<compile_context>
chip_gen: v5e
topology: v5e:2x2
jax: 0.10.0
libtpu: 0.0.40
codegen_flags: <defaults>
</compile_context>

<pallas_src>
import jax
import jax.numpy as jnp
from jax.experimental import pallas as pl
from jax.experimental.pallas import tpu as pltpu

IMG = 32          # img_height == img_width
BASE = 16         # "base" (scaled down from 128 for a small test)
CHANNEL = 3
LATENT = 100

CPAD = 128                      # lane-dense channel padding
VMEM_LIMIT = 48 * 1024 * 1024   # explicit scoped-VMEM budget (< v7x 64 MiB)


def _round_up(x, m):
    return (x + m - 1) // m * m


def _pick_tile(n, candidates):
    for c in candidates:
        if n % c == 0:
            return c
    return n


# ---------------------------------------------------------------------------
# Pallas kernels
# ---------------------------------------------------------------------------
def _mm_bn_stats_kernel(a_ref, b_ref, y_ref, stats_ref):
    """bf16 x bf16 tiled matmul, f32 accumulation directly into the resident
    output block (no scratch).  On the last K step it also writes per-column
    sum / sum^2 partials used by the fused BatchNorm."""
    k = pl.program_id(2)

    @pl.when(k == 0)
    def _():
        y_ref[...] = jnp.zeros_like(y_ref)

    y_ref[...] += jnp.dot(a_ref[...], b_ref[...],
                          preferred_element_type=jnp.float32)

    @pl.when(k == pl.num_programs(2) - 1)
    def _():
        y = y_ref[...]
        s1 = jnp.sum(y, axis=0, keepdims=True)        # (1, TN)
        s2 = jnp.sum(y * y, axis=0, keepdims=True)    # (1, TN)
        stats_ref[0] = jnp.concatenate([s1, s2], axis=0)


def _mm_tanh_kernel(a_ref, b_ref, y_ref):
    """Same tiled matmul with tanh fused into the final K step (last layer)."""
    k = pl.program_id(2)

    @pl.when(k == 0)
    def _():
        y_ref[...] = jnp.zeros_like(y_ref)

    y_ref[...] += jnp.dot(a_ref[...], b_ref[...],
                          preferred_element_type=jnp.float32)

    @pl.when(k == pl.num_programs(2) - 1)
    def _():
        y_ref[...] = jnp.tanh(y_ref[...])


def _scale_shift_relu_kernel(y_ref, s_ref, t_ref, o_ref):
    """Fused BatchNorm affine (precomputed per-column scale/shift) + ReLU."""
    y = y_ref[...] * s_ref[...] + t_ref[...]
    o_ref[...] = jnp.maximum(y, 0.0).astype(o_ref.dtype)


# ---------------------------------------------------------------------------
# Pallas wrappers
# ---------------------------------------------------------------------------
def _matmul_grid(a, b, tk=128):
    """Shared tiling / zero-padding for the matmul kernels.

    tk=128 keeps v5e's 4x128^2 MXU happy; on v6e/v7x tk=256 halves vmatmul
    pushes when K allows it.
    """
    M, K = a.shape
    K2, Ntot = b.shape
    TM = min(256, _round_up(M, 16))
    TN = _pick_tile(Ntot, (512, 256, 128))
    Mp = _round_up(M, TM)
    Kp = _round_up(K, tk)
    if (Mp, Kp) != (M, K):
        a = jnp.pad(a, ((0, Mp - M), (0, Kp - K)))
    if Kp != K2:
        b = jnp.pad(b, ((0, Kp - K2), (0, 0)))
    grid = (Mp // TM, Ntot // TN, Kp // tk)
    in_specs = [pl.BlockSpec((TM, tk), lambda i, j, k: (i, k)),
                pl.BlockSpec((tk, TN), lambda i, j, k: (k, j))]
    y_spec = pl.BlockSpec((TM, TN), lambda i, j, k: (i, j))
    return a, b, grid, in_specs, y_spec, (Mp, Ntot, TM, TN)


def matmul_bn_stats(a, b):
    """(M, K) @ (K, Ntot) in bf16 with f32 accumulation.

    Returns the f32 product (M zero-padded to the tile size) plus per-row-tile
    column sum / sum^2 partials for the fused BatchNorm statistics.
    """
    a, b, grid, in_specs, y_spec, (Mp, Ntot, _, TN) = _matmul_grid(a, b)
    gM = grid[0]
    y, stats = pl.pallas_call(
        _mm_bn_stats_kernel,
        out_shape=(jax.ShapeDtypeStruct((Mp, Ntot), jnp.float32),
                   jax.ShapeDtypeStruct((gM, 2, Ntot), jnp.float32)),
        grid_spec=pltpu.PrefetchScalarGridSpec(
            num_scalar_prefetch=0,
            grid=grid,
            in_specs=in_specs,
            out_specs=[y_spec,
                       pl.BlockSpec((1, 2, TN), lambda i, j, k: (i, 0, j))]),
        compiler_params=pltpu.CompilerParams(
            dimension_semantics=("parallel", "parallel", "arbitrary"),
            vmem_limit_bytes=VMEM_LIMIT),
    )(a, b)
    return y, stats


def matmul_tanh(a, b):
    """(M, K) @ (K, Ntot) in bf16 with tanh fused into the epilogue."""
    a, b, grid, in_specs, y_spec, (Mp, Ntot, _, _) = _matmul_grid(a, b)
    return pl.pallas_call(
        _mm_tanh_kernel,
        out_shape=jax.ShapeDtypeStruct((Mp, Ntot), jnp.float32),
        grid_spec=pltpu.PrefetchScalarGridSpec(
            num_scalar_prefetch=0,
            grid=grid,
            in_specs=in_specs,
            out_specs=y_spec),
        compiler_params=pltpu.CompilerParams(
            dimension_semantics=("parallel", "parallel", "arbitrary"),
            vmem_limit_bytes=VMEM_LIMIT),
    )(a, b)


def scale_shift_relu(y, scale, shift):
    """M-tiled (y * scale + shift) -> ReLU -> bf16 (next layer's input)."""
    Mp, Ntot = y.shape
    TMe = _pick_tile(Mp, (512, 256, 128, 64, 32, 16, 8))
    return pl.pallas_call(
        _scale_shift_relu_kernel,
        out_shape=jax.ShapeDtypeStruct((Mp, Ntot), jnp.bfloat16),
        grid_spec=pltpu.PrefetchScalarGridSpec(
            num_scalar_prefetch=0,
            grid=(Mp // TMe,),
            in_specs=[pl.BlockSpec((TMe, Ntot), lambda i: (i, 0)),
                      pl.BlockSpec((1, Ntot), lambda i: (0, 0)),
                      pl.BlockSpec((1, Ntot), lambda i: (0, 0))],
            out_specs=pl.BlockSpec((TMe, Ntot), lambda i: (i, 0))),
        compiler_params=pltpu.CompilerParams(
            dimension_semantics=("parallel",),
            vmem_limit_bytes=VMEM_LIMIT),
    )(y, scale, shift)


# ---------------------------------------------------------------------------
# Glue: weights, patches, BN statistics, phase interleave (tiny / XLA-side)
# ---------------------------------------------------------------------------
def _bn_scale_shift(stats, groups, count, gamma_p, beta_p, eps=1e-5):
    """Reduce per-tile matmul partials to per-column BN scale/shift.

    stats: (gM, 2, groups*Cp); each real channel appears once per column group.
    Padded (all-zero) channels get mean=0, var=0 -> output stays exactly zero.
    """
    cp = gamma_p.shape[0]
    s = stats.sum(axis=0).reshape(2, groups, cp).sum(axis=1)   # (2, Cp)
    mean = s[0] / count
    var = jnp.maximum(s[1] / count - mean * mean, 0.0)  # biased var (training BN)
    scale_c = gamma_p * jax.lax.rsqrt(var + eps)
    shift_c = beta_p - mean * scale_c
    scale = jnp.tile(scale_c, groups)[None, :]
    shift = jnp.tile(shift_c, groups)[None, :]
    return scale.astype(jnp.float32), shift.astype(jnp.float32)


def _pad_channels(v, size, fill):
    if v.shape[0] == size:
        return v
    return jnp.concatenate([v, jnp.full((size - v.shape[0],), fill, v.dtype)])


def _convt_taps(x):
    """3x3-tap patches of the 1-padded input, shared by all 4 output phases.

    x: (N, H, W, Cp) bf16  ->  (N*H*W, 9*Cp) bf16
    """
    n, h, w, c = x.shape
    xp = jnp.pad(x, ((0, 0), (1, 1), (1, 1), (0, 0)))
    taps = [xp[:, dy:dy + h, dx:dx + w, :]
            for dy in range(3) for dx in range(3)]
    return jnp.concatenate(taps, axis=-1).reshape(n * h * w, 9 * c)


def _convt_weight(w, ci_pad, co_pad):
    """ConvTranspose2d(k=4,s=2,p=1) weight (Ci,Co,4,4) -> (9*ci_pad, 4*co_pad).

    Output phase p = 2*py+px at input position (t,s) only needs the 2x2 window
    starting at (t+py, s+px) of the 1-padded input; tap (dy,dx) of the shared
    3x3 window multiplies kernel element (3+py-2*dy, 3+px-2*dx).
    """
    ci, co = w.shape[0], w.shape[1]
    wm = jnp.zeros((9, ci_pad, 4, co_pad), jnp.float32)
    for py in range(2):
        for px in range(2):
            p = py * 2 + px
            for dy in (py, py + 1):
                for dx in (px, px + 1):
                    q = dy * 3 + dx
                    ky = 3 + py - 2 * dy
                    kx = 3 + px - 2 * dx
                    wm = wm.at[q, :ci, p, :co].set(w[:, :, ky, kx])
    return wm.reshape(9 * ci_pad, 4 * co_pad).astype(jnp.bfloat16)


def _interleave_phases(y, n, h, w, cp):
    """(n*h*w, 4*cp) phase-major columns -> (n, 2h, 2w, cp)."""
    y = y.reshape(n, h, w, 2, 2, cp)
    y = jnp.transpose(y, (0, 1, 3, 2, 4, 5))
    return y.reshape(n, 2 * h, 2 * w, cp)


def _lin_weight(w, co_pad):
    """ConvTranspose2d(LATENT, C, k=kh, s=1) on a 1x1 input == matmul.

    w: (LATENT, C, kh, kw) -> (LATENT, kh*kw*co_pad), columns ordered (ky,kx,c).
    """
    ci, co, kh, kw = w.shape
    wt = jnp.transpose(w, (0, 2, 3, 1))
    wt = jnp.pad(wt, ((0, 0), (0, 0), (0, 0), (0, co_pad - co)))
    return wt.reshape(ci, kh * kw * co_pad).astype(jnp.bfloat16)


# ---------------------------------------------------------------------------
# Parameters (deterministic synthetic init)
# ---------------------------------------------------------------------------
def init_params(key):
    in_hw = IMG // 16
    ks = jax.random.split(key, 5)
    p = {}
    p["lin_w"] = 0.02 * jax.random.normal(
        ks[0], (LATENT, BASE * 8, in_hw, in_hw), jnp.float32)
    p["l1_w"] = 0.02 * jax.random.normal(ks[1], (BASE * 8, BASE * 4, 4, 4), jnp.float32)
    p["l2_w"] = 0.02 * jax.random.normal(ks[2], (BASE * 4, BASE * 2, 4, 4), jnp.float32)
    p["l3_w"] = 0.02 * jax.random.normal(ks[3], (BASE * 2, BASE, 4, 4), jnp.float32)
    p["l4_w"] = 0.02 * jax.random.normal(ks[4], (BASE, CHANNEL, 4, 4), jnp.float32)
    for name, c in [("bnin", BASE * 8), ("bn1", BASE * 4),
                    ("bn2", BASE * 2), ("bn3", BASE)]:
        p[name + "_g"] = jnp.ones((c,), jnp.float32)    # BatchNorm weight init
        p[name + "_b"] = jnp.zeros((c,), jnp.float32)   # BatchNorm bias init
    return p


# ---------------------------------------------------------------------------
# Forward pass (mirrors Generator.forward)
# ---------------------------------------------------------------------------
def generator_forward(params, z):
    # z: (N, 100, 1, 1) NCHW, like the PyTorch module expects.
    n = z.shape[0]
    khw = IMG // 16
    z2 = z.reshape(n, LATENT).astype(jnp.bfloat16)

    # ---- lin: ConvTranspose2d(100, base*8, k=khw, s=1) on 1x1 + BN + ReLU --
    c8p = _round_up(BASE * 8, CPAD)
    y, st = matmul_bn_stats(z2, _lin_weight(params["lin_w"], c8p))
    scale, shift = _bn_scale_shift(
        st, khw * khw, n * khw * khw,
        _pad_channels(params["bnin_g"], c8p, 1.0),
        _pad_channels(params["bnin_b"], c8p, 0.0))
    x = scale_shift_relu(y, scale, shift)[:n]
    x = x.reshape(n, khw, khw, c8p)

    # ---- l1..l3: ConvTranspose2d(k=4, s=2, p=1) + BN + ReLU ---------------
    for wname, bn, co in (("l1_w", "bn1", BASE * 4),
                          ("l2_w", "bn2", BASE * 2),
                          ("l3_w", "bn3", BASE)):
        _, h, w, cip = x.shape
        cop = _round_up(co, CPAD)
        y, st = matmul_bn_stats(_convt_taps(x),
                                _convt_weight(params[wname], cip, cop))
        scale, shift = _bn_scale_shift(
            st, 4, n * (2 * h) * (2 * w),
            _pad_channels(params[bn + "_g"], cop, 1.0),
            _pad_channels(params[bn + "_b"], cop, 0.0))
        yb = scale_shift_relu(y, scale, shift)[:n * h * w]
        x = _interleave_phases(yb, n, h, w, cop)

    # ---- l4: ConvTranspose2d(base, channel, k=4, s=2, p=1) + tanh ---------
    _, h, w, cip = x.shape
    cop = _round_up(CHANNEL, CPAD)
    y = matmul_tanh(_convt_taps(x),
                    _convt_weight(params["l4_w"], cip, cop))[:n * h * w]
    x = _interleave_phases(y, n, h, w, cop)[..., :CHANNEL]
    return jnp.transpose(x, (0, 3, 1, 2))   # NHWC -> NCHW (PyTorch convention)


if __name__ == "__main__":
    key = jax.random.PRNGKey(0)
    pkey, zkey = jax.random.split(key)
    params = init_params(pkey)
    z = jax.random.normal(zkey, (2, LATENT, 1, 1), jnp.float32)

    out = jax.jit(generator_forward)(params, z)
    out = jax.block_until_ready(out)

    assert out.shape == (2, CHANNEL, IMG, IMG), out.shape
    assert out.dtype == jnp.float32, out.dtype
    assert bool(jnp.all(jnp.isfinite(out)))
    assert bool(jnp.all(jnp.abs(out) <= 1.0 + 1e-5))   # tanh range
    print("KERNEL_OK")
</pallas_src>

<mosaic_0001>
module attributes {stable_mosaic.version = 11 : i64} {
  func.func @_scale_shift_relu_kernel(%arg0: i32, %arg1: memref<16x512xf32, #tpu.memory_space<vmem>>, %arg2: memref<1x512xf32, #tpu.memory_space<vmem>>, %arg3: memref<1x512xf32, #tpu.memory_space<vmem>>, %arg4: memref<16x512xbf16, #tpu.memory_space<vmem>>) attributes {dimension_semantics = [#tpu.dimension_semantics<parallel>], iteration_bounds = array<i64: 1>, scalar_prefetch = 0 : i64, scratch_operands = 0 : i64, tpu.core_type = #tpu.core_type<tc>, window_params = [{transform_indices = @transform_0, window_bounds = array<i64: 16, 512>}, {pipeline_mode = #tpu.pipeline_mode<synchronous>, transform_indices = @transform_1, window_bounds = array<i64: 1, 512>}, {pipeline_mode = #tpu.pipeline_mode<synchronous>, transform_indices = @transform_2, window_bounds = array<i64: 1, 512>}, {transform_indices = @transform_3, window_bounds = array<i64: 16, 512>}]} {
    %c0 = arith.constant 0 : index
    %c0_0 = arith.constant 0 : index
    %0 = vector.load %arg1[%c0, %c0_0] : memref<16x512xf32, #tpu.memory_space<vmem>>, vector<16x512xf32>
    %c0_1 = arith.constant 0 : index
    %c0_2 = arith.constant 0 : index
    %1 = vector.load %arg2[%c0_1, %c0_2] : memref<1x512xf32, #tpu.memory_space<vmem>>, vector<1x512xf32>
    %2 = vector.broadcast %1 : vector<1x512xf32> to vector<16x512xf32>
    %3 = arith.mulf %0, %2 : vector<16x512xf32>
    %c0_3 = arith.constant 0 : index
    %c0_4 = arith.constant 0 : index
    %4 = vector.load %arg3[%c0_3, %c0_4] : memref<1x512xf32, #tpu.memory_space<vmem>>, vector<1x512xf32>
    %5 = vector.broadcast %4 : vector<1x512xf32> to vector<16x512xf32>
    %6 = arith.addf %3, %5 : vector<16x512xf32>
    %cst = arith.constant 0.000000e+00 : f32
    %7 = vector.broadcast %cst : f32 to vector<16x512xf32>
    %8 = arith.maximumf %6, %7 : vector<16x512xf32>
    %9 = arith.truncf %8 : vector<16x512xf32> to vector<16x512xbf16>
    %c0_5 = arith.constant 0 : index
    %c0_6 = arith.constant 0 : index
    %10 = vector.load %arg4[%c0_5, %c0_6] : memref<16x512xbf16, #tpu.memory_space<vmem>>, vector<16x512xbf16>
    tpu.vector_store %arg4[%c0_5, %c0_6], %9 {strides = array<i32>} : memref<16x512xbf16, #tpu.memory_space<vmem>>, vector<16x512xbf16>,
    return
  }
  func.func @transform_0(%arg0: i32) -> (i32, i32) {
    %c0_i32 = arith.constant 0 : i32
    %c0_i32_0 = arith.constant 0 : i32
    return %arg0, %c0_i32 : i32, i32
  }
  func.func @transform_1(%arg0: i32) -> (i32, i32) {
    %c0_i32 = arith.constant 0 : i32
    %c0_i32_0 = arith.constant 0 : i32
    %c0_i32_1 = arith.constant 0 : i32
    return %c0_i32, %c0_i32_0 : i32, i32
  }
  func.func @transform_2(%arg0: i32) -> (i32, i32) {
    %c0_i32 = arith.constant 0 : i32
    %c0_i32_0 = arith.constant 0 : i32
    %c0_i32_1 = arith.constant 0 : i32
    return %c0_i32, %c0_i32_0 : i32, i32
  }
  func.func @transform_3(%arg0: i32) -> (i32, i32) {
    %c0_i32 = arith.constant 0 : i32
    %c0_i32_0 = arith.constant 0 : i32
    return %arg0, %c0_i32 : i32, i32
  }
}

module attributes {stable_mosaic.version = 11 : i64} {
  func.func @_mm_bn_stats_kernel(%arg0: i32, %arg1: i32, %arg2: i32, %arg3: memref<16x128xbf16, #tpu.memory_space<vmem>>, %arg4: memref<128x512xbf16, #tpu.memory_space<vmem>>, %arg5: memref<16x512xf32, #tpu.memory_space<vmem>>, %arg6: memref<1x2x512xf32, #tpu.memory_space<vmem>>) attributes {dimension_semantics = [#tpu.dimension_semantics<parallel>, #tpu.dimension_semantics<parallel>, #tpu.dimension_semantics<arbitrary>], iteration_bounds = array<i64: 1, 1, 1>, scalar_prefetch = 0 : i64, scratch_operands = 0 : i64, tpu.core_type = #tpu.core_type<tc>, window_params = [{transform_indices = @transform_0, window_bounds = array<i64: 16, 128>}, {transform_indices = @transform_1, window_bounds = array<i64: 128, 512>}, {transform_indices = @transform_2, window_bounds = array<i64: 16, 512>}, {transform_indices = @transform_3, window_bounds = array<i64: 1, 2, 512>}]} {
    %c0_i32 = arith.constant 0 : i32
    %0 = arith.cmpi eq, %arg2, %c0_i32 : i32
    %1 = arith.extui %0 : i1 to i32
    %c0_i32_0 = arith.constant 0 : i32
    %2 = arith.cmpi ne, %1, %c0_i32_0 : i32
    scf.if %2 {
      %cst_10 = arith.constant 0.000000e+00 : f32
      %12 = vector.broadcast %cst_10 : f32 to vector<16x512xf32>
      %c0_11 = arith.constant 0 : index
      %c0_12 = arith.constant 0 : index
      %13 = vector.load %arg5[%c0_11, %c0_12] : memref<16x512xf32, #tpu.memory_space<vmem>>, vector<16x512xf32>
      tpu.vector_store %arg5[%c0_11, %c0_12], %12 {strides = array<i32>} : memref<16x512xf32, #tpu.memory_space<vmem>>, vector<16x512xf32>,
    } else {
    }
    %c0 = arith.constant 0 : index
    %c0_1 = arith.constant 0 : index
    %3 = vector.load %arg5[%c0, %c0_1] : memref<16x512xf32, #tpu.memory_space<vmem>>, vector<16x512xf32>
    %c0_2 = arith.constant 0 : index
    %c0_3 = arith.constant 0 : index
    %4 = vector.load %arg3[%c0_2, %c0_3] : memref<16x128xbf16, #tpu.memory_space<vmem>>, vector<16x128xbf16>
    %c0_4 = arith.constant 0 : index
    %c0_5 = arith.constant 0 : index
    %5 = vector.load %arg4[%c0_4, %c0_5] : memref<128x512xbf16, #tpu.memory_space<vmem>>, vector<128x512xbf16>
    %cst = arith.constant dense<0.000000e+00> : vector<16x512xf32>
    %6 = tpu.matmul %4, %5, %cst {dimension_numbers = #tpu.dot_dimension_numbers<[1], [0], [0], [1], [0, 0, 1, 1], [], []>} : vector<16x128xbf16>, vector<128x512xbf16>, vector<16x512xf32> -> vector<16x512xf32>
    %7 = arith.addf %3, %6 : vector<16x512xf32>
    %c0_6 = arith.constant 0 : index
    %c0_7 = arith.constant 0 : index
    %8 = vector.load %arg5[%c0_6, %c0_7] : memref<16x512xf32, #tpu.memory_space<vmem>>, vector<16x512xf32>
    tpu.vector_store %arg5[%c0_6, %c0_7], %7 {strides = array<i32>} : memref<16x512xf32, #tpu.memory_space<vmem>>, vector<16x512xf32>,
    %c0_i32_8 = arith.constant 0 : i32
    %9 = arith.cmpi eq, %arg2, %c0_i32_8 : i32
    %10 = arith.extui %9 : i1 to i32
    %c0_i32_9 = arith.constant 0 : i32
    %11 = arith.cmpi ne, %10, %c0_i32_9 : i32
    scf.if %11 {
      %c0_10 = arith.constant 0 : index
      %c0_11 = arith.constant 0 : index
      %12 = vector.load %arg5[%c0_10, %c0_11] : memref<16x512xf32, #tpu.memory_space<vmem>>, vector<16x512xf32>
      %cst_12 = arith.constant dense<0.000000e+00> : vector<512xf32>
      %13 = vector.multi_reduction <add>, %12, %cst_12 [0] : vector<16x512xf32> to vector<512xf32>
      %14 = vector.shape_cast %13 : vector<512xf32> to vector<1x512xf32>
      %15 = arith.mulf %12, %12 : vector<16x512xf32>
      %cst_13 = arith.constant dense<0.000000e+00> : vector<512xf32>
      %16 = vector.multi_reduction <add>, %15, %cst_13 [0] : vector<16x512xf32> to vector<512xf32>
      %17 = vector.shape_cast %16 : vector<512xf32> to vector<1x512xf32>
      %18 = tpu.concatenate %14, %17 in 0 : vector<1x512xf32>, vector<1x512xf32> -> vector<2x512xf32>
      %c0_14 = arith.constant 0 : index
      %c0_15 = arith.constant 0 : index
      %c0_16 = arith.constant 0 : index
      %19 = vector.load %arg6[%c0_14, %c0_15, %c0_16] : memref<1x2x512xf32, #tpu.memory_space<vmem>>, vector<1x2x512xf32>
      %20 = vector.shape_cast %19 : vector<1x2x512xf32> to vector<2x512xf32>
      %21 = vector.shape_cast %18 : vector<2x512xf32> to vector<1x2x512xf32>
      tpu.vector_store %arg6[%c0_14, %c0_15, %c0_16], %21 {strides = array<i32>} : memref<1x2x512xf32, #tpu.memory_space<vmem>>, vector<1x2x512xf32>,
    } else {
    }
    return
  }
  func.func @transform_0(%arg0: i32, %arg1: i32, %arg2: i32) -> (i32, i32) {
    %c0_i32 = arith.constant 0 : i32
    return %arg0, %arg2 : i32, i32
  }
  func.func @transform_1(%arg0: i32, %arg1: i32, %arg2: i32) -> (i32, i32) {
    %c0_i32 = arith.constant 0 : i32
    return %arg2, %arg1 : i32, i32
  }
  func.func @transform_2(%arg0: i32, %arg1: i32, %arg2: i32) -> (i32, i32) {
    %c0_i32 = arith.constant 0 : i32
    return %arg0, %arg1 : i32, i32
  }
  func.func @transform_3(%arg0: i32, %arg1: i32, %arg2: i32) -> (i32, i32, i32) {
    %c0_i32 = arith.constant 0 : i32
    %c0_i32_0 = arith.constant 0 : i32
    return %arg0, %c0_i32, %arg1 : i32, i32, i32
  }
}

module attributes {stable_mosaic.version = 11 : i64} {
  func.func @_mm_bn_stats_kernel(%arg0: i32, %arg1: i32, %arg2: i32, %arg3: memref<16x128xbf16, #tpu.memory_space<vmem>>, %arg4: memref<128x512xbf16, #tpu.memory_space<vmem>>, %arg5: memref<16x512xf32, #tpu.memory_space<vmem>>, %arg6: memref<1x2x512xf32, #tpu.memory_space<vmem>>) attributes {dimension_semantics = [#tpu.dimension_semantics<parallel>, #tpu.dimension_semantics<parallel>, #tpu.dimension_semantics<arbitrary>], iteration_bounds = array<i64: 1, 1, 9>, scalar_prefetch = 0 : i64, scratch_operands = 0 : i64, tpu.core_type = #tpu.core_type<tc>, window_params = [{transform_indices = @transform_0, window_bounds = array<i64: 16, 128>}, {transform_indices = @transform_1, window_bounds = array<i64: 128, 512>}, {transform_indices = @transform_2, window_bounds = array<i64: 16, 512>}, {transform_indices = @transform_3, window_bounds = array<i64: 1, 2, 512>}]} {
    %c0_i32 = arith.constant 0 : i32
    %0 = arith.cmpi eq, %arg2, %c0_i32 : i32
    %1 = arith.extui %0 : i1 to i32
    %c0_i32_0 = arith.constant 0 : i32
    %2 = arith.cmpi ne, %1, %c0_i32_0 : i32
    scf.if %2 {
      %cst_9 = arith.constant 0.000000e+00 : f32
      %12 = vector.broadcast %cst_9 : f32 to vector<16x512xf32>
      %c0_10 = arith.constant 0 : index
      %c0_11 = arith.constant 0 : index
      %13 = vector.load %arg5[%c0_10, %c0_11] : memref<16x512xf32, #tpu.memory_space<vmem>>, vector<16x512xf32>
      tpu.vector_store %arg5[%c0_10, %c0_11], %12 {strides = array<i32>} : memref<16x512xf32, #tpu.memory_space<vmem>>, vector<16x512xf32>,
    } else {
    }
    %c0 = arith.constant 0 : index
    %c0_1 = arith.constant 0 : index
    %3 = vector.load %arg5[%c0, %c0_1] : memref<16x512xf32, #tpu.memory_space<vmem>>, vector<16x512xf32>
    %c0_2 = arith.constant 0 : index
    %c0_3 = arith.constant 0 : index
    %4 = vector.load %arg3[%c0_2, %c0_3] : memref<16x128xbf16, #tpu.memory_space<vmem>>, vector<16x128xbf16>
    %c0_4 = arith.constant 0 : index
    %c0_5 = arith.constant 0 : index
    %5 = vector.load %arg4[%c0_4, %c0_5] : memref<128x512xbf16, #tpu.memory_space<vmem>>, vector<128x512xbf16>
    %cst = arith.constant dense<0.000000e+00> : vector<16x512xf32>
    %6 = tpu.matmul %4, %5, %cst {dimension_numbers = #tpu.dot_dimension_numbers<[1], [0], [0], [1], [0, 0, 1, 1], [], []>} : vector<16x128xbf16>, vector<128x512xbf16>, vector<16x512xf32> -> vector<16x512xf32>
    %7 = arith.addf %3, %6 : vector<16x512xf32>
    %c0_6 = arith.constant 0 : index
    %c0_7 = arith.constant 0 : index
    %8 = vector.load %arg5[%c0_6, %c0_7] : memref<16x512xf32, #tpu.memory_space<vmem>>, vector<16x512xf32>
    tpu.vector_store %arg5[%c0_6, %c0_7], %7 {strides = array<i32>} : memref<16x512xf32, #tpu.memory_space<vmem>>, vector<16x512xf32>,
    %c8_i32 = arith.constant 8 : i32
    %9 = arith.cmpi eq, %arg2, %c8_i32 : i32
    %10 = arith.extui %9 : i1 to i32
    %c0_i32_8 = arith.constant 0 : i32
    %11 = arith.cmpi ne, %10, %c0_i32_8 : i32
    scf.if %11 {
      %c0_9 = arith.constant 0 : index
      %c0_10 = arith.constant 0 : index
      %12 = vector.load %arg5[%c0_9, %c0_10] : memref<16x512xf32, #tpu.memory_space<vmem>>, vector<16x512xf32>
      %cst_11 = arith.constant dense<0.000000e+00> : vector<512xf32>
      %13 = vector.multi_reduction <add>, %12, %cst_11 [0] : vector<16x512xf32> to vector<512xf32>
      %14 = vector.shape_cast %13 : vector<512xf32> to vector<1x512xf32>
      %15 = arith.mulf %12, %12 : vector<16x512xf32>
      %cst_12 = arith.constant dense<0.000000e+00> : vector<512xf32>
      %16 = vector.multi_reduction <add>, %15, %cst_12 [0] : vector<16x512xf32> to vector<512xf32>
      %17 = vector.shape_cast %16 : vector<512xf32> to vector<1x512xf32>
      %18 = tpu.concatenate %14, %17 in 0 : vector<1x512xf32>, vector<1x512xf32> -> vector<2x512xf32>
      %c0_13 = arith.constant 0 : index
      %c0_14 = arith.constant 0 : index
      %c0_15 = arith.constant 0 : index
      %19 = vector.load %arg6[%c0_13, %c0_14, %c0_15] : memref<1x2x512xf32, #tpu.memory_space<vmem>>, vector<1x2x512xf32>
      %20 = vector.shape_cast %19 : vector<1x2x512xf32> to vector<2x512xf32>
      %21 = vector.shape_cast %18 : vector<2x512xf32> to vector<1x2x512xf32>
      tpu.vector_store %arg6[%c0_13, %c0_14, %c0_15], %21 {strides = array<i32>} : memref<1x2x512xf32, #tpu.memory_space<vmem>>, vector<1x2x512xf32>,
    } else {
    }
    return
  }
  func.func @transform_0(%arg0: i32, %arg1: i32, %arg2: i32) -> (i32, i32) {
    %c0_i32 = arith.constant 0 : i32
    return %arg0, %arg2 : i32, i32
  }
  func.func @transform_1(%arg0: i32, %arg1: i32, %arg2: i32) -> (i32, i32) {
    %c0_i32 = arith.constant 0 : i32
    return %arg2, %arg1 : i32, i32
  }
  func.func @transform_2(%arg0: i32, %arg1: i32, %arg2: i32) -> (i32, i32) {
    %c0_i32 = arith.constant 0 : i32
    return %arg0, %arg1 : i32, i32
  }
  func.func @transform_3(%arg0: i32, %arg1: i32, %arg2: i32) -> (i32, i32, i32) {
    %c0_i32 = arith.constant 0 : i32
    %c0_i32_0 = arith.constant 0 : i32
    return %arg0, %c0_i32, %arg1 : i32, i32, i32
  }
}

module attributes {stable_mosaic.version = 11 : i64} {
  func.func @_mm_bn_stats_kernel(%arg0: i32, %arg1: i32, %arg2: i32, %arg3: memref<32x128xbf16, #tpu.memory_space<vmem>>, %arg4: memref<128x512xbf16, #tpu.memory_space<vmem>>, %arg5: memref<32x512xf32, #tpu.memory_space<vmem>>, %arg6: memref<1x2x512xf32, #tpu.memory_space<vmem>>) attributes {dimension_semantics = [#tpu.dimension_semantics<parallel>, #tpu.dimension_semantics<parallel>, #tpu.dimension_semantics<arbitrary>], iteration_bounds = array<i64: 1, 1, 9>, scalar_prefetch = 0 : i64, scratch_operands = 0 : i64, tpu.core_type = #tpu.core_type<tc>, window_params = [{transform_indices = @transform_0, window_bounds = array<i64: 32, 128>}, {transform_indices = @transform_1, window_bounds = array<i64: 128, 512>}, {transform_indices = @transform_2, window_bounds = array<i64: 32, 512>}, {transform_indices = @transform_3, window_bounds = array<i64: 1, 2, 512>}]} {
    %c0_i32 = arith.constant 0 : i32
    %0 = arith.cmpi eq, %arg2, %c0_i32 : i32
    %1 = arith.extui %0 : i1 to i32
    %c0_i32_0 = arith.constant 0 : i32
    %2 = arith.cmpi ne, %1, %c0_i32_0 : i32
    scf.if %2 {
      %cst_9 = arith.constant 0.000000e+00 : f32
      %12 = vector.broadcast %cst_9 : f32 to vector<32x512xf32>
      %c0_10 = arith.constant 0 : index
      %c0_11 = arith.constant 0 : index
      %13 = vector.load %arg5[%c0_10, %c0_11] : memref<32x512xf32, #tpu.memory_space<vmem>>, vector<32x512xf32>
      tpu.vector_store %arg5[%c0_10, %c0_11], %12 {strides = array<i32>} : memref<32x512xf32, #tpu.memory_space<vmem>>, vector<32x512xf32>,
    } else {
    }
    %c0 = arith.constant 0 : index
    %c0_1 = arith.constant 0 : index
    %3 = vector.load %arg5[%c0, %c0_1] : memref<32x512xf32, #tpu.memory_space<vmem>>, vector<32x512xf32>
    %c0_2 = arith.constant 0 : index
    %c0_3 = arith.constant 0 : index
    %4 = vector.load %arg3[%c0_2, %c0_3] : memref<32x128xbf16, #tpu.memory_space<vmem>>, vector<32x128xbf16>
    %c0_4 = arith.constant 0 : index
    %c0_5 = arith.constant 0 : index
    %5 = vector.load %arg4[%c0_4, %c0_5] : memref<128x512xbf16, #tpu.memory_space<vmem>>, vector<128x512xbf16>
    %cst = arith.constant dense<0.000000e+00> : vector<32x512xf32>
    %6 = tpu.matmul %4, %5, %cst {dimension_numbers = #tpu.dot_dimension_numbers<[1], [0], [0], [1], [0, 0, 1, 1], [], []>} : vector<32x128xbf16>, vector<128x512xbf16>, vector<32x512xf32> -> vector<32x512xf32>
    %7 = arith.addf %3, %6 : vector<32x512xf32>
    %c0_6 = arith.constant 0 : index
    %c0_7 = arith.constant 0 : index
    %8 = vector.load %arg5[%c0_6, %c0_7] : memref<32x512xf32, #tpu.memory_space<vmem>>, vector<32x512xf32>
    tpu.vector_store %arg5[%c0_6, %c0_7], %7 {strides = array<i32>} : memref<32x512xf32, #tpu.memory_space<vmem>>, vector<32x512xf32>,
    %c8_i32 = arith.constant 8 : i32
    %9 = arith.cmpi eq, %arg2, %c8_i32 : i32
    %10 = arith.extui %9 : i1 to i32
    %c0_i32_8 = arith.constant 0 : i32
    %11 = arith.cmpi ne, %10, %c0_i32_8 : i32
    scf.if %11 {
      %c0_9 = arith.constant 0 : index
      %c0_10 = arith.constant 0 : index
      %12 = vector.load %arg5[%c0_9, %c0_10] : memref<32x512xf32, #tpu.memory_space<vmem>>, vector<32x512xf32>
      %cst_11 = arith.constant dense<0.000000e+00> : vector<512xf32>
      %13 = vector.multi_reduction <add>, %12, %cst_11 [0] : vector<32x512xf32> to vector<512xf32>
      %14 = vector.shape_cast %13 : vector<512xf32> to vector<1x512xf32>
      %15 = arith.mulf %12, %12 : vector<32x512xf32>
      %cst_12 = arith.constant dense<0.000000e+00> : vector<512xf32>
      %16 = vector.multi_reduction <add>, %15, %cst_12 [0] : vector<32x512xf32> to vector<512xf32>
      %17 = vector.shape_cast %16 : vector<512xf32> to vector<1x512xf32>
      %18 = tpu.concatenate %14, %17 in 0 : vector<1x512xf32>, vector<1x512xf32> -> vector<2x512xf32>
      %c0_13 = arith.constant 0 : index
      %c0_14 = arith.constant 0 : index
      %c0_15 = arith.constant 0 : index
      %19 = vector.load %arg6[%c0_13, %c0_14, %c0_15] : memref<1x2x512xf32, #tpu.memory_space<vmem>>, vector<1x2x512xf32>
      %20 = vector.shape_cast %19 : vector<1x2x512xf32> to vector<2x512xf32>
      %21 = vector.shape_cast %18 : vector<2x512xf32> to vector<1x2x512xf32>
      tpu.vector_store %arg6[%c0_13, %c0_14, %c0_15], %21 {strides = array<i32>} : memref<1x2x512xf32, #tpu.memory_space<vmem>>, vector<1x2x512xf32>,
    } else {
    }
    return
  }
  func.func @transform_0(%arg0: i32, %arg1: i32, %arg2: i32) -> (i32, i32) {
    %c0_i32 = arith.constant 0 : i32
    return %arg0, %arg2 : i32, i32
  }
  func.func @transform_1(%arg0: i32, %arg1: i32, %arg2: i32) -> (i32, i32) {
    %c0_i32 = arith.constant 0 : i32
    return %arg2, %arg1 : i32, i32
  }
  func.func @transform_2(%arg0: i32, %arg1: i32, %arg2: i32) -> (i32, i32) {
    %c0_i32 = arith.constant 0 : i32
    return %arg0, %arg1 : i32, i32
  }
  func.func @transform_3(%arg0: i32, %arg1: i32, %arg2: i32) -> (i32, i32, i32) {
    %c0_i32 = arith.constant 0 : i32
    %c0_i32_0 = arith.constant 0 : i32
    return %arg0, %c0_i32, %arg1 : i32, i32, i32
  }
}

module attributes {stable_mosaic.version = 11 : i64} {
  func.func @_scale_shift_relu_kernel(%arg0: i32, %arg1: memref<32x512xf32, #tpu.memory_space<vmem>>, %arg2: memref<1x512xf32, #tpu.memory_space<vmem>>, %arg3: memref<1x512xf32, #tpu.memory_space<vmem>>, %arg4: memref<32x512xbf16, #tpu.memory_space<vmem>>) attributes {dimension_semantics = [#tpu.dimension_semantics<parallel>], iteration_bounds = array<i64: 1>, scalar_prefetch = 0 : i64, scratch_operands = 0 : i64, tpu.core_type = #tpu.core_type<tc>, window_params = [{transform_indices = @transform_0, window_bounds = array<i64: 32, 512>}, {pipeline_mode = #tpu.pipeline_mode<synchronous>, transform_indices = @transform_1, window_bounds = array<i64: 1, 512>}, {pipeline_mode = #tpu.pipeline_mode<synchronous>, transform_indices = @transform_2, window_bounds = array<i64: 1, 512>}, {transform_indices = @transform_3, window_bounds = array<i64: 32, 512>}]} {
    %c0 = arith.constant 0 : index
    %c0_0 = arith.constant 0 : index
    %0 = vector.load %arg1[%c0, %c0_0] : memref<32x512xf32, #tpu.memory_space<vmem>>, vector<32x512xf32>
    %c0_1 = arith.constant 0 : index
    %c0_2 = arith.constant 0 : index
    %1 = vector.load %arg2[%c0_1, %c0_2] : memref<1x512xf32, #tpu.memory_space<vmem>>, vector<1x512xf32>
    %2 = vector.broadcast %1 : vector<1x512xf32> to vector<32x512xf32>
    %3 = arith.mulf %0, %2 : vector<32x512xf32>
    %c0_3 = arith.constant 0 : index
    %c0_4 = arith.constant 0 : index
    %4 = vector.load %arg3[%c0_3, %c0_4] : memref<1x512xf32, #tpu.memory_space<vmem>>, vector<1x512xf32>
    %5 = vector.broadcast %4 : vector<1x512xf32> to vector<32x512xf32>
    %6 = arith.addf %3, %5 : vector<32x512xf32>
    %cst = arith.constant 0.000000e+00 : f32
    %7 = vector.broadcast %cst : f32 to vector<32x512xf32>
    %8 = arith.maximumf %6, %7 : vector<32x512xf32>
    %9 = arith.truncf %8 : vector<32x512xf32> to vector<32x512xbf16>
    %c0_5 = arith.constant 0 : index
    %c0_6 = arith.constant 0 : index
    %10 = vector.load %arg4[%c0_5, %c0_6] : memref<32x512xbf16, #tpu.memory_space<vmem>>, vector<32x512xbf16>
    tpu.vector_store %arg4[%c0_5, %c0_6], %9 {strides = array<i32>} : memref<32x512xbf16, #tpu.memory_space<vmem>>, vector<32x512xbf16>,
    return
  }
  func.func @transform_0(%arg0: i32) -> (i32, i32) {
    %c0_i32 = arith.constant 0 : i32
    %c0_i32_0 = arith.constant 0 : i32
    return %arg0, %c0_i32 : i32, i32
  }
  func.func @transform_1(%arg0: i32) -> (i32, i32) {
    %c0_i32 = arith.constant 0 : i32
    %c0_i32_0 = arith.constant 0 : i32
    %c0_i32_1 = arith.constant 0 : i32
    return %c0_i32, %c0_i32_0 : i32, i32
  }
  func.func @transform_2(%arg0: i32) -> (i32, i32) {
    %c0_i32 = arith.constant 0 : i32
    %c0_i32_0 = arith.constant 0 : i32
    %c0_i32_1 = arith.constant 0 : i32
    return %c0_i32, %c0_i32_0 : i32, i32
  }
  func.func @transform_3(%arg0: i32) -> (i32, i32) {
    %c0_i32 = arith.constant 0 : i32
    %c0_i32_0 = arith.constant 0 : i32
    return %arg0, %c0_i32 : i32, i32
  }
}

module attributes {stable_mosaic.version = 11 : i64} {
  func.func @_mm_bn_stats_kernel(%arg0: i32, %arg1: i32, %arg2: i32, %arg3: memref<128x128xbf16, #tpu.memory_space<vmem>>, %arg4: memref<128x512xbf16, #tpu.memory_space<vmem>>, %arg5: memref<128x512xf32, #tpu.memory_space<vmem>>, %arg6: memref<1x2x512xf32, #tpu.memory_space<vmem>>) attributes {dimension_semantics = [#tpu.dimension_semantics<parallel>, #tpu.dimension_semantics<parallel>, #tpu.dimension_semantics<arbitrary>], iteration_bounds = array<i64: 1, 1, 9>, scalar_prefetch = 0 : i64, scratch_operands = 0 : i64, tpu.core_type = #tpu.core_type<tc>, window_params = [{transform_indices = @transform_0, window_bounds = array<i64: 128, 128>}, {transform_indices = @transform_1, window_bounds = array<i64: 128, 512>}, {transform_indices = @transform_2, window_bounds = array<i64: 128, 512>}, {transform_indices = @transform_3, window_bounds = array<i64: 1, 2, 512>}]} {
    %c0_i32 = arith.constant 0 : i32
    %0 = arith.cmpi eq, %arg2, %c0_i32 : i32
    %1 = arith.extui %0 : i1 to i32
    %c0_i32_0 = arith.constant 0 : i32
    %2 = arith.cmpi ne, %1, %c0_i32_0 : i32
    scf.if %2 {
      %cst_9 = arith.constant 0.000000e+00 : f32
      %12 = vector.broadcast %cst_9 : f32 to vector<128x512xf32>
      %c0_10 = arith.constant 0 : index
      %c0_11 = arith.constant 0 : index
      %13 = vector.load %arg5[%c0_10, %c0_11] : memref<128x512xf32, #tpu.memory_space<vmem>>, vector<128x512xf32>
      tpu.vector_store %arg5[%c0_10, %c0_11], %12 {strides = array<i32>} : memref<128x512xf32, #tpu.memory_space<vmem>>, vector<128x512xf32>,
    } else {
    }
    %c0 = arith.constant 0 : index
    %c0_1 = arith.constant 0 : index
    %3 = vector.load %arg5[%c0, %c0_1] : memref<128x512xf32, #tpu.memory_space<vmem>>, vector<128x512xf32>
    %c0_2 = arith.constant 0 : index
    %c0_3 = arith.constant 0 : index
    %4 = vector.load %arg3[%c0_2, %c0_3] : memref<128x128xbf16, #tpu.memory_space<vmem>>, vector<128x128xbf16>
    %c0_4 = arith.constant 0 : index
    %c0_5 = arith.constant 0 : index
    %5 = vector.load %arg4[%c0_4, %c0_5] : memref<128x512xbf16, #tpu.memory_space<vmem>>, vector<128x512xbf16>
    %cst = arith.constant dense<0.000000e+00> : vector<128x512xf32>
    %6 = tpu.matmul %4, %5, %cst {dimension_numbers = #tpu.dot_dimension_numbers<[1], [0], [0], [1], [0, 0, 1, 1], [], []>} : vector<128x128xbf16>, vector<128x512xbf16>, vector<128x512xf32> -> vector<128x512xf32>
    %7 = arith.addf %3, %6 : vector<128x512xf32>
    %c0_6 = arith.constant 0 : index
    %c0_7 = arith.constant 0 : index
    %8 = vector.load %arg5[%c0_6, %c0_7] : memref<128x512xf32, #tpu.memory_space<vmem>>, vector<128x512xf32>
    tpu.vector_store %arg5[%c0_6, %c0_7], %7 {strides = array<i32>} : memref<128x512xf32, #tpu.memory_space<vmem>>, vector<128x512xf32>,
    %c8_i32 = arith.constant 8 : i32
    %9 = arith.cmpi eq, %arg2, %c8_i32 : i32
    %10 = arith.extui %9 : i1 to i32
    %c0_i32_8 = arith.constant 0 : i32
    %11 = arith.cmpi ne, %10, %c0_i32_8 : i32
    scf.if %11 {
      %c0_9 = arith.constant 0 : index
      %c0_10 = arith.constant 0 : index
      %12 = vector.load %arg5[%c0_9, %c0_10] : memref<128x512xf32, #tpu.memory_space<vmem>>, vector<128x512xf32>
      %cst_11 = arith.constant dense<0.000000e+00> : vector<512xf32>
      %13 = vector.multi_reduction <add>, %12, %cst_11 [0] : vector<128x512xf32> to vector<512xf32>
      %14 = vector.shape_cast %13 : vector<512xf32> to vector<1x512xf32>
      %15 = arith.mulf %12, %12 : vector<128x512xf32>
      %cst_12 = arith.constant dense<0.000000e+00> : vector<512xf32>
      %16 = vector.multi_reduction <add>, %15, %cst_12 [0] : vector<128x512xf32> to vector<512xf32>
      %17 = vector.shape_cast %16 : vector<512xf32> to vector<1x512xf32>
      %18 = tpu.concatenate %14, %17 in 0 : vector<1x512xf32>, vector<1x512xf32> -> vector<2x512xf32>
      %c0_13 = arith.constant 0 : index
      %c0_14 = arith.constant 0 : index
      %c0_15 = arith.constant 0 : index
      %19 = vector.load %arg6[%c0_13, %c0_14, %c0_15] : memref<1x2x512xf32, #tpu.memory_space<vmem>>, vector<1x2x512xf32>
      %20 = vector.shape_cast %19 : vector<1x2x512xf32> to vector<2x512xf32>
      %21 = vector.shape_cast %18 : vector<2x512xf32> to vector<1x2x512xf32>
      tpu.vector_store %arg6[%c0_13, %c0_14, %c0_15], %21 {strides = array<i32>} : memref<1x2x512xf32, #tpu.memory_space<vmem>>, vector<1x2x512xf32>,
    } else {
    }
    return
  }
  func.func @transform_0(%arg0: i32, %arg1: i32, %arg2: i32) -> (i32, i32) {
    %c0_i32 = arith.constant 0 : i32
    return %arg0, %arg2 : i32, i32
  }
  func.func @transform_1(%arg0: i32, %arg1: i32, %arg2: i32) -> (i32, i32) {
    %c0_i32 = arith.constant 0 : i32
    return %arg2, %arg1 : i32, i32
  }
  func.func @transform_2(%arg0: i32, %arg1: i32, %arg2: i32) -> (i32, i32) {
    %c0_i32 = arith.constant 0 : i32
    return %arg0, %arg1 : i32, i32
  }
  func.func @transform_3(%arg0: i32, %arg1: i32, %arg2: i32) -> (i32, i32, i32) {
    %c0_i32 = arith.constant 0 : i32
    %c0_i32_0 = arith.constant 0 : i32
    return %arg0, %c0_i32, %arg1 : i32, i32, i32
  }
}

module attributes {stable_mosaic.version = 11 : i64} {
  func.func @_scale_shift_relu_kernel(%arg0: i32, %arg1: memref<128x512xf32, #tpu.memory_space<vmem>>, %arg2: memref<1x512xf32, #tpu.memory_space<vmem>>, %arg3: memref<1x512xf32, #tpu.memory_space<vmem>>, %arg4: memref<128x512xbf16, #tpu.memory_space<vmem>>) attributes {dimension_semantics = [#tpu.dimension_semantics<parallel>], iteration_bounds = array<i64: 1>, scalar_prefetch = 0 : i64, scratch_operands = 0 : i64, tpu.core_type = #tpu.core_type<tc>, window_params = [{transform_indices = @transform_0, window_bounds = array<i64: 128, 512>}, {pipeline_mode = #tpu.pipeline_mode<synchronous>, transform_indices = @transform_1, window_bounds = array<i64: 1, 512>}, {pipeline_mode = #tpu.pipeline_mode<synchronous>, transform_indices = @transform_2, window_bounds = array<i64: 1, 512>}, {transform_indices = @transform_3, window_bounds = array<i64: 128, 512>}]} {
    %c0 = arith.constant 0 : index
    %c0_0 = arith.constant 0 : index
    %0 = vector.load %arg1[%c0, %c0_0] : memref<128x512xf32, #tpu.memory_space<vmem>>, vector<128x512xf32>
    %c0_1 = arith.constant 0 : index
    %c0_2 = arith.constant 0 : index
    %1 = vector.load %arg2[%c0_1, %c0_2] : memref<1x512xf32, #tpu.memory_space<vmem>>, vector<1x512xf32>
    %2 = vector.broadcast %1 : vector<1x512xf32> to vector<128x512xf32>
    %3 = arith.mulf %0, %2 : vector<128x512xf32>
    %c0_3 = arith.constant 0 : index
    %c0_4 = arith.constant 0 : index
    %4 = vector.load %arg3[%c0_3, %c0_4] : memref<1x512xf32, #tpu.memory_space<vmem>>, vector<1x512xf32>
    %5 = vector.broadcast %4 : vector<1x512xf32> to vector<128x512xf32>
    %6 = arith.addf %3, %5 : vector<128x512xf32>
    %cst = arith.constant 0.000000e+00 : f32
    %7 = vector.broadcast %cst : f32 to vector<128x512xf32>
    %8 = arith.maximumf %6, %7 : vector<128x512xf32>
    %9 = arith.truncf %8 : vector<128x512xf32> to vector<128x512xbf16>
    %c0_5 = arith.constant 0 : index
    %c0_6 = arith.constant 0 : index
    %10 = vector.load %arg4[%c0_5, %c0_6] : memref<128x512xbf16, #tpu.memory_space<vmem>>, vector<128x512xbf16>
    tpu.vector_store %arg4[%c0_5, %c0_6], %9 {strides = array<i32>} : memref<128x512xbf16, #tpu.memory_space<vmem>>, vector<128x512xbf16>,
    return
  }
  func.func @transform_0(%arg0: i32) -> (i32, i32) {
    %c0_i32 = arith.constant 0 : i32
    %c0_i32_0 = arith.constant 0 : i32
    return %arg0, %c0_i32 : i32, i32
  }
  func.func @transform_1(%arg0: i32) -> (i32, i32) {
    %c0_i32 = arith.constant 0 : i32
    %c0_i32_0 = arith.constant 0 : i32
    %c0_i32_1 = arith.constant 0 : i32
    return %c0_i32, %c0_i32_0 : i32, i32
  }
  func.func @transform_2(%arg0: i32) -> (i32, i32) {
    %c0_i32 = arith.constant 0 : i32
    %c0_i32_0 = arith.constant 0 : i32
    %c0_i32_1 = arith.constant 0 : i32
    return %c0_i32, %c0_i32_0 : i32, i32
  }
  func.func @transform_3(%arg0: i32) -> (i32, i32) {
    %c0_i32 = arith.constant 0 : i32
    %c0_i32_0 = arith.constant 0 : i32
    return %arg0, %c0_i32 : i32, i32
  }
}

module attributes {stable_mosaic.version = 11 : i64} {
  func.func @_mm_tanh_kernel(%arg0: i32, %arg1: i32, %arg2: i32, %arg3: memref<256x128xbf16, #tpu.memory_space<vmem>>, %arg4: memref<128x512xbf16, #tpu.memory_space<vmem>>, %arg5: memref<256x512xf32, #tpu.memory_space<vmem>>) attributes {dimension_semantics = [#tpu.dimension_semantics<parallel>, #tpu.dimension_semantics<parallel>, #tpu.dimension_semantics<arbitrary>], iteration_bounds = array<i64: 2, 1, 9>, scalar_prefetch = 0 : i64, scratch_operands = 0 : i64, tpu.core_type = #tpu.core_type<tc>, window_params = [{transform_indices = @transform_0, window_bounds = array<i64: 256, 128>}, {transform_indices = @transform_1, window_bounds = array<i64: 128, 512>}, {transform_indices = @transform_2, window_bounds = array<i64: 256, 512>}]} {
    %c0_i32 = arith.constant 0 : i32
    %0 = arith.cmpi eq, %arg2, %c0_i32 : i32
    %1 = arith.extui %0 : i1 to i32
    %c0_i32_0 = arith.constant 0 : i32
    %2 = arith.cmpi ne, %1, %c0_i32_0 : i32
    scf.if %2 {
      %cst_9 = arith.constant 0.000000e+00 : f32
      %12 = vector.broadcast %cst_9 : f32 to vector<256x512xf32>
      %c0_10 = arith.constant 0 : index
      %c0_11 = arith.constant 0 : index
      %13 = vector.load %arg5[%c0_10, %c0_11] : memref<256x512xf32, #tpu.memory_space<vmem>>, vector<256x512xf32>
      tpu.vector_store %arg5[%c0_10, %c0_11], %12 {strides = array<i32>} : memref<256x512xf32, #tpu.memory_space<vmem>>, vector<256x512xf32>,
    } else {
    }
    %c0 = arith.constant 0 : index
    %c0_1 = arith.constant 0 : index
    %3 = vector.load %arg5[%c0, %c0_1] : memref<256x512xf32, #tpu.memory_space<vmem>>, vector<256x512xf32>
    %c0_2 = arith.constant 0 : index
    %c0_3 = arith.constant 0 : index
    %4 = vector.load %arg3[%c0_2, %c0_3] : memref<256x128xbf16, #tpu.memory_space<vmem>>, vector<256x128xbf16>
    %c0_4 = arith.constant 0 : index
    %c0_5 = arith.constant 0 : index
    %5 = vector.load %arg4[%c0_4, %c0_5] : memref<128x512xbf16, #tpu.memory_space<vmem>>, vector<128x512xbf16>
    %cst = arith.constant dense<0.000000e+00> : vector<256x512xf32>
    %6 = tpu.matmul %4, %5, %cst {dimension_numbers = #tpu.dot_dimension_numbers<[1], [0], [0], [1], [0, 0, 1, 1], [], []>} : vector<256x128xbf16>, vector<128x512xbf16>, vector<256x512xf32> -> vector<256x512xf32>
    %7 = arith.addf %3, %6 : vector<256x512xf32>
    %c0_6 = arith.constant 0 : index
    %c0_7 = arith.constant 0 : index
    %8 = vector.load %arg5[%c0_6, %c0_7] : memref<256x512xf32, #tpu.memory_space<vmem>>, vector<256x512xf32>
    tpu.vector_store %arg5[%c0_6, %c0_7], %7 {strides = array<i32>} : memref<256x512xf32, #tpu.memory_space<vmem>>, vector<256x512xf32>,
    %c8_i32 = arith.constant 8 : i32
    %9 = arith.cmpi eq, %arg2, %c8_i32 : i32
    %10 = arith.extui %9 : i1 to i32
    %c0_i32_8 = arith.constant 0 : i32
    %11 = arith.cmpi ne, %10, %c0_i32_8 : i32
    scf.if %11 {
      %c0_9 = arith.constant 0 : index
      %c0_10 = arith.constant 0 : index
      %12 = vector.load %arg5[%c0_9, %c0_10] : memref<256x512xf32, #tpu.memory_space<vmem>>, vector<256x512xf32>
      %13 = math.tanh %12 : vector<256x512xf32>
      %c0_11 = arith.constant 0 : index
      %c0_12 = arith.constant 0 : index
      %14 = vector.load %arg5[%c0_11, %c0_12] : memref<256x512xf32, #tpu.memory_space<vmem>>, vector<256x512xf32>
      tpu.vector_store %arg5[%c0_11, %c0_12], %13 {strides = array<i32>} : memref<256x512xf32, #tpu.memory_space<vmem>>, vector<256x512xf32>,
    } else {
    }
    return
  }
  func.func @transform_0(%arg0: i32, %arg1: i32, %arg2: i32) -> (i32, i32) {
    %c0_i32 = arith.constant 0 : i32
    return %arg0, %arg2 : i32, i32
  }
  func.func @transform_1(%arg0: i32, %arg1: i32, %arg2: i32) -> (i32, i32) {
    %c0_i32 = arith.constant 0 : i32
    return %arg2, %arg1 : i32, i32
  }
  func.func @transform_2(%arg0: i32, %arg1: i32, %arg2: i32) -> (i32, i32) {
    %c0_i32 = arith.constant 0 : i32
    return %arg0, %arg1 : i32, i32
  }
}

</mosaic_0001>

<llo_original>
// kernel: tile.43
$region0: #{tile.43}
  #allocation0 [shape = 's32[1]{0}', space=sflag, size = 0x4, scoped, tag = 'scoped memory for tile.43']
  %s0 = inlined_call_operand.vmem [shape: f32[128], index: 0, kind: input, shape index: {}]
  %s1 = inlined_call_operand.vmem [shape: f32[4,128], index: 1, kind: output, shape index: {}]
  // Predicated region
  $region2: #{tile.43} parent=0 // pred_check
    _
  $region3: #{tile.43} parent=0 // pred_check_branch
    %3 = sbr.rel (0) target = $region5
  $region4: #{tile.43} parent=0 // pred_region
    _
  $region5: #{tile.43} parent=0 // pred_fallthru
    _
  %v4 = vld [vmem:[%s0] ss:$0 sm:$0xff]
  %5 = vst [vmem:[%s1] sm:$0xf] %v4

// kernel: generator_forward.10
$region0: #{generator_forward.10}
  #allocation0 [shape = 'u32[]', space=smem, size = 0x4, offset = 0x4, fixed_abs, tag = 'smem constant byte address 0x4 - core index']
  #allocation1 [shape = 'u32[72,128]{1,0:T(1,128)}', space=vmem, size = 0x9000, scoped, tag = 'internal scratch']
  %s0 = inlined_call_operand.vmem [shape: f32[16,512], index: 0, kind: input, shape index: {}]
  %s1 = inlined_call_operand.vmem [shape: f32[1,512], index: 1, kind: input, shape index: {}]
  %s2 = inlined_call_operand.vmem [shape: f32[1,512], index: 2, kind: input, shape index: {}]
  %s3 = inlined_call_operand.vmem [shape: bf16[16,512], index: 3, kind: output, shape index: {}]
  %s4 = sld [smem:[#allocation0]]
  $region22: #{generator_forward.10} parent=0
    _
  %s6 = ssub.s32 1, %s4
  %s7 = scalar_select 0, %s6, %s4
  // Predicated region
  $region2: #{generator_forward.10} parent=0 // pred_check
    _
  $region3: #{generator_forward.10} parent=0 // pred_check_branch
    %9 = sbr.rel (0) target = $region5
  $region4: #{generator_forward.10} parent=0 // pred_region
    _
  $region5: #{generator_forward.10} parent=0 // pred_fallthru
    _
  // Predicated region
  $region6: #{generator_forward.10} parent=0 // pred_check
    _
  $region7: #{generator_forward.10} parent=0 // pred_check_branch
    %11 = sbr.rel (0) target = $region9
  $region8: #{generator_forward.10} parent=0 // pred_region
    _
  $region9: #{generator_forward.10} parent=0 // pred_fallthru
    _
  // Predicated region
  $region10: #{generator_forward.10} parent=0 // pred_check
    _
  $region11: #{generator_forward.10} parent=0 // pred_check_branch
    %13 = sbr.rel (0) target = $region13
  $region12: #{generator_forward.10} parent=0 // pred_region
    _
  $region13: #{generator_forward.10} parent=0 // pred_fallthru
    _
  %v14 = vld [vmem:[%s0] sm:$0xff]
  %v15 = vld [vmem:[%s0 + $0x8] sm:$0xff]
  %v16 = vld [vmem:[%s0 + $0x10] sm:$0xff]
  %v17 = vld [vmem:[%s0 + $0x18] sm:$0xff]
  %v18 = vld [vmem:[%s0 + $0x20] sm:$0xff]
  %v19 = vld [vmem:[%s0 + $0x28] sm:$0xff]
  %v20 = vld [vmem:[%s0 + $0x30] sm:$0xff]
  %v21 = vld [vmem:[%s0 + $0x38] sm:$0xff]
  %v22 = vld [vmem:[%s1] sm:$0xf]
  %v24 = vperm.slane %v22, 0
  %v25 = vperm.slane %v22, 1
  %v26 = vperm.slane %v22, 2
  %v27 = vperm.slane %v22, 3
  %v32 = vmul.f32 %v14, %v24
  %v33 = vmul.f32 %v15, %v25
  %v34 = vmul.f32 %v16, %v26
  %v35 = vmul.f32 %v17, %v27
  %v36 = vmul.f32 %v18, %v24
  %v37 = vmul.f32 %v19, %v25
  %v38 = vmul.f32 %v20, %v26
  %v39 = vmul.f32 %v21, %v27
  %v40 = vld [vmem:[%s2] sm:$0xf]
  %v42 = vperm.slane %v40, 0
  %v43 = vperm.slane %v40, 1
  %v44 = vperm.slane %v40, 2
  %v45 = vperm.slane %v40, 3
  %v50 = vadd.f32 %v32, %v42
  %v51 = vadd.f32 %v33, %v43
  %v52 = vadd.f32 %v34, %v44
  %v53 = vadd.f32 %v35, %v45
  %v54 = vadd.f32 %v36, %v42
  %v55 = vadd.f32 %v37, %v43
  %v56 = vadd.f32 %v38, %v44
  %v57 = vadd.f32 %v39, %v45
  %v58 = vmax.f32 %v50, 0.0
  %v59 = vmax.f32 %v51, 0.0
  %v60 = vmax.f32 %v52, 0.0
  %v61 = vmax.f32 %v53, 0.0
  %v62 = vmax.f32 %v54, 0.0
  %v63 = vmax.f32 %v55, 0.0
  %v64 = vmax.f32 %v56, 0.0
  %v65 = vmax.f32 %v57, 0.0
  %v66 = vpack.c.bf16 %v59, %v58
  %v67 = vpack.c.bf16 %v61, %v60
  %v68 = vpack.c.bf16 %v63, %v62
  %v69 = vpack.c.bf16 %v65, %v64
  %70 = vst [vmem:[%s3] sm:$0xff] %v66
  %71 = vst [vmem:[%s3 + $0x8] sm:$0xff] %v67
  %72 = vst [vmem:[%s3 + $0x10] sm:$0xff] %v68
  %73 = vst [vmem:[%s3 + $0x18] sm:$0xff] %v69
  // Predicated region
  $region14: #{generator_forward.10} parent=0 // pred_check
    _
  $region15: #{generator_forward.10} parent=0 // pred_check_branch
    %75 = sbr.rel (0) target = $region17
  $region16: #{generator_forward.10} parent=0 // pred_region
    _
  $region17: #{generator_forward.10} parent=0 // pred_fallthru
    _
  // Predicated region
  $region18: #{generator_forward.10} parent=0 // pred_check
    _
  $region19: #{generator_forward.10} parent=0 // pred_check_branch
    %77 = sbr.rel (0) target = $region21
  $region20: #{generator_forward.10} parent=0 // pred_region
    _
  $region21: #{generator_forward.10} parent=0 // pred_fallthru
    _

// kernel: generator_forward.9
$region0: #{generator_forward.9}
  #allocation0 [shape = 'u32[]', space=smem, size = 0x4, offset = 0x4, fixed_abs, tag = 'smem constant byte address 0x4 - core index']
  #allocation1 [shape = 'u32[72,128]{1,0:T(1,128)}', space=vmem, size = 0x9000, scoped, tag = 'internal scratch']
  %s0 = inlined_call_operand.vmem [shape: bf16[16,128], index: 0, kind: input, shape index: {}]
  %s1 = inlined_call_operand.vmem [shape: bf16[128,512], index: 1, kind: input, shape index: {}]
  %s2 = inlined_call_operand.vmem [shape: f32[16,512], index: 2, kind: output, shape index: {0}]
  %s3 = inlined_call_operand.vmem [shape: f32[1,2,512], index: 3, kind: output, shape index: {1}]
  %4 = xla_tuple %s2, %s3
  %s5 = sld [smem:[#allocation0]]
  $region34: #{generator_forward.9} parent=0
    _
  %s7 = ssub.s32 1, %s5
  %s8 = scalar_select 0, %s7, %s5
  // Predicated region
  $region2: #{generator_forward.9} parent=0 // pred_check
    _
  $region3: #{generator_forward.9} parent=0 // pred_check_branch
    %10 = sbr.rel (0) target = $region5
  $region4: #{generator_forward.9} parent=0 // pred_region
    _
  $region5: #{generator_forward.9} parent=0 // pred_fallthru
    _
  // Predicated region
  $region6: #{generator_forward.9} parent=0 // pred_check
    _
  $region7: #{generator_forward.9} parent=0 // pred_check_branch
    %12 = sbr.rel (0) target = $region9
  $region8: #{generator_forward.9} parent=0 // pred_region
    _
  $region9: #{generator_forward.9} parent=0 // pred_fallthru
    _
  %p13 = scmp.eq.s32.totalorder 0, 0
  // Predicated region
  $region10: #{generator_forward.9} parent=0 // pred_check
    %p14 = pneg %p13
  $region11: #{generator_forward.9} parent=0 // pred_check_branch
    %16 = sbr.rel (%p14) target = $region13
  $region12: #{generator_forward.9} parent=0 // pred_region
    %17 = vst [vmem:[%s2] sm:$0xff] 0.0
    %18 = vst [vmem:[%s2 + $0x8] sm:$0xff] 0.0
    %19 = vst [vmem:[%s2 + $0x10] sm:$0xff] 0.0
    %20 = vst [vmem:[%s2 + $0x18] sm:$0xff] 0.0
    %21 = vst [vmem:[%s2 + $0x20] sm:$0xff] 0.0
    %22 = vst [vmem:[%s2 + $0x28] sm:$0xff] 0.0
    %23 = vst [vmem:[%s2 + $0x30] sm:$0xff] 0.0
    %24 = vst [vmem:[%s2 + $0x38] sm:$0xff] 0.0
  $region13: #{generator_forward.9} parent=0 // pred_fallthru
    _
  %v25 = vld [vmem:[%s2] sm:$0xff]
  %v26 = vld [vmem:[%s2 + $0x8] sm:$0xff]
  %v27 = vld [vmem:[%s2 + $0x10] sm:$0xff]
  %v28 = vld [vmem:[%s2 + $0x18] sm:$0xff]
  %v29 = vld [vmem:[%s2 + $0x20] sm:$0xff]
  %v30 = vld [vmem:[%s2 + $0x28] sm:$0xff]
  %v31 = vld [vmem:[%s2 + $0x30] sm:$0xff]
  %v32 = vld [vmem:[%s2 + $0x38] sm:$0xff]
  %v33 = vld [vmem:[%s0] sm:$0xf]
  %v34 = vld [vmem:[%s0 + $0x4] sm:$0xf]
  %v35 = vld [vmem:[%s1] sm:$0xff]
  %v36 = vld [vmem:[%s1 + $0x8] sm:$0xff]
  %v37 = vld [vmem:[%s1 + $0x10] sm:$0xff]
  %v38 = vld [vmem:[%s1 + $0x18] sm:$0xff]
  %v39 = vld [vmem:[%s1 + $0x20] sm:$0xff]
  %v40 = vld [vmem:[%s1 + $0x28] sm:$0xff]
  %v41 = vld [vmem:[%s1 + $0x30] sm:$0xff]
  %v42 = vld [vmem:[%s1 + $0x38] sm:$0xff]
  %v43 = vld [vmem:[%s1 + $0x40] sm:$0xff]
  %v44 = vld [vmem:[%s1 + $0x48] sm:$0xff]
  %v45 = vld [vmem:[%s1 + $0x50] sm:$0xff]
  %v46 = vld [vmem:[%s1 + $0x58] sm:$0xff]
  %v47 = vld [vmem:[%s1 + $0x60] sm:$0xff]
  %v48 = vld [vmem:[%s1 + $0x68] sm:$0xff]
  %v49 = vld [vmem:[%s1 + $0x70] sm:$0xff]
  %v50 = vld [vmem:[%s1 + $0x78] sm:$0xff]
  %v51 = vld [vmem:[%s1 + $0x80] sm:$0xff]
  %v52 = vld [vmem:[%s1 + $0x88] sm:$0xff]
  %v53 = vld [vmem:[%s1 + $0x90] sm:$0xff]
  %v54 = vld [vmem:[%s1 + $0x98] sm:$0xff]
  %v55 = vld [vmem:[%s1 + $0xa0] sm:$0xff]
  %v56 = vld [vmem:[%s1 + $0xa8] sm:$0xff]
  %v57 = vld [vmem:[%s1 + $0xb0] sm:$0xff]
  %v58 = vld [vmem:[%s1 + $0xb8] sm:$0xff]
  %v59 = vld [vmem:[%s1 + $0xc0] sm:$0xff]
  %v60 = vld [vmem:[%s1 + $0xc8] sm:$0xff]
  %v61 = vld [vmem:[%s1 + $0xd0] sm:$0xff]
  %v62 = vld [vmem:[%s1 + $0xd8] sm:$0xff]
  %v63 = vld [vmem:[%s1 + $0xe0] sm:$0xff]
  %v64 = vld [vmem:[%s1 + $0xe8] sm:$0xff]
  %v65 = vld [vmem:[%s1 + $0xf0] sm:$0xff]
  %v66 = vld [vmem:[%s1 + $0xf8] sm:$0xff]
  %v69 = vunpack.c.l.b16 %v33
  %v70 = vunpack.c.l.b16 %v34
  %v71 = vpack.c.b16 %v70, %v69
  %v105 = vunpack.c.l.b16 %v35
  %v106 = vunpack.c.h.b16 %v35
  %v107 = vunpack.c.l.b16 %v36
  %v108 = vunpack.c.h.b16 %v36
  %v109 = vunpack.c.l.b16 %v37
  %v110 = vunpack.c.h.b16 %v37
  %v111 = vunpack.c.l.b16 %v38
  %v112 = vunpack.c.h.b16 %v38
  %v113 = vunpack.c.l.b16 %v39
  %v114 = vunpack.c.h.b16 %v39
  %v115 = vunpack.c.l.b16 %v40
  %v116 = vunpack.c.h.b16 %v40
  %v117 = vunpack.c.l.b16 %v41
  %v118 = vunpack.c.h.b16 %v41
  %v119 = vunpack.c.l.b16 %v42
  %v120 = vunpack.c.h.b16 %v42
  %v121 = vunpack.c.l.b16 %v43
  %v122 = vunpack.c.h.b16 %v43
  %v123 = vunpack.c.l.b16 %v44
  %v124 = vunpack.c.h.b16 %v44
  %v125 = vunpack.c.l.b16 %v45
  %v126 = vunpack.c.h.b16 %v45
  %v127 = vunpack.c.l.b16 %v46
  %v128 = vunpack.c.h.b16 %v46
  %v129 = vunpack.c.l.b16 %v47
  %v130 = vunpack.c.h.b16 %v47
  %v131 = vunpack.c.l.b16 %v48
  %v132 = vunpack.c.h.b16 %v48
  %v133 = vunpack.c.l.b16 %v49
  %v134 = vunpack.c.h.b16 %v49
  %v135 = vunpack.c.l.b16 %v50
  %v136 = vunpack.c.h.b16 %v50
  %v137 = vunpack.c.l.b16 %v51
  %v138 = vunpack.c.h.b16 %v51
  %v139 = vunpack.c.l.b16 %v52
  %v140 = vunpack.c.h.b16 %v52
  %v141 = vunpack.c.l.b16 %v53
  %v142 = vunpack.c.h.b16 %v53
  %v143 = vunpack.c.l.b16 %v54
  %v144 = vunpack.c.h.b16 %v54
  %v145 = vunpack.c.l.b16 %v55
  %v146 = vunpack.c.h.b16 %v55
  %v147 = vunpack.c.l.b16 %v56
  %v148 = vunpack.c.h.b16 %v56
  %v149 = vunpack.c.l.b16 %v57
  %v150 = vunpack.c.h.b16 %v57
  %v151 = vunpack.c.l.b16 %v58
  %v152 = vunpack.c.h.b16 %v58
  %v153 = vunpack.c.l.b16 %v59
  %v154 = vunpack.c.h.b16 %v59
  %v155 = vunpack.c.l.b16 %v60
  %v156 = vunpack.c.h.b16 %v60
  %v157 = vunpack.c.l.b16 %v61
  %v158 = vunpack.c.h.b16 %v61
  %v159 = vunpack.c.l.b16 %v62
  %v160 = vunpack.c.h.b16 %v62
  %v161 = vunpack.c.l.b16 %v63
  %v162 = vunpack.c.h.b16 %v63
  %v163 = vunpack.c.l.b16 %v64
  %v164 = vunpack.c.h.b16 %v64
  %v165 = vunpack.c.l.b16 %v65
  %v166 = vunpack.c.h.b16 %v65
  %v167 = vunpack.c.l.b16 %v66
  %v168 = vunpack.c.h.b16 %v66
  %v169 = vpack.c.b16 %v109, %v105
  %v170 = vpack.c.b16 %v110, %v106
  %v171 = vpack.c.b16 %v111, %v107
  %v172 = vpack.c.b16 %v112, %v108
  %v173 = vpack.c.b16 %v117, %v113
  %v174 = vpack.c.b16 %v118, %v114
  %v175 = vpack.c.b16 %v119, %v115
  %v176 = vpack.c.b16 %v120, %v116
  %v177 = vpack.c.b16 %v125, %v121
  %v178 = vpack.c.b16 %v126, %v122
  %v179 = vpack.c.b16 %v127, %v123
  %v180 = vpack.c.b16 %v128, %v124
  %v181 = vpack.c.b16 %v133, %v129
  %v182 = vpack.c.b16 %v134, %v130
  %v183 = vpack.c.b16 %v135, %v131
  %v184 = vpack.c.b16 %v136, %v132
  %v185 = vpack.c.b16 %v141, %v137
  %v186 = vpack.c.b16 %v142, %v138
  %v187 = vpack.c.b16 %v143, %v139
  %v188 = vpack.c.b16 %v144, %v140
  %v189 = vpack.c.b16 %v149, %v145
  %v190 = vpack.c.b16 %v150, %v146
  %v191 = vpack.c.b16 %v151, %v147
  %v192 = vpack.c.b16 %v152, %v148
  %v193 = vpack.c.b16 %v157, %v153
  %v194 = vpack.c.b16 %v158, %v154
  %v195 = vpack.c.b16 %v159, %v155
  %v196 = vpack.c.b16 %v160, %v156
  %v197 = vpack.c.b16 %v165, %v161
  %v198 = vpack.c.b16 %v166, %v162
  %v199 = vpack.c.b16 %v167, %v163
  %v200 = vpack.c.b16 %v168, %v164
  %233 = vmatpush.bf16.msra.mxu0 %v197
  %234 = vmatpush.bf16.msra.mxu0 %v193
  %235 = vmatpush.bf16.msra.mxu0 %v189
  %236 = vmatpush.bf16.msra.mxu0 %v185
  %237 = vmatpush.bf16.msra.mxu0 %v181
  %238 = vmatpush.bf16.msra.mxu0 %v177
  %239 = vmatpush.bf16.msra.mxu0 %v173
  %240 = vmatpush.bf16.msra.mxu0 %v169
  %241 = vmatmul.bf16.gmra.mxu0 %v71
  %v242 = vpop.f32.mrf.mxu0
  %v243 = vadd.f32 0.0, %v242
  %v244 = vpop.f32.mrf.mxu0
  %v245 = vadd.f32 0.0, %v244
  %246 = vdwg.mxu0
  %247 = vmatpush.bf16.msra.mxu0 %v198
  %248 = vmatpush.bf16.msra.mxu0 %v194
  %249 = vmatpush.bf16.msra.mxu0 %v190
  %250 = vmatpush.bf16.msra.mxu0 %v186
  %251 = vmatpush.bf16.msra.mxu0 %v182
  %252 = vmatpush.bf16.msra.mxu0 %v178
  %253 = vmatpush.bf16.msra.mxu0 %v174
  %254 = vmatpush.bf16.msra.mxu0 %v170
  %255 = vmatmul.bf16.gmra.mxu0 %v71
  %v256 = vpop.f32.mrf.mxu0
  %v257 = vadd.f32 0.0, %v256
  %v258 = vpop.f32.mrf.mxu0
  %v259 = vadd.f32 0.0, %v258
  %260 = vdwg.mxu0
  %261 = vmatpush.bf16.msra.mxu0 %v199
  %262 = vmatpush.bf16.msra.mxu0 %v195
  %263 = vmatpush.bf16.msra.mxu0 %v191
  %264 = vmatpush.bf16.msra.mxu0 %v187
  %265 = vmatpush.bf16.msra.mxu0 %v183
  %266 = vmatpush.bf16.msra.mxu0 %v179
  %267 = vmatpush.bf16.msra.mxu0 %v175
  %268 = vmatpush.bf16.msra.mxu0 %v171
  %269 = vmatmul.bf16.gmra.mxu0 %v71
  %v270 = vpop.f32.mrf.mxu0
  %v271 = vadd.f32 0.0, %v270
  %v272 = vpop.f32.mrf.mxu0
  %v273 = vadd.f32 0.0, %v272
  %274 = vdwg.mxu0
  %275 = vmatpush.bf16.msra.mxu0 %v200
  %276 = vmatpush.bf16.msra.mxu0 %v196
  %277 = vmatpush.bf16.msra.mxu0 %v192
  %278 = vmatpush.bf16.msra.mxu0 %v188
  %279 = vmatpush.bf16.msra.mxu0 %v184
  %280 = vmatpush.bf16.msra.mxu0 %v180
  %281 = vmatpush.bf16.msra.mxu0 %v176
  %282 = vmatpush.bf16.msra.mxu0 %v172
  %283 = vmatmul.bf16.gmra.mxu0 %v71
  %v284 = vpop.f32.mrf.mxu0
  %v285 = vadd.f32 0.0, %v284
  %v286 = vpop.f32.mrf.mxu0
  %v287 = vadd.f32 0.0, %v286
  %288 = vdwg.mxu0
  %v289 = vadd.f32 %v25, %v243
  %v290 = vadd.f32 %v26, %v257
  %v291 = vadd.f32 %v27, %v271
  %v292 = vadd.f32 %v28, %v285
  %v293 = vadd.f32 %v29, %v245
  %v294 = vadd.f32 %v30, %v259
  %v295 = vadd.f32 %v31, %v273
  %v296 = vadd.f32 %v32, %v287
  %297 = vst [vmem:[%s2] sm:$0xff] %v289
  %298 = vst [vmem:[%s2 + $0x8] sm:$0xff] %v290
  %299 = vst [vmem:[%s2 + $0x10] sm:$0xff] %v291
  %300 = vst [vmem:[%s2 + $0x18] sm:$0xff] %v292
  %301 = vst [vmem:[%s2 + $0x20] sm:$0xff] %v293
  %302 = vst [vmem:[%s2 + $0x28] sm:$0xff] %v294
  %303 = vst [vmem:[%s2 + $0x30] sm:$0xff] %v295
  %304 = vst [vmem:[%s2 + $0x38] sm:$0xff] %v296
  // Predicated region
  $region14: #{generator_forward.9} parent=0 // pred_check
    %p305 = pneg %p13
  $region15: #{generator_forward.9} parent=0 // pred_check_branch
    %307 = sbr.rel (%p305) target = $region17
  $region16: #{generator_forward.9} parent=0 // pred_region
    %v308 = vld [vmem:[%s2] sm:$0xff]
    %v309 = vld [vmem:[%s2 + $0x8] sm:$0xff]
    %v310 = vld [vmem:[%s2 + $0x10] sm:$0xff]
    %v311 = vld [vmem:[%s2 + $0x18] sm:$0xff]
    %v312 = vld [vmem:[%s2 + $0x20] sm:$0xff]
    %v313 = vld [vmem:[%s2 + $0x28] sm:$0xff]
    %v314 = vld [vmem:[%s2 + $0x30] sm:$0xff]
    %v315 = vld [vmem:[%s2 + $0x38] sm:$0xff]
    %v316 = vadd.f32 %v308, %v312
    %v317 = vrot.slane %v316, 4
    %v318 = vadd.f32 %v316, %v317
    %v319 = vrot.slane %v318, 2
    %v320 = vadd.f32 %v318, %v319
    %v321 = vrot.slane %v320, 1
    %v322 = vadd.f32 %v320, %v321
    %v323 = vadd.f32 %v309, %v313
    %v324 = vrot.slane %v323, 4
    %v325 = vadd.f32 %v323, %v324
    %v326 = vrot.slane %v325, 2
    %v327 = vadd.f32 %v325, %v326
    %v328 = vrot.slane %v327, 1
    %v329 = vadd.f32 %v327, %v328
    %v330 = vadd.f32 %v310, %v314
    %v331 = vrot.slane %v330, 4
    %v332 = vadd.f32 %v330, %v331
    %v333 = vrot.slane %v332, 2
    %v334 = vadd.f32 %v332, %v333
    %v335 = vrot.slane %v334, 1
    %v336 = vadd.f32 %v334, %v335
    %v337 = vadd.f32 %v311, %v315
    %v338 = vrot.slane %v337, 4
    %v339 = vadd.f32 %v337, %v338
    %v340 = vrot.slane %v339, 2
    %v341 = vadd.f32 %v339, %v340
    %v342 = vrot.slane %v341, 1
    %v343 = vadd.f32 %v341, %v342
    %v344 = vmul.f32 %v308, %v308
    %v345 = vmul.f32 %v309, %v309
    %v346 = vmul.f32 %v310, %v310
    %v347 = vmul.f32 %v311, %v311
    %v348 = vmul.f32 %v312, %v312
    %v349 = vmul.f32 %v313, %v313
    %v350 = vmul.f32 %v314, %v314
    %v351 = vmul.f32 %v315, %v315
    %v352 = vadd.f32 %v344, %v348
    %v353 = vrot.slane %v352, 4
    %v354 = vadd.f32 %v352, %v353
    %v355 = vrot.slane %v354, 2
    %v356 = vadd.f32 %v354, %v355
    %v357 = vrot.slane %v356, 1
    %v358 = vadd.f32 %v356, %v357
    %v359 = vadd.f32 %v345, %v349
    %v360 = vrot.slane %v359, 4
    %v361 = vadd.f32 %v359, %v360
    %v362 = vrot.slane %v361, 2
    %v363 = vadd.f32 %v361, %v362
    %v364 = vrot.slane %v363, 1
    %v365 = vadd.f32 %v363, %v364
    %v366 = vadd.f32 %v346, %v350
    %v367 = vrot.slane %v366, 4
    %v368 = vadd.f32 %v366, %v367
    %v369 = vrot.slane %v368, 2
    %v370 = vadd.f32 %v368, %v369
    %v371 = vrot.slane %v370, 1
    %v372 = vadd.f32 %v370, %v371
    %v373 = vadd.f32 %v347, %v351
    %v374 = vrot.slane %v373, 4
    %v375 = vadd.f32 %v373, %v374
    %v376 = vrot.slane %v375, 2
    %v377 = vadd.f32 %v375, %v376
    %v378 = vrot.slane %v377, 1
    %v379 = vadd.f32 %v377, %v378
    %vm380 = vcmask 1040384
    %v381 = vsel %vm380, %v322, %v358
    %v382 = vsel %vm380, %v329, %v365
    %v383 = vsel %vm380, %v336, %v372
    %v384 = vsel %vm380, %v343, %v379
    %v389 = vrot.slane %v382, 6
    %v390 = vrot.slane %v383, 4
    %v391 = vrot.slane %v384, 2
    %vm392 = vcmask 1041408
    %v393 = vsel %vm392, %v381, %v389
    %vm394 = vcmask 1045508
    %v395 = vsel %vm394, %v390, %v391
    %vm396 = vcmask 1043456
    %v397 = vsel %vm396, %v393, %v395
    %399 = vst [vmem:[%s3] sm:$0xff] %v397
  $region17: #{generator_forward.9} parent=0 // pred_fallthru
    _
  // Predicated region
  $region18: #{generator_forward.9} parent=0 // pred_check
    _
  $region19: #{generator_forward.9} parent=0 // pred_check_branch
    %401 = sbr.rel (0) target = $region21
  $region20: #{generator_forward.9} parent=0 // pred_region
    _
  $region21: #{generator_forward.9} parent=0 // pred_fallthru
    _
  // Predicated region
  $region22: #{generator_forward.9} parent=0 // pred_check
    _
  $region23: #{generator_forward.9} parent=0 // pred_check_branch
    %403 = sbr.rel (0) target = $region25
  $region24: #{generator_forward.9} parent=0 // pred_region
    _
  $region25: #{generator_forward.9} parent=0 // pred_fallthru
    _
  // Predicated region
  $region26: #{generator_forward.9} parent=0 // pred_check
    _
  $region27: #{generator_forward.9} parent=0 // pred_check_branch
    %405 = sbr.rel (0) target = $region29
  $region28: #{generator_forward.9} parent=0 // pred_region
    _
  $region29: #{generator_forward.9} parent=0 // pred_fallthru
    _
  // Predicated region
  $region30: #{generator_forward.9} parent=0 // pred_check
    _
  $region31: #{generator_forward.9} parent=0 // pred_check_branch
    %407 = sbr.rel (0) target = $region33
  $region32: #{generator_forward.9} parent=0 // pred_region
    _
  $region33: #{generator_forward.9} parent=0 // pred_fallthru
    _

// kernel: generator_forward.11
$region0: #{generator_forward.11}
  #allocation0 [shape = 'u32[]', space=smem, size = 0x4, offset = 0x4, fixed_abs, tag = 'smem constant byte address 0x4 - core index']
  #allocation1 [shape = 'u32[72,128]{1,0:T(1,128)}', space=vmem, size = 0x9000, scoped, tag = 'internal scratch']
  %s0 = inlined_call_operand.vmem [shape: bf16[16,1152], index: 0, kind: input, shape index: {}]
  %s1 = inlined_call_operand.vmem [shape: bf16[1152,512], index: 1, kind: input, shape index: {}]
  %s2 = inlined_call_operand.vmem [shape: f32[16,512], index: 2, kind: output, shape index: {0}]
  %s3 = inlined_call_operand.vmem [shape: f32[1,2,512], index: 3, kind: output, shape index: {1}]
  %4 = xla_tuple %s2, %s3
  %s5 = sld [smem:[#allocation0]]
  $region98: #{generator_forward.11} parent=0
    _
  %s7 = ssub.s32 1, %s5
  %s8 = scalar_select 0, %s7, %s5
  $region1: #{generator_forward.11} parent=0
    #allocation2 [shape = 'u8[8192]{0}', space=vmem, size = 0x2000, scoped, tag = 'input window, operand 0']
    loop: start=0, step=1, limit=11
    $region2: #{generator_forward.11} parent=1 // loop_pre_header
      _
    $region3: #{generator_forward.11} parent=1 // loop_header
      %s10 = sphi 0, %s14
      %p11 = scmp.ge.s32.totalorder %s10, 11
      %s17 = sphi 0, %s36
      %s18 = sphi 0, %s32
      %s19 = sphi 0, %s28
      %s20 = sphi 0, %s17
      %s21 = sphi 0, %s18
      %s22 = sphi 0, %s19
      %s23 = sphi 0, %s20
      %s24 = sphi 0, %s21
      %s25 = sphi 0, %s22
      %s41 = sphi 0, %s43
      %s44 = sphi 0, %s41
      %s45 = sphi 0, %s44
      %s61 = sphi 0, %s45
      %s69 = sphi 0, %s71
      %s72 = sphi 0, %s69
      %s73 = sphi 0, %s72
      %s89 = sphi 0, %s73
      %s97 = sphi 0, %s99
      %s100 = sphi 0, %s97
      %s101 = sphi 0, %s100
      %s117 = sphi 0, %s101
      %s125 = sphi 0, %s127
      %s128 = sphi 0, %s125
      %s129 = sphi 0, %s128
      %s145 = sphi 0, %s129
    $region4: #{generator_forward.11} parent=1 // loop_header_branch
      %13 = sbr.rel (%p11) target = $region8
    $region5: #{generator_forward.11} parent=1 // loop_body
      %s15 = ssub.s32 %s10, 1
      %s16 = ssub.s32 %s10, 2
      %s26 = sadd.s32 1, %s19
      %p27 = scmp.ge.s32.totalorder %s26, 9
      %s28 = scalar_select %p27, 0, %s26
      %s29 = sadd.s32 1, %s18
      %s30 = scalar_select %p27, %s29, %s18
      %p31 = scmp.ge.s32.totalorder %s30, 1
      %s32 = scalar_select %p31, 0, %s30
      %s33 = sadd.s32 1, %s17
      %s34 = scalar_select %p31, %s33, %s17
      %p35 = scmp.ge.s32.totalorder %s34, 1
      %s36 = scalar_select %p35, 0, %s34
      %s37 = ssub.s32 %s17, %s36
      %s38 = ssub.s32 %s19, %s28
      %s39 = sor.u32 %s37, %s38
      %p40 = scmp.eq.s32.totalorder %s39, 0
      %s42 = sadd.s32 %s41, 1
      %s43 = scalar_select %p40, %s41, %s42
      %p46 = pneg %p40
      %p47 = scmp.eq.s32.totalorder %s10, 8
      %p48 = por %p46, %p47
      %p49 = scmp.ne.s32.totalorder %s41, %s44
      %p50 = scmp.eq.s32.totalorder %s10, 0
      %p51 = por %p49, %p50
      %p52 = scmp.ne.s32.totalorder %s41, %s44
      %p53 = scmp.eq.s32.totalorder %s15, 8
      %p54 = por %p52, %p53
      %p55 = scmp.ne.s32.totalorder %s44, %s45
      %p56 = scmp.eq.s32.totalorder %s15, 0
      %p57 = por %p55, %p56
      %p58 = scmp.ne.s32.totalorder %s44, %s45
      %p59 = scmp.eq.s32.totalorder %s16, 8
      %p60 = por %p58, %p59
      %p62 = scmp.ne.s32.totalorder %s45, %s61
      %p63 = scmp.eq.s32.totalorder %s16, 0
      %p64 = por %p62, %p63
      %s65 = ssub.s32 %s19, %s28
      %s66 = ssub.s32 %s18, %s32
      %s67 = sor.u32 %s65, %s66
      %p68 = scmp.eq.s32.totalorder %s67, 0
      %s70 = sadd.s32 %s69, 1
      %s71 = scalar_select %p68, %s69, %s70
      %p74 = pneg %p68
      %p75 = scmp.eq.s32.totalorder %s10, 8
      %p76 = por %p74, %p75
      %p77 = scmp.ne.s32.totalorder %s69, %s72
      %p78 = scmp.eq.s32.totalorder %s10, 0
      %p79 = por %p77, %p78
      %p80 = scmp.ne.s32.totalorder %s69, %s72
      %p81 = scmp.eq.s32.totalorder %s15, 8
      %p82 = por %p80, %p81
      %p83 = scmp.ne.s32.totalorder %s72, %s73
      %p84 = scmp.eq.s32.totalorder %s15, 0
      %p85 = por %p83, %p84
      %p86 = scmp.ne.s32.totalorder %s72, %s73
      %p87 = scmp.eq.s32.totalorder %s16, 8
      %p88 = por %p86, %p87
      %p90 = scmp.ne.s32.totalorder %s73, %s89
      %p91 = scmp.eq.s32.totalorder %s16, 0
      %p92 = por %p90, %p91
      %s93 = ssub.s32 %s17, %s36
      %s94 = ssub.s32 %s18, %s32
      %s95 = sor.u32 %s93, %s94
      %p96 = scmp.eq.s32.totalorder %s95, 0
      %s98 = sadd.s32 %s97, 1
      %s99 = scalar_select %p96, %s97, %s98
      %p102 = pneg %p96
      %p103 = scmp.eq.s32.totalorder %s10, 8
      %p104 = por %p102, %p103
      %p105 = scmp.ne.s32.totalorder %s97, %s100
      %p106 = scmp.eq.s32.totalorder %s10, 0
      %p107 = por %p105, %p106
      %p108 = scmp.ne.s32.totalorder %s97, %s100
      %p109 = scmp.eq.s32.totalorder %s15, 8
      %p110 = por %p108, %p109
      %p111 = scmp.ne.s32.totalorder %s100, %s101
      %p112 = scmp.eq.s32.totalorder %s15, 0
      %p113 = por %p111, %p112
      %p114 = scmp.ne.s32.totalorder %s100, %s101
      %p115 = scmp.eq.s32.totalorder %s16, 8
      %p116 = por %p114, %p115
      %p118 = scmp.ne.s32.totalorder %s101, %s117
      %p119 = scmp.eq.s32.totalorder %s16, 0
      %p120 = por %p118, %p119
      %s121 = ssub.s32 %s17, %s36
      %s122 = ssub.s32 %s18, %s32
      %s123 = sor.u32 %s121, %s122
      %p124 = scmp.eq.s32.totalorder %s123, 0
      %s126 = sadd.s32 %s125, 1
      %s127 = scalar_select %p124, %s125, %s126
      %p130 = pneg %p124
      %p131 = scmp.eq.s32.totalorder %s10, 8
      %p132 = por %p130, %p131
      %p133 = scmp.ne.s32.totalorder %s125, %s128
      %p134 = scmp.eq.s32.totalorder %s10, 0
      %p135 = por %p133, %p134
      %p136 = scmp.ne.s32.totalorder %s125, %s128
      %p137 = scmp.eq.s32.totalorder %s15, 8
      %p138 = por %p136, %p137
      %p139 = scmp.ne.s32.totalorder %s128, %s129
      %p140 = scmp.eq.s32.totalorder %s15, 0
      %p141 = por %p139, %p140
      %p142 = scmp.ne.s32.totalorder %s128, %s129
      %p143 = scmp.eq.s32.totalorder %s16, 8
      %p144 = por %p142, %p143
      %p146 = scmp.ne.s32.totalorder %s129, %s145
      %p147 = scmp.eq.s32.totalorder %s16, 0
      %p148 = por %p146, %p147
      %p149 = scmp.le.s32.totalorder 1, %s10
      %p150 = scmp.lt.s32.totalorder %s10, 10
      %p151 = pnand %p149, %p150
      %p152 = pneg %p151
      // Predicated region
      $region9: #{generator_forward.11} parent=5 // pred_check
        _
      $region10: #{generator_forward.11} parent=5 // pred_check_branch
        %154 = sbr.rel (%p151) target = $region12
      $region11: #{generator_forward.11} parent=5 // pred_region
        %s155 = ssub.s32 %s10, 1
      $region12: #{generator_forward.11} parent=5 // pred_fallthru
        _
      %p156 = scmp.lt.s32.totalorder %s10, 9
      // Predicated region
      $region13: #{generator_forward.11} parent=5 // pred_check
        %p157 = pneg %p156
      $region14: #{generator_forward.11} parent=5 // pred_check_branch
        %159 = sbr.rel (%p157) target = $region16
      $region15: #{generator_forward.11} parent=5 // pred_region
        // Predicated region
        $region17: #{generator_forward.11} parent=15 // pred_check
          %p160 = pneg %p51
        $region18: #{generator_forward.11} parent=15 // pred_check_branch
          %162 = sbr.rel (%p160) target = $region20
        $region19: #{generator_forward.11} parent=15 // pred_region
          %s163 = sand.u32 %s41, 1
          %s164 = sand.u32 %s41, 1
          %s165 = smul.addr %s164, 8
          %s166 = scalar_lea.vmem [#allocation2], %s165
          %s167 = smul.u32 2, %s17
          %s168 = smul.addr %s167, 9
          %s169 = sadd.s32 %s19, %s168
          %s170 = smul.addr %s169, 4
          %s171 = scalar_lea.vmem %s0, %s170
          // Predicated region
          $region21: #{generator_forward.11} parent=19 // pred_check
            _
          $region22: #{generator_forward.11} parent=19 // pred_check_branch
            %173 = sbr.rel (0) target = $region24
          $region23: #{generator_forward.11} parent=19 // pred_region
            // Predicated region
            $region25: #{generator_forward.11} parent=23 // pred_check
              _
            $region26: #{generator_forward.11} parent=23 // pred_check_branch
              %175 = sbr.rel target = $region28
            $region27: #{generator_forward.11} parent=23 // pred_region
              // Predicated region
              $region40: #{generator_forward.11} parent=27 // pred_check
                _
              $region41: #{generator_forward.11} parent=27 // pred_check_branch
                %193 = sbr.rel (0) target = $region43
              $region42: #{generator_forward.11} parent=27 // pred_region
                loop: start=0, step=1, limit=1
                $region44: #{generator_forward.11} parent=42 // loop_pre_header
                  _
                $region45: #{generator_forward.11} parent=42 // loop_header
                  %s195 = sphi 0, %s199
                  %p196 = scmp.ge.s32.totalorder %s195, 1
                  %s200 = sphi %s171, %s171
                  %s201 = sphi %s166, %s166
                $region46: #{generator_forward.11} parent=42 // loop_header_branch
                  %198 = sbr.rel (%p196) target = $region50
                $region47: #{generator_forward.11} parent=42 // loop_body
                  _
                $region48: #{generator_forward.11} parent=42 // loop_footer
                  %s199 = sadd.s32 1, %s195
                $region49: #{generator_forward.11} parent=42 // loop_footer_branch
                  %194 = sbr.rel target = $region45
                $region50: #{generator_forward.11} parent=42 // loop_exit
                  _
                %s203 = ssub.s32 16, 1
                loop: start=0, step=1, limit=1
                $region51: #{generator_forward.11} parent=42 // loop_pre_header
                  _
                $region52: #{generator_forward.11} parent=42 // loop_header
                  %s205 = sphi 0, %s209
                  %p206 = scmp.ge.s32.totalorder %s205, 1
                  %s210 = sphi %s171, %s171
                  %s211 = sphi %s166, %s166
                $region53: #{generator_forward.11} parent=42 // loop_header_branch
                  %208 = sbr.rel (%p206) target = $region57
                $region54: #{generator_forward.11} parent=42 // loop_body
                  %v212 = vld [vmem:[%s210] sm:%s203]
                  %213 = vst [vmem:[%s211] sm:%s203] %v212
                  %v214 = vld [vmem:[%s210 + $0x24] sm:%s203]
                  %215 = vst [vmem:[%s211 + $0x4] sm:%s203] %v214
                $region55: #{generator_forward.11} parent=42 // loop_footer
                  %s209 = sadd.s32 1, %s205
                $region56: #{generator_forward.11} parent=42 // loop_footer_branch
                  %204 = sbr.rel target = $region52
                $region57: #{generator_forward.11} parent=42 // loop_exit
                  _
              $region43: #{generator_forward.11} parent=27 // pred_fallthru
                _
            $region28: #{generator_forward.11} parent=23 // pred_fallthru
              _
            // Predicated region
            $region29: #{generator_forward.11} parent=23 // pred_check
              _
            $region30: #{generator_forward.11} parent=23 // pred_check_branch
              %177 = sbr.rel (0) target = $region32
            $region31: #{generator_forward.11} parent=23 // pred_region
              %s179 = ssub.s32 16, 1
              loop: start=0, step=1, limit=1
              $region33: #{generator_forward.11} parent=31 // loop_pre_header
                _
              $region34: #{generator_forward.11} parent=31 // loop_header
                %s181 = sphi 0, %s185
                %p182 = scmp.ge.s32.totalorder %s181, 1
                %s186 = sphi %s171, %s171
                %s187 = sphi %s166, %s166
              $region35: #{generator_forward.11} parent=31 // loop_header_branch
                %184 = sbr.rel (%p182) target = $region39
              $region36: #{generator_forward.11} parent=31 // loop_body
                %v188 = vld [vmem:[%s186] sm:%s179]
                %189 = vst [vmem:[%s187] sm:%s179] %v188
                %v190 = vld [vmem:[%s186 + $0x24] sm:%s179]
                %191 = vst [vmem:[%s187 + $0x4] sm:%s179] %v190
              $region37: #{generator_forward.11} parent=31 // loop_footer
                %s185 = sadd.s32 1, %s181
              $region38: #{generator_forward.11} parent=31 // loop_footer_branch
                %180 = sbr.rel target = $region34
              $region39: #{generator_forward.11} parent=31 // loop_exit
                _
            $region32: #{generator_forward.11} parent=23 // pred_fallthru
              _
          $region24: #{generator_forward.11} parent=19 // pred_fallthru
            _
          %216 = vnop
        $region20: #{generator_forward.11} parent=15 // pred_fallthru
          _
        // Predicated region
        $region58: #{generator_forward.11} parent=15 // pred_check
          %p217 = pneg %p79
        $region59: #{generator_forward.11} parent=15 // pred_check_branch
          %219 = sbr.rel (%p217) target = $region61
        $region60: #{generator_forward.11} parent=15 // pred_region
          %s220 = smul.u32 16, %s19
          %s221 = smul.u32 4, %s18
          %p222 = scmp.lt.s32.totalorder %s220, 143
          %s223 = scalar_select %p222, %s220, 143
          %p224 = scmp.lt.s32.totalorder %s221, 3
          %s225 = scalar_select %p224, %s221, 3
          %s226 = smul.addr %s223, 4
          %s227 = sadd.s32 %s225, %s226
          %s228 = smul.addr %s227, 4
          %s229 = scalar_lea.vmem %s1, %s228
          %s230 = smul.u32 16, %s19
          %s231 = smul.u32 4, %s18
        $region61: #{generator_forward.11} parent=15 // pred_fallthru
          _
      $region16: #{generator_forward.11} parent=5 // pred_fallthru
        _
      %p232 = scmp.le.s32.totalorder 1, %s10
      %p233 = scmp.lt.s32.totalorder %s10, 10
      %p234 = pnand %p232, %p233
      %p235 = pneg %p234
      // Predicated region
      $region62: #{generator_forward.11} parent=5 // pred_check
        _
      $region63: #{generator_forward.11} parent=5 // pred_check_branch
        %237 = sbr.rel (%p234) target = $region65
      $region64: #{generator_forward.11} parent=5 // pred_region
        %s238 = ssub.s32 %s10, 1
        %s239 = sand.u32 %s44, 1
        %s240 = sand.u32 %s44, 1
        %s241 = smul.addr %s240, 8
        %s242 = scalar_lea.vmem [#allocation2], %s241
        // Predicated region
        $region66: #{generator_forward.11} parent=64 // pred_check
          %p243 = pneg %p57
        $region67: #{generator_forward.11} parent=64 // pred_check_branch
          %245 = sbr.rel (%p243) target = $region69
        $region68: #{generator_forward.11} parent=64 // pred_region
          _
        $region69: #{generator_forward.11} parent=64 // pred_fallthru
          _
        %s246 = sand.u32 %s44, 1
        %s247 = sand.u32 %s44, 1
        %s248 = smul.addr %s247, 8
        %s249 = scalar_lea.vmem [#allocation2], %s248
        %p250 = pneg %p57
        %p251 = pneg %p54
        %s252 = smul.u32 16, %s22
        %s253 = smul.u32 4, %s21
        %p254 = scmp.lt.s32.totalorder %s252, 143
        %s255 = scalar_select %p254, %s252, 143
        %p256 = scmp.lt.s32.totalorder %s253, 3
        %s257 = scalar_select %p256, %s253, 3
        %s258 = smul.addr %s255, 4
        %s259 = sadd.s32 %s257, %s258
        %s260 = smul.addr %s259, 4
        %s261 = scalar_lea.vmem %s1, %s260
        %p262 = pneg %p85
        %p263 = pneg %p82
        %p264 = pneg %p113
        %p265 = pneg %p110
        %s266 = smul.u32 2, %s20
        %s267 = smul.u32 4, %s21
        %p268 = scmp.lt.s32.totalorder %s266, 1
        %s269 = scalar_select %p268, %s266, 1
        %p270 = scmp.lt.s32.totalorder %s267, 3
        %s271 = scalar_select %p270, %s267, 3
        %s272 = smul.addr %s269, 4
        %s273 = sadd.s32 %s271, %s272
        %s274 = smul.addr %s273, 8
        %s275 = scalar_lea.vmem %s2, %s274
        %p276 = pneg %p141
        %p277 = pneg %p138
        %s278 = smul.u32 4, %s21
        %p279 = scmp.lt.s32.totalorder %s20, 0
        %s280 = scalar_select %p279, %s20, 0
        %p281 = scmp.lt.s32.totalorder %s278, 3
        %s282 = scalar_select %p281, %s278, 3
        %s283 = smul.addr %s280, 4
        %s284 = sadd.s32 %s282, %s283
        %s285 = smul.addr %s284, 2
        %s286 = scalar_lea.vmem %s3, %s285
        %s287 = smul.u32 2, %s20
        %s288 = smul.u32 16, %s22
        %s289 = smul.u32 4, %s21
        %p290 = scmp.lt.s32.totalorder %s288, 143
        %s291 = scalar_select %p290, %s288, 143
        %p292 = scmp.lt.s32.totalorder %s289, 3
        %s293 = scalar_select %p292, %s289, 3
        %s294 = smul.addr %s291, 4
        %s295 = sadd.s32 %s293, %s294
        %s296 = smul.addr %s295, 4
        %s297 = scalar_lea.vmem %s1, %s296
        %s298 = smul.u32 16, %s22
        %s299 = smul.u32 4, %s21
        %s300 = smul.u32 2, %s20
        %s301 = smul.u32 4, %s21
        %p302 = scmp.lt.s32.totalorder %s300, 1
        %s303 = scalar_select %p302, %s300, 1
        %p304 = scmp.lt.s32.totalorder %s301, 3
        %s305 = scalar_select %p304, %s301, 3
        %s306 = smul.addr %s303, 4
        %s307 = sadd.s32 %s305, %s306
        %s308 = smul.addr %s307, 8
        %s309 = scalar_lea.vmem %s2, %s308
        %s310 = smul.u32 2, %s20
        %s311 = smul.u32 4, %s21
        %s312 = smul.u32 4, %s21
        %p313 = scmp.lt.s32.totalorder %s20, 0
        %s314 = scalar_select %p313, %s20, 0
        %p315 = scmp.lt.s32.totalorder %s312, 3
        %s316 = scalar_select %p315, %s312, 3
        %s317 = smul.addr %s314, 4
        %s318 = sadd.s32 %s316, %s317
        %s319 = smul.addr %s318, 2
        %s320 = scalar_lea.vmem %s3, %s319
        %s321 = smul.u32 4, %s21
        %p322 = scmp.eq.s32.totalorder %s22, 0
        // Predicated region
        $region70: #{generator_forward.11} parent=64 // pred_check
          %p323 = pneg %p322
        $region71: #{generator_forward.11} parent=64 // pred_check_branch
          %325 = sbr.rel (%p323) target = $region73
        $region72: #{generator_forward.11} parent=64 // pred_region
          %326 = vst [vmem:[%s309] sm:$0xff] 0.0
          %327 = vst [vmem:[%s309 + $0x8] sm:$0xff] 0.0
          %328 = vst [vmem:[%s309 + $0x10] sm:$0xff] 0.0
          %329 = vst [vmem:[%s309 + $0x18] sm:$0xff] 0.0
          %330 = vst [vmem:[%s309 + $0x20] sm:$0xff] 0.0
          %331 = vst [vmem:[%s309 + $0x28] sm:$0xff] 0.0
          %332 = vst [vmem:[%s309 + $0x30] sm:$0xff] 0.0
          %333 = vst [vmem:[%s309 + $0x38] sm:$0xff] 0.0
        $region73: #{generator_forward.11} parent=64 // pred_fallthru
          _
        %v334 = vld [vmem:[%s309] sm:$0xff]
        %v335 = vld [vmem:[%s309 + $0x8] sm:$0xff]
        %v336 = vld [vmem:[%s309 + $0x10] sm:$0xff]
        %v337 = vld [vmem:[%s309 + $0x18] sm:$0xff]
        %v338 = vld [vmem:[%s309 + $0x20] sm:$0xff]
        %v339 = vld [vmem:[%s309 + $0x28] sm:$0xff]
        %v340 = vld [vmem:[%s309 + $0x30] sm:$0xff]
        %v341 = vld [vmem:[%s309 + $0x38] sm:$0xff]
        %v342 = vld [vmem:[%s242] sm:$0xf]
        %v343 = vld [vmem:[%s242 + $0x4] sm:$0xf]
        %v344 = vld [vmem:[%s297] sm:$0xff]
        %v345 = vld [vmem:[%s297 + $0x8] sm:$0xff]
        %v346 = vld [vmem:[%s297 + $0x10] sm:$0xff]
        %v347 = vld [vmem:[%s297 + $0x18] sm:$0xff]
        %v348 = vld [vmem:[%s297 + $0x20] sm:$0xff]
        %v349 = vld [vmem:[%s297 + $0x28] sm:$0xff]
        %v350 = vld [vmem:[%s297 + $0x30] sm:$0xff]
        %v351 = vld [vmem:[%s297 + $0x38] sm:$0xff]
        %v352 = vld [vmem:[%s297 + $0x40] sm:$0xff]
        %v353 = vld [vmem:[%s297 + $0x48] sm:$0xff]
        %v354 = vld [vmem:[%s297 + $0x50] sm:$0xff]
        %v355 = vld [vmem:[%s297 + $0x58] sm:$0xff]
        %v356 = vld [vmem:[%s297 + $0x60] sm:$0xff]
        %v357 = vld [vmem:[%s297 + $0x68] sm:$0xff]
        %v358 = vld [vmem:[%s297 + $0x70] sm:$0xff]
        %v359 = vld [vmem:[%s297 + $0x78] sm:$0xff]
        %v360 = vld [vmem:[%s297 + $0x80] sm:$0xff]
        %v361 = vld [vmem:[%s297 + $0x88] sm:$0xff]
        %v362 = vld [vmem:[%s297 + $0x90] sm:$0xff]
        %v363 = vld [vmem:[%s297 + $0x98] sm:$0xff]
        %v364 = vld [vmem:[%s297 + $0xa0] sm:$0xff]
        %v365 = vld [vmem:[%s297 + $0xa8] sm:$0xff]
        %v366 = vld [vmem:[%s297 + $0xb0] sm:$0xff]
        %v367 = vld [vmem:[%s297 + $0xb8] sm:$0xff]
        %v368 = vld [vmem:[%s297 + $0xc0] sm:$0xff]
        %v369 = vld [vmem:[%s297 + $0xc8] sm:$0xff]
        %v370 = vld [vmem:[%s297 + $0xd0] sm:$0xff]
        %v371 = vld [vmem:[%s297 + $0xd8] sm:$0xff]
        %v372 = vld [vmem:[%s297 + $0xe0] sm:$0xff]
        %v373 = vld [vmem:[%s297 + $0xe8] sm:$0xff]
        %v374 = vld [vmem:[%s297 + $0xf0] sm:$0xff]
        %v375 = vld [vmem:[%s297 + $0xf8] sm:$0xff]
        %v378 = vunpack.c.l.b16 %v342
        %v379 = vunpack.c.l.b16 %v343
        %v380 = vpack.c.b16 %v379, %v378
        %v414 = vunpack.c.l.b16 %v344
        %v415 = vunpack.c.h.b16 %v344
        %v416 = vunpack.c.l.b16 %v345
        %v417 = vunpack.c.h.b16 %v345
        %v418 = vunpack.c.l.b16 %v346
        %v419 = vunpack.c.h.b16 %v346
        %v420 = vunpack.c.l.b16 %v347
        %v421 = vunpack.c.h.b16 %v347
        %v422 = vunpack.c.l.b16 %v348
        %v423 = vunpack.c.h.b16 %v348
        %v424 = vunpack.c.l.b16 %v349
        %v425 = vunpack.c.h.b16 %v349
        %v426 = vunpack.c.l.b16 %v350
        %v427 = vunpack.c.h.b16 %v350
        %v428 = vunpack.c.l.b16 %v351
        %v429 = vunpack.c.h.b16 %v351
        %v430 = vunpack.c.l.b16 %v352
        %v431 = vunpack.c.h.b16 %v352
        %v432 = vunpack.c.l.b16 %v353
        %v433 = vunpack.c.h.b16 %v353
        %v434 = vunpack.c.l.b16 %v354
        %v435 = vunpack.c.h.b16 %v354
        %v436 = vunpack.c.l.b16 %v355
        %v437 = vunpack.c.h.b16 %v355
        %v438 = vunpack.c.l.b16 %v356
        %v439 = vunpack.c.h.b16 %v356
        %v440 = vunpack.c.l.b16 %v357
        %v441 = vunpack.c.h.b16 %v357
        %v442 = vunpack.c.l.b16 %v358
        %v443 = vunpack.c.h.b16 %v358
        %v444 = vunpack.c.l.b16 %v359
        %v445 = vunpack.c.h.b16 %v359
        %v446 = vunpack.c.l.b16 %v360
        %v447 = vunpack.c.h.b16 %v360
        %v448 = vunpack.c.l.b16 %v361
        %v449 = vunpack.c.h.b16 %v361
        %v450 = vunpack.c.l.b16 %v362
        %v451 = vunpack.c.h.b16 %v362
        %v452 = vunpack.c.l.b16 %v363
        %v453 = vunpack.c.h.b16 %v363
        %v454 = vunpack.c.l.b16 %v364
        %v455 = vunpack.c.h.b16 %v364
        %v456 = vunpack.c.l.b16 %v365
        %v457 = vunpack.c.h.b16 %v365
        %v458 = vunpack.c.l.b16 %v366
        %v459 = vunpack.c.h.b16 %v366
        %v460 = vunpack.c.l.b16 %v367
        %v461 = vunpack.c.h.b16 %v367
        %v462 = vunpack.c.l.b16 %v368
        %v463 = vunpack.c.h.b16 %v368
        %v464 = vunpack.c.l.b16 %v369
        %v465 = vunpack.c.h.b16 %v369
        %v466 = vunpack.c.l.b16 %v370
        %v467 = vunpack.c.h.b16 %v370
        %v468 = vunpack.c.l.b16 %v371
        %v469 = vunpack.c.h.b16 %v371
        %v470 = vunpack.c.l.b16 %v372
        %v471 = vunpack.c.h.b16 %v372
        %v472 = vunpack.c.l.b16 %v373
        %v473 = vunpack.c.h.b16 %v373
        %v474 = vunpack.c.l.b16 %v374
        %v475 = vunpack.c.h.b16 %v374
        %v476 = vunpack.c.l.b16 %v375
        %v477 = vunpack.c.h.b16 %v375
        %v478 = vpack.c.b16 %v418, %v414
        %v479 = vpack.c.b16 %v419, %v415
        %v480 = vpack.c.b16 %v420, %v416
        %v481 = vpack.c.b16 %v421, %v417
        %v482 = vpack.c.b16 %v426, %v422
        %v483 = vpack.c.b16 %v427, %v423
        %v484 = vpack.c.b16 %v428, %v424
        %v485 = vpack.c.b16 %v429, %v425
        %v486 = vpack.c.b16 %v434, %v430
        %v487 = vpack.c.b16 %v435, %v431
        %v488 = vpack.c.b16 %v436, %v432
        %v489 = vpack.c.b16 %v437, %v433
        %v490 = vpack.c.b16 %v442, %v438
        %v491 = vpack.c.b16 %v443, %v439
        %v492 = vpack.c.b16 %v444, %v440
        %v493 = vpack.c.b16 %v445, %v441
        %v494 = vpack.c.b16 %v450, %v446
        %v495 = vpack.c.b16 %v451, %v447
        %v496 = vpack.c.b16 %v452, %v448
        %v497 = vpack.c.b16 %v453, %v449
        %v498 = vpack.c.b16 %v458, %v454
        %v499 = vpack.c.b16 %v459, %v455
        %v500 = vpack.c.b16 %v460, %v456
        %v501 = vpack.c.b16 %v461, %v457
        %v502 = vpack.c.b16 %v466, %v462
        %v503 = vpack.c.b16 %v467, %v463
        %v504 = vpack.c.b16 %v468, %v464
        %v505 = vpack.c.b16 %v469, %v465
        %v506 = vpack.c.b16 %v474, %v470
        %v507 = vpack.c.b16 %v475, %v471
        %v508 = vpack.c.b16 %v476, %v472
        %v509 = vpack.c.b16 %v477, %v473
        %542 = vmatpush.bf16.msra.mxu0 %v506
        %543 = vmatpush.bf16.msra.mxu0 %v502
        %544 = vmatpush.bf16.msra.mxu0 %v498
        %545 = vmatpush.bf16.msra.mxu0 %v494
        %546 = vmatpush.bf16.msra.mxu0 %v490
        %547 = vmatpush.bf16.msra.mxu0 %v486
        %548 = vmatpush.bf16.msra.mxu0 %v482
        %549 = vmatpush.bf16.msra.mxu0 %v478
        %550 = vmatmul.bf16.gmra.mxu0 %v380
        %v551 = vpop.f32.mrf.mxu0
        %v552 = vadd.f32 0.0, %v551
        %v553 = vpop.f32.mrf.mxu0
        %v554 = vadd.f32 0.0, %v553
        %555 = vdwg.mxu0
        %556 = vmatpush.bf16.msra.mxu0 %v507
        %557 = vmatpush.bf16.msra.mxu0 %v503
        %558 = vmatpush.bf16.msra.mxu0 %v499
        %559 = vmatpush.bf16.msra.mxu0 %v495
        %560 = vmatpush.bf16.msra.mxu0 %v491
        %561 = vmatpush.bf16.msra.mxu0 %v487
        %562 = vmatpush.bf16.msra.mxu0 %v483
        %563 = vmatpush.bf16.msra.mxu0 %v479
        %564 = vmatmul.bf16.gmra.mxu0 %v380
        %v565 = vpop.f32.mrf.mxu0
        %v566 = vadd.f32 0.0, %v565
        %v567 = vpop.f32.mrf.mxu0
        %v568 = vadd.f32 0.0, %v567
        %569 = vdwg.mxu0
        %570 = vmatpush.bf16.msra.mxu0 %v508
        %571 = vmatpush.bf16.msra.mxu0 %v504
        %572 = vmatpush.bf16.msra.mxu0 %v500
        %573 = vmatpush.bf16.msra.mxu0 %v496
        %574 = vmatpush.bf16.msra.mxu0 %v492
        %575 = vmatpush.bf16.msra.mxu0 %v488
        %576 = vmatpush.bf16.msra.mxu0 %v484
        %577 = vmatpush.bf16.msra.mxu0 %v480
        %578 = vmatmul.bf16.gmra.mxu0 %v380
        %v579 = vpop.f32.mrf.mxu0
        %v580 = vadd.f32 0.0, %v579
        %v581 = vpop.f32.mrf.mxu0
        %v582 = vadd.f32 0.0, %v581
        %583 = vdwg.mxu0
        %584 = vmatpush.bf16.msra.mxu0 %v509
        %585 = vmatpush.bf16.msra.mxu0 %v505
        %586 = vmatpush.bf16.msra.mxu0 %v501
        %587 = vmatpush.bf16.msra.mxu0 %v497
        %588 = vmatpush.bf16.msra.mxu0 %v493
        %589 = vmatpush.bf16.msra.mxu0 %v489
        %590 = vmatpush.bf16.msra.mxu0 %v485
        %591 = vmatpush.bf16.msra.mxu0 %v481
        %592 = vmatmul.bf16.gmra.mxu0 %v380
        %v593 = vpop.f32.mrf.mxu0
        %v594 = vadd.f32 0.0, %v593
        %v595 = vpop.f32.mrf.mxu0
        %v596 = vadd.f32 0.0, %v595
        %597 = vdwg.mxu0
        %v598 = vadd.f32 %v334, %v552
        %v599 = vadd.f32 %v335, %v566
        %v600 = vadd.f32 %v336, %v580
        %v601 = vadd.f32 %v337, %v594
        %v602 = vadd.f32 %v338, %v554
        %v603 = vadd.f32 %v339, %v568
        %v604 = vadd.f32 %v340, %v582
        %v605 = vadd.f32 %v341, %v596
        %606 = vst [vmem:[%s309] sm:$0xff] %v598
        %607 = vst [vmem:[%s309 + $0x8] sm:$0xff] %v599
        %608 = vst [vmem:[%s309 + $0x10] sm:$0xff] %v600
        %609 = vst [vmem:[%s309 + $0x18] sm:$0xff] %v601
        %610 = vst [vmem:[%s309 + $0x20] sm:$0xff] %v602
        %611 = vst [vmem:[%s309 + $0x28] sm:$0xff] %v603
        %612 = vst [vmem:[%s309 + $0x30] sm:$0xff] %v604
        %613 = vst [vmem:[%s309 + $0x38] sm:$0xff] %v605
        %p614 = scmp.eq.s32.totalorder %s22, 8
        // Predicated region
        $region74: #{generator_forward.11} parent=64 // pred_check
          %p615 = pneg %p614
        $region75: #{generator_forward.11} parent=64 // pred_check_branch
          %617 = sbr.rel (%p615) target = $region77
        $region76: #{generator_forward.11} parent=64 // pred_region
          %v618 = vld [vmem:[%s309] sm:$0xff]
          %v619 = vld [vmem:[%s309 + $0x8] sm:$0xff]
          %v620 = vld [vmem:[%s309 + $0x10] sm:$0xff]
          %v621 = vld [vmem:[%s309 + $0x18] sm:$0xff]
          %v622 = vld [vmem:[%s309 + $0x20] sm:$0xff]
          %v623 = vld [vmem:[%s309 + $0x28] sm:$0xff]
          %v624 = vld [vmem:[%s309 + $0x30] sm:$0xff]
          %v625 = vld [vmem:[%s309 + $0x38] sm:$0xff]
          %v626 = vadd.f32 %v618, %v622
          %v627 = vrot.slane %v626, 4
          %v628 = vadd.f32 %v626, %v627
          %v629 = vrot.slane %v628, 2
          %v630 = vadd.f32 %v628, %v629
          %v631 = vrot.slane %v630, 1
          %v632 = vadd.f32 %v630, %v631
          %v633 = vadd.f32 %v619, %v623
          %v634 = vrot.slane %v633, 4
          %v635 = vadd.f32 %v633, %v634
          %v636 = vrot.slane %v635, 2
          %v637 = vadd.f32 %v635, %v636
          %v638 = vrot.slane %v637, 1
          %v639 = vadd.f32 %v637, %v638
          %v640 = vadd.f32 %v620, %v624
          %v641 = vrot.slane %v640, 4
          %v642 = vadd.f32 %v640, %v641
          %v643 = vrot.slane %v642, 2
          %v644 = vadd.f32 %v642, %v643
          %v645 = vrot.slane %v644, 1
          %v646 = vadd.f32 %v644, %v645
          %v647 = vadd.f32 %v621, %v625
          %v648 = vrot.slane %v647, 4
          %v649 = vadd.f32 %v647, %v648
          %v650 = vrot.slane %v649, 2
          %v651 = vadd.f32 %v649, %v650
          %v652 = vrot.slane %v651, 1
          %v653 = vadd.f32 %v651, %v652
          %v654 = vmul.f32 %v618, %v618
          %v655 = vmul.f32 %v619, %v619
          %v656 = vmul.f32 %v620, %v620
          %v657 = vmul.f32 %v621, %v621
          %v658 = vmul.f32 %v622, %v622
          %v659 = vmul.f32 %v623, %v623
          %v660 = vmul.f32 %v624, %v624
          %v661 = vmul.f32 %v625, %v625
          %v662 = vadd.f32 %v654, %v658
          %v663 = vrot.slane %v662, 4
          %v664 = vadd.f32 %v662, %v663
          %v665 = vrot.slane %v664, 2
          %v666 = vadd.f32 %v664, %v665
          %v667 = vrot.slane %v666, 1
          %v668 = vadd.f32 %v666, %v667
          %v669 = vadd.f32 %v655, %v659
          %v670 = vrot.slane %v669, 4
          %v671 = vadd.f32 %v669, %v670
          %v672 = vrot.slane %v671, 2
          %v673 = vadd.f32 %v671, %v672
          %v674 = vrot.slane %v673, 1
          %v675 = vadd.f32 %v673, %v674
          %v676 = vadd.f32 %v656, %v660
          %v677 = vrot.slane %v676, 4
          %v678 = vadd.f32 %v676, %v677
          %v679 = vrot.slane %v678, 2
          %v680 = vadd.f32 %v678, %v679
          %v681 = vrot.slane %v680, 1
          %v682 = vadd.f32 %v680, %v681
          %v683 = vadd.f32 %v657, %v661
          %v684 = vrot.slane %v683, 4
          %v685 = vadd.f32 %v683, %v684
          %v686 = vrot.slane %v685, 2
          %v687 = vadd.f32 %v685, %v686
          %v688 = vrot.slane %v687, 1
          %v689 = vadd.f32 %v687, %v688
          %vm690 = vcmask 1040384
          %v691 = vsel %vm690, %v632, %v668
          %v692 = vsel %vm690, %v639, %v675
          %v693 = vsel %vm690, %v646, %v682
          %v694 = vsel %vm690, %v653, %v689
          %v699 = vrot.slane %v692, 6
          %v700 = vrot.slane %v693, 4
          %v701 = vrot.slane %v694, 2
          %vm702 = vcmask 1041408
          %v703 = vsel %vm702, %v691, %v699
          %vm704 = vcmask 1045508
          %v705 = vsel %vm704, %v700, %v701
          %vm706 = vcmask 1043456
          %v707 = vsel %vm706, %v703, %v705
          %709 = vst [vmem:[%s320] sm:$0xff] %v707
        $region77: #{generator_forward.11} parent=64 // pred_fallthru
          _
        %s710 = smul.u32 2, %s20
        %s711 = smul.u32 4, %s21
        %p712 = scmp.lt.s32.totalorder %s710, 1
        %s713 = scalar_select %p712, %s710, 1
        %p714 = scmp.lt.s32.totalorder %s711, 3
        %s715 = scalar_select %p714, %s711, 3
        %s716 = smul.addr %s713, 4
        %s717 = sadd.s32 %s715, %s716
        %s718 = smul.addr %s717, 8
        %s719 = scalar_lea.vmem %s2, %s718
        %s720 = smul.u32 4, %s21
        %p721 = scmp.lt.s32.totalorder %s20, 0
        %s722 = scalar_select %p721, %s20, 0
        %p723 = scmp.lt.s32.totalorder %s720, 3
        %s724 = scalar_select %p723, %s720, 3
        %s725 = smul.addr %s722, 4
        %s726 = sadd.s32 %s724, %s725
        %s727 = smul.addr %s726, 2
        %s728 = scalar_lea.vmem %s3, %s727
        // Predicated region
        $region78: #{generator_forward.11} parent=64 // pred_check
          %p729 = pneg %p110
        $region79: #{generator_forward.11} parent=64 // pred_check_branch
          %731 = sbr.rel (%p729) target = $region81
        $region80: #{generator_forward.11} parent=64 // pred_region
          %s732 = smul.u32 2, %s20
          %s733 = smul.u32 4, %s21
        $region81: #{generator_forward.11} parent=64 // pred_fallthru
          _
        // Predicated region
        $region82: #{generator_forward.11} parent=64 // pred_check
          %p734 = pneg %p138
        $region83: #{generator_forward.11} parent=64 // pred_check_branch
          %736 = sbr.rel (%p734) target = $region85
        $region84: #{generator_forward.11} parent=64 // pred_region
          %s737 = smul.u32 4, %s21
        $region85: #{generator_forward.11} parent=64 // pred_fallthru
          _
        // Predicated region
        $region86: #{generator_forward.11} parent=64 // pred_check
          %p738 = pneg %p110
        $region87: #{generator_forward.11} parent=64 // pred_check_branch
          %740 = sbr.rel (%p738) target = $region89
        $region88: #{generator_forward.11} parent=64 // pred_region
          %s741 = smul.u32 2, %s20
          %s742 = smul.u32 4, %s21
          %p743 = scmp.lt.s32.totalorder %s741, 1
          %s744 = scalar_select %p743, %s741, 1
          %p745 = scmp.lt.s32.totalorder %s742, 3
          %s746 = scalar_select %p745, %s742, 3
          %s747 = smul.addr %s744, 4
          %s748 = sadd.s32 %s746, %s747
          %s749 = smul.addr %s748, 8
          %s750 = scalar_lea.vmem %s2, %s749
        $region89: #{generator_forward.11} parent=64 // pred_fallthru
          _
        // Predicated region
        $region90: #{generator_forward.11} parent=64 // pred_check
          %p751 = pneg %p138
        $region91: #{generator_forward.11} parent=64 // pred_check_branch
          %753 = sbr.rel (%p751) target = $region93
        $region92: #{generator_forward.11} parent=64 // pred_region
          %s754 = smul.u32 4, %s21
          %p755 = scmp.lt.s32.totalorder %s20, 0
          %s756 = scalar_select %p755, %s20, 0
          %p757 = scmp.lt.s32.totalorder %s754, 3
          %s758 = scalar_select %p757, %s754, 3
          %s759 = smul.addr %s756, 4
          %s760 = sadd.s32 %s758, %s759
          %s761 = smul.addr %s760, 2
          %s762 = scalar_lea.vmem %s3, %s761
        $region93: #{generator_forward.11} parent=64 // pred_fallthru
          _
      $region65: #{generator_forward.11} parent=5 // pred_fallthru
        _
      %p763 = scmp.le.s32.totalorder 2, %s10
      // Predicated region
      $region94: #{generator_forward.11} parent=5 // pred_check
        %p764 = pneg %p763
      $region95: #{generator_forward.11} parent=5 // pred_check_branch
        %766 = sbr.rel (%p764) target = $region97
      $region96: #{generator_forward.11} parent=5 // pred_region
        %s767 = ssub.s32 %s10, 2
      $region97: #{generator_forward.11} parent=5 // pred_fallthru
        _
    $region6: #{generator_forward.11} parent=1 // loop_footer
      %s14 = sadd.s32 1, %s10
    $region7: #{generator_forward.11} parent=1 // loop_footer_branch
      %9 = sbr.rel target = $region3
    $region8: #{generator_forward.11} parent=1 // loop_exit
      _

// kernel: generator_forward.14
$region0: #{generator_forward.14}
  #allocation0 [shape = 'u32[]', space=smem, size = 0x4, offset = 0x4, fixed_abs, tag = 'smem constant byte address 0x4 - core index']
  #allocation1 [shape = 'u32[72,128]{1,0:T(1,128)}', space=vmem, size = 0x9000, scoped, tag = 'internal scratch']
  %s0 = inlined_call_operand.vmem [shape: f32[32,512], index: 0, kind: input, shape index: {}]
  %s1 = inlined_call_operand.vmem [shape: f32[1,512], index: 1, kind: input, shape index: {}]
  %s2 = inlined_call_operand.vmem [shape: f32[1,512], index: 2, kind: input, shape index: {}]
  %s3 = inlined_call_operand.vmem [shape: bf16[32,512], index: 3, kind: output, shape index: {}]
  %s4 = sld [smem:[#allocation0]]
  $region22: #{generator_forward.14} parent=0
    _
  %s6 = ssub.s32 1, %s4
  %s7 = scalar_select 0, %s6, %s4
  // Predicated region
  $region2: #{generator_forward.14} parent=0 // pred_check
    _
  $region3: #{generator_forward.14} parent=0 // pred_check_branch
    %9 = sbr.rel (0) target = $region5
  $region4: #{generator_forward.14} parent=0 // pred_region
    _
  $region5: #{generator_forward.14} parent=0 // pred_fallthru
    _
  // Predicated region
  $region6: #{generator_forward.14} parent=0 // pred_check
    _
  $region7: #{generator_forward.14} parent=0 // pred_check_branch
    %11 = sbr.rel (0) target = $region9
  $region8: #{generator_forward.14} parent=0 // pred_region
    _
  $region9: #{generator_forward.14} parent=0 // pred_fallthru
    _
  // Predicated region
  $region10: #{generator_forward.14} parent=0 // pred_check
    _
  $region11: #{generator_forward.14} parent=0 // pred_check_branch
    %13 = sbr.rel (0) target = $region13
  $region12: #{generator_forward.14} parent=0 // pred_region
    _
  $region13: #{generator_forward.14} parent=0 // pred_fallthru
    _
  %v14 = vld [vmem:[%s0] sm:$0xff]
  %v15 = vld [vmem:[%s0 + $0x8] sm:$0xff]
  %v16 = vld [vmem:[%s0 + $0x10] sm:$0xff]
  %v17 = vld [vmem:[%s0 + $0x18] sm:$0xff]
  %v18 = vld [vmem:[%s0 + $0x20] sm:$0xff]
  %v19 = vld [vmem:[%s0 + $0x28] sm:$0xff]
  %v20 = vld [vmem:[%s0 + $0x30] sm:$0xff]
  %v21 = vld [vmem:[%s0 + $0x38] sm:$0xff]
  %v22 = vld [vmem:[%s0 + $0x40] sm:$0xff]
  %v23 = vld [vmem:[%s0 + $0x48] sm:$0xff]
  %v24 = vld [vmem:[%s0 + $0x50] sm:$0xff]
  %v25 = vld [vmem:[%s0 + $0x58] sm:$0xff]
  %v26 = vld [vmem:[%s0 + $0x60] sm:$0xff]
  %v27 = vld [vmem:[%s0 + $0x68] sm:$0xff]
  %v28 = vld [vmem:[%s0 + $0x70] sm:$0xff]
  %v29 = vld [vmem:[%s0 + $0x78] sm:$0xff]
  %v30 = vld [vmem:[%s1] sm:$0xf]
  %v32 = vperm.slane %v30, 0
  %v33 = vperm.slane %v30, 1
  %v34 = vperm.slane %v30, 2
  %v35 = vperm.slane %v30, 3
  %v40 = vmul.f32 %v14, %v32
  %v41 = vmul.f32 %v15, %v33
  %v42 = vmul.f32 %v16, %v34
  %v43 = vmul.f32 %v17, %v35
  %v44 = vmul.f32 %v18, %v32
  %v45 = vmul.f32 %v19, %v33
  %v46 = vmul.f32 %v20, %v34
  %v47 = vmul.f32 %v21, %v35
  %v48 = vmul.f32 %v22, %v32
  %v49 = vmul.f32 %v23, %v33
  %v50 = vmul.f32 %v24, %v34
  %v51 = vmul.f32 %v25, %v35
  %v52 = vmul.f32 %v26, %v32
  %v53 = vmul.f32 %v27, %v33
  %v54 = vmul.f32 %v28, %v34
  %v55 = vmul.f32 %v29, %v35
  %v56 = vld [vmem:[%s2] sm:$0xf]
  %v58 = vperm.slane %v56, 0
  %v59 = vperm.slane %v56, 1
  %v60 = vperm.slane %v56, 2
  %v61 = vperm.slane %v56, 3
  %v66 = vadd.f32 %v40, %v58
  %v67 = vadd.f32 %v41, %v59
  %v68 = vadd.f32 %v42, %v60
  %v69 = vadd.f32 %v43, %v61
  %v70 = vadd.f32 %v44, %v58
  %v71 = vadd.f32 %v45, %v59
  %v72 = vadd.f32 %v46, %v60
  %v73 = vadd.f32 %v47, %v61
  %v74 = vadd.f32 %v48, %v58
  %v75 = vadd.f32 %v49, %v59
  %v76 = vadd.f32 %v50, %v60
  %v77 = vadd.f32 %v51, %v61
  %v78 = vadd.f32 %v52, %v58
  %v79 = vadd.f32 %v53, %v59
  %v80 = vadd.f32 %v54, %v60
  %v81 = vadd.f32 %v55, %v61
  %v82 = vmax.f32 %v66, 0.0
  %v83 = vmax.f32 %v67, 0.0
  %v84 = vmax.f32 %v68, 0.0
  %v85 = vmax.f32 %v69, 0.0
  %v86 = vmax.f32 %v70, 0.0
  %v87 = vmax.f32 %v71, 0.0
  %v88 = vmax.f32 %v72, 0.0
  %v89 = vmax.f32 %v73, 0.0
  %v90 = vmax.f32 %v74, 0.0
  %v91 = vmax.f32 %v75, 0.0
  %v92 = vmax.f32 %v76, 0.0
  %v93 = vmax.f32 %v77, 0.0
  %v94 = vmax.f32 %v78, 0.0
  %v95 = vmax.f32 %v79, 0.0
  %v96 = vmax.f32 %v80, 0.0
  %v97 = vmax.f32 %v81, 0.0
  %v98 = vpack.c.bf16 %v83, %v82
  %v99 = vpack.c.bf16 %v85, %v84
  %v100 = vpack.c.bf16 %v87, %v86
  %v101 = vpack.c.bf16 %v89, %v88
  %v102 = vpack.c.bf16 %v91, %v90
  %v103 = vpack.c.bf16 %v93, %v92
  %v104 = vpack.c.bf16 %v95, %v94
  %v105 = vpack.c.bf16 %v97, %v96
  %106 = vst [vmem:[%s3] sm:$0xff] %v98
  %107 = vst [vmem:[%s3 + $0x8] sm:$0xff] %v99
  %108 = vst [vmem:[%s3 + $0x10] sm:$0xff] %v100
  %109 = vst [vmem:[%s3 + $0x18] sm:$0xff] %v101
  %110 = vst [vmem:[%s3 + $0x20] sm:$0xff] %v102
  %111 = vst [vmem:[%s3 + $0x28] sm:$0xff] %v103
  %112 = vst [vmem:[%s3 + $0x30] sm:$0xff] %v104
  %113 = vst [vmem:[%s3 + $0x38] sm:$0xff] %v105
  // Predicated region
  $region14: #{generator_forward.14} parent=0 // pred_check
    _
  $region15: #{generator_forward.14} parent=0 // pred_check_branch
    %115 = sbr.rel (0) target = $region17
  $region16: #{generator_forward.14} parent=0 // pred_region
    _
  $region17: #{generator_forward.14} parent=0 // pred_fallthru
    _
  // Predicated region
  $region18: #{generator_forward.14} parent=0 // pred_check
    _
  $region19: #{generator_forward.14} parent=0 // pred_check_branch
    %117 = sbr.rel (0) target = $region21
  $region20: #{generator_forward.14} parent=0 // pred_region
    _
  $region21: #{generator_forward.14} parent=0 // pred_fallthru
    _

// kernel: generator_forward.13
$region0: #{generator_forward.13}
  #allocation0 [shape = 'u32[]', space=smem, size = 0x4, offset = 0x4, fixed_abs, tag = 'smem constant byte address 0x4 - core index']
  #allocation1 [shape = 'u32[72,128]{1,0:T(1,128)}', space=vmem, size = 0x9000, scoped, tag = 'internal scratch']
  %s0 = inlined_call_operand.vmem [shape: bf16[32,1152], index: 0, kind: input, shape index: {}]
  %s1 = inlined_call_operand.vmem [shape: bf16[1152,512], index: 1, kind: input, shape index: {}]
  %s2 = inlined_call_operand.vmem [shape: f32[32,512], index: 2, kind: output, shape index: {0}]
  %s3 = inlined_call_operand.vmem [shape: f32[1,2,512], index: 3, kind: output, shape index: {1}]
  %4 = xla_tuple %s2, %s3
  %s5 = sld [smem:[#allocation0]]
  $region98: #{generator_forward.13} parent=0
    _
  %s7 = ssub.s32 1, %s5
  %s8 = scalar_select 0, %s7, %s5
  $region1: #{generator_forward.13} parent=0
    #allocation2 [shape = 'u8[16384]{0}', space=vmem, size = 0x4000, scoped, tag = 'input window, operand 0']
    loop: start=0, step=1, limit=11
    $region2: #{generator_forward.13} parent=1 // loop_pre_header
      _
    $region3: #{generator_forward.13} parent=1 // loop_header
      %s10 = sphi 0, %s14
      %p11 = scmp.ge.s32.totalorder %s10, 11
      %s17 = sphi 0, %s36
      %s18 = sphi 0, %s32
      %s19 = sphi 0, %s28
      %s20 = sphi 0, %s17
      %s21 = sphi 0, %s18
      %s22 = sphi 0, %s19
      %s23 = sphi 0, %s20
      %s24 = sphi 0, %s21
      %s25 = sphi 0, %s22
      %s41 = sphi 0, %s43
      %s44 = sphi 0, %s41
      %s45 = sphi 0, %s44
      %s61 = sphi 0, %s45
      %s69 = sphi 0, %s71
      %s72 = sphi 0, %s69
      %s73 = sphi 0, %s72
      %s89 = sphi 0, %s73
      %s97 = sphi 0, %s99
      %s100 = sphi 0, %s97
      %s101 = sphi 0, %s100
      %s117 = sphi 0, %s101
      %s125 = sphi 0, %s127
      %s128 = sphi 0, %s125
      %s129 = sphi 0, %s128
      %s145 = sphi 0, %s129
    $region4: #{generator_forward.13} parent=1 // loop_header_branch
      %13 = sbr.rel (%p11) target = $region8
    $region5: #{generator_forward.13} parent=1 // loop_body
      %s15 = ssub.s32 %s10, 1
      %s16 = ssub.s32 %s10, 2
      %s26 = sadd.s32 1, %s19
      %p27 = scmp.ge.s32.totalorder %s26, 9
      %s28 = scalar_select %p27, 0, %s26
      %s29 = sadd.s32 1, %s18
      %s30 = scalar_select %p27, %s29, %s18
      %p31 = scmp.ge.s32.totalorder %s30, 1
      %s32 = scalar_select %p31, 0, %s30
      %s33 = sadd.s32 1, %s17
      %s34 = scalar_select %p31, %s33, %s17
      %p35 = scmp.ge.s32.totalorder %s34, 1
      %s36 = scalar_select %p35, 0, %s34
      %s37 = ssub.s32 %s17, %s36
      %s38 = ssub.s32 %s19, %s28
      %s39 = sor.u32 %s37, %s38
      %p40 = scmp.eq.s32.totalorder %s39, 0
      %s42 = sadd.s32 %s41, 1
      %s43 = scalar_select %p40, %s41, %s42
      %p46 = pneg %p40
      %p47 = scmp.eq.s32.totalorder %s10, 8
      %p48 = por %p46, %p47
      %p49 = scmp.ne.s32.totalorder %s41, %s44
      %p50 = scmp.eq.s32.totalorder %s10, 0
      %p51 = por %p49, %p50
      %p52 = scmp.ne.s32.totalorder %s41, %s44
      %p53 = scmp.eq.s32.totalorder %s15, 8
      %p54 = por %p52, %p53
      %p55 = scmp.ne.s32.totalorder %s44, %s45
      %p56 = scmp.eq.s32.totalorder %s15, 0
      %p57 = por %p55, %p56
      %p58 = scmp.ne.s32.totalorder %s44, %s45
      %p59 = scmp.eq.s32.totalorder %s16, 8
      %p60 = por %p58, %p59
      %p62 = scmp.ne.s32.totalorder %s45, %s61
      %p63 = scmp.eq.s32.totalorder %s16, 0
      %p64 = por %p62, %p63
      %s65 = ssub.s32 %s19, %s28
      %s66 = ssub.s32 %s18, %s32
      %s67 = sor.u32 %s65, %s66
      %p68 = scmp.eq.s32.totalorder %s67, 0
      %s70 = sadd.s32 %s69, 1
      %s71 = scalar_select %p68, %s69, %s70
      %p74 = pneg %p68
      %p75 = scmp.eq.s32.totalorder %s10, 8
      %p76 = por %p74, %p75
      %p77 = scmp.ne.s32.totalorder %s69, %s72
      %p78 = scmp.eq.s32.totalorder %s10, 0
      %p79 = por %p77, %p78
      %p80 = scmp.ne.s32.totalorder %s69, %s72
      %p81 = scmp.eq.s32.totalorder %s15, 8
      %p82 = por %p80, %p81
      %p83 = scmp.ne.s32.totalorder %s72, %s73
      %p84 = scmp.eq.s32.totalorder %s15, 0
      %p85 = por %p83, %p84
      %p86 = scmp.ne.s32.totalorder %s72, %s73
      %p87 = scmp.eq.s32.totalorder %s16, 8
      %p88 = por %p86, %p87
      %p90 = scmp.ne.s32.totalorder %s73, %s89
      %p91 = scmp.eq.s32.totalorder %s16, 0
      %p92 = por %p90, %p91
      %s93 = ssub.s32 %s17, %s36
      %s94 = ssub.s32 %s18, %s32
      %s95 = sor.u32 %s93, %s94
      %p96 = scmp.eq.s32.totalorder %s95, 0
      %s98 = sadd.s32 %s97, 1
      %s99 = scalar_select %p96, %s97, %s98
      %p102 = pneg %p96
      %p103 = scmp.eq.s32.totalorder %s10, 8
      %p104 = por %p102, %p103
      %p105 = scmp.ne.s32.totalorder %s97, %s100
      %p106 = scmp.eq.s32.totalorder %s10, 0
      %p107 = por %p105, %p106
      %p108 = scmp.ne.s32.totalorder %s97, %s100
      %p109 = scmp.eq.s32.totalorder %s15, 8
      %p110 = por %p108, %p109
      %p111 = scmp.ne.s32.totalorder %s100, %s101
      %p112 = scmp.eq.s32.totalorder %s15, 0
      %p113 = por %p111, %p112
      %p114 = scmp.ne.s32.totalorder %s100, %s101
      %p115 = scmp.eq.s32.totalorder %s16, 8
      %p116 = por %p114, %p115
      %p118 = scmp.ne.s32.totalorder %s101, %s117
      %p119 = scmp.eq.s32.totalorder %s16, 0
      %p120 = por %p118, %p119
      %s121 = ssub.s32 %s17, %s36
      %s122 = ssub.s32 %s18, %s32
      %s123 = sor.u32 %s121, %s122
      %p124 = scmp.eq.s32.totalorder %s123, 0
      %s126 = sadd.s32 %s125, 1
      %s127 = scalar_select %p124, %s125, %s126
      %p130 = pneg %p124
      %p131 = scmp.eq.s32.totalorder %s10, 8
      %p132 = por %p130, %p131
      %p133 = scmp.ne.s32.totalorder %s125, %s128
      %p134 = scmp.eq.s32.totalorder %s10, 0
      %p135 = por %p133, %p134
      %p136 = scmp.ne.s32.totalorder %s125, %s128
      %p137 = scmp.eq.s32.totalorder %s15, 8
      %p138 = por %p136, %p137
      %p139 = scmp.ne.s32.totalorder %s128, %s129
      %p140 = scmp.eq.s32.totalorder %s15, 0
      %p141 = por %p139, %p140
      %p142 = scmp.ne.s32.totalorder %s128, %s129
      %p143 = scmp.eq.s32.totalorder %s16, 8
      %p144 = por %p142, %p143
      %p146 = scmp.ne.s32.totalorder %s129, %s145
      %p147 = scmp.eq.s32.totalorder %s16, 0
      %p148 = por %p146, %p147
      %p149 = scmp.le.s32.totalorder 1, %s10
      %p150 = scmp.lt.s32.totalorder %s10, 10
      %p151 = pnand %p149, %p150
      %p152 = pneg %p151
      // Predicated region
      $region9: #{generator_forward.13} parent=5 // pred_check
        _
      $region10: #{generator_forward.13} parent=5 // pred_check_branch
        %154 = sbr.rel (%p151) target = $region12
      $region11: #{generator_forward.13} parent=5 // pred_region
        %s155 = ssub.s32 %s10, 1
      $region12: #{generator_forward.13} parent=5 // pred_fallthru
        _
      %p156 = scmp.lt.s32.totalorder %s10, 9
      // Predicated region
      $region13: #{generator_forward.13} parent=5 // pred_check
        %p157 = pneg %p156
      $region14: #{generator_forward.13} parent=5 // pred_check_branch
        %159 = sbr.rel (%p157) target = $region16
      $region15: #{generator_forward.13} parent=5 // pred_region
        // Predicated region
        $region17: #{generator_forward.13} parent=15 // pred_check
          %p160 = pneg %p51
        $region18: #{generator_forward.13} parent=15 // pred_check_branch
          %162 = sbr.rel (%p160) target = $region20
        $region19: #{generator_forward.13} parent=15 // pred_region
          %s163 = sand.u32 %s41, 1
          %s164 = sand.u32 %s41, 1
          %s165 = smul.addr %s164, 16
          %s166 = scalar_lea.vmem [#allocation2], %s165
          %s167 = smul.u32 4, %s17
          %s168 = smul.addr %s167, 9
          %s169 = sadd.s32 %s19, %s168
          %s170 = smul.addr %s169, 4
          %s171 = scalar_lea.vmem %s0, %s170
          // Predicated region
          $region21: #{generator_forward.13} parent=19 // pred_check
            _
          $region22: #{generator_forward.13} parent=19 // pred_check_branch
            %173 = sbr.rel (0) target = $region24
          $region23: #{generator_forward.13} parent=19 // pred_region
            // Predicated region
            $region25: #{generator_forward.13} parent=23 // pred_check
              _
            $region26: #{generator_forward.13} parent=23 // pred_check_branch
              %175 = sbr.rel target = $region28
            $region27: #{generator_forward.13} parent=23 // pred_region
              // Predicated region
              $region40: #{generator_forward.13} parent=27 // pred_check
                _
              $region41: #{generator_forward.13} parent=27 // pred_check_branch
                %197 = sbr.rel (0) target = $region43
              $region42: #{generator_forward.13} parent=27 // pred_region
                loop: start=0, step=1, limit=1
                $region44: #{generator_forward.13} parent=42 // loop_pre_header
                  _
                $region45: #{generator_forward.13} parent=42 // loop_header
                  %s199 = sphi 0, %s203
                  %p200 = scmp.ge.s32.totalorder %s199, 1
                  %s204 = sphi %s171, %s171
                  %s205 = sphi %s166, %s166
                $region46: #{generator_forward.13} parent=42 // loop_header_branch
                  %202 = sbr.rel (%p200) target = $region50
                $region47: #{generator_forward.13} parent=42 // loop_body
                  _
                $region48: #{generator_forward.13} parent=42 // loop_footer
                  %s203 = sadd.s32 1, %s199
                $region49: #{generator_forward.13} parent=42 // loop_footer_branch
                  %198 = sbr.rel target = $region45
                $region50: #{generator_forward.13} parent=42 // loop_exit
                  _
                %s207 = ssub.s32 16, 1
                loop: start=0, step=1, limit=1
                $region51: #{generator_forward.13} parent=42 // loop_pre_header
                  _
                $region52: #{generator_forward.13} parent=42 // loop_header
                  %s209 = sphi 0, %s213
                  %p210 = scmp.ge.s32.totalorder %s209, 1
                  %s214 = sphi %s171, %s171
                  %s215 = sphi %s166, %s166
                $region53: #{generator_forward.13} parent=42 // loop_header_branch
                  %212 = sbr.rel (%p210) target = $region57
                $region54: #{generator_forward.13} parent=42 // loop_body
                  %v216 = vld [vmem:[%s214] sm:%s207]
                  %217 = vst [vmem:[%s215] sm:%s207] %v216
                  %v218 = vld [vmem:[%s214 + $0x24] sm:%s207]
                  %219 = vst [vmem:[%s215 + $0x4] sm:%s207] %v218
                  %v220 = vld [vmem:[%s214 + $0x48] sm:%s207]
                  %221 = vst [vmem:[%s215 + $0x8] sm:%s207] %v220
                  %v222 = vld [vmem:[%s214 + $0x6c] sm:%s207]
                  %223 = vst [vmem:[%s215 + $0xc] sm:%s207] %v222
                $region55: #{generator_forward.13} parent=42 // loop_footer
                  %s213 = sadd.s32 1, %s209
                $region56: #{generator_forward.13} parent=42 // loop_footer_branch
                  %208 = sbr.rel target = $region52
                $region57: #{generator_forward.13} parent=42 // loop_exit
                  _
              $region43: #{generator_forward.13} parent=27 // pred_fallthru
                _
            $region28: #{generator_forward.13} parent=23 // pred_fallthru
              _
            // Predicated region
            $region29: #{generator_forward.13} parent=23 // pred_check
              _
            $region30: #{generator_forward.13} parent=23 // pred_check_branch
              %177 = sbr.rel (0) target = $region32
            $region31: #{generator_forward.13} parent=23 // pred_region
              %s179 = ssub.s32 16, 1
              loop: start=0, step=1, limit=1
              $region33: #{generator_forward.13} parent=31 // loop_pre_header
                _
              $region34: #{generator_forward.13} parent=31 // loop_header
                %s181 = sphi 0, %s185
                %p182 = scmp.ge.s32.totalorder %s181, 1
                %s186 = sphi %s171, %s171
                %s187 = sphi %s166, %s166
              $region35: #{generator_forward.13} parent=31 // loop_header_branch
                %184 = sbr.rel (%p182) target = $region39
              $region36: #{generator_forward.13} parent=31 // loop_body
                %v188 = vld [vmem:[%s186] sm:%s179]
                %189 = vst [vmem:[%s187] sm:%s179] %v188
                %v190 = vld [vmem:[%s186 + $0x24] sm:%s179]
                %191 = vst [vmem:[%s187 + $0x4] sm:%s179] %v190
                %v192 = vld [vmem:[%s186 + $0x48] sm:%s179]
                %193 = vst [vmem:[%s187 + $0x8] sm:%s179] %v192
                %v194 = vld [vmem:[%s186 + $0x6c] sm:%s179]
                %195 = vst [vmem:[%s187 + $0xc] sm:%s179] %v194
              $region37: #{generator_forward.13} parent=31 // loop_footer
                %s185 = sadd.s32 1, %s181
              $region38: #{generator_forward.13} parent=31 // loop_footer_branch
                %180 = sbr.rel target = $region34
              $region39: #{generator_forward.13} parent=31 // loop_exit
                _
            $region32: #{generator_forward.13} parent=23 // pred_fallthru
              _
          $region24: #{generator_forward.13} parent=19 // pred_fallthru
            _
          %224 = vnop
        $region20: #{generator_forward.13} parent=15 // pred_fallthru
          _
        // Predicated region
        $region58: #{generator_forward.13} parent=15 // pred_check
          %p225 = pneg %p79
        $region59: #{generator_forward.13} parent=15 // pred_check_branch
          %227 = sbr.rel (%p225) target = $region61
        $region60: #{generator_forward.13} parent=15 // pred_region
          %s228 = smul.u32 16, %s19
          %s229 = smul.u32 4, %s18
          %p230 = scmp.lt.s32.totalorder %s228, 143
          %s231 = scalar_select %p230, %s228, 143
          %p232 = scmp.lt.s32.totalorder %s229, 3
          %s233 = scalar_select %p232, %s229, 3
          %s234 = smul.addr %s231, 4
          %s235 = sadd.s32 %s233, %s234
          %s236 = smul.addr %s235, 4
          %s237 = scalar_lea.vmem %s1, %s236
          %s238 = smul.u32 16, %s19
          %s239 = smul.u32 4, %s18
        $region61: #{generator_forward.13} parent=15 // pred_fallthru
          _
      $region16: #{generator_forward.13} parent=5 // pred_fallthru
        _
      %p240 = scmp.le.s32.totalorder 1, %s10
      %p241 = scmp.lt.s32.totalorder %s10, 10
      %p242 = pnand %p240, %p241
      %p243 = pneg %p242
      // Predicated region
      $region62: #{generator_forward.13} parent=5 // pred_check
        _
      $region63: #{generator_forward.13} parent=5 // pred_check_branch
        %245 = sbr.rel (%p242) target = $region65
      $region64: #{generator_forward.13} parent=5 // pred_region
        %s246 = ssub.s32 %s10, 1
        %s247 = sand.u32 %s44, 1
        %s248 = sand.u32 %s44, 1
        %s249 = smul.addr %s248, 16
        %s250 = scalar_lea.vmem [#allocation2], %s249
        // Predicated region
        $region66: #{generator_forward.13} parent=64 // pred_check
          %p251 = pneg %p57
        $region67: #{generator_forward.13} parent=64 // pred_check_branch
          %253 = sbr.rel (%p251) target = $region69
        $region68: #{generator_forward.13} parent=64 // pred_region
          _
        $region69: #{generator_forward.13} parent=64 // pred_fallthru
          _
        %s254 = sand.u32 %s44, 1
        %s255 = sand.u32 %s44, 1
        %s256 = smul.addr %s255, 16
        %s257 = scalar_lea.vmem [#allocation2], %s256
        %p258 = pneg %p57
        %p259 = pneg %p54
        %s260 = smul.u32 16, %s22
        %s261 = smul.u32 4, %s21
        %p262 = scmp.lt.s32.totalorder %s260, 143
        %s263 = scalar_select %p262, %s260, 143
        %p264 = scmp.lt.s32.totalorder %s261, 3
        %s265 = scalar_select %p264, %s261, 3
        %s266 = smul.addr %s263, 4
        %s267 = sadd.s32 %s265, %s266
        %s268 = smul.addr %s267, 4
        %s269 = scalar_lea.vmem %s1, %s268
        %p270 = pneg %p85
        %p271 = pneg %p82
        %p272 = pneg %p113
        %p273 = pneg %p110
        %s274 = smul.u32 4, %s20
        %s275 = smul.u32 4, %s21
        %p276 = scmp.lt.s32.totalorder %s274, 3
        %s277 = scalar_select %p276, %s274, 3
        %p278 = scmp.lt.s32.totalorder %s275, 3
        %s279 = scalar_select %p278, %s275, 3
        %s280 = smul.addr %s277, 4
        %s281 = sadd.s32 %s279, %s280
        %s282 = smul.addr %s281, 8
        %s283 = scalar_lea.vmem %s2, %s282
        %p284 = pneg %p141
        %p285 = pneg %p138
        %s286 = smul.u32 4, %s21
        %p287 = scmp.lt.s32.totalorder %s20, 0
        %s288 = scalar_select %p287, %s20, 0
        %p289 = scmp.lt.s32.totalorder %s286, 3
        %s290 = scalar_select %p289, %s286, 3
        %s291 = smul.addr %s288, 4
        %s292 = sadd.s32 %s290, %s291
        %s293 = smul.addr %s292, 2
        %s294 = scalar_lea.vmem %s3, %s293
        %s295 = smul.u32 4, %s20
        %s296 = smul.u32 16, %s22
        %s297 = smul.u32 4, %s21
        %p298 = scmp.lt.s32.totalorder %s296, 143
        %s299 = scalar_select %p298, %s296, 143
        %p300 = scmp.lt.s32.totalorder %s297, 3
        %s301 = scalar_select %p300, %s297, 3
        %s302 = smul.addr %s299, 4
        %s303 = sadd.s32 %s301, %s302
        %s304 = smul.addr %s303, 4
        %s305 = scalar_lea.vmem %s1, %s304
        %s306 = smul.u32 16, %s22
        %s307 = smul.u32 4, %s21
        %s308 = smul.u32 4, %s20
        %s309 = smul.u32 4, %s21
        %p310 = scmp.lt.s32.totalorder %s308, 3
        %s311 = scalar_select %p310, %s308, 3
        %p312 = scmp.lt.s32.totalorder %s309, 3
        %s313 = scalar_select %p312, %s309, 3
        %s314 = smul.addr %s311, 4
        %s315 = sadd.s32 %s313, %s314
        %s316 = smul.addr %s315, 8
        %s317 = scalar_lea.vmem %s2, %s316
        %s318 = smul.u32 4, %s20
        %s319 = smul.u32 4, %s21
        %s320 = smul.u32 4, %s21
        %p321 = scmp.lt.s32.totalorder %s20, 0
        %s322 = scalar_select %p321, %s20, 0
        %p323 = scmp.lt.s32.totalorder %s320, 3
        %s324 = scalar_select %p323, %s320, 3
        %s325 = smul.addr %s322, 4
        %s326 = sadd.s32 %s324, %s325
        %s327 = smul.addr %s326, 2
        %s328 = scalar_lea.vmem %s3, %s327
        %s329 = smul.u32 4, %s21
        %p330 = scmp.eq.s32.totalorder %s22, 0
        // Predicated region
        $region70: #{generator_forward.13} parent=64 // pred_check
          %p331 = pneg %p330
        $region71: #{generator_forward.13} parent=64 // pred_check_branch
          %333 = sbr.rel (%p331) target = $region73
        $region72: #{generator_forward.13} parent=64 // pred_region
          %334 = vst [vmem:[%s317] sm:$0xff] 0.0
          %335 = vst [vmem:[%s317 + $0x8] sm:$0xff] 0.0
          %336 = vst [vmem:[%s317 + $0x10] sm:$0xff] 0.0
          %337 = vst [vmem:[%s317 + $0x18] sm:$0xff] 0.0
          %338 = vst [vmem:[%s317 + $0x20] sm:$0xff] 0.0
          %339 = vst [vmem:[%s317 + $0x28] sm:$0xff] 0.0
          %340 = vst [vmem:[%s317 + $0x30] sm:$0xff] 0.0
          %341 = vst [vmem:[%s317 + $0x38] sm:$0xff] 0.0
          %342 = vst [vmem:[%s317 + $0x40] sm:$0xff] 0.0
          %343 = vst [vmem:[%s317 + $0x48] sm:$0xff] 0.0
          %344 = vst [vmem:[%s317 + $0x50] sm:$0xff] 0.0
          %345 = vst [vmem:[%s317 + $0x58] sm:$0xff] 0.0
          %346 = vst [vmem:[%s317 + $0x60] sm:$0xff] 0.0
          %347 = vst [vmem:[%s317 + $0x68] sm:$0xff] 0.0
          %348 = vst [vmem:[%s317 + $0x70] sm:$0xff] 0.0
          %349 = vst [vmem:[%s317 + $0x78] sm:$0xff] 0.0
        $region73: #{generator_forward.13} parent=64 // pred_fallthru
          _
        %v350 = vld [vmem:[%s317] sm:$0xff]
        %v351 = vld [vmem:[%s317 + $0x8] sm:$0xff]
        %v352 = vld [vmem:[%s317 + $0x10] sm:$0xff]
        %v353 = vld [vmem:[%s317 + $0x18] sm:$0xff]
        %v354 = vld [vmem:[%s317 + $0x20] sm:$0xff]
        %v355 = vld [vmem:[%s317 + $0x28] sm:$0xff]
        %v356 = vld [vmem:[%s317 + $0x30] sm:$0xff]
        %v357 = vld [vmem:[%s317 + $0x38] sm:$0xff]
        %v358 = vld [vmem:[%s317 + $0x40] sm:$0xff]
        %v359 = vld [vmem:[%s317 + $0x48] sm:$0xff]
        %v360 = vld [vmem:[%s317 + $0x50] sm:$0xff]
        %v361 = vld [vmem:[%s317 + $0x58] sm:$0xff]
        %v362 = vld [vmem:[%s317 + $0x60] sm:$0xff]
        %v363 = vld [vmem:[%s317 + $0x68] sm:$0xff]
        %v364 = vld [vmem:[%s317 + $0x70] sm:$0xff]
        %v365 = vld [vmem:[%s317 + $0x78] sm:$0xff]
        %v366 = vld [vmem:[%s250] sm:$0xf]
        %v367 = vld [vmem:[%s250 + $0x4] sm:$0xf]
        %v368 = vld [vmem:[%s250 + $0x8] sm:$0xf]
        %v369 = vld [vmem:[%s250 + $0xc] sm:$0xf]
        %v370 = vld [vmem:[%s305] sm:$0xff]
        %v371 = vld [vmem:[%s305 + $0x8] sm:$0xff]
        %v372 = vld [vmem:[%s305 + $0x10] sm:$0xff]
        %v373 = vld [vmem:[%s305 + $0x18] sm:$0xff]
        %v374 = vld [vmem:[%s305 + $0x20] sm:$0xff]
        %v375 = vld [vmem:[%s305 + $0x28] sm:$0xff]
        %v376 = vld [vmem:[%s305 + $0x30] sm:$0xff]
        %v377 = vld [vmem:[%s305 + $0x38] sm:$0xff]
        %v378 = vld [vmem:[%s305 + $0x40] sm:$0xff]
        %v379 = vld [vmem:[%s305 + $0x48] sm:$0xff]
        %v380 = vld [vmem:[%s305 + $0x50] sm:$0xff]
        %v381 = vld [vmem:[%s305 + $0x58] sm:$0xff]
        %v382 = vld [vmem:[%s305 + $0x60] sm:$0xff]
        %v383 = vld [vmem:[%s305 + $0x68] sm:$0xff]
        %v384 = vld [vmem:[%s305 + $0x70] sm:$0xff]
        %v385 = vld [vmem:[%s305 + $0x78] sm:$0xff]
        %v386 = vld [vmem:[%s305 + $0x80] sm:$0xff]
        %v387 = vld [vmem:[%s305 + $0x88] sm:$0xff]
        %v388 = vld [vmem:[%s305 + $0x90] sm:$0xff]
        %v389 = vld [vmem:[%s305 + $0x98] sm:$0xff]
        %v390 = vld [vmem:[%s305 + $0xa0] sm:$0xff]
        %v391 = vld [vmem:[%s305 + $0xa8] sm:$0xff]
        %v392 = vld [vmem:[%s305 + $0xb0] sm:$0xff]
        %v393 = vld [vmem:[%s305 + $0xb8] sm:$0xff]
        %v394 = vld [vmem:[%s305 + $0xc0] sm:$0xff]
        %v395 = vld [vmem:[%s305 + $0xc8] sm:$0xff]
        %v396 = vld [vmem:[%s305 + $0xd0] sm:$0xff]
        %v397 = vld [vmem:[%s305 + $0xd8] sm:$0xff]
        %v398 = vld [vmem:[%s305 + $0xe0] sm:$0xff]
        %v399 = vld [vmem:[%s305 + $0xe8] sm:$0xff]
        %v400 = vld [vmem:[%s305 + $0xf0] sm:$0xff]
        %v401 = vld [vmem:[%s305 + $0xf8] sm:$0xff]
        %v406 = vunpack.c.l.b16 %v366
        %v407 = vunpack.c.l.b16 %v367
        %v408 = vunpack.c.l.b16 %v368
        %v409 = vunpack.c.l.b16 %v369
        %v410 = vpack.c.b16 %v407, %v406
        %v411 = vpack.c.b16 %v409, %v408
        %v446 = vunpack.c.l.b16 %v370
        %v447 = vunpack.c.h.b16 %v370
        %v448 = vunpack.c.l.b16 %v371
        %v449 = vunpack.c.h.b16 %v371
        %v450 = vunpack.c.l.b16 %v372
        %v451 = vunpack.c.h.b16 %v372
        %v452 = vunpack.c.l.b16 %v373
        %v453 = vunpack.c.h.b16 %v373
        %v454 = vunpack.c.l.b16 %v374
        %v455 = vunpack.c.h.b16 %v374
        %v456 = vunpack.c.l.b16 %v375
        %v457 = vunpack.c.h.b16 %v375
        %v458 = vunpack.c.l.b16 %v376
        %v459 = vunpack.c.h.b16 %v376
        %v460 = vunpack.c.l.b16 %v377
        %v461 = vunpack.c.h.b16 %v377
        %v462 = vunpack.c.l.b16 %v378
        %v463 = vunpack.c.h.b16 %v378
        %v464 = vunpack.c.l.b16 %v379
        %v465 = vunpack.c.h.b16 %v379
        %v466 = vunpack.c.l.b16 %v380
        %v467 = vunpack.c.h.b16 %v380
        %v468 = vunpack.c.l.b16 %v381
        %v469 = vunpack.c.h.b16 %v381
        %v470 = vunpack.c.l.b16 %v382
        %v471 = vunpack.c.h.b16 %v382
        %v472 = vunpack.c.l.b16 %v383
        %v473 = vunpack.c.h.b16 %v383
        %v474 = vunpack.c.l.b16 %v384
        %v475 = vunpack.c.h.b16 %v384
        %v476 = vunpack.c.l.b16 %v385
        %v477 = vunpack.c.h.b16 %v385
        %v478 = vunpack.c.l.b16 %v386
        %v479 = vunpack.c.h.b16 %v386
        %v480 = vunpack.c.l.b16 %v387
        %v481 = vunpack.c.h.b16 %v387
        %v482 = vunpack.c.l.b16 %v388
        %v483 = vunpack.c.h.b16 %v388
        %v484 = vunpack.c.l.b16 %v389
        %v485 = vunpack.c.h.b16 %v389
        %v486 = vunpack.c.l.b16 %v390
        %v487 = vunpack.c.h.b16 %v390
        %v488 = vunpack.c.l.b16 %v391
        %v489 = vunpack.c.h.b16 %v391
        %v490 = vunpack.c.l.b16 %v392
        %v491 = vunpack.c.h.b16 %v392
        %v492 = vunpack.c.l.b16 %v393
        %v493 = vunpack.c.h.b16 %v393
        %v494 = vunpack.c.l.b16 %v394
        %v495 = vunpack.c.h.b16 %v394
        %v496 = vunpack.c.l.b16 %v395
        %v497 = vunpack.c.h.b16 %v395
        %v498 = vunpack.c.l.b16 %v396
        %v499 = vunpack.c.h.b16 %v396
        %v500 = vunpack.c.l.b16 %v397
        %v501 = vunpack.c.h.b16 %v397
        %v502 = vunpack.c.l.b16 %v398
        %v503 = vunpack.c.h.b16 %v398
        %v504 = vunpack.c.l.b16 %v399
        %v505 = vunpack.c.h.b16 %v399
        %v506 = vunpack.c.l.b16 %v400
        %v507 = vunpack.c.h.b16 %v400
        %v508 = vunpack.c.l.b16 %v401
        %v509 = vunpack.c.h.b16 %v401
        %v510 = vpack.c.b16 %v450, %v446
        %v511 = vpack.c.b16 %v451, %v447
        %v512 = vpack.c.b16 %v452, %v448
        %v513 = vpack.c.b16 %v453, %v449
        %v514 = vpack.c.b16 %v458, %v454
        %v515 = vpack.c.b16 %v459, %v455
        %v516 = vpack.c.b16 %v460, %v456
        %v517 = vpack.c.b16 %v461, %v457
        %v518 = vpack.c.b16 %v466, %v462
        %v519 = vpack.c.b16 %v467, %v463
        %v520 = vpack.c.b16 %v468, %v464
        %v521 = vpack.c.b16 %v469, %v465
        %v522 = vpack.c.b16 %v474, %v470
        %v523 = vpack.c.b16 %v475, %v471
        %v524 = vpack.c.b16 %v476, %v472
        %v525 = vpack.c.b16 %v477, %v473
        %v526 = vpack.c.b16 %v482, %v478
        %v527 = vpack.c.b16 %v483, %v479
        %v528 = vpack.c.b16 %v484, %v480
        %v529 = vpack.c.b16 %v485, %v481
        %v530 = vpack.c.b16 %v490, %v486
        %v531 = vpack.c.b16 %v491, %v487
        %v532 = vpack.c.b16 %v492, %v488
        %v533 = vpack.c.b16 %v493, %v489
        %v534 = vpack.c.b16 %v498, %v494
        %v535 = vpack.c.b16 %v499, %v495
        %v536 = vpack.c.b16 %v500, %v496
        %v537 = vpack.c.b16 %v501, %v497
        %v538 = vpack.c.b16 %v506, %v502
        %v539 = vpack.c.b16 %v507, %v503
        %v540 = vpack.c.b16 %v508, %v504
        %v541 = vpack.c.b16 %v509, %v505
        %574 = vmatpush.bf16.msra.mxu0 %v538
        %575 = vmatpush.bf16.msra.mxu0 %v534
        %576 = vmatpush.bf16.msra.mxu0 %v530
        %577 = vmatpush.bf16.msra.mxu0 %v526
        %578 = vmatpush.bf16.msra.mxu0 %v522
        %579 = vmatpush.bf16.msra.mxu0 %v518
        %580 = vmatpush.bf16.msra.mxu0 %v514
        %581 = vmatpush.bf16.msra.mxu0 %v510
        %582 = vmatmul.bf16.gmra.mxu0 %v410
        %v583 = vpop.f32.mrf.mxu0
        %v584 = vadd.f32 0.0, %v583
        %v585 = vpop.f32.mrf.mxu0
        %v586 = vadd.f32 0.0, %v585
        %587 = vmatmul.bf16.gmra.mxu0 %v411
        %v588 = vpop.f32.mrf.mxu0
        %v589 = vadd.f32 0.0, %v588
        %v590 = vpop.f32.mrf.mxu0
        %v591 = vadd.f32 0.0, %v590
        %592 = vdwg.mxu0
        %593 = vmatpush.bf16.msra.mxu0 %v539
        %594 = vmatpush.bf16.msra.mxu0 %v535
        %595 = vmatpush.bf16.msra.mxu0 %v531
        %596 = vmatpush.bf16.msra.mxu0 %v527
        %597 = vmatpush.bf16.msra.mxu0 %v523
        %598 = vmatpush.bf16.msra.mxu0 %v519
        %599 = vmatpush.bf16.msra.mxu0 %v515
        %600 = vmatpush.bf16.msra.mxu0 %v511
        %601 = vmatmul.bf16.gmra.mxu0 %v410
        %v602 = vpop.f32.mrf.mxu0
        %v603 = vadd.f32 0.0, %v602
        %v604 = vpop.f32.mrf.mxu0
        %v605 = vadd.f32 0.0, %v604
        %606 = vmatmul.bf16.gmra.mxu0 %v411
        %v607 = vpop.f32.mrf.mxu0
        %v608 = vadd.f32 0.0, %v607
        %v609 = vpop.f32.mrf.mxu0
        %v610 = vadd.f32 0.0, %v609
        %611 = vdwg.mxu0
        %612 = vmatpush.bf16.msra.mxu0 %v540
        %613 = vmatpush.bf16.msra.mxu0 %v536
        %614 = vmatpush.bf16.msra.mxu0 %v532
        %615 = vmatpush.bf16.msra.mxu0 %v528
        %616 = vmatpush.bf16.msra.mxu0 %v524
        %617 = vmatpush.bf16.msra.mxu0 %v520
        %618 = vmatpush.bf16.msra.mxu0 %v516
        %619 = vmatpush.bf16.msra.mxu0 %v512
        %620 = vmatmul.bf16.gmra.mxu0 %v410
        %v621 = vpop.f32.mrf.mxu0
        %v622 = vadd.f32 0.0, %v621
        %v623 = vpop.f32.mrf.mxu0
        %v624 = vadd.f32 0.0, %v623
        %625 = vmatmul.bf16.gmra.mxu0 %v411
        %v626 = vpop.f32.mrf.mxu0
        %v627 = vadd.f32 0.0, %v626
        %v628 = vpop.f32.mrf.mxu0
        %v629 = vadd.f32 0.0, %v628
        %630 = vdwg.mxu0
        %631 = vmatpush.bf16.msra.mxu0 %v541
        %632 = vmatpush.bf16.msra.mxu0 %v537
        %633 = vmatpush.bf16.msra.mxu0 %v533
        %634 = vmatpush.bf16.msra.mxu0 %v529
        %635 = vmatpush.bf16.msra.mxu0 %v525
        %636 = vmatpush.bf16.msra.mxu0 %v521
        %637 = vmatpush.bf16.msra.mxu0 %v517
        %638 = vmatpush.bf16.msra.mxu0 %v513
        %639 = vmatmul.bf16.gmra.mxu0 %v410
        %v640 = vpop.f32.mrf.mxu0
        %v641 = vadd.f32 0.0, %v640
        %v642 = vpop.f32.mrf.mxu0
        %v643 = vadd.f32 0.0, %v642
        %644 = vmatmul.bf16.gmra.mxu0 %v411
        %v645 = vpop.f32.mrf.mxu0
        %v646 = vadd.f32 0.0, %v645
        %v647 = vpop.f32.mrf.mxu0
        %v648 = vadd.f32 0.0, %v647
        %649 = vdwg.mxu0
        %v650 = vadd.f32 %v350, %v584
        %v651 = vadd.f32 %v351, %v603
        %v652 = vadd.f32 %v352, %v622
        %v653 = vadd.f32 %v353, %v641
        %v654 = vadd.f32 %v354, %v586
        %v655 = vadd.f32 %v355, %v605
        %v656 = vadd.f32 %v356, %v624
        %v657 = vadd.f32 %v357, %v643
        %v658 = vadd.f32 %v358, %v589
        %v659 = vadd.f32 %v359, %v608
        %v660 = vadd.f32 %v360, %v627
        %v661 = vadd.f32 %v361, %v646
        %v662 = vadd.f32 %v362, %v591
        %v663 = vadd.f32 %v363, %v610
        %v664 = vadd.f32 %v364, %v629
        %v665 = vadd.f32 %v365, %v648
        %666 = vst [vmem:[%s317] sm:$0xff] %v650
        %667 = vst [vmem:[%s317 + $0x8] sm:$0xff] %v651
        %668 = vst [vmem:[%s317 + $0x10] sm:$0xff] %v652
        %669 = vst [vmem:[%s317 + $0x18] sm:$0xff] %v653
        %670 = vst [vmem:[%s317 + $0x20] sm:$0xff] %v654
        %671 = vst [vmem:[%s317 + $0x28] sm:$0xff] %v655
        %672 = vst [vmem:[%s317 + $0x30] sm:$0xff] %v656
        %673 = vst [vmem:[%s317 + $0x38] sm:$0xff] %v657
        %674 = vst [vmem:[%s317 + $0x40] sm:$0xff] %v658
        %675 = vst [vmem:[%s317 + $0x48] sm:$0xff] %v659
        %676 = vst [vmem:[%s317 + $0x50] sm:$0xff] %v660
        %677 = vst [vmem:[%s317 + $0x58] sm:$0xff] %v661
        %678 = vst [vmem:[%s317 + $0x60] sm:$0xff] %v662
        %679 = vst [vmem:[%s317 + $0x68] sm:$0xff] %v663
        %680 = vst [vmem:[%s317 + $0x70] sm:$0xff] %v664
        %681 = vst [vmem:[%s317 + $0x78] sm:$0xff] %v665
        %p682 = scmp.eq.s32.totalorder %s22, 8
        // Predicated region
        $region74: #{generator_forward.13} parent=64 // pred_check
          %p683 = pneg %p682
        $region75: #{generator_forward.13} parent=64 // pred_check_branch
          %685 = sbr.rel (%p683) target = $region77
        $region76: #{generator_forward.13} parent=64 // pred_region
          %v686 = vld [vmem:[%s317] sm:$0xff]
          %v687 = vld [vmem:[%s317 + $0x8] sm:$0xff]
          %v688 = vld [vmem:[%s317 + $0x10] sm:$0xff]
          %v689 = vld [vmem:[%s317 + $0x18] sm:$0xff]
          %v690 = vld [vmem:[%s317 + $0x20] sm:$0xff]
          %v691 = vld [vmem:[%s317 + $0x28] sm:$0xff]
          %v692 = vld [vmem:[%s317 + $0x30] sm:$0xff]
          %v693 = vld [vmem:[%s317 + $0x38] sm:$0xff]
          %v694 = vld [vmem:[%s317 + $0x40] sm:$0xff]
          %v695 = vld [vmem:[%s317 + $0x48] sm:$0xff]
          %v696 = vld [vmem:[%s317 + $0x50] sm:$0xff]
          %v697 = vld [vmem:[%s317 + $0x58] sm:$0xff]
          %v698 = vld [vmem:[%s317 + $0x60] sm:$0xff]
          %v699 = vld [vmem:[%s317 + $0x68] sm:$0xff]
          %v700 = vld [vmem:[%s317 + $0x70] sm:$0xff]
          %v701 = vld [vmem:[%s317 + $0x78] sm:$0xff]
          %v702 = vadd.f32 %v686, %v690
          %v703 = vadd.f32 %v702, %v694
          %v704 = vadd.f32 %v703, %v698
          %v705 = vrot.slane %v704, 4
          %v706 = vadd.f32 %v704, %v705
          %v707 = vrot.slane %v706, 2
          %v708 = vadd.f32 %v706, %v707
          %v709 = vrot.slane %v708, 1
          %v710 = vadd.f32 %v708, %v709
          %v711 = vadd.f32 %v687, %v691
          %v712 = vadd.f32 %v711, %v695
          %v713 = vadd.f32 %v712, %v699
          %v714 = vrot.slane %v713, 4
          %v715 = vadd.f32 %v713, %v714
          %v716 = vrot.slane %v715, 2
          %v717 = vadd.f32 %v715, %v716
          %v718 = vrot.slane %v717, 1
          %v719 = vadd.f32 %v717, %v718
          %v720 = vadd.f32 %v688, %v692
          %v721 = vadd.f32 %v720, %v696
          %v722 = vadd.f32 %v721, %v700
          %v723 = vrot.slane %v722, 4
          %v724 = vadd.f32 %v722, %v723
          %v725 = vrot.slane %v724, 2
          %v726 = vadd.f32 %v724, %v725
          %v727 = vrot.slane %v726, 1
          %v728 = vadd.f32 %v726, %v727
          %v729 = vadd.f32 %v689, %v693
          %v730 = vadd.f32 %v729, %v697
          %v731 = vadd.f32 %v730, %v701
          %v732 = vrot.slane %v731, 4
          %v733 = vadd.f32 %v731, %v732
          %v734 = vrot.slane %v733, 2
          %v735 = vadd.f32 %v733, %v734
          %v736 = vrot.slane %v735, 1
          %v737 = vadd.f32 %v735, %v736
          %v738 = vmul.f32 %v686, %v686
          %v739 = vmul.f32 %v687, %v687
          %v740 = vmul.f32 %v688, %v688
          %v741 = vmul.f32 %v689, %v689
          %v742 = vmul.f32 %v690, %v690
          %v743 = vmul.f32 %v691, %v691
          %v744 = vmul.f32 %v692, %v692
          %v745 = vmul.f32 %v693, %v693
          %v746 = vmul.f32 %v694, %v694
          %v747 = vmul.f32 %v695, %v695
          %v748 = vmul.f32 %v696, %v696
          %v749 = vmul.f32 %v697, %v697
          %v750 = vmul.f32 %v698, %v698
          %v751 = vmul.f32 %v699, %v699
          %v752 = vmul.f32 %v700, %v700
          %v753 = vmul.f32 %v701, %v701
          %v754 = vadd.f32 %v738, %v742
          %v755 = vadd.f32 %v754, %v746
          %v756 = vadd.f32 %v755, %v750
          %v757 = vrot.slane %v756, 4
          %v758 = vadd.f32 %v756, %v757
          %v759 = vrot.slane %v758, 2
          %v760 = vadd.f32 %v758, %v759
          %v761 = vrot.slane %v760, 1
          %v762 = vadd.f32 %v760, %v761
          %v763 = vadd.f32 %v739, %v743
          %v764 = vadd.f32 %v763, %v747
          %v765 = vadd.f32 %v764, %v751
          %v766 = vrot.slane %v765, 4
          %v767 = vadd.f32 %v765, %v766
          %v768 = vrot.slane %v767, 2
          %v769 = vadd.f32 %v767, %v768
          %v770 = vrot.slane %v769, 1
          %v771 = vadd.f32 %v769, %v770
          %v772 = vadd.f32 %v740, %v744
          %v773 = vadd.f32 %v772, %v748
          %v774 = vadd.f32 %v773, %v752
          %v775 = vrot.slane %v774, 4
          %v776 = vadd.f32 %v774, %v775
          %v777 = vrot.slane %v776, 2
          %v778 = vadd.f32 %v776, %v777
          %v779 = vrot.slane %v778, 1
          %v780 = vadd.f32 %v778, %v779
          %v781 = vadd.f32 %v741, %v745
          %v782 = vadd.f32 %v781, %v749
          %v783 = vadd.f32 %v782, %v753
          %v784 = vrot.slane %v783, 4
          %v785 = vadd.f32 %v783, %v784
          %v786 = vrot.slane %v785, 2
          %v787 = vadd.f32 %v785, %v786
          %v788 = vrot.slane %v787, 1
          %v789 = vadd.f32 %v787, %v788
          %vm790 = vcmask 1040384
          %v791 = vsel %vm790, %v710, %v762
          %v792 = vsel %vm790, %v719, %v771
          %v793 = vsel %vm790, %v728, %v780
          %v794 = vsel %vm790, %v737, %v789
          %v799 = vrot.slane %v792, 6
          %v800 = vrot.slane %v793, 4
          %v801 = vrot.slane %v794, 2
          %vm802 = vcmask 1041408
          %v803 = vsel %vm802, %v791, %v799
          %vm804 = vcmask 1045508
          %v805 = vsel %vm804, %v800, %v801
          %vm806 = vcmask 1043456
          %v807 = vsel %vm806, %v803, %v805
          %809 = vst [vmem:[%s328] sm:$0xff] %v807
        $region77: #{generator_forward.13} parent=64 // pred_fallthru
          _
        %s810 = smul.u32 4, %s20
        %s811 = smul.u32 4, %s21
        %p812 = scmp.lt.s32.totalorder %s810, 3
        %s813 = scalar_select %p812, %s810, 3
        %p814 = scmp.lt.s32.totalorder %s811, 3
        %s815 = scalar_select %p814, %s811, 3
        %s816 = smul.addr %s813, 4
        %s817 = sadd.s32 %s815, %s816
        %s818 = smul.addr %s817, 8
        %s819 = scalar_lea.vmem %s2, %s818
        %s820 = smul.u32 4, %s21
        %p821 = scmp.lt.s32.totalorder %s20, 0
        %s822 = scalar_select %p821, %s20, 0
        %p823 = scmp.lt.s32.totalorder %s820, 3
        %s824 = scalar_select %p823, %s820, 3
        %s825 = smul.addr %s822, 4
        %s826 = sadd.s32 %s824, %s825
        %s827 = smul.addr %s826, 2
        %s828 = scalar_lea.vmem %s3, %s827
        // Predicated region
        $region78: #{generator_forward.13} parent=64 // pred_check
          %p829 = pneg %p110
        $region79: #{generator_forward.13} parent=64 // pred_check_branch
          %831 = sbr.rel (%p829) target = $region81
        $region80: #{generator_forward.13} parent=64 // pred_region
          %s832 = smul.u32 4, %s20
          %s833 = smul.u32 4, %s21
        $region81: #{generator_forward.13} parent=64 // pred_fallthru
          _
        // Predicated region
        $region82: #{generator_forward.13} parent=64 // pred_check
          %p834 = pneg %p138
        $region83: #{generator_forward.13} parent=64 // pred_check_branch
          %836 = sbr.rel (%p834) target = $region85
        $region84: #{generator_forward.13} parent=64 // pred_region
          %s837 = smul.u32 4, %s21
        $region85: #{generator_forward.13} parent=64 // pred_fallthru
          _
        // Predicated region
        $region86: #{generator_forward.13} parent=64 // pred_check
          %p838 = pneg %p110
        $region87: #{generator_forward.13} parent=64 // pred_check_branch
          %840 = sbr.rel (%p838) target = $region89
        $region88: #{generator_forward.13} parent=64 // pred_region
          %s841 = smul.u32 4, %s20
          %s842 = smul.u32 4, %s21
          %p843 = scmp.lt.s32.totalorder %s841, 3
          %s844 = scalar_select %p843, %s841, 3
          %p845 = scmp.lt.s32.totalorder %s842, 3
          %s846 = scalar_select %p845, %s842, 3
          %s847 = smul.addr %s844, 4
          %s848 = sadd.s32 %s846, %s847
          %s849 = smul.addr %s848, 8
          %s850 = scalar_lea.vmem %s2, %s849
        $region89: #{generator_forward.13} parent=64 // pred_fallthru
          _
        // Predicated region
        $region90: #{generator_forward.13} parent=64 // pred_check
          %p851 = pneg %p138
        $region91: #{generator_forward.13} parent=64 // pred_check_branch
          %853 = sbr.rel (%p851) target = $region93
        $region92: #{generator_forward.13} parent=64 // pred_region
          %s854 = smul.u32 4, %s21
          %p855 = scmp.lt.s32.totalorder %s20, 0
          %s856 = scalar_select %p855, %s20, 0
          %p857 = scmp.lt.s32.totalorder %s854, 3
          %s858 = scalar_select %p857, %s854, 3
          %s859 = smul.addr %s856, 4
          %s860 = sadd.s32 %s858, %s859
          %s861 = smul.addr %s860, 2
          %s862 = scalar_lea.vmem %s3, %s861
        $region93: #{generator_forward.13} parent=64 // pred_fallthru
          _
      $region65: #{generator_forward.13} parent=5 // pred_fallthru
        _
      %p863 = scmp.le.s32.totalorder 2, %s10
      // Predicated region
      $region94: #{generator_forward.13} parent=5 // pred_check
        %p864 = pneg %p863
      $region95: #{generator_forward.13} parent=5 // pred_check_branch
        %866 = sbr.rel (%p864) target = $region97
      $region96: #{generator_forward.13} parent=5 // pred_region
        %s867 = ssub.s32 %s10, 2
      $region97: #{generator_forward.13} parent=5 // pred_fallthru
        _
    $region6: #{generator_forward.13} parent=1 // loop_footer
      %s14 = sadd.s32 1, %s10
    $region7: #{generator_forward.13} parent=1 // loop_footer_branch
      %9 = sbr.rel target = $region3
    $region8: #{generator_forward.13} parent=1 // loop_exit
      _

// kernel: generator_forward.16
$region0: #{generator_forward.16}
  #allocation0 [shape = 'u32[]', space=smem, size = 0x4, offset = 0x4, fixed_abs, tag = 'smem constant byte address 0x4 - core index']
  #allocation1 [shape = 'u32[72,128]{1,0:T(1,128)}', space=vmem, size = 0x9000, scoped, tag = 'internal scratch']
  %s0 = inlined_call_operand.vmem [shape: f32[128,512], index: 0, kind: input, shape index: {}]
  %s1 = inlined_call_operand.vmem [shape: f32[1,512], index: 1, kind: input, shape index: {}]
  %s2 = inlined_call_operand.vmem [shape: f32[1,512], index: 2, kind: input, shape index: {}]
  %s3 = inlined_call_operand.vmem [shape: bf16[128,512], index: 3, kind: output, shape index: {}]
  %s4 = sld [smem:[#allocation0]]
  $region22: #{generator_forward.16} parent=0
    _
  %s6 = ssub.s32 1, %s4
  %s7 = scalar_select 0, %s6, %s4
  // Predicated region
  $region2: #{generator_forward.16} parent=0 // pred_check
    _
  $region3: #{generator_forward.16} parent=0 // pred_check_branch
    %9 = sbr.rel (0) target = $region5
  $region4: #{generator_forward.16} parent=0 // pred_region
    _
  $region5: #{generator_forward.16} parent=0 // pred_fallthru
    _
  // Predicated region
  $region6: #{generator_forward.16} parent=0 // pred_check
    _
  $region7: #{generator_forward.16} parent=0 // pred_check_branch
    %11 = sbr.rel (0) target = $region9
  $region8: #{generator_forward.16} parent=0 // pred_region
    _
  $region9: #{generator_forward.16} parent=0 // pred_fallthru
    _
  // Predicated region
  $region10: #{generator_forward.16} parent=0 // pred_check
    _
  $region11: #{generator_forward.16} parent=0 // pred_check_branch
    %13 = sbr.rel (0) target = $region13
  $region12: #{generator_forward.16} parent=0 // pred_region
    _
  $region13: #{generator_forward.16} parent=0 // pred_fallthru
    _
  %v14 = vld [vmem:[%s0] sm:$0xff]
  %v15 = vld [vmem:[%s0 + $0x8] sm:$0xff]
  %v16 = vld [vmem:[%s0 + $0x10] sm:$0xff]
  %v17 = vld [vmem:[%s0 + $0x18] sm:$0xff]
  %v18 = vld [vmem:[%s0 + $0x20] sm:$0xff]
  %v19 = vld [vmem:[%s0 + $0x28] sm:$0xff]
  %v20 = vld [vmem:[%s0 + $0x30] sm:$0xff]
  %v21 = vld [vmem:[%s0 + $0x38] sm:$0xff]
  %v22 = vld [vmem:[%s0 + $0x40] sm:$0xff]
  %v23 = vld [vmem:[%s0 + $0x48] sm:$0xff]
  %v24 = vld [vmem:[%s0 + $0x50] sm:$0xff]
  %v25 = vld [vmem:[%s0 + $0x58] sm:$0xff]
  %v26 = vld [vmem:[%s0 + $0x60] sm:$0xff]
  %v27 = vld [vmem:[%s0 + $0x68] sm:$0xff]
  %v28 = vld [vmem:[%s0 + $0x70] sm:$0xff]
  %v29 = vld [vmem:[%s0 + $0x78] sm:$0xff]
  %v30 = vld [vmem:[%s0 + $0x80] sm:$0xff]
  %v31 = vld [vmem:[%s0 + $0x88] sm:$0xff]
  %v32 = vld [vmem:[%s0 + $0x90] sm:$0xff]
  %v33 = vld [vmem:[%s0 + $0x98] sm:$0xff]
  %v34 = vld [vmem:[%s0 + $0xa0] sm:$0xff]
  %v35 = vld [vmem:[%s0 + $0xa8] sm:$0xff]
  %v36 = vld [vmem:[%s0 + $0xb0] sm:$0xff]
  %v37 = vld [vmem:[%s0 + $0xb8] sm:$0xff]
  %v38 = vld [vmem:[%s0 + $0xc0] sm:$0xff]
  %v39 = vld [vmem:[%s0 + $0xc8] sm:$0xff]
  %v40 = vld [vmem:[%s0 + $0xd0] sm:$0xff]
  %v41 = vld [vmem:[%s0 + $0xd8] sm:$0xff]
  %v42 = vld [vmem:[%s0 + $0xe0] sm:$0xff]
  %v43 = vld [vmem:[%s0 + $0xe8] sm:$0xff]
  %v44 = vld [vmem:[%s0 + $0xf0] sm:$0xff]
  %v45 = vld [vmem:[%s0 + $0xf8] sm:$0xff]
  %v46 = vld [vmem:[%s0 + $0x100] sm:$0xff]
  %v47 = vld [vmem:[%s0 + $0x108] sm:$0xff]
  %v48 = vld [vmem:[%s0 + $0x110] sm:$0xff]
  %v49 = vld [vmem:[%s0 + $0x118] sm:$0xff]
  %v50 = vld [vmem:[%s0 + $0x120] sm:$0xff]
  %v51 = vld [vmem:[%s0 + $0x128] sm:$0xff]
  %v52 = vld [vmem:[%s0 + $0x130] sm:$0xff]
  %v53 = vld [vmem:[%s0 + $0x138] sm:$0xff]
  %v54 = vld [vmem:[%s0 + $0x140] sm:$0xff]
  %v55 = vld [vmem:[%s0 + $0x148] sm:$0xff]
  %v56 = vld [vmem:[%s0 + $0x150] sm:$0xff]
  %v57 = vld [vmem:[%s0 + $0x158] sm:$0xff]
  %v58 = vld [vmem:[%s0 + $0x160] sm:$0xff]
  %v59 = vld [vmem:[%s0 + $0x168] sm:$0xff]
  %v60 = vld [vmem:[%s0 + $0x170] sm:$0xff]
  %v61 = vld [vmem:[%s0 + $0x178] sm:$0xff]
  %v62 = vld [vmem:[%s0 + $0x180] sm:$0xff]
  %v63 = vld [vmem:[%s0 + $0x188] sm:$0xff]
  %v64 = vld [vmem:[%s0 + $0x190] sm:$0xff]
  %v65 = vld [vmem:[%s0 + $0x198] sm:$0xff]
  %v66 = vld [vmem:[%s0 + $0x1a0] sm:$0xff]
  %v67 = vld [vmem:[%s0 + $0x1a8] sm:$0xff]
  %v68 = vld [vmem:[%s0 + $0x1b0] sm:$0xff]
  %v69 = vld [vmem:[%s0 + $0x1b8] sm:$0xff]
  %v70 = vld [vmem:[%s0 + $0x1c0] sm:$0xff]
  %v71 = vld [vmem:[%s0 + $0x1c8] sm:$0xff]
  %v72 = vld [vmem:[%s0 + $0x1d0] sm:$0xff]
  %v73 = vld [vmem:[%s0 + $0x1d8] sm:$0xff]
  %v74 = vld [vmem:[%s0 + $0x1e0] sm:$0xff]
  %v75 = vld [vmem:[%s0 + $0x1e8] sm:$0xff]
  %v76 = vld [vmem:[%s0 + $0x1f0] sm:$0xff]
  %v77 = vld [vmem:[%s0 + $0x1f8] sm:$0xff]
  %v78 = vld [vmem:[%s1] sm:$0xf]
  %v80 = vperm.slane %v78, 0
  %v81 = vperm.slane %v78, 1
  %v82 = vperm.slane %v78, 2
  %v83 = vperm.slane %v78, 3
  %v88 = vmul.f32 %v14, %v80
  %v89 = vmul.f32 %v15, %v81
  %v90 = vmul.f32 %v16, %v82
  %v91 = vmul.f32 %v17, %v83
  %v92 = vmul.f32 %v18, %v80
  %v93 = vmul.f32 %v19, %v81
  %v94 = vmul.f32 %v20, %v82
  %v95 = vmul.f32 %v21, %v83
  %v96 = vmul.f32 %v22, %v80
  %v97 = vmul.f32 %v23, %v81
  %v98 = vmul.f32 %v24, %v82
  %v99 = vmul.f32 %v25, %v83
  %v100 = vmul.f32 %v26, %v80
  %v101 = vmul.f32 %v27, %v81
  %v102 = vmul.f32 %v28, %v82
  %v103 = vmul.f32 %v29, %v83
  %v104 = vmul.f32 %v30, %v80
  %v105 = vmul.f32 %v31, %v81
  %v106 = vmul.f32 %v32, %v82
  %v107 = vmul.f32 %v33, %v83
  %v108 = vmul.f32 %v34, %v80
  %v109 = vmul.f32 %v35, %v81
  %v110 = vmul.f32 %v36, %v82
  %v111 = vmul.f32 %v37, %v83
  %v112 = vmul.f32 %v38, %v80
  %v113 = vmul.f32 %v39, %v81
  %v114 = vmul.f32 %v40, %v82
  %v115 = vmul.f32 %v41, %v83
  %v116 = vmul.f32 %v42, %v80
  %v117 = vmul.f32 %v43, %v81
  %v118 = vmul.f32 %v44, %v82
  %v119 = vmul.f32 %v45, %v83
  %v120 = vmul.f32 %v46, %v80
  %v121 = vmul.f32 %v47, %v81
  %v122 = vmul.f32 %v48, %v82
  %v123 = vmul.f32 %v49, %v83
  %v124 = vmul.f32 %v50, %v80
  %v125 = vmul.f32 %v51, %v81
  %v126 = vmul.f32 %v52, %v82
  %v127 = vmul.f32 %v53, %v83
  %v128 = vmul.f32 %v54, %v80
  %v129 = vmul.f32 %v55, %v81
  %v130 = vmul.f32 %v56, %v82
  %v131 = vmul.f32 %v57, %v83
  %v132 = vmul.f32 %v58, %v80
  %v133 = vmul.f32 %v59, %v81
  %v134 = vmul.f32 %v60, %v82
  %v135 = vmul.f32 %v61, %v83
  %v136 = vmul.f32 %v62, %v80
  %v137 = vmul.f32 %v63, %v81
  %v138 = vmul.f32 %v64, %v82
  %v139 = vmul.f32 %v65, %v83
  %v140 = vmul.f32 %v66, %v80
  %v141 = vmul.f32 %v67, %v81
  %v142 = vmul.f32 %v68, %v82
  %v143 = vmul.f32 %v69, %v83
  %v144 = vmul.f32 %v70, %v80
  %v145 = vmul.f32 %v71, %v81
  %v146 = vmul.f32 %v72, %v82
  %v147 = vmul.f32 %v73, %v83
  %v148 = vmul.f32 %v74, %v80
  %v149 = vmul.f32 %v75, %v81
  %v150 = vmul.f32 %v76, %v82
  %v151 = vmul.f32 %v77, %v83
  %v152 = vld [vmem:[%s2] sm:$0xf]
  %v154 = vperm.slane %v152, 0
  %v155 = vperm.slane %v152, 1
  %v156 = vperm.slane %v152, 2
  %v157 = vperm.slane %v152, 3
  %v162 = vadd.f32 %v88, %v154
  %v163 = vadd.f32 %v89, %v155
  %v164 = vadd.f32 %v90, %v156
  %v165 = vadd.f32 %v91, %v157
  %v166 = vadd.f32 %v92, %v154
  %v167 = vadd.f32 %v93, %v155
  %v168 = vadd.f32 %v94, %v156
  %v169 = vadd.f32 %v95, %v157
  %v170 = vadd.f32 %v96, %v154
  %v171 = vadd.f32 %v97, %v155
  %v172 = vadd.f32 %v98, %v156
  %v173 = vadd.f32 %v99, %v157
  %v174 = vadd.f32 %v100, %v154
  %v175 = vadd.f32 %v101, %v155
  %v176 = vadd.f32 %v102, %v156
  %v177 = vadd.f32 %v103, %v157
  %v178 = vadd.f32 %v104, %v154
  %v179 = vadd.f32 %v105, %v155
  %v180 = vadd.f32 %v106, %v156
  %v181 = vadd.f32 %v107, %v157
  %v182 = vadd.f32 %v108, %v154
  %v183 = vadd.f32 %v109, %v155
  %v184 = vadd.f32 %v110, %v156
  %v185 = vadd.f32 %v111, %v157
  %v186 = vadd.f32 %v112, %v154
  %v187 = vadd.f32 %v113, %v155
  %v188 = vadd.f32 %v114, %v156
  %v189 = vadd.f32 %v115, %v157
  %v190 = vadd.f32 %v116, %v154
  %v191 = vadd.f32 %v117, %v155
  %v192 = vadd.f32 %v118, %v156
  %v193 = vadd.f32 %v119, %v157
  %v194 = vadd.f32 %v120, %v154
  %v195 = vadd.f32 %v121, %v155
  %v196 = vadd.f32 %v122, %v156
  %v197 = vadd.f32 %v123, %v157
  %v198 = vadd.f32 %v124, %v154
  %v199 = vadd.f32 %v125, %v155
  %v200 = vadd.f32 %v126, %v156
  %v201 = vadd.f32 %v127, %v157
  %v202 = vadd.f32 %v128, %v154
  %v203 = vadd.f32 %v129, %v155
  %v204 = vadd.f32 %v130, %v156
  %v205 = vadd.f32 %v131, %v157
  %v206 = vadd.f32 %v132, %v154
  %v207 = vadd.f32 %v133, %v155
  %v208 = vadd.f32 %v134, %v156
  %v209 = vadd.f32 %v135, %v157
  %v210 = vadd.f32 %v136, %v154
  %v211 = vadd.f32 %v137, %v155
  %v212 = vadd.f32 %v138, %v156
  %v213 = vadd.f32 %v139, %v157
  %v214 = vadd.f32 %v140, %v154
  %v215 = vadd.f32 %v141, %v155
  %v216 = vadd.f32 %v142, %v156
  %v217 = vadd.f32 %v143, %v157
  %v218 = vadd.f32 %v144, %v154
  %v219 = vadd.f32 %v145, %v155
  %v220 = vadd.f32 %v146, %v156
  %v221 = vadd.f32 %v147, %v157
  %v222 = vadd.f32 %v148, %v154
  %v223 = vadd.f32 %v149, %v155
  %v224 = vadd.f32 %v150, %v156
  %v225 = vadd.f32 %v151, %v157
  %v226 = vmax.f32 %v162, 0.0
  %v227 = vmax.f32 %v163, 0.0
  %v228 = vmax.f32 %v164, 0.0
  %v229 = vmax.f32 %v165, 0.0
  %v230 = vmax.f32 %v166, 0.0
  %v231 = vmax.f32 %v167, 0.0
  %v232 = vmax.f32 %v168, 0.0
  %v233 = vmax.f32 %v169, 0.0
  %v234 = vmax.f32 %v170, 0.0
  %v235 = vmax.f32 %v171, 0.0
  %v236 = vmax.f32 %v172, 0.0
  %v237 = vmax.f32 %v173, 0.0
  %v238 = vmax.f32 %v174, 0.0
  %v239 = vmax.f32 %v175, 0.0
  %v240 = vmax.f32 %v176, 0.0
  %v241 = vmax.f32 %v177, 0.0
  %v242 = vmax.f32 %v178, 0.0
  %v243 = vmax.f32 %v179, 0.0
  %v244 = vmax.f32 %v180, 0.0
  %v245 = vmax.f32 %v181, 0.0
  %v246 = vmax.f32 %v182, 0.0
  %v247 = vmax.f32 %v183, 0.0
  %v248 = vmax.f32 %v184, 0.0
  %v249 = vmax.f32 %v185, 0.0
  %v250 = vmax.f32 %v186, 0.0
  %v251 = vmax.f32 %v187, 0.0
  %v252 = vmax.f32 %v188, 0.0
  %v253 = vmax.f32 %v189, 0.0
  %v254 = vmax.f32 %v190, 0.0
  %v255 = vmax.f32 %v191, 0.0
  %v256 = vmax.f32 %v192, 0.0
  %v257 = vmax.f32 %v193, 0.0
  %v258 = vmax.f32 %v194, 0.0
  %v259 = vmax.f32 %v195, 0.0
  %v260 = vmax.f32 %v196, 0.0
  %v261 = vmax.f32 %v197, 0.0
  %v262 = vmax.f32 %v198, 0.0
  %v263 = vmax.f32 %v199, 0.0
  %v264 = vmax.f32 %v200, 0.0
  %v265 = vmax.f32 %v201, 0.0
  %v266 = vmax.f32 %v202, 0.0
  %v267 = vmax.f32 %v203, 0.0
  %v268 = vmax.f32 %v204, 0.0
  %v269 = vmax.f32 %v205, 0.0
  %v270 = vmax.f32 %v206, 0.0
  %v271 = vmax.f32 %v207, 0.0
  %v272 = vmax.f32 %v208, 0.0
  %v273 = vmax.f32 %v209, 0.0
  %v274 = vmax.f32 %v210, 0.0
  %v275 = vmax.f32 %v211, 0.0
  %v276 = vmax.f32 %v212, 0.0
  %v277 = vmax.f32 %v213, 0.0
  %v278 = vmax.f32 %v214, 0.0
  %v279 = vmax.f32 %v215, 0.0
  %v280 = vmax.f32 %v216, 0.0
  %v281 = vmax.f32 %v217, 0.0
  %v282 = vmax.f32 %v218, 0.0
  %v283 = vmax.f32 %v219, 0.0
  %v284 = vmax.f32 %v220, 0.0
  %v285 = vmax.f32 %v221, 0.0
  %v286 = vmax.f32 %v222, 0.0
  %v287 = vmax.f32 %v223, 0.0
  %v288 = vmax.f32 %v224, 0.0
  %v289 = vmax.f32 %v225, 0.0
  %v290 = vpack.c.bf16 %v227, %v226
  %v291 = vpack.c.bf16 %v229, %v228
  %v292 = vpack.c.bf16 %v231, %v230
  %v293 = vpack.c.bf16 %v233, %v232
  %v294 = vpack.c.bf16 %v235, %v234
  %v295 = vpack.c.bf16 %v237, %v236
  %v296 = vpack.c.bf16 %v239, %v238
  %v297 = vpack.c.bf16 %v241, %v240
  %v298 = vpack.c.bf16 %v243, %v242
  %v299 = vpack.c.bf16 %v245, %v244
  %v300 = vpack.c.bf16 %v247, %v246
  %v301 = vpack.c.bf16 %v249, %v248
  %v302 = vpack.c.bf16 %v251, %v250
  %v303 = vpack.c.bf16 %v253, %v252
  %v304 = vpack.c.bf16 %v255, %v254
  %v305 = vpack.c.bf16 %v257, %v256
  %v306 = vpack.c.bf16 %v259, %v258
  %v307 = vpack.c.bf16 %v261, %v260
  %v308 = vpack.c.bf16 %v263, %v262
  %v309 = vpack.c.bf16 %v265, %v264
  %v310 = vpack.c.bf16 %v267, %v266
  %v311 = vpack.c.bf16 %v269, %v268
  %v312 = vpack.c.bf16 %v271, %v270
  %v313 = vpack.c.bf16 %v273, %v272
  %v314 = vpack.c.bf16 %v275, %v274
  %v315 = vpack.c.bf16 %v277, %v276
  %v316 = vpack.c.bf16 %v279, %v278
  %v317 = vpack.c.bf16 %v281, %v280
  %v318 = vpack.c.bf16 %v283, %v282
  %v319 = vpack.c.bf16 %v285, %v284
  %v320 = vpack.c.bf16 %v287, %v286
  %v321 = vpack.c.bf16 %v289, %v288
  %322 = vst [vmem:[%s3] sm:$0xff] %v290
  %323 = vst [vmem:[%s3 + $0x8] sm:$0xff] %v291
  %324 = vst [vmem:[%s3 + $0x10] sm:$0xff] %v292
  %325 = vst [vmem:[%s3 + $0x18] sm:$0xff] %v293
  %326 = vst [vmem:[%s3 + $0x20] sm:$0xff] %v294
  %327 = vst [vmem:[%s3 + $0x28] sm:$0xff] %v295
  %328 = vst [vmem:[%s3 + $0x30] sm:$0xff] %v296
  %329 = vst [vmem:[%s3 + $0x38] sm:$0xff] %v297
  %330 = vst [vmem:[%s3 + $0x40] sm:$0xff] %v298
  %331 = vst [vmem:[%s3 + $0x48] sm:$0xff] %v299
  %332 = vst [vmem:[%s3 + $0x50] sm:$0xff] %v300
  %333 = vst [vmem:[%s3 + $0x58] sm:$0xff] %v301
  %334 = vst [vmem:[%s3 + $0x60] sm:$0xff] %v302
  %335 = vst [vmem:[%s3 + $0x68] sm:$0xff] %v303
  %336 = vst [vmem:[%s3 + $0x70] sm:$0xff] %v304
  %337 = vst [vmem:[%s3 + $0x78] sm:$0xff] %v305
  %338 = vst [vmem:[%s3 + $0x80] sm:$0xff] %v306
  %339 = vst [vmem:[%s3 + $0x88] sm:$0xff] %v307
  %340 = vst [vmem:[%s3 + $0x90] sm:$0xff] %v308
  %341 = vst [vmem:[%s3 + $0x98] sm:$0xff] %v309
  %342 = vst [vmem:[%s3 + $0xa0] sm:$0xff] %v310
  %343 = vst [vmem:[%s3 + $0xa8] sm:$0xff] %v311
  %344 = vst [vmem:[%s3 + $0xb0] sm:$0xff] %v312
  %345 = vst [vmem:[%s3 + $0xb8] sm:$0xff] %v313
  %346 = vst [vmem:[%s3 + $0xc0] sm:$0xff] %v314
  %347 = vst [vmem:[%s3 + $0xc8] sm:$0xff] %v315
  %348 = vst [vmem:[%s3 + $0xd0] sm:$0xff] %v316
  %349 = vst [vmem:[%s3 + $0xd8] sm:$0xff] %v317
  %350 = vst [vmem:[%s3 + $0xe0] sm:$0xff] %v318
  %351 = vst [vmem:[%s3 + $0xe8] sm:$0xff] %v319
  %352 = vst [vmem:[%s3 + $0xf0] sm:$0xff] %v320
  %353 = vst [vmem:[%s3 + $0xf8] sm:$0xff] %v321
  // Predicated region
  $region14: #{generator_forward.16} parent=0 // pred_check
    _
  $region15: #{generator_forward.16} parent=0 // pred_check_branch
    %355 = sbr.rel (0) target = $region17
  $region16: #{generator_forward.16} parent=0 // pred_region
    _
  $region17: #{generator_forward.16} parent=0 // pred_fallthru
    _
  // Predicated region
  $region18: #{generator_forward.16} parent=0 // pred_check
    _
  $region19: #{generator_forward.16} parent=0 // pred_check_branch
    %357 = sbr.rel (0) target = $region21
  $region20: #{generator_forward.16} parent=0 // pred_region
    _
  $region21: #{generator_forward.16} parent=0 // pred_fallthru
    _

// kernel: generator_forward.15
$region0: #{generator_forward.15}
  #allocation0 [shape = 'u32[]', space=smem, size = 0x4, offset = 0x4, fixed_abs, tag = 'smem constant byte address 0x4 - core index']
  #allocation1 [shape = 'u32[72,128]{1,0:T(1,128)}', space=vmem, size = 0x9000, scoped, tag = 'internal scratch']
  %s0 = inlined_call_operand.vmem [shape: bf16[128,1152], index: 0, kind: input, shape index: {}]
  %s1 = inlined_call_operand.vmem [shape: bf16[1152,512], index: 1, kind: input, shape index: {}]
  %s2 = inlined_call_operand.vmem [shape: f32[128,512], index: 2, kind: output, shape index: {0}]
  %s3 = inlined_call_operand.vmem [shape: f32[1,2,512], index: 3, kind: output, shape index: {1}]
  %4 = xla_tuple %s2, %s3
  %s5 = sld [smem:[#allocation0]]
  $region98: #{generator_forward.15} parent=0
    _
  %s7 = ssub.s32 1, %s5
  %s8 = scalar_select 0, %s7, %s5
  $region1: #{generator_forward.15} parent=0
    #allocation2 [shape = 'u8[65536]{0}', space=vmem, size = 0x10000, scoped, tag = 'input window, operand 0']
    loop: start=0, step=1, limit=11
    $region2: #{generator_forward.15} parent=1 // loop_pre_header
      _
    $region3: #{generator_forward.15} parent=1 // loop_header
      %s10 = sphi 0, %s14
      %p11 = scmp.ge.s32.totalorder %s10, 11
      %s17 = sphi 0, %s36
      %s18 = sphi 0, %s32
      %s19 = sphi 0, %s28
      %s20 = sphi 0, %s17
      %s21 = sphi 0, %s18
      %s22 = sphi 0, %s19
      %s23 = sphi 0, %s20
      %s24 = sphi 0, %s21
      %s25 = sphi 0, %s22
      %s41 = sphi 0, %s43
      %s44 = sphi 0, %s41
      %s45 = sphi 0, %s44
      %s61 = sphi 0, %s45
      %s69 = sphi 0, %s71
      %s72 = sphi 0, %s69
      %s73 = sphi 0, %s72
      %s89 = sphi 0, %s73
      %s97 = sphi 0, %s99
      %s100 = sphi 0, %s97
      %s101 = sphi 0, %s100
      %s117 = sphi 0, %s101
      %s125 = sphi 0, %s127
      %s128 = sphi 0, %s125
      %s129 = sphi 0, %s128
      %s145 = sphi 0, %s129
    $region4: #{generator_forward.15} parent=1 // loop_header_branch
      %13 = sbr.rel (%p11) target = $region8
    $region5: #{generator_forward.15} parent=1 // loop_body
      %s15 = ssub.s32 %s10, 1
      %s16 = ssub.s32 %s10, 2
      %s26 = sadd.s32 1, %s19
      %p27 = scmp.ge.s32.totalorder %s26, 9
      %s28 = scalar_select %p27, 0, %s26
      %s29 = sadd.s32 1, %s18
      %s30 = scalar_select %p27, %s29, %s18
      %p31 = scmp.ge.s32.totalorder %s30, 1
      %s32 = scalar_select %p31, 0, %s30
      %s33 = sadd.s32 1, %s17
      %s34 = scalar_select %p31, %s33, %s17
      %p35 = scmp.ge.s32.totalorder %s34, 1
      %s36 = scalar_select %p35, 0, %s34
      %s37 = ssub.s32 %s17, %s36
      %s38 = ssub.s32 %s19, %s28
      %s39 = sor.u32 %s37, %s38
      %p40 = scmp.eq.s32.totalorder %s39, 0
      %s42 = sadd.s32 %s41, 1
      %s43 = scalar_select %p40, %s41, %s42
      %p46 = pneg %p40
      %p47 = scmp.eq.s32.totalorder %s10, 8
      %p48 = por %p46, %p47
      %p49 = scmp.ne.s32.totalorder %s41, %s44
      %p50 = scmp.eq.s32.totalorder %s10, 0
      %p51 = por %p49, %p50
      %p52 = scmp.ne.s32.totalorder %s41, %s44
      %p53 = scmp.eq.s32.totalorder %s15, 8
      %p54 = por %p52, %p53
      %p55 = scmp.ne.s32.totalorder %s44, %s45
      %p56 = scmp.eq.s32.totalorder %s15, 0
      %p57 = por %p55, %p56
      %p58 = scmp.ne.s32.totalorder %s44, %s45
      %p59 = scmp.eq.s32.totalorder %s16, 8
      %p60 = por %p58, %p59
      %p62 = scmp.ne.s32.totalorder %s45, %s61
      %p63 = scmp.eq.s32.totalorder %s16, 0
      %p64 = por %p62, %p63
      %s65 = ssub.s32 %s19, %s28
      %s66 = ssub.s32 %s18, %s32
      %s67 = sor.u32 %s65, %s66
      %p68 = scmp.eq.s32.totalorder %s67, 0
      %s70 = sadd.s32 %s69, 1
      %s71 = scalar_select %p68, %s69, %s70
      %p74 = pneg %p68
      %p75 = scmp.eq.s32.totalorder %s10, 8
      %p76 = por %p74, %p75
      %p77 = scmp.ne.s32.totalorder %s69, %s72
      %p78 = scmp.eq.s32.totalorder %s10, 0
      %p79 = por %p77, %p78
      %p80 = scmp.ne.s32.totalorder %s69, %s72
      %p81 = scmp.eq.s32.totalorder %s15, 8
      %p82 = por %p80, %p81
      %p83 = scmp.ne.s32.totalorder %s72, %s73
      %p84 = scmp.eq.s32.totalorder %s15, 0
      %p85 = por %p83, %p84
      %p86 = scmp.ne.s32.totalorder %s72, %s73
      %p87 = scmp.eq.s32.totalorder %s16, 8
      %p88 = por %p86, %p87
      %p90 = scmp.ne.s32.totalorder %s73, %s89
      %p91 = scmp.eq.s32.totalorder %s16, 0
      %p92 = por %p90, %p91
      %s93 = ssub.s32 %s17, %s36
      %s94 = ssub.s32 %s18, %s32
      %s95 = sor.u32 %s93, %s94
      %p96 = scmp.eq.s32.totalorder %s95, 0
      %s98 = sadd.s32 %s97, 1
      %s99 = scalar_select %p96, %s97, %s98
      %p102 = pneg %p96
      %p103 = scmp.eq.s32.totalorder %s10, 8
      %p104 = por %p102, %p103
      %p105 = scmp.ne.s32.totalorder %s97, %s100
      %p106 = scmp.eq.s32.totalorder %s10, 0
      %p107 = por %p105, %p106
      %p108 = scmp.ne.s32.totalorder %s97, %s100
      %p109 = scmp.eq.s32.totalorder %s15, 8
      %p110 = por %p108, %p109
      %p111 = scmp.ne.s32.totalorder %s100, %s101
      %p112 = scmp.eq.s32.totalorder %s15, 0
      %p113 = por %p111, %p112
      %p114 = scmp.ne.s32.totalorder %s100, %s101
      %p115 = scmp.eq.s32.totalorder %s16, 8
      %p116 = por %p114, %p115
      %p118 = scmp.ne.s32.totalorder %s101, %s117
      %p119 = scmp.eq.s32.totalorder %s16, 0
      %p120 = por %p118, %p119
      %s121 = ssub.s32 %s17, %s36
      %s122 = ssub.s32 %s18, %s32
      %s123 = sor.u32 %s121, %s122
      %p124 = scmp.eq.s32.totalorder %s123, 0
      %s126 = sadd.s32 %s125, 1
      %s127 = scalar_select %p124, %s125, %s126
      %p130 = pneg %p124
      %p131 = scmp.eq.s32.totalorder %s10, 8
      %p132 = por %p130, %p131
      %p133 = scmp.ne.s32.totalorder %s125, %s128
      %p134 = scmp.eq.s32.totalorder %s10, 0
      %p135 = por %p133, %p134
      %p136 = scmp.ne.s32.totalorder %s125, %s128
      %p137 = scmp.eq.s32.totalorder %s15, 8
      %p138 = por %p136, %p137
      %p139 = scmp.ne.s32.totalorder %s128, %s129
      %p140 = scmp.eq.s32.totalorder %s15, 0
      %p141 = por %p139, %p140
      %p142 = scmp.ne.s32.totalorder %s128, %s129
      %p143 = scmp.eq.s32.totalorder %s16, 8
      %p144 = por %p142, %p143
      %p146 = scmp.ne.s32.totalorder %s129, %s145
      %p147 = scmp.eq.s32.totalorder %s16, 0
      %p148 = por %p146, %p147
      %p149 = scmp.le.s32.totalorder 1, %s10
      %p150 = scmp.lt.s32.totalorder %s10, 10
      %p151 = pnand %p149, %p150
      %p152 = pneg %p151
      // Predicated region
      $region9: #{generator_forward.15} parent=5 // pred_check
        _
      $region10: #{generator_forward.15} parent=5 // pred_check_branch
        %154 = sbr.rel (%p151) target = $region12
      $region11: #{generator_forward.15} parent=5 // pred_region
        %s155 = ssub.s32 %s10, 1
      $region12: #{generator_forward.15} parent=5 // pred_fallthru
        _
      %p156 = scmp.lt.s32.totalorder %s10, 9
      // Predicated region
      $region13: #{generator_forward.15} parent=5 // pred_check
        %p157 = pneg %p156
      $region14: #{generator_forward.15} parent=5 // pred_check_branch
        %159 = sbr.rel (%p157) target = $region16
      $region15: #{generator_forward.15} parent=5 // pred_region
        // Predicated region
        $region17: #{generator_forward.15} parent=15 // pred_check
          %p160 = pneg %p51
        $region18: #{generator_forward.15} parent=15 // pred_check_branch
          %162 = sbr.rel (%p160) target = $region20
        $region19: #{generator_forward.15} parent=15 // pred_region
          %s163 = sand.u32 %s41, 1
          %s164 = sand.u32 %s41, 1
          %s165 = smul.addr %s164, 64
          %s166 = scalar_lea.vmem [#allocation2], %s165
          %s167 = smul.u32 16, %s17
          %s168 = smul.addr %s167, 9
          %s169 = sadd.s32 %s19, %s168
          %s170 = smul.addr %s169, 4
          %s171 = scalar_lea.vmem %s0, %s170
          // Predicated region
          $region21: #{generator_forward.15} parent=19 // pred_check
            _
          $region22: #{generator_forward.15} parent=19 // pred_check_branch
            %173 = sbr.rel (0) target = $region24
          $region23: #{generator_forward.15} parent=19 // pred_region
            // Predicated region
            $region25: #{generator_forward.15} parent=23 // pred_check
              _
            $region26: #{generator_forward.15} parent=23 // pred_check_branch
              %175 = sbr.rel target = $region28
            $region27: #{generator_forward.15} parent=23 // pred_region
              // Predicated region
              $region40: #{generator_forward.15} parent=27 // pred_check
                _
              $region41: #{generator_forward.15} parent=27 // pred_check_branch
                %221 = sbr.rel (0) target = $region43
              $region42: #{generator_forward.15} parent=27 // pred_region
                loop: start=0, step=1, limit=1
                $region44: #{generator_forward.15} parent=42 // loop_pre_header
                  _
                $region45: #{generator_forward.15} parent=42 // loop_header
                  %s223 = sphi 0, %s227
                  %p224 = scmp.ge.s32.totalorder %s223, 1
                  %s228 = sphi %s171, %s171
                  %s229 = sphi %s166, %s166
                $region46: #{generator_forward.15} parent=42 // loop_header_branch
                  %226 = sbr.rel (%p224) target = $region50
                $region47: #{generator_forward.15} parent=42 // loop_body
                  _
                $region48: #{generator_forward.15} parent=42 // loop_footer
                  %s227 = sadd.s32 1, %s223
                $region49: #{generator_forward.15} parent=42 // loop_footer_branch
                  %222 = sbr.rel target = $region45
                $region50: #{generator_forward.15} parent=42 // loop_exit
                  _
                %s231 = ssub.s32 16, 1
                loop: start=0, step=1, limit=1
                $region51: #{generator_forward.15} parent=42 // loop_pre_header
                  _
                $region52: #{generator_forward.15} parent=42 // loop_header
                  %s233 = sphi 0, %s237
                  %p234 = scmp.ge.s32.totalorder %s233, 1
                  %s238 = sphi %s171, %s171
                  %s239 = sphi %s166, %s166
                $region53: #{generator_forward.15} parent=42 // loop_header_branch
                  %236 = sbr.rel (%p234) target = $region57
                $region54: #{generator_forward.15} parent=42 // loop_body
                  %v240 = vld [vmem:[%s238] sm:%s231]
                  %241 = vst [vmem:[%s239] sm:%s231] %v240
                  %v242 = vld [vmem:[%s238 + $0x24] sm:%s231]
                  %243 = vst [vmem:[%s239 + $0x4] sm:%s231] %v242
                  %v244 = vld [vmem:[%s238 + $0x48] sm:%s231]
                  %245 = vst [vmem:[%s239 + $0x8] sm:%s231] %v244
                  %v246 = vld [vmem:[%s238 + $0x6c] sm:%s231]
                  %247 = vst [vmem:[%s239 + $0xc] sm:%s231] %v246
                  %v248 = vld [vmem:[%s238 + $0x90] sm:%s231]
                  %249 = vst [vmem:[%s239 + $0x10] sm:%s231] %v248
                  %v250 = vld [vmem:[%s238 + $0xb4] sm:%s231]
                  %251 = vst [vmem:[%s239 + $0x14] sm:%s231] %v250
                  %v252 = vld [vmem:[%s238 + $0xd8] sm:%s231]
                  %253 = vst [vmem:[%s239 + $0x18] sm:%s231] %v252
                  %v254 = vld [vmem:[%s238 + $0xfc] sm:%s231]
                  %255 = vst [vmem:[%s239 + $0x1c] sm:%s231] %v254
                  %v256 = vld [vmem:[%s238 + $0x120] sm:%s231]
                  %257 = vst [vmem:[%s239 + $0x20] sm:%s231] %v256
                  %v258 = vld [vmem:[%s238 + $0x144] sm:%s231]
                  %259 = vst [vmem:[%s239 + $0x24] sm:%s231] %v258
                  %v260 = vld [vmem:[%s238 + $0x168] sm:%s231]
                  %261 = vst [vmem:[%s239 + $0x28] sm:%s231] %v260
                  %v262 = vld [vmem:[%s238 + $0x18c] sm:%s231]
                  %263 = vst [vmem:[%s239 + $0x2c] sm:%s231] %v262
                  %v264 = vld [vmem:[%s238 + $0x1b0] sm:%s231]
                  %265 = vst [vmem:[%s239 + $0x30] sm:%s231] %v264
                  %v266 = vld [vmem:[%s238 + $0x1d4] sm:%s231]
                  %267 = vst [vmem:[%s239 + $0x34] sm:%s231] %v266
                  %v268 = vld [vmem:[%s238 + $0x1f8] sm:%s231]
                  %269 = vst [vmem:[%s239 + $0x38] sm:%s231] %v268
                  %v270 = vld [vmem:[%s238 + $0x21c] sm:%s231]
                  %271 = vst [vmem:[%s239 + $0x3c] sm:%s231] %v270
                $region55: #{generator_forward.15} parent=42 // loop_footer
                  %s237 = sadd.s32 1, %s233
                $region56: #{generator_forward.15} parent=42 // loop_footer_branch
                  %232 = sbr.rel target = $region52
                $region57: #{generator_forward.15} parent=42 // loop_exit
                  _
              $region43: #{generator_forward.15} parent=27 // pred_fallthru
                _
            $region28: #{generator_forward.15} parent=23 // pred_fallthru
              _
            // Predicated region
            $region29: #{generator_forward.15} parent=23 // pred_check
              _
            $region30: #{generator_forward.15} parent=23 // pred_check_branch
              %177 = sbr.rel (0) target = $region32
            $region31: #{generator_forward.15} parent=23 // pred_region
              %s179 = ssub.s32 16, 1
              loop: start=0, step=1, limit=1
              $region33: #{generator_forward.15} parent=31 // loop_pre_header
                _
              $region34: #{generator_forward.15} parent=31 // loop_header
                %s181 = sphi 0, %s185
                %p182 = scmp.ge.s32.totalorder %s181, 1
                %s186 = sphi %s171, %s171
                %s187 = sphi %s166, %s166
              $region35: #{generator_forward.15} parent=31 // loop_header_branch
                %184 = sbr.rel (%p182) target = $region39
              $region36: #{generator_forward.15} parent=31 // loop_body
                %v188 = vld [vmem:[%s186] sm:%s179]
                %189 = vst [vmem:[%s187] sm:%s179] %v188
                %v190 = vld [vmem:[%s186 + $0x24] sm:%s179]
                %191 = vst [vmem:[%s187 + $0x4] sm:%s179] %v190
                %v192 = vld [vmem:[%s186 + $0x48] sm:%s179]
                %193 = vst [vmem:[%s187 + $0x8] sm:%s179] %v192
                %v194 = vld [vmem:[%s186 + $0x6c] sm:%s179]
                %195 = vst [vmem:[%s187 + $0xc] sm:%s179] %v194
                %v196 = vld [vmem:[%s186 + $0x90] sm:%s179]
                %197 = vst [vmem:[%s187 + $0x10] sm:%s179] %v196
                %v198 = vld [vmem:[%s186 + $0xb4] sm:%s179]
                %199 = vst [vmem:[%s187 + $0x14] sm:%s179] %v198
                %v200 = vld [vmem:[%s186 + $0xd8] sm:%s179]
                %201 = vst [vmem:[%s187 + $0x18] sm:%s179] %v200
                %v202 = vld [vmem:[%s186 + $0xfc] sm:%s179]
                %203 = vst [vmem:[%s187 + $0x1c] sm:%s179] %v202
                %v204 = vld [vmem:[%s186 + $0x120] sm:%s179]
                %205 = vst [vmem:[%s187 + $0x20] sm:%s179] %v204
                %v206 = vld [vmem:[%s186 + $0x144] sm:%s179]
                %207 = vst [vmem:[%s187 + $0x24] sm:%s179] %v206
                %v208 = vld [vmem:[%s186 + $0x168] sm:%s179]
                %209 = vst [vmem:[%s187 + $0x28] sm:%s179] %v208
                %v210 = vld [vmem:[%s186 + $0x18c] sm:%s179]
                %211 = vst [vmem:[%s187 + $0x2c] sm:%s179] %v210
                %v212 = vld [vmem:[%s186 + $0x1b0] sm:%s179]
                %213 = vst [vmem:[%s187 + $0x30] sm:%s179] %v212
                %v214 = vld [vmem:[%s186 + $0x1d4] sm:%s179]
                %215 = vst [vmem:[%s187 + $0x34] sm:%s179] %v214
                %v216 = vld [vmem:[%s186 + $0x1f8] sm:%s179]
                %217 = vst [vmem:[%s187 + $0x38] sm:%s179] %v216
                %v218 = vld [vmem:[%s186 + $0x21c] sm:%s179]
                %219 = vst [vmem:[%s187 + $0x3c] sm:%s179] %v218
              $region37: #{generator_forward.15} parent=31 // loop_footer
                %s185 = sadd.s32 1, %s181
              $region38: #{generator_forward.15} parent=31 // loop_footer_branch
                %180 = sbr.rel target = $region34
              $region39: #{generator_forward.15} parent=31 // loop_exit
                _
            $region32: #{generator_forward.15} parent=23 // pred_fallthru
              _
          $region24: #{generator_forward.15} parent=19 // pred_fallthru
            _
          %272 = vnop
        $region20: #{generator_forward.15} parent=15 // pred_fallthru
          _
        // Predicated region
        $region58: #{generator_forward.15} parent=15 // pred_check
          %p273 = pneg %p79
        $region59: #{generator_forward.15} parent=15 // pred_check_branch
          %275 = sbr.rel (%p273) target = $region61
        $region60: #{generator_forward.15} parent=15 // pred_region
          %s276 = smul.u32 16, %s19
          %s277 = smul.u32 4, %s18
          %p278 = scmp.lt.s32.totalorder %s276, 143
          %s279 = scalar_select %p278, %s276, 143
          %p280 = scmp.lt.s32.totalorder %s277, 3
          %s281 = scalar_select %p280, %s277, 3
          %s282 = smul.addr %s279, 4
          %s283 = sadd.s32 %s281, %s282
          %s284 = smul.addr %s283, 4
          %s285 = scalar_lea.vmem %s1, %s284
          %s286 = smul.u32 16, %s19
          %s287 = smul.u32 4, %s18
        $region61: #{generator_forward.15} parent=15 // pred_fallthru
          _
      $region16: #{generator_forward.15} parent=5 // pred_fallthru
        _
      %p288 = scmp.le.s32.totalorder 1, %s10
      %p289 = scmp.lt.s32.totalorder %s10, 10
      %p290 = pnand %p288, %p289
      %p291 = pneg %p290
      // Predicated region
      $region62: #{generator_forward.15} parent=5 // pred_check
        _
      $region63: #{generator_forward.15} parent=5 // pred_check_branch
        %293 = sbr.rel (%p290) target = $region65
      $region64: #{generator_forward.15} parent=5 // pred_region
        %s294 = ssub.s32 %s10, 1
        %s295 = sand.u32 %s44, 1
        %s296 = sand.u32 %s44, 1
        %s297 = smul.addr %s296, 64
        %s298 = scalar_lea.vmem [#allocation2], %s297
        // Predicated region
        $region66: #{generator_forward.15} parent=64 // pred_check
          %p299 = pneg %p57
        $region67: #{generator_forward.15} parent=64 // pred_check_branch
          %301 = sbr.rel (%p299) target = $region69
        $region68: #{generator_forward.15} parent=64 // pred_region
          _
        $region69: #{generator_forward.15} parent=64 // pred_fallthru
          _
        %s302 = sand.u32 %s44, 1
        %s303 = sand.u32 %s44, 1
        %s304 = smul.addr %s303, 64
        %s305 = scalar_lea.vmem [#allocation2], %s304
        %p306 = pneg %p57
        %p307 = pneg %p54
        %s308 = smul.u32 16, %s22
        %s309 = smul.u32 4, %s21
        %p310 = scmp.lt.s32.totalorder %s308, 143
        %s311 = scalar_select %p310, %s308, 143
        %p312 = scmp.lt.s32.totalorder %s309, 3
        %s313 = scalar_select %p312, %s309, 3
        %s314 = smul.addr %s311, 4
        %s315 = sadd.s32 %s313, %s314
        %s316 = smul.addr %s315, 4
        %s317 = scalar_lea.vmem %s1, %s316
        %p318 = pneg %p85
        %p319 = pneg %p82
        %p320 = pneg %p113
        %p321 = pneg %p110
        %s322 = smul.u32 16, %s20
        %s323 = smul.u32 4, %s21
        %p324 = scmp.lt.s32.totalorder %s322, 15
        %s325 = scalar_select %p324, %s322, 15
        %p326 = scmp.lt.s32.totalorder %s323, 3
        %s327 = scalar_select %p326, %s323, 3
        %s328 = smul.addr %s325, 4
        %s329 = sadd.s32 %s327, %s328
        %s330 = smul.addr %s329, 8
        %s331 = scalar_lea.vmem %s2, %s330
        %p332 = pneg %p141
        %p333 = pneg %p138
        %s334 = smul.u32 4, %s21
        %p335 = scmp.lt.s32.totalorder %s20, 0
        %s336 = scalar_select %p335, %s20, 0
        %p337 = scmp.lt.s32.totalorder %s334, 3
        %s338 = scalar_select %p337, %s334, 3
        %s339 = smul.addr %s336, 4
        %s340 = sadd.s32 %s338, %s339
        %s341 = smul.addr %s340, 2
        %s342 = scalar_lea.vmem %s3, %s341
        %s343 = smul.u32 16, %s20
        %s344 = smul.u32 16, %s22
        %s345 = smul.u32 4, %s21
        %p346 = scmp.lt.s32.totalorder %s344, 143
        %s347 = scalar_select %p346, %s344, 143
        %p348 = scmp.lt.s32.totalorder %s345, 3
        %s349 = scalar_select %p348, %s345, 3
        %s350 = smul.addr %s347, 4
        %s351 = sadd.s32 %s349, %s350
        %s352 = smul.addr %s351, 4
        %s353 = scalar_lea.vmem %s1, %s352
        %s354 = smul.u32 16, %s22
        %s355 = smul.u32 4, %s21
        %s356 = smul.u32 16, %s20
        %s357 = smul.u32 4, %s21
        %p358 = scmp.lt.s32.totalorder %s356, 15
        %s359 = scalar_select %p358, %s356, 15
        %p360 = scmp.lt.s32.totalorder %s357, 3
        %s361 = scalar_select %p360, %s357, 3
        %s362 = smul.addr %s359, 4
        %s363 = sadd.s32 %s361, %s362
        %s364 = smul.addr %s363, 8
        %s365 = scalar_lea.vmem %s2, %s364
        %s366 = smul.u32 16, %s20
        %s367 = smul.u32 4, %s21
        %s368 = smul.u32 4, %s21
        %p369 = scmp.lt.s32.totalorder %s20, 0
        %s370 = scalar_select %p369, %s20, 0
        %p371 = scmp.lt.s32.totalorder %s368, 3
        %s372 = scalar_select %p371, %s368, 3
        %s373 = smul.addr %s370, 4
        %s374 = sadd.s32 %s372, %s373
        %s375 = smul.addr %s374, 2
        %s376 = scalar_lea.vmem %s3, %s375
        %s377 = smul.u32 4, %s21
        %p378 = scmp.eq.s32.totalorder %s22, 0
        // Predicated region
        $region70: #{generator_forward.15} parent=64 // pred_check
          %p379 = pneg %p378
        $region71: #{generator_forward.15} parent=64 // pred_check_branch
          %381 = sbr.rel (%p379) target = $region73
        $region72: #{generator_forward.15} parent=64 // pred_region
          %382 = vst [vmem:[%s365] sm:$0xff] 0.0
          %383 = vst [vmem:[%s365 + $0x8] sm:$0xff] 0.0
          %384 = vst [vmem:[%s365 + $0x10] sm:$0xff] 0.0
          %385 = vst [vmem:[%s365 + $0x18] sm:$0xff] 0.0
          %386 = vst [vmem:[%s365 + $0x20] sm:$0xff] 0.0
          %387 = vst [vmem:[%s365 + $0x28] sm:$0xff] 0.0
          %388 = vst [vmem:[%s365 + $0x30] sm:$0xff] 0.0
          %389 = vst [vmem:[%s365 + $0x38] sm:$0xff] 0.0
          %390 = vst [vmem:[%s365 + $0x40] sm:$0xff] 0.0
          %391 = vst [vmem:[%s365 + $0x48] sm:$0xff] 0.0
          %392 = vst [vmem:[%s365 + $0x50] sm:$0xff] 0.0
          %393 = vst [vmem:[%s365 + $0x58] sm:$0xff] 0.0
          %394 = vst [vmem:[%s365 + $0x60] sm:$0xff] 0.0
          %395 = vst [vmem:[%s365 + $0x68] sm:$0xff] 0.0
          %396 = vst [vmem:[%s365 + $0x70] sm:$0xff] 0.0
          %397 = vst [vmem:[%s365 + $0x78] sm:$0xff] 0.0
          %398 = vst [vmem:[%s365 + $0x80] sm:$0xff] 0.0
          %399 = vst [vmem:[%s365 + $0x88] sm:$0xff] 0.0
          %400 = vst [vmem:[%s365 + $0x90] sm:$0xff] 0.0
          %401 = vst [vmem:[%s365 + $0x98] sm:$0xff] 0.0
          %402 = vst [vmem:[%s365 + $0xa0] sm:$0xff] 0.0
          %403 = vst [vmem:[%s365 + $0xa8] sm:$0xff] 0.0
          %404 = vst [vmem:[%s365 + $0xb0] sm:$0xff] 0.0
          %405 = vst [vmem:[%s365 + $0xb8] sm:$0xff] 0.0
          %406 = vst [vmem:[%s365 + $0xc0] sm:$0xff] 0.0
          %407 = vst [vmem:[%s365 + $0xc8] sm:$0xff] 0.0
          %408 = vst [vmem:[%s365 + $0xd0] sm:$0xff] 0.0
          %409 = vst [vmem:[%s365 + $0xd8] sm:$0xff] 0.0
          %410 = vst [vmem:[%s365 + $0xe0] sm:$0xff] 0.0
          %411 = vst [vmem:[%s365 + $0xe8] sm:$0xff] 0.0
          %412 = vst [vmem:[%s365 + $0xf0] sm:$0xff] 0.0
          %413 = vst [vmem:[%s365 + $0xf8] sm:$0xff] 0.0
          %414 = vst [vmem:[%s365 + $0x100] sm:$0xff] 0.0
          %415 = vst [vmem:[%s365 + $0x108] sm:$0xff] 0.0
          %416 = vst [vmem:[%s365 + $0x110] sm:$0xff] 0.0
          %417 = vst [vmem:[%s365 + $0x118] sm:$0xff] 0.0
          %418 = vst [vmem:[%s365 + $0x120] sm:$0xff] 0.0
          %419 = vst [vmem:[%s365 + $0x128] sm:$0xff] 0.0
          %420 = vst [vmem:[%s365 + $0x130] sm:$0xff] 0.0
          %421 = vst [vmem:[%s365 + $0x138] sm:$0xff] 0.0
          %422 = vst [vmem:[%s365 + $0x140] sm:$0xff] 0.0
          %423 = vst [vmem:[%s365 + $0x148] sm:$0xff] 0.0
          %424 = vst [vmem:[%s365 + $0x150] sm:$0xff] 0.0
          %425 = vst [vmem:[%s365 + $0x158] sm:$0xff] 0.0
          %426 = vst [vmem:[%s365 + $0x160] sm:$0xff] 0.0
          %427 = vst [vmem:[%s365 + $0x168] sm:$0xff] 0.0
          %428 = vst [vmem:[%s365 + $0x170] sm:$0xff] 0.0
          %429 = vst [vmem:[%s365 + $0x178] sm:$0xff] 0.0
          %430 = vst [vmem:[%s365 + $0x180] sm:$0xff] 0.0
          %431 = vst [vmem:[%s365 + $0x188] sm:$0xff] 0.0
          %432 = vst [vmem:[%s365 + $0x190] sm:$0xff] 0.0
          %433 = vst [vmem:[%s365 + $0x198] sm:$0xff] 0.0
          %434 = vst [vmem:[%s365 + $0x1a0] sm:$0xff] 0.0
          %435 = vst [vmem:[%s365 + $0x1a8] sm:$0xff] 0.0
          %436 = vst [vmem:[%s365 + $0x1b0] sm:$0xff] 0.0
          %437 = vst [vmem:[%s365 + $0x1b8] sm:$0xff] 0.0
          %438 = vst [vmem:[%s365 + $0x1c0] sm:$0xff] 0.0
          %439 = vst [vmem:[%s365 + $0x1c8] sm:$0xff] 0.0
          %440 = vst [vmem:[%s365 + $0x1d0] sm:$0xff] 0.0
          %441 = vst [vmem:[%s365 + $0x1d8] sm:$0xff] 0.0
          %442 = vst [vmem:[%s365 + $0x1e0] sm:$0xff] 0.0
          %443 = vst [vmem:[%s365 + $0x1e8] sm:$0xff] 0.0
          %444 = vst [vmem:[%s365 + $0x1f0] sm:$0xff] 0.0
          %445 = vst [vmem:[%s365 + $0x1f8] sm:$0xff] 0.0
        $region73: #{generator_forward.15} parent=64 // pred_fallthru
          _
        %v446 = vld [vmem:[%s365] sm:$0xff]
        %v447 = vld [vmem:[%s365 + $0x8] sm:$0xff]
        %v448 = vld [vmem:[%s365 + $0x10] sm:$0xff]
        %v449 = vld [vmem:[%s365 + $0x18] sm:$0xff]
        %v450 = vld [vmem:[%s365 + $0x20] sm:$0xff]
        %v451 = vld [vmem:[%s365 + $0x28] sm:$0xff]
        %v452 = vld [vmem:[%s365 + $0x30] sm:$0xff]
        %v453 = vld [vmem:[%s365 + $0x38] sm:$0xff]
        %v454 = vld [vmem:[%s365 + $0x40] sm:$0xff]
        %v455 = vld [vmem:[%s365 + $0x48] sm:$0xff]
        %v456 = vld [vmem:[%s365 + $0x50] sm:$0xff]
        %v457 = vld [vmem:[%s365 + $0x58] sm:$0xff]
        %v458 = vld [vmem:[%s365 + $0x60] sm:$0xff]
        %v459 = vld [vmem:[%s365 + $0x68] sm:$0xff]
        %v460 = vld [vmem:[%s365 + $0x70] sm:$0xff]
        %v461 = vld [vmem:[%s365 + $0x78] sm:$0xff]
        %v462 = vld [vmem:[%s365 + $0x80] sm:$0xff]
        %v463 = vld [vmem:[%s365 + $0x88] sm:$0xff]
        %v464 = vld [vmem:[%s365 + $0x90] sm:$0xff]
        %v465 = vld [vmem:[%s365 + $0x98] sm:$0xff]
        %v466 = vld [vmem:[%s365 + $0xa0] sm:$0xff]
        %v467 = vld [vmem:[%s365 + $0xa8] sm:$0xff]
        %v468 = vld [vmem:[%s365 + $0xb0] sm:$0xff]
        %v469 = vld [vmem:[%s365 + $0xb8] sm:$0xff]
        %v470 = vld [vmem:[%s365 + $0xc0] sm:$0xff]
        %v471 = vld [vmem:[%s365 + $0xc8] sm:$0xff]
        %v472 = vld [vmem:[%s365 + $0xd0] sm:$0xff]
        %v473 = vld [vmem:[%s365 + $0xd8] sm:$0xff]
        %v474 = vld [vmem:[%s365 + $0xe0] sm:$0xff]
        %v475 = vld [vmem:[%s365 + $0xe8] sm:$0xff]
        %v476 = vld [vmem:[%s365 + $0xf0] sm:$0xff]
        %v477 = vld [vmem:[%s365 + $0xf8] sm:$0xff]
        %v478 = vld [vmem:[%s365 + $0x100] sm:$0xff]
        %v479 = vld [vmem:[%s365 + $0x108] sm:$0xff]
        %v480 = vld [vmem:[%s365 + $0x110] sm:$0xff]
        %v481 = vld [vmem:[%s365 + $0x118] sm:$0xff]
        %v482 = vld [vmem:[%s365 + $0x120] sm:$0xff]
        %v483 = vld [vmem:[%s365 + $0x128] sm:$0xff]
        %v484 = vld [vmem:[%s365 + $0x130] sm:$0xff]
        %v485 = vld [vmem:[%s365 + $0x138] sm:$0xff]
        %v486 = vld [vmem:[%s365 + $0x140] sm:$0xff]
        %v487 = vld [vmem:[%s365 + $0x148] sm:$0xff]
        %v488 = vld [vmem:[%s365 + $0x150] sm:$0xff]
        %v489 = vld [vmem:[%s365 + $0x158] sm:$0xff]
        %v490 = vld [vmem:[%s365 + $0x160] sm:$0xff]
        %v491 = vld [vmem:[%s365 + $0x168] sm:$0xff]
        %v492 = vld [vmem:[%s365 + $0x170] sm:$0xff]
        %v493 = vld [vmem:[%s365 + $0x178] sm:$0xff]
        %v494 = vld [vmem:[%s365 + $0x180] sm:$0xff]
        %v495 = vld [vmem:[%s365 + $0x188] sm:$0xff]
        %v496 = vld [vmem:[%s365 + $0x190] sm:$0xff]
        %v497 = vld [vmem:[%s365 + $0x198] sm:$0xff]
        %v498 = vld [vmem:[%s365 + $0x1a0] sm:$0xff]
        %v499 = vld [vmem:[%s365 + $0x1a8] sm:$0xff]
        %v500 = vld [vmem:[%s365 + $0x1b0] sm:$0xff]
        %v501 = vld [vmem:[%s365 + $0x1b8] sm:$0xff]
        %v502 = vld [vmem:[%s365 + $0x1c0] sm:$0xff]
        %v503 = vld [vmem:[%s365 + $0x1c8] sm:$0xff]
        %v504 = vld [vmem:[%s365 + $0x1d0] sm:$0xff]
        %v505 = vld [vmem:[%s365 + $0x1d8] sm:$0xff]
        %v506 = vld [vmem:[%s365 + $0x1e0] sm:$0xff]
        %v507 = vld [vmem:[%s365 + $0x1e8] sm:$0xff]
        %v508 = vld [vmem:[%s365 + $0x1f0] sm:$0xff]
        %v509 = vld [vmem:[%s365 + $0x1f8] sm:$0xff]
        %v510 = vld [vmem:[%s298] sm:$0xf]
        %v511 = vld [vmem:[%s298 + $0x4] sm:$0xf]
        %v512 = vld [vmem:[%s298 + $0x8] sm:$0xf]
        %v513 = vld [vmem:[%s298 + $0xc] sm:$0xf]
        %v514 = vld [vmem:[%s298 + $0x10] sm:$0xf]
        %v515 = vld [vmem:[%s298 + $0x14] sm:$0xf]
        %v516 = vld [vmem:[%s298 + $0x18] sm:$0xf]
        %v517 = vld [vmem:[%s298 + $0x1c] sm:$0xf]
        %v518 = vld [vmem:[%s298 + $0x20] sm:$0xf]
        %v519 = vld [vmem:[%s298 + $0x24] sm:$0xf]
        %v520 = vld [vmem:[%s298 + $0x28] sm:$0xf]
        %v521 = vld [vmem:[%s298 + $0x2c] sm:$0xf]
        %v522 = vld [vmem:[%s298 + $0x30] sm:$0xf]
        %v523 = vld [vmem:[%s298 + $0x34] sm:$0xf]
        %v524 = vld [vmem:[%s298 + $0x38] sm:$0xf]
        %v525 = vld [vmem:[%s298 + $0x3c] sm:$0xf]
        %v526 = vld [vmem:[%s353] sm:$0xff]
        %v527 = vld [vmem:[%s353 + $0x8] sm:$0xff]
        %v528 = vld [vmem:[%s353 + $0x10] sm:$0xff]
        %v529 = vld [vmem:[%s353 + $0x18] sm:$0xff]
        %v530 = vld [vmem:[%s353 + $0x20] sm:$0xff]
        %v531 = vld [vmem:[%s353 + $0x28] sm:$0xff]
        %v532 = vld [vmem:[%s353 + $0x30] sm:$0xff]
        %v533 = vld [vmem:[%s353 + $0x38] sm:$0xff]
        %v534 = vld [vmem:[%s353 + $0x40] sm:$0xff]
        %v535 = vld [vmem:[%s353 + $0x48] sm:$0xff]
        %v536 = vld [vmem:[%s353 + $0x50] sm:$0xff]
        %v537 = vld [vmem:[%s353 + $0x58] sm:$0xff]
        %v538 = vld [vmem:[%s353 + $0x60] sm:$0xff]
        %v539 = vld [vmem:[%s353 + $0x68] sm:$0xff]
        %v540 = vld [vmem:[%s353 + $0x70] sm:$0xff]
        %v541 = vld [vmem:[%s353 + $0x78] sm:$0xff]
        %v542 = vld [vmem:[%s353 + $0x80] sm:$0xff]
        %v543 = vld [vmem:[%s353 + $0x88] sm:$0xff]
        %v544 = vld [vmem:[%s353 + $0x90] sm:$0xff]
        %v545 = vld [vmem:[%s353 + $0x98] sm:$0xff]
        %v546 = vld [vmem:[%s353 + $0xa0] sm:$0xff]
        %v547 = vld [vmem:[%s353 + $0xa8] sm:$0xff]
        %v548 = vld [vmem:[%s353 + $0xb0] sm:$0xff]
        %v549 = vld [vmem:[%s353 + $0xb8] sm:$0xff]
        %v550 = vld [vmem:[%s353 + $0xc0] sm:$0xff]
        %v551 = vld [vmem:[%s353 + $0xc8] sm:$0xff]
        %v552 = vld [vmem:[%s353 + $0xd0] sm:$0xff]
        %v553 = vld [vmem:[%s353 + $0xd8] sm:$0xff]
        %v554 = vld [vmem:[%s353 + $0xe0] sm:$0xff]
        %v555 = vld [vmem:[%s353 + $0xe8] sm:$0xff]
        %v556 = vld [vmem:[%s353 + $0xf0] sm:$0xff]
        %v557 = vld [vmem:[%s353 + $0xf8] sm:$0xff]
        %v574 = vunpack.c.l.b16 %v510
        %v575 = vunpack.c.l.b16 %v511
        %v576 = vunpack.c.l.b16 %v512
        %v577 = vunpack.c.l.b16 %v513
        %v578 = vunpack.c.l.b16 %v514
        %v579 = vunpack.c.l.b16 %v515
        %v580 = vunpack.c.l.b16 %v516
        %v581 = vunpack.c.l.b16 %v517
        %v582 = vunpack.c.l.b16 %v518
        %v583 = vunpack.c.l.b16 %v519
        %v584 = vunpack.c.l.b16 %v520
        %v585 = vunpack.c.l.b16 %v521
        %v586 = vunpack.c.l.b16 %v522
        %v587 = vunpack.c.l.b16 %v523
        %v588 = vunpack.c.l.b16 %v524
        %v589 = vunpack.c.l.b16 %v525
        %v590 = vpack.c.b16 %v575, %v574
        %v591 = vpack.c.b16 %v577, %v576
        %v592 = vpack.c.b16 %v579, %v578
        %v593 = vpack.c.b16 %v581, %v580
        %v594 = vpack.c.b16 %v583, %v582
        %v595 = vpack.c.b16 %v585, %v584
        %v596 = vpack.c.b16 %v587, %v586
        %v597 = vpack.c.b16 %v589, %v588
        %v638 = vunpack.c.l.b16 %v526
        %v639 = vunpack.c.h.b16 %v526
        %v640 = vunpack.c.l.b16 %v527
        %v641 = vunpack.c.h.b16 %v527
        %v642 = vunpack.c.l.b16 %v528
        %v643 = vunpack.c.h.b16 %v528
        %v644 = vunpack.c.l.b16 %v529
        %v645 = vunpack.c.h.b16 %v529
        %v646 = vunpack.c.l.b16 %v530
        %v647 = vunpack.c.h.b16 %v530
        %v648 = vunpack.c.l.b16 %v531
        %v649 = vunpack.c.h.b16 %v531
        %v650 = vunpack.c.l.b16 %v532
        %v651 = vunpack.c.h.b16 %v532
        %v652 = vunpack.c.l.b16 %v533
        %v653 = vunpack.c.h.b16 %v533
        %v654 = vunpack.c.l.b16 %v534
        %v655 = vunpack.c.h.b16 %v534
        %v656 = vunpack.c.l.b16 %v535
        %v657 = vunpack.c.h.b16 %v535
        %v658 = vunpack.c.l.b16 %v536
        %v659 = vunpack.c.h.b16 %v536
        %v660 = vunpack.c.l.b16 %v537
        %v661 = vunpack.c.h.b16 %v537
        %v662 = vunpack.c.l.b16 %v538
        %v663 = vunpack.c.h.b16 %v538
        %v664 = vunpack.c.l.b16 %v539
        %v665 = vunpack.c.h.b16 %v539
        %v666 = vunpack.c.l.b16 %v540
        %v667 = vunpack.c.h.b16 %v540
        %v668 = vunpack.c.l.b16 %v541
        %v669 = vunpack.c.h.b16 %v541
        %v670 = vunpack.c.l.b16 %v542
        %v671 = vunpack.c.h.b16 %v542
        %v672 = vunpack.c.l.b16 %v543
        %v673 = vunpack.c.h.b16 %v543
        %v674 = vunpack.c.l.b16 %v544
        %v675 = vunpack.c.h.b16 %v544
        %v676 = vunpack.c.l.b16 %v545
        %v677 = vunpack.c.h.b16 %v545
        %v678 = vunpack.c.l.b16 %v546
        %v679 = vunpack.c.h.b16 %v546
        %v680 = vunpack.c.l.b16 %v547
        %v681 = vunpack.c.h.b16 %v547
        %v682 = vunpack.c.l.b16 %v548
        %v683 = vunpack.c.h.b16 %v548
        %v684 = vunpack.c.l.b16 %v549
        %v685 = vunpack.c.h.b16 %v549
        %v686 = vunpack.c.l.b16 %v550
        %v687 = vunpack.c.h.b16 %v550
        %v688 = vunpack.c.l.b16 %v551
        %v689 = vunpack.c.h.b16 %v551
        %v690 = vunpack.c.l.b16 %v552
        %v691 = vunpack.c.h.b16 %v552
        %v692 = vunpack.c.l.b16 %v553
        %v693 = vunpack.c.h.b16 %v553
        %v694 = vunpack.c.l.b16 %v554
        %v695 = vunpack.c.h.b16 %v554
        %v696 = vunpack.c.l.b16 %v555
        %v697 = vunpack.c.h.b16 %v555
        %v698 = vunpack.c.l.b16 %v556
        %v699 = vunpack.c.h.b16 %v556
        %v700 = vunpack.c.l.b16 %v557
        %v701 = vunpack.c.h.b16 %v557
        %v702 = vpack.c.b16 %v642, %v638
        %v703 = vpack.c.b16 %v643, %v639
        %v704 = vpack.c.b16 %v644, %v640
        %v705 = vpack.c.b16 %v645, %v641
        %v706 = vpack.c.b16 %v650, %v646
        %v707 = vpack.c.b16 %v651, %v647
        %v708 = vpack.c.b16 %v652, %v648
        %v709 = vpack.c.b16 %v653, %v649
        %v710 = vpack.c.b16 %v658, %v654
        %v711 = vpack.c.b16 %v659, %v655
        %v712 = vpack.c.b16 %v660, %v656
        %v713 = vpack.c.b16 %v661, %v657
        %v714 = vpack.c.b16 %v666, %v662
        %v715 = vpack.c.b16 %v667, %v663
        %v716 = vpack.c.b16 %v668, %v664
        %v717 = vpack.c.b16 %v669, %v665
        %v718 = vpack.c.b16 %v674, %v670
        %v719 = vpack.c.b16 %v675, %v671
        %v720 = vpack.c.b16 %v676, %v672
        %v721 = vpack.c.b16 %v677, %v673
        %v722 = vpack.c.b16 %v682, %v678
        %v723 = vpack.c.b16 %v683, %v679
        %v724 = vpack.c.b16 %v684, %v680
        %v725 = vpack.c.b16 %v685, %v681
        %v726 = vpack.c.b16 %v690, %v686
        %v727 = vpack.c.b16 %v691, %v687
        %v728 = vpack.c.b16 %v692, %v688
        %v729 = vpack.c.b16 %v693, %v689
        %v730 = vpack.c.b16 %v698, %v694
        %v731 = vpack.c.b16 %v699, %v695
        %v732 = vpack.c.b16 %v700, %v696
        %v733 = vpack.c.b16 %v701, %v697
        %766 = vmatpush.bf16.msra.mxu0 %v730
        %767 = vmatpush.bf16.msra.mxu0 %v726
        %768 = vmatpush.bf16.msra.mxu0 %v722
        %769 = vmatpush.bf16.msra.mxu0 %v718
        %770 = vmatpush.bf16.msra.mxu0 %v714
        %771 = vmatpush.bf16.msra.mxu0 %v710
        %772 = vmatpush.bf16.msra.mxu0 %v706
        %773 = vmatpush.bf16.msra.mxu0 %v702
        %774 = vmatmul.bf16.gmra.mxu0 %v590
        %v775 = vpop.f32.mrf.mxu0
        %v776 = vadd.f32 0.0, %v775
        %v777 = vpop.f32.mrf.mxu0
        %v778 = vadd.f32 0.0, %v777
        %779 = vmatmul.bf16.gmra.mxu0 %v591
        %v780 = vpop.f32.mrf.mxu0
        %v781 = vadd.f32 0.0, %v780
        %v782 = vpop.f32.mrf.mxu0
        %v783 = vadd.f32 0.0, %v782
        %784 = vmatmul.bf16.gmra.mxu0 %v592
        %v785 = vpop.f32.mrf.mxu0
        %v786 = vadd.f32 0.0, %v785
        %v787 = vpop.f32.mrf.mxu0
        %v788 = vadd.f32 0.0, %v787
        %789 = vmatmul.bf16.gmra.mxu0 %v593
        %v790 = vpop.f32.mrf.mxu0
        %v791 = vadd.f32 0.0, %v790
        %v792 = vpop.f32.mrf.mxu0
        %v793 = vadd.f32 0.0, %v792
        %794 = vmatmul.bf16.gmra.mxu0 %v594
        %v795 = vpop.f32.mrf.mxu0
        %v796 = vadd.f32 0.0, %v795
        %v797 = vpop.f32.mrf.mxu0
        %v798 = vadd.f32 0.0, %v797
        %799 = vmatmul.bf16.gmra.mxu0 %v595
        %v800 = vpop.f32.mrf.mxu0
        %v801 = vadd.f32 0.0, %v800
        %v802 = vpop.f32.mrf.mxu0
        %v803 = vadd.f32 0.0, %v802
        %804 = vmatmul.bf16.gmra.mxu0 %v596
        %v805 = vpop.f32.mrf.mxu0
        %v806 = vadd.f32 0.0, %v805
        %v807 = vpop.f32.mrf.mxu0
        %v808 = vadd.f32 0.0, %v807
        %809 = vmatmul.bf16.gmra.mxu0 %v597
        %v810 = vpop.f32.mrf.mxu0
        %v811 = vadd.f32 0.0, %v810
        %v812 = vpop.f32.mrf.mxu0
        %v813 = vadd.f32 0.0, %v812
        %814 = vdwg.mxu0
        %815 = vmatpush.bf16.msra.mxu0 %v731
        %816 = vmatpush.bf16.msra.mxu0 %v727
        %817 = vmatpush.bf16.msra.mxu0 %v723
        %818 = vmatpush.bf16.msra.mxu0 %v719
        %819 = vmatpush.bf16.msra.mxu0 %v715
        %820 = vmatpush.bf16.msra.mxu0 %v711
        %821 = vmatpush.bf16.msra.mxu0 %v707
        %822 = vmatpush.bf16.msra.mxu0 %v703
        %823 = vmatmul.bf16.gmra.mxu0 %v590
        %v824 = vpop.f32.mrf.mxu0
        %v825 = vadd.f32 0.0, %v824
        %v826 = vpop.f32.mrf.mxu0
        %v827 = vadd.f32 0.0, %v826
        %828 = vmatmul.bf16.gmra.mxu0 %v591
        %v829 = vpop.f32.mrf.mxu0
        %v830 = vadd.f32 0.0, %v829
        %v831 = vpop.f32.mrf.mxu0
        %v832 = vadd.f32 0.0, %v831
        %833 = vmatmul.bf16.gmra.mxu0 %v592
        %v834 = vpop.f32.mrf.mxu0
        %v835 = vadd.f32 0.0, %v834
        %v836 = vpop.f32.mrf.mxu0
        %v837 = vadd.f32 0.0, %v836
        %838 = vmatmul.bf16.gmra.mxu0 %v593
        %v839 = vpop.f32.mrf.mxu0
        %v840 = vadd.f32 0.0, %v839
        %v841 = vpop.f32.mrf.mxu0
        %v842 = vadd.f32 0.0, %v841
        %843 = vmatmul.bf16.gmra.mxu0 %v594
        %v844 = vpop.f32.mrf.mxu0
        %v845 = vadd.f32 0.0, %v844
        %v846 = vpop.f32.mrf.mxu0
        %v847 = vadd.f32 0.0, %v846
        %848 = vmatmul.bf16.gmra.mxu0 %v595
        %v849 = vpop.f32.mrf.mxu0
        %v850 = vadd.f32 0.0, %v849
        %v851 = vpop.f32.mrf.mxu0
        %v852 = vadd.f32 0.0, %v851
        %853 = vmatmul.bf16.gmra.mxu0 %v596
        %v854 = vpop.f32.mrf.mxu0
        %v855 = vadd.f32 0.0, %v854
        %v856 = vpop.f32.mrf.mxu0
        %v857 = vadd.f32 0.0, %v856
        %858 = vmatmul.bf16.gmra.mxu0 %v597
        %v859 = vpop.f32.mrf.mxu0
        %v860 = vadd.f32 0.0, %v859
        %v861 = vpop.f32.mrf.mxu0
        %v862 = vadd.f32 0.0, %v861
        %863 = vdwg.mxu0
        %864 = vmatpush.bf16.msra.mxu0 %v732
        %865 = vmatpush.bf16.msra.mxu0 %v728
        %866 = vmatpush.bf16.msra.mxu0 %v724
        %867 = vmatpush.bf16.msra.mxu0 %v720
        %868 = vmatpush.bf16.msra.mxu0 %v716
        %869 = vmatpush.bf16.msra.mxu0 %v712
        %870 = vmatpush.bf16.msra.mxu0 %v708
        %871 = vmatpush.bf16.msra.mxu0 %v704
        %872 = vmatmul.bf16.gmra.mxu0 %v590
        %v873 = vpop.f32.mrf.mxu0
        %v874 = vadd.f32 0.0, %v873
        %v875 = vpop.f32.mrf.mxu0
        %v876 = vadd.f32 0.0, %v875
        %877 = vmatmul.bf16.gmra.mxu0 %v591
        %v878 = vpop.f32.mrf.mxu0
        %v879 = vadd.f32 0.0, %v878
        %v880 = vpop.f32.mrf.mxu0
        %v881 = vadd.f32 0.0, %v880
        %882 = vmatmul.bf16.gmra.mxu0 %v592
        %v883 = vpop.f32.mrf.mxu0
        %v884 = vadd.f32 0.0, %v883
        %v885 = vpop.f32.mrf.mxu0
        %v886 = vadd.f32 0.0, %v885
        %887 = vmatmul.bf16.gmra.mxu0 %v593
        %v888 = vpop.f32.mrf.mxu0
        %v889 = vadd.f32 0.0, %v888
        %v890 = vpop.f32.mrf.mxu0
        %v891 = vadd.f32 0.0, %v890
        %892 = vmatmul.bf16.gmra.mxu0 %v594
        %v893 = vpop.f32.mrf.mxu0
        %v894 = vadd.f32 0.0, %v893
        %v895 = vpop.f32.mrf.mxu0
        %v896 = vadd.f32 0.0, %v895
        %897 = vmatmul.bf16.gmra.mxu0 %v595
        %v898 = vpop.f32.mrf.mxu0
        %v899 = vadd.f32 0.0, %v898
        %v900 = vpop.f32.mrf.mxu0
        %v901 = vadd.f32 0.0, %v900
        %902 = vmatmul.bf16.gmra.mxu0 %v596
        %v903 = vpop.f32.mrf.mxu0
        %v904 = vadd.f32 0.0, %v903
        %v905 = vpop.f32.mrf.mxu0
        %v906 = vadd.f32 0.0, %v905
        %907 = vmatmul.bf16.gmra.mxu0 %v597
        %v908 = vpop.f32.mrf.mxu0
        %v909 = vadd.f32 0.0, %v908
        %v910 = vpop.f32.mrf.mxu0
        %v911 = vadd.f32 0.0, %v910
        %912 = vdwg.mxu0
        %913 = vmatpush.bf16.msra.mxu0 %v733
        %914 = vmatpush.bf16.msra.mxu0 %v729
        %915 = vmatpush.bf16.msra.mxu0 %v725
        %916 = vmatpush.bf16.msra.mxu0 %v721
        %917 = vmatpush.bf16.msra.mxu0 %v717
        %918 = vmatpush.bf16.msra.mxu0 %v713
        %919 = vmatpush.bf16.msra.mxu0 %v709
        %920 = vmatpush.bf16.msra.mxu0 %v705
        %921 = vmatmul.bf16.gmra.mxu0 %v590
        %v922 = vpop.f32.mrf.mxu0
        %v923 = vadd.f32 0.0, %v922
        %v924 = vpop.f32.mrf.mxu0
        %v925 = vadd.f32 0.0, %v924
        %926 = vmatmul.bf16.gmra.mxu0 %v591
        %v927 = vpop.f32.mrf.mxu0
        %v928 = vadd.f32 0.0, %v927
        %v929 = vpop.f32.mrf.mxu0
        %v930 = vadd.f32 0.0, %v929
        %931 = vmatmul.bf16.gmra.mxu0 %v592
        %v932 = vpop.f32.mrf.mxu0
        %v933 = vadd.f32 0.0, %v932
        %v934 = vpop.f32.mrf.mxu0
        %v935 = vadd.f32 0.0, %v934
        %936 = vmatmul.bf16.gmra.mxu0 %v593
        %v937 = vpop.f32.mrf.mxu0
        %v938 = vadd.f32 0.0, %v937
        %v939 = vpop.f32.mrf.mxu0
        %v940 = vadd.f32 0.0, %v939
        %941 = vmatmul.bf16.gmra.mxu0 %v594
        %v942 = vpop.f32.mrf.mxu0
        %v943 = vadd.f32 0.0, %v942
        %v944 = vpop.f32.mrf.mxu0
        %v945 = vadd.f32 0.0, %v944
        %946 = vmatmul.bf16.gmra.mxu0 %v595
        %v947 = vpop.f32.mrf.mxu0
        %v948 = vadd.f32 0.0, %v947
        %v949 = vpop.f32.mrf.mxu0
        %v950 = vadd.f32 0.0, %v949
        %951 = vmatmul.bf16.gmra.mxu0 %v596
        %v952 = vpop.f32.mrf.mxu0
        %v953 = vadd.f32 0.0, %v952
        %v954 = vpop.f32.mrf.mxu0
        %v955 = vadd.f32 0.0, %v954
        %956 = vmatmul.bf16.gmra.mxu0 %v597
        %v957 = vpop.f32.mrf.mxu0
        %v958 = vadd.f32 0.0, %v957
        %v959 = vpop.f32.mrf.mxu0
        %v960 = vadd.f32 0.0, %v959
        %961 = vdwg.mxu0
        %v962 = vadd.f32 %v446, %v776
        %v963 = vadd.f32 %v447, %v825
        %v964 = vadd.f32 %v448, %v874
        %v965 = vadd.f32 %v449, %v923
        %v966 = vadd.f32 %v450, %v778
        %v967 = vadd.f32 %v451, %v827
        %v968 = vadd.f32 %v452, %v876
        %v969 = vadd.f32 %v453, %v925
        %v970 = vadd.f32 %v454, %v781
        %v971 = vadd.f32 %v455, %v830
        %v972 = vadd.f32 %v456, %v879
        %v973 = vadd.f32 %v457, %v928
        %v974 = vadd.f32 %v458, %v783
        %v975 = vadd.f32 %v459, %v832
        %v976 = vadd.f32 %v460, %v881
        %v977 = vadd.f32 %v461, %v930
        %v978 = vadd.f32 %v462, %v786
        %v979 = vadd.f32 %v463, %v835
        %v980 = vadd.f32 %v464, %v884
        %v981 = vadd.f32 %v465, %v933
        %v982 = vadd.f32 %v466, %v788
        %v983 = vadd.f32 %v467, %v837
        %v984 = vadd.f32 %v468, %v886
        %v985 = vadd.f32 %v469, %v935
        %v986 = vadd.f32 %v470, %v791
        %v987 = vadd.f32 %v471, %v840
        %v988 = vadd.f32 %v472, %v889
        %v989 = vadd.f32 %v473, %v938
        %v990 = vadd.f32 %v474, %v793
        %v991 = vadd.f32 %v475, %v842
        %v992 = vadd.f32 %v476, %v891
        %v993 = vadd.f32 %v477, %v940
        %v994 = vadd.f32 %v478, %v796
        %v995 = vadd.f32 %v479, %v845
        %v996 = vadd.f32 %v480, %v894
        %v997 = vadd.f32 %v481, %v943
        %v998 = vadd.f32 %v482, %v798
        %v999 = vadd.f32 %v483, %v847
        %v1000 = vadd.f32 %v484, %v896
        %v1001 = vadd.f32 %v485, %v945
        %v1002 = vadd.f32 %v486, %v801
        %v1003 = vadd.f32 %v487, %v850
        %v1004 = vadd.f32 %v488, %v899
        %v1005 = vadd.f32 %v489, %v948
        %v1006 = vadd.f32 %v490, %v803
        %v1007 = vadd.f32 %v491, %v852
        %v1008 = vadd.f32 %v492, %v901
        %v1009 = vadd.f32 %v493, %v950
        %v1010 = vadd.f32 %v494, %v806
        %v1011 = vadd.f32 %v495, %v855
        %v1012 = vadd.f32 %v496, %v904
        %v1013 = vadd.f32 %v497, %v953
        %v1014 = vadd.f32 %v498, %v808
        %v1015 = vadd.f32 %v499, %v857
        %v1016 = vadd.f32 %v500, %v906
        %v1017 = vadd.f32 %v501, %v955
        %v1018 = vadd.f32 %v502, %v811
        %v1019 = vadd.f32 %v503, %v860
        %v1020 = vadd.f32 %v504, %v909
        %v1021 = vadd.f32 %v505, %v958
        %v1022 = vadd.f32 %v506, %v813
        %v1023 = vadd.f32 %v507, %v862
        %v1024 = vadd.f32 %v508, %v911
        %v1025 = vadd.f32 %v509, %v960
        %1026 = vst [vmem:[%s365] sm:$0xff] %v962
        %1027 = vst [vmem:[%s365 + $0x8] sm:$0xff] %v963
        %1028 = vst [vmem:[%s365 + $0x10] sm:$0xff] %v964
        %1029 = vst [vmem:[%s365 + $0x18] sm:$0xff] %v965
        %1030 = vst [vmem:[%s365 + $0x20] sm:$0xff] %v966
        %1031 = vst [vmem:[%s365 + $0x28] sm:$0xff] %v967
        %1032 = vst [vmem:[%s365 + $0x30] sm:$0xff] %v968
        %1033 = vst [vmem:[%s365 + $0x38] sm:$0xff] %v969
        %1034 = vst [vmem:[%s365 + $0x40] sm:$0xff] %v970
        %1035 = vst [vmem:[%s365 + $0x48] sm:$0xff] %v971
        %1036 = vst [vmem:[%s365 + $0x50] sm:$0xff] %v972
        %1037 = vst [vmem:[%s365 + $0x58] sm:$0xff] %v973
        %1038 = vst [vmem:[%s365 + $0x60] sm:$0xff] %v974
        %1039 = vst [vmem:[%s365 + $0x68] sm:$0xff] %v975
        %1040 = vst [vmem:[%s365 + $0x70] sm:$0xff] %v976
        %1041 = vst [vmem:[%s365 + $0x78] sm:$0xff] %v977
        %1042 = vst [vmem:[%s365 + $0x80] sm:$0xff] %v978
        %1043 = vst [vmem:[%s365 + $0x88] sm:$0xff] %v979
        %1044 = vst [vmem:[%s365 + $0x90] sm:$0xff] %v980
        %1045 = vst [vmem:[%s365 + $0x98] sm:$0xff] %v981
        %1046 = vst [vmem:[%s365 + $0xa0] sm:$0xff] %v982
        %1047 = vst [vmem:[%s365 + $0xa8] sm:$0xff] %v983
        %1048 = vst [vmem:[%s365 + $0xb0] sm:$0xff] %v984
        %1049 = vst [vmem:[%s365 + $0xb8] sm:$0xff] %v985
        %1050 = vst [vmem:[%s365 + $0xc0] sm:$0xff] %v986
        %1051 = vst [vmem:[%s365 + $0xc8] sm:$0xff] %v987
        %1052 = vst [vmem:[%s365 + $0xd0] sm:$0xff] %v988
        %1053 = vst [vmem:[%s365 + $0xd8] sm:$0xff] %v989
        %1054 = vst [vmem:[%s365 + $0xe0] sm:$0xff] %v990
        %1055 = vst [vmem:[%s365 + $0xe8] sm:$0xff] %v991
        %1056 = vst [vmem:[%s365 + $0xf0] sm:$0xff] %v992
        %1057 = vst [vmem:[%s365 + $0xf8] sm:$0xff] %v993
        %1058 = vst [vmem:[%s365 + $0x100] sm:$0xff] %v994
        %1059 = vst [vmem:[%s365 + $0x108] sm:$0xff] %v995
        %1060 = vst [vmem:[%s365 + $0x110] sm:$0xff] %v996
        %1061 = vst [vmem:[%s365 + $0x118] sm:$0xff] %v997
        %1062 = vst [vmem:[%s365 + $0x120] sm:$0xff] %v998
        %1063 = vst [vmem:[%s365 + $0x128] sm:$0xff] %v999
        %1064 = vst [vmem:[%s365 + $0x130] sm:$0xff] %v1000
        %1065 = vst [vmem:[%s365 + $0x138] sm:$0xff] %v1001
        %1066 = vst [vmem:[%s365 + $0x140] sm:$0xff] %v1002
        %1067 = vst [vmem:[%s365 + $0x148] sm:$0xff] %v1003
        %1068 = vst [vmem:[%s365 + $0x150] sm:$0xff] %v1004
        %1069 = vst [vmem:[%s365 + $0x158] sm:$0xff] %v1005
        %1070 = vst [vmem:[%s365 + $0x160] sm:$0xff] %v1006
        %1071 = vst [vmem:[%s365 + $0x168] sm:$0xff] %v1007
        %1072 = vst [vmem:[%s365 + $0x170] sm:$0xff] %v1008
        %1073 = vst [vmem:[%s365 + $0x178] sm:$0xff] %v1009
        %1074 = vst [vmem:[%s365 + $0x180] sm:$0xff] %v1010
        %1075 = vst [vmem:[%s365 + $0x188] sm:$0xff] %v1011
        %1076 = vst [vmem:[%s365 + $0x190] sm:$0xff] %v1012
        %1077 = vst [vmem:[%s365 + $0x198] sm:$0xff] %v1013
        %1078 = vst [vmem:[%s365 + $0x1a0] sm:$0xff] %v1014
        %1079 = vst [vmem:[%s365 + $0x1a8] sm:$0xff] %v1015
        %1080 = vst [vmem:[%s365 + $0x1b0] sm:$0xff] %v1016
        %1081 = vst [vmem:[%s365 + $0x1b8] sm:$0xff] %v1017
        %1082 = vst [vmem:[%s365 + $0x1c0] sm:$0xff] %v1018
        %1083 = vst [vmem:[%s365 + $0x1c8] sm:$0xff] %v1019
        %1084 = vst [vmem:[%s365 + $0x1d0] sm:$0xff] %v1020
        %1085 = vst [vmem:[%s365 + $0x1d8] sm:$0xff] %v1021
        %1086 = vst [vmem:[%s365 + $0x1e0] sm:$0xff] %v1022
        %1087 = vst [vmem:[%s365 + $0x1e8] sm:$0xff] %v1023
        %1088 = vst [vmem:[%s365 + $0x1f0] sm:$0xff] %v1024
        %1089 = vst [vmem:[%s365 + $0x1f8] sm:$0xff] %v1025
        %p1090 = scmp.eq.s32.totalorder %s22, 8
        // Predicated region
        $region74: #{generator_forward.15} parent=64 // pred_check
          %p1091 = pneg %p1090
        $region75: #{generator_forward.15} parent=64 // pred_check_branch
          %1093 = sbr.rel (%p1091) target = $region77
        $region76: #{generator_forward.15} parent=64 // pred_region
          %v1094 = vld [vmem:[%s365] sm:$0xff]
          %v1095 = vld [vmem:[%s365 + $0x8] sm:$0xff]
          %v1096 = vld [vmem:[%s365 + $0x10] sm:$0xff]
          %v1097 = vld [vmem:[%s365 + $0x18] sm:$0xff]
          %v1098 = vld [vmem:[%s365 + $0x20] sm:$0xff]
          %v1099 = vld [vmem:[%s365 + $0x28] sm:$0xff]
          %v1100 = vld [vmem:[%s365 + $0x30] sm:$0xff]
          %v1101 = vld [vmem:[%s365 + $0x38] sm:$0xff]
          %v1102 = vld [vmem:[%s365 + $0x40] sm:$0xff]
          %v1103 = vld [vmem:[%s365 + $0x48] sm:$0xff]
          %v1104 = vld [vmem:[%s365 + $0x50] sm:$0xff]
          %v1105 = vld [vmem:[%s365 + $0x58] sm:$0xff]
          %v1106 = vld [vmem:[%s365 + $0x60] sm:$0xff]
          %v1107 = vld [vmem:[%s365 + $0x68] sm:$0xff]
          %v1108 = vld [vmem:[%s365 + $0x70] sm:$0xff]
          %v1109 = vld [vmem:[%s365 + $0x78] sm:$0xff]
          %v1110 = vld [vmem:[%s365 + $0x80] sm:$0xff]
          %v1111 = vld [vmem:[%s365 + $0x88] sm:$0xff]
          %v1112 = vld [vmem:[%s365 + $0x90] sm:$0xff]
          %v1113 = vld [vmem:[%s365 + $0x98] sm:$0xff]
          %v1114 = vld [vmem:[%s365 + $0xa0] sm:$0xff]
          %v1115 = vld [vmem:[%s365 + $0xa8] sm:$0xff]
          %v1116 = vld [vmem:[%s365 + $0xb0] sm:$0xff]
          %v1117 = vld [vmem:[%s365 + $0xb8] sm:$0xff]
          %v1118 = vld [vmem:[%s365 + $0xc0] sm:$0xff]
          %v1119 = vld [vmem:[%s365 + $0xc8] sm:$0xff]
          %v1120 = vld [vmem:[%s365 + $0xd0] sm:$0xff]
          %v1121 = vld [vmem:[%s365 + $0xd8] sm:$0xff]
          %v1122 = vld [vmem:[%s365 + $0xe0] sm:$0xff]
          %v1123 = vld [vmem:[%s365 + $0xe8] sm:$0xff]
          %v1124 = vld [vmem:[%s365 + $0xf0] sm:$0xff]
          %v1125 = vld [vmem:[%s365 + $0xf8] sm:$0xff]
          %v1126 = vld [vmem:[%s365 + $0x100] sm:$0xff]
          %v1127 = vld [vmem:[%s365 + $0x108] sm:$0xff]
          %v1128 = vld [vmem:[%s365 + $0x110] sm:$0xff]
          %v1129 = vld [vmem:[%s365 + $0x118] sm:$0xff]
          %v1130 = vld [vmem:[%s365 + $0x120] sm:$0xff]
          %v1131 = vld [vmem:[%s365 + $0x128] sm:$0xff]
          %v1132 = vld [vmem:[%s365 + $0x130] sm:$0xff]
          %v1133 = vld [vmem:[%s365 + $0x138] sm:$0xff]
          %v1134 = vld [vmem:[%s365 + $0x140] sm:$0xff]
          %v1135 = vld [vmem:[%s365 + $0x148] sm:$0xff]
          %v1136 = vld [vmem:[%s365 + $0x150] sm:$0xff]
          %v1137 = vld [vmem:[%s365 + $0x158] sm:$0xff]
          %v1138 = vld [vmem:[%s365 + $0x160] sm:$0xff]
          %v1139 = vld [vmem:[%s365 + $0x168] sm:$0xff]
          %v1140 = vld [vmem:[%s365 + $0x170] sm:$0xff]
          %v1141 = vld [vmem:[%s365 + $0x178] sm:$0xff]
          %v1142 = vld [vmem:[%s365 + $0x180] sm:$0xff]
          %v1143 = vld [vmem:[%s365 + $0x188] sm:$0xff]
          %v1144 = vld [vmem:[%s365 + $0x190] sm:$0xff]
          %v1145 = vld [vmem:[%s365 + $0x198] sm:$0xff]
          %v1146 = vld [vmem:[%s365 + $0x1a0] sm:$0xff]
          %v1147 = vld [vmem:[%s365 + $0x1a8] sm:$0xff]
          %v1148 = vld [vmem:[%s365 + $0x1b0] sm:$0xff]
          %v1149 = vld [vmem:[%s365 + $0x1b8] sm:$0xff]
          %v1150 = vld [vmem:[%s365 + $0x1c0] sm:$0xff]
          %v1151 = vld [vmem:[%s365 + $0x1c8] sm:$0xff]
          %v1152 = vld [vmem:[%s365 + $0x1d0] sm:$0xff]
          %v1153 = vld [vmem:[%s365 + $0x1d8] sm:$0xff]
          %v1154 = vld [vmem:[%s365 + $0x1e0] sm:$0xff]
          %v1155 = vld [vmem:[%s365 + $0x1e8] sm:$0xff]
          %v1156 = vld [vmem:[%s365 + $0x1f0] sm:$0xff]
          %v1157 = vld [vmem:[%s365 + $0x1f8] sm:$0xff]
          %v1158 = vadd.f32 %v1094, %v1098
          %v1159 = vadd.f32 %v1158, %v1102
          %v1160 = vadd.f32 %v1159, %v1106
          %v1161 = vadd.f32 %v1160, %v1110
          %v1162 = vadd.f32 %v1161, %v1114
          %v1163 = vadd.f32 %v1162, %v1118
          %v1164 = vadd.f32 %v1163, %v1122
          %v1165 = vadd.f32 %v1164, %v1126
          %v1166 = vadd.f32 %v1165, %v1130
          %v1167 = vadd.f32 %v1166, %v1134
          %v1168 = vadd.f32 %v1167, %v1138
          %v1169 = vadd.f32 %v1168, %v1142
          %v1170 = vadd.f32 %v1169, %v1146
          %v1171 = vadd.f32 %v1170, %v1150
          %v1172 = vadd.f32 %v1171, %v1154
          %v1173 = vrot.slane %v1172, 4
          %v1174 = vadd.f32 %v1172, %v1173
          %v1175 = vrot.slane %v1174, 2
          %v1176 = vadd.f32 %v1174, %v1175
          %v1177 = vrot.slane %v1176, 1
          %v1178 = vadd.f32 %v1176, %v1177
          %v1179 = vadd.f32 %v1095, %v1099
          %v1180 = vadd.f32 %v1179, %v1103
          %v1181 = vadd.f32 %v1180, %v1107
          %v1182 = vadd.f32 %v1181, %v1111
          %v1183 = vadd.f32 %v1182, %v1115
          %v1184 = vadd.f32 %v1183, %v1119
          %v1185 = vadd.f32 %v1184, %v1123
          %v1186 = vadd.f32 %v1185, %v1127
          %v1187 = vadd.f32 %v1186, %v1131
          %v1188 = vadd.f32 %v1187, %v1135
          %v1189 = vadd.f32 %v1188, %v1139
          %v1190 = vadd.f32 %v1189, %v1143
          %v1191 = vadd.f32 %v1190, %v1147
          %v1192 = vadd.f32 %v1191, %v1151
          %v1193 = vadd.f32 %v1192, %v1155
          %v1194 = vrot.slane %v1193, 4
          %v1195 = vadd.f32 %v1193, %v1194
          %v1196 = vrot.slane %v1195, 2
          %v1197 = vadd.f32 %v1195, %v1196
          %v1198 = vrot.slane %v1197, 1
          %v1199 = vadd.f32 %v1197, %v1198
          %v1200 = vadd.f32 %v1096, %v1100
          %v1201 = vadd.f32 %v1200, %v1104
          %v1202 = vadd.f32 %v1201, %v1108
          %v1203 = vadd.f32 %v1202, %v1112
          %v1204 = vadd.f32 %v1203, %v1116
          %v1205 = vadd.f32 %v1204, %v1120
          %v1206 = vadd.f32 %v1205, %v1124
          %v1207 = vadd.f32 %v1206, %v1128
          %v1208 = vadd.f32 %v1207, %v1132
          %v1209 = vadd.f32 %v1208, %v1136
          %v1210 = vadd.f32 %v1209, %v1140
          %v1211 = vadd.f32 %v1210, %v1144
          %v1212 = vadd.f32 %v1211, %v1148
          %v1213 = vadd.f32 %v1212, %v1152
          %v1214 = vadd.f32 %v1213, %v1156
          %v1215 = vrot.slane %v1214, 4
          %v1216 = vadd.f32 %v1214, %v1215
          %v1217 = vrot.slane %v1216, 2
          %v1218 = vadd.f32 %v1216, %v1217
          %v1219 = vrot.slane %v1218, 1
          %v1220 = vadd.f32 %v1218, %v1219
          %v1221 = vadd.f32 %v1097, %v1101
          %v1222 = vadd.f32 %v1221, %v1105
          %v1223 = vadd.f32 %v1222, %v1109
          %v1224 = vadd.f32 %v1223, %v1113
          %v1225 = vadd.f32 %v1224, %v1117
          %v1226 = vadd.f32 %v1225, %v1121
          %v1227 = vadd.f32 %v1226, %v1125
          %v1228 = vadd.f32 %v1227, %v1129
          %v1229 = vadd.f32 %v1228, %v1133
          %v1230 = vadd.f32 %v1229, %v1137
          %v1231 = vadd.f32 %v1230, %v1141
          %v1232 = vadd.f32 %v1231, %v1145
          %v1233 = vadd.f32 %v1232, %v1149
          %v1234 = vadd.f32 %v1233, %v1153
          %v1235 = vadd.f32 %v1234, %v1157
          %v1236 = vrot.slane %v1235, 4
          %v1237 = vadd.f32 %v1235, %v1236
          %v1238 = vrot.slane %v1237, 2
          %v1239 = vadd.f32 %v1237, %v1238
          %v1240 = vrot.slane %v1239, 1
          %v1241 = vadd.f32 %v1239, %v1240
          %v1242 = vmul.f32 %v1094, %v1094
          %v1243 = vmul.f32 %v1095, %v1095
          %v1244 = vmul.f32 %v1096, %v1096
          %v1245 = vmul.f32 %v1097, %v1097
          %v1246 = vmul.f32 %v1098, %v1098
          %v1247 = vmul.f32 %v1099, %v1099
          %v1248 = vmul.f32 %v1100, %v1100
          %v1249 = vmul.f32 %v1101, %v1101
          %v1250 = vmul.f32 %v1102, %v1102
          %v1251 = vmul.f32 %v1103, %v1103
          %v1252 = vmul.f32 %v1104, %v1104
          %v1253 = vmul.f32 %v1105, %v1105
          %v1254 = vmul.f32 %v1106, %v1106
          %v1255 = vmul.f32 %v1107, %v1107
          %v1256 = vmul.f32 %v1108, %v1108
          %v1257 = vmul.f32 %v1109, %v1109
          %v1258 = vmul.f32 %v1110, %v1110
          %v1259 = vmul.f32 %v1111, %v1111
          %v1260 = vmul.f32 %v1112, %v1112
          %v1261 = vmul.f32 %v1113, %v1113
          %v1262 = vmul.f32 %v1114, %v1114
          %v1263 = vmul.f32 %v1115, %v1115
          %v1264 = vmul.f32 %v1116, %v1116
          %v1265 = vmul.f32 %v1117, %v1117
          %v1266 = vmul.f32 %v1118, %v1118
          %v1267 = vmul.f32 %v1119, %v1119
          %v1268 = vmul.f32 %v1120, %v1120
          %v1269 = vmul.f32 %v1121, %v1121
          %v1270 = vmul.f32 %v1122, %v1122
          %v1271 = vmul.f32 %v1123, %v1123
          %v1272 = vmul.f32 %v1124, %v1124
          %v1273 = vmul.f32 %v1125, %v1125
          %v1274 = vmul.f32 %v1126, %v1126
          %v1275 = vmul.f32 %v1127, %v1127
          %v1276 = vmul.f32 %v1128, %v1128
          %v1277 = vmul.f32 %v1129, %v1129
          %v1278 = vmul.f32 %v1130, %v1130
          %v1279 = vmul.f32 %v1131, %v1131
          %v1280 = vmul.f32 %v1132, %v1132
          %v1281 = vmul.f32 %v1133, %v1133
          %v1282 = vmul.f32 %v1134, %v1134
          %v1283 = vmul.f32 %v1135, %v1135
          %v1284 = vmul.f32 %v1136, %v1136
          %v1285 = vmul.f32 %v1137, %v1137
          %v1286 = vmul.f32 %v1138, %v1138
          %v1287 = vmul.f32 %v1139, %v1139
          %v1288 = vmul.f32 %v1140, %v1140
          %v1289 = vmul.f32 %v1141, %v1141
          %v1290 = vmul.f32 %v1142, %v1142
          %v1291 = vmul.f32 %v1143, %v1143
          %v1292 = vmul.f32 %v1144, %v1144
          %v1293 = vmul.f32 %v1145, %v1145
          %v1294 = vmul.f32 %v1146, %v1146
          %v1295 = vmul.f32 %v1147, %v1147
          %v1296 = vmul.f32 %v1148, %v1148
          %v1297 = vmul.f32 %v1149, %v1149
          %v1298 = vmul.f32 %v1150, %v1150
          %v1299 = vmul.f32 %v1151, %v1151
          %v1300 = vmul.f32 %v1152, %v1152
          %v1301 = vmul.f32 %v1153, %v1153
          %v1302 = vmul.f32 %v1154, %v1154
          %v1303 = vmul.f32 %v1155, %v1155
          %v1304 = vmul.f32 %v1156, %v1156
          %v1305 = vmul.f32 %v1157, %v1157
          %v1306 = vadd.f32 %v1242, %v1246
          %v1307 = vadd.f32 %v1306, %v1250
          %v1308 = vadd.f32 %v1307, %v1254
          %v1309 = vadd.f32 %v1308, %v1258
          %v1310 = vadd.f32 %v1309, %v1262
          %v1311 = vadd.f32 %v1310, %v1266
          %v1312 = vadd.f32 %v1311, %v1270
          %v1313 = vadd.f32 %v1312, %v1274
          %v1314 = vadd.f32 %v1313, %v1278
          %v1315 = vadd.f32 %v1314, %v1282
          %v1316 = vadd.f32 %v1315, %v1286
          %v1317 = vadd.f32 %v1316, %v1290
          %v1318 = vadd.f32 %v1317, %v1294
          %v1319 = vadd.f32 %v1318, %v1298
          %v1320 = vadd.f32 %v1319, %v1302
          %v1321 = vrot.slane %v1320, 4
          %v1322 = vadd.f32 %v1320, %v1321
          %v1323 = vrot.slane %v1322, 2
          %v1324 = vadd.f32 %v1322, %v1323
          %v1325 = vrot.slane %v1324, 1
          %v1326 = vadd.f32 %v1324, %v1325
          %v1327 = vadd.f32 %v1243, %v1247
          %v1328 = vadd.f32 %v1327, %v1251
          %v1329 = vadd.f32 %v1328, %v1255
          %v1330 = vadd.f32 %v1329, %v1259
          %v1331 = vadd.f32 %v1330, %v1263
          %v1332 = vadd.f32 %v1331, %v1267
          %v1333 = vadd.f32 %v1332, %v1271
          %v1334 = vadd.f32 %v1333, %v1275
          %v1335 = vadd.f32 %v1334, %v1279
          %v1336 = vadd.f32 %v1335, %v1283
          %v1337 = vadd.f32 %v1336, %v1287
          %v1338 = vadd.f32 %v1337, %v1291
          %v1339 = vadd.f32 %v1338, %v1295
          %v1340 = vadd.f32 %v1339, %v1299
          %v1341 = vadd.f32 %v1340, %v1303
          %v1342 = vrot.slane %v1341, 4
          %v1343 = vadd.f32 %v1341, %v1342
          %v1344 = vrot.slane %v1343, 2
          %v1345 = vadd.f32 %v1343, %v1344
          %v1346 = vrot.slane %v1345, 1
          %v1347 = vadd.f32 %v1345, %v1346
          %v1348 = vadd.f32 %v1244, %v1248
          %v1349 = vadd.f32 %v1348, %v1252
          %v1350 = vadd.f32 %v1349, %v1256
          %v1351 = vadd.f32 %v1350, %v1260
          %v1352 = vadd.f32 %v1351, %v1264
          %v1353 = vadd.f32 %v1352, %v1268
          %v1354 = vadd.f32 %v1353, %v1272
          %v1355 = vadd.f32 %v1354, %v1276
          %v1356 = vadd.f32 %v1355, %v1280
          %v1357 = vadd.f32 %v1356, %v1284
          %v1358 = vadd.f32 %v1357, %v1288
          %v1359 = vadd.f32 %v1358, %v1292
          %v1360 = vadd.f32 %v1359, %v1296
          %v1361 = vadd.f32 %v1360, %v1300
          %v1362 = vadd.f32 %v1361, %v1304
          %v1363 = vrot.slane %v1362, 4
          %v1364 = vadd.f32 %v1362, %v1363
          %v1365 = vrot.slane %v1364, 2
          %v1366 = vadd.f32 %v1364, %v1365
          %v1367 = vrot.slane %v1366, 1
          %v1368 = vadd.f32 %v1366, %v1367
          %v1369 = vadd.f32 %v1245, %v1249
          %v1370 = vadd.f32 %v1369, %v1253
          %v1371 = vadd.f32 %v1370, %v1257
          %v1372 = vadd.f32 %v1371, %v1261
          %v1373 = vadd.f32 %v1372, %v1265
          %v1374 = vadd.f32 %v1373, %v1269
          %v1375 = vadd.f32 %v1374, %v1273
          %v1376 = vadd.f32 %v1375, %v1277
          %v1377 = vadd.f32 %v1376, %v1281
          %v1378 = vadd.f32 %v1377, %v1285
          %v1379 = vadd.f32 %v1378, %v1289
          %v1380 = vadd.f32 %v1379, %v1293
          %v1381 = vadd.f32 %v1380, %v1297
          %v1382 = vadd.f32 %v1381, %v1301
          %v1383 = vadd.f32 %v1382, %v1305
          %v1384 = vrot.slane %v1383, 4
          %v1385 = vadd.f32 %v1383, %v1384
          %v1386 = vrot.slane %v1385, 2
          %v1387 = vadd.f32 %v1385, %v1386
          %v1388 = vrot.slane %v1387, 1
          %v1389 = vadd.f32 %v1387, %v1388
          %vm1390 = vcmask 1040384
          %v1391 = vsel %vm1390, %v1178, %v1326
          %v1392 = vsel %vm1390, %v1199, %v1347
          %v1393 = vsel %vm1390, %v1220, %v1368
          %v1394 = vsel %vm1390, %v1241, %v1389
          %v1399 = vrot.slane %v1392, 6
          %v1400 = vrot.slane %v1393, 4
          %v1401 = vrot.slane %v1394, 2
          %vm1402 = vcmask 1041408
          %v1403 = vsel %vm1402, %v1391, %v1399
          %vm1404 = vcmask 1045508
          %v1405 = vsel %vm1404, %v1400, %v1401
          %vm1406 = vcmask 1043456
          %v1407 = vsel %vm1406, %v1403, %v1405
          %1409 = vst [vmem:[%s376] sm:$0xff] %v1407
        $region77: #{generator_forward.15} parent=64 // pred_fallthru
          _
        %s1410 = smul.u32 16, %s20
        %s1411 = smul.u32 4, %s21
        %p1412 = scmp.lt.s32.totalorder %s1410, 15
        %s1413 = scalar_select %p1412, %s1410, 15
        %p1414 = scmp.lt.s32.totalorder %s1411, 3
        %s1415 = scalar_select %p1414, %s1411, 3
        %s1416 = smul.addr %s1413, 4
        %s1417 = sadd.s32 %s1415, %s1416
        %s1418 = smul.addr %s1417, 8
        %s1419 = scalar_lea.vmem %s2, %s1418
        %s1420 = smul.u32 4, %s21
        %p1421 = scmp.lt.s32.totalorder %s20, 0
        %s1422 = scalar_select %p1421, %s20, 0
        %p1423 = scmp.lt.s32.totalorder %s1420, 3
        %s1424 = scalar_select %p1423, %s1420, 3
        %s1425 = smul.addr %s1422, 4
        %s1426 = sadd.s32 %s1424, %s1425
        %s1427 = smul.addr %s1426, 2
        %s1428 = scalar_lea.vmem %s3, %s1427
        // Predicated region
        $region78: #{generator_forward.15} parent=64 // pred_check
          %p1429 = pneg %p110
        $region79: #{generator_forward.15} parent=64 // pred_check_branch
          %1431 = sbr.rel (%p1429) target = $region81
        $region80: #{generator_forward.15} parent=64 // pred_region
          %s1432 = smul.u32 16, %s20
          %s1433 = smul.u32 4, %s21
        $region81: #{generator_forward.15} parent=64 // pred_fallthru
          _
        // Predicated region
        $region82: #{generator_forward.15} parent=64 // pred_check
          %p1434 = pneg %p138
        $region83: #{generator_forward.15} parent=64 // pred_check_branch
          %1436 = sbr.rel (%p1434) target = $region85
        $region84: #{generator_forward.15} parent=64 // pred_region
          %s1437 = smul.u32 4, %s21
        $region85: #{generator_forward.15} parent=64 // pred_fallthru
          _
        // Predicated region
        $region86: #{generator_forward.15} parent=64 // pred_check
          %p1438 = pneg %p110
        $region87: #{generator_forward.15} parent=64 // pred_check_branch
          %1440 = sbr.rel (%p1438) target = $region89
        $region88: #{generator_forward.15} parent=64 // pred_region
          %s1441 = smul.u32 16, %s20
          %s1442 = smul.u32 4, %s21
          %p1443 = scmp.lt.s32.totalorder %s1441, 15
          %s1444 = scalar_select %p1443, %s1441, 15
          %p1445 = scmp.lt.s32.totalorder %s1442, 3
          %s1446 = scalar_select %p1445, %s1442, 3
          %s1447 = smul.addr %s1444, 4
          %s1448 = sadd.s32 %s1446, %s1447
          %s1449 = smul.addr %s1448, 8
          %s1450 = scalar_lea.vmem %s2, %s1449
        $region89: #{generator_forward.15} parent=64 // pred_fallthru
          _
        // Predicated region
        $region90: #{generator_forward.15} parent=64 // pred_check
          %p1451 = pneg %p138
        $region91: #{generator_forward.15} parent=64 // pred_check_branch
          %1453 = sbr.rel (%p1451) target = $region93
        $region92: #{generator_forward.15} parent=64 // pred_region
          %s1454 = smul.u32 4, %s21
          %p1455 = scmp.lt.s32.totalorder %s20, 0
          %s1456 = scalar_select %p1455, %s20, 0
          %p1457 = scmp.lt.s32.totalorder %s1454, 3
          %s1458 = scalar_select %p1457, %s1454, 3
          %s1459 = smul.addr %s1456, 4
          %s1460 = sadd.s32 %s1458, %s1459
          %s1461 = smul.addr %s1460, 2
          %s1462 = scalar_lea.vmem %s3, %s1461
        $region93: #{generator_forward.15} parent=64 // pred_fallthru
          _
      $region65: #{generator_forward.15} parent=5 // pred_fallthru
        _
      %p1463 = scmp.le.s32.totalorder 2, %s10
      // Predicated region
      $region94: #{generator_forward.15} parent=5 // pred_check
        %p1464 = pneg %p1463
      $region95: #{generator_forward.15} parent=5 // pred_check_branch
        %1466 = sbr.rel (%p1464) target = $region97
      $region96: #{generator_forward.15} parent=5 // pred_region
        %s1467 = ssub.s32 %s10, 2
      $region97: #{generator_forward.15} parent=5 // pred_fallthru
        _
    $region6: #{generator_forward.15} parent=1 // loop_footer
      %s14 = sadd.s32 1, %s10
    $region7: #{generator_forward.15} parent=1 // loop_footer_branch
      %9 = sbr.rel target = $region3
    $region8: #{generator_forward.15} parent=1 // loop_exit
      _

// kernel: generator_forward.17
$region0: #{generator_forward.17}
  #allocation0 [shape = 'u32[]', space=smem, size = 0x4, offset = 0x4, fixed_abs, tag = 'smem constant byte address 0x4 - core index']
  #allocation1 [shape = 'u32[72,128]{1,0:T(1,128)}', space=vmem, size = 0x9000, scoped, tag = 'internal scratch']
  %s0 = inlined_call_operand.vmem [shape: bf16[512,1152], index: 0, kind: input, shape index: {}]
  %s1 = inlined_call_operand.vmem [shape: bf16[1152,512], index: 1, kind: input, shape index: {}]
  %s2 = inlined_call_operand.vmem [shape: f32[512,512], index: 2, kind: output, shape index: {}]
  %s3 = sld [smem:[#allocation0]]
  $region90: #{generator_forward.17} parent=0
    _
  %s5 = ssub.s32 1, %s3
  %s6 = scalar_select 0, %s5, %s3
  $region1: #{generator_forward.17} parent=0
    #allocation2 [shape = 'u8[131072]{0}', space=vmem, size = 0x20000, scoped, tag = 'input window, operand 0']
    loop: start=0, step=1, limit=20
    $region2: #{generator_forward.17} parent=1 // loop_pre_header
      _
    $region3: #{generator_forward.17} parent=1 // loop_header
      %s8 = sphi 0, %s12
      %p9 = scmp.ge.s32.totalorder %s8, 20
      %s15 = sphi 0, %s34
      %s16 = sphi 0, %s30
      %s17 = sphi 0, %s26
      %s18 = sphi 0, %s15
      %s19 = sphi 0, %s16
      %s20 = sphi 0, %s17
      %s21 = sphi 0, %s18
      %s22 = sphi 0, %s19
      %s23 = sphi 0, %s20
      %s39 = sphi 0, %s41
      %s42 = sphi 0, %s39
      %s43 = sphi 0, %s42
      %s59 = sphi 0, %s43
      %s67 = sphi 0, %s69
      %s70 = sphi 0, %s67
      %s71 = sphi 0, %s70
      %s87 = sphi 0, %s71
      %s95 = sphi 0, %s97
      %s98 = sphi 0, %s95
      %s99 = sphi 0, %s98
      %s115 = sphi 0, %s99
    $region4: #{generator_forward.17} parent=1 // loop_header_branch
      %11 = sbr.rel (%p9) target = $region8
    $region5: #{generator_forward.17} parent=1 // loop_body
      %s13 = ssub.s32 %s8, 1
      %s14 = ssub.s32 %s8, 2
      %s24 = sadd.s32 1, %s17
      %p25 = scmp.ge.s32.totalorder %s24, 9
      %s26 = scalar_select %p25, 0, %s24
      %s27 = sadd.s32 1, %s16
      %s28 = scalar_select %p25, %s27, %s16
      %p29 = scmp.ge.s32.totalorder %s28, 1
      %s30 = scalar_select %p29, 0, %s28
      %s31 = sadd.s32 1, %s15
      %s32 = scalar_select %p29, %s31, %s15
      %p33 = scmp.ge.s32.totalorder %s32, 2
      %s34 = scalar_select %p33, 0, %s32
      %s35 = ssub.s32 %s15, %s34
      %s36 = ssub.s32 %s17, %s26
      %s37 = sor.u32 %s35, %s36
      %p38 = scmp.eq.s32.totalorder %s37, 0
      %s40 = sadd.s32 %s39, 1
      %s41 = scalar_select %p38, %s39, %s40
      %p44 = pneg %p38
      %p45 = scmp.eq.s32.totalorder %s8, 17
      %p46 = por %p44, %p45
      %p47 = scmp.ne.s32.totalorder %s39, %s42
      %p48 = scmp.eq.s32.totalorder %s8, 0
      %p49 = por %p47, %p48
      %p50 = scmp.ne.s32.totalorder %s39, %s42
      %p51 = scmp.eq.s32.totalorder %s13, 17
      %p52 = por %p50, %p51
      %p53 = scmp.ne.s32.totalorder %s42, %s43
      %p54 = scmp.eq.s32.totalorder %s13, 0
      %p55 = por %p53, %p54
      %p56 = scmp.ne.s32.totalorder %s42, %s43
      %p57 = scmp.eq.s32.totalorder %s14, 17
      %p58 = por %p56, %p57
      %p60 = scmp.ne.s32.totalorder %s43, %s59
      %p61 = scmp.eq.s32.totalorder %s14, 0
      %p62 = por %p60, %p61
      %s63 = ssub.s32 %s17, %s26
      %s64 = ssub.s32 %s16, %s30
      %s65 = sor.u32 %s63, %s64
      %p66 = scmp.eq.s32.totalorder %s65, 0
      %s68 = sadd.s32 %s67, 1
      %s69 = scalar_select %p66, %s67, %s68
      %p72 = pneg %p66
      %p73 = scmp.eq.s32.totalorder %s8, 17
      %p74 = por %p72, %p73
      %p75 = scmp.ne.s32.totalorder %s67, %s70
      %p76 = scmp.eq.s32.totalorder %s8, 0
      %p77 = por %p75, %p76
      %p78 = scmp.ne.s32.totalorder %s67, %s70
      %p79 = scmp.eq.s32.totalorder %s13, 17
      %p80 = por %p78, %p79
      %p81 = scmp.ne.s32.totalorder %s70, %s71
      %p82 = scmp.eq.s32.totalorder %s13, 0
      %p83 = por %p81, %p82
      %p84 = scmp.ne.s32.totalorder %s70, %s71
      %p85 = scmp.eq.s32.totalorder %s14, 17
      %p86 = por %p84, %p85
      %p88 = scmp.ne.s32.totalorder %s71, %s87
      %p89 = scmp.eq.s32.totalorder %s14, 0
      %p90 = por %p88, %p89
      %s91 = ssub.s32 %s15, %s34
      %s92 = ssub.s32 %s16, %s30
      %s93 = sor.u32 %s91, %s92
      %p94 = scmp.eq.s32.totalorder %s93, 0
      %s96 = sadd.s32 %s95, 1
      %s97 = scalar_select %p94, %s95, %s96
      %p100 = pneg %p94
      %p101 = scmp.eq.s32.totalorder %s8, 17
      %p102 = por %p100, %p101
      %p103 = scmp.ne.s32.totalorder %s95, %s98
      %p104 = scmp.eq.s32.totalorder %s8, 0
      %p105 = por %p103, %p104
      %p106 = scmp.ne.s32.totalorder %s95, %s98
      %p107 = scmp.eq.s32.totalorder %s13, 17
      %p108 = por %p106, %p107
      %p109 = scmp.ne.s32.totalorder %s98, %s99
      %p110 = scmp.eq.s32.totalorder %s13, 0
      %p111 = por %p109, %p110
      %p112 = scmp.ne.s32.totalorder %s98, %s99
      %p113 = scmp.eq.s32.totalorder %s14, 17
      %p114 = por %p112, %p113
      %p116 = scmp.ne.s32.totalorder %s99, %s115
      %p117 = scmp.eq.s32.totalorder %s14, 0
      %p118 = por %p116, %p117
      %p119 = scmp.le.s32.totalorder 1, %s8
      %p120 = scmp.lt.s32.totalorder %s8, 19
      %p121 = pnand %p119, %p120
      %p122 = pneg %p121
      // Predicated region
      $region9: #{generator_forward.17} parent=5 // pred_check
        _
      $region10: #{generator_forward.17} parent=5 // pred_check_branch
        %124 = sbr.rel (%p121) target = $region12
      $region11: #{generator_forward.17} parent=5 // pred_region
        %s125 = ssub.s32 %s8, 1
      $region12: #{generator_forward.17} parent=5 // pred_fallthru
        _
      %p126 = scmp.lt.s32.totalorder %s8, 18
      // Predicated region
      $region13: #{generator_forward.17} parent=5 // pred_check
        %p127 = pneg %p126
      $region14: #{generator_forward.17} parent=5 // pred_check_branch
        %129 = sbr.rel (%p127) target = $region16
      $region15: #{generator_forward.17} parent=5 // pred_region
        // Predicated region
        $region17: #{generator_forward.17} parent=15 // pred_check
          %p130 = pneg %p49
        $region18: #{generator_forward.17} parent=15 // pred_check_branch
          %132 = sbr.rel (%p130) target = $region20
        $region19: #{generator_forward.17} parent=15 // pred_region
          %s133 = sand.u32 %s39, 1
          %s134 = sand.u32 %s39, 1
          %s135 = smul.addr %s134, 128
          %s136 = scalar_lea.vmem [#allocation2], %s135
          %s137 = smul.u32 32, %s15
          %s138 = smul.addr %s137, 9
          %s139 = sadd.s32 %s17, %s138
          %s140 = smul.addr %s139, 4
          %s141 = scalar_lea.vmem %s0, %s140
          // Predicated region
          $region21: #{generator_forward.17} parent=19 // pred_check
            _
          $region22: #{generator_forward.17} parent=19 // pred_check_branch
            %143 = sbr.rel (0) target = $region24
          $region23: #{generator_forward.17} parent=19 // pred_region
            // Predicated region
            $region25: #{generator_forward.17} parent=23 // pred_check
              _
            $region26: #{generator_forward.17} parent=23 // pred_check_branch
              %145 = sbr.rel target = $region28
            $region27: #{generator_forward.17} parent=23 // pred_region
              // Predicated region
              $region40: #{generator_forward.17} parent=27 // pred_check
                _
              $region41: #{generator_forward.17} parent=27 // pred_check_branch
                %223 = sbr.rel (0) target = $region43
              $region42: #{generator_forward.17} parent=27 // pred_region
                loop: start=0, step=1, limit=1
                $region44: #{generator_forward.17} parent=42 // loop_pre_header
                  _
                $region45: #{generator_forward.17} parent=42 // loop_header
                  %s225 = sphi 0, %s229
                  %p226 = scmp.ge.s32.totalorder %s225, 1
                  %s230 = sphi %s141, %s141
                  %s231 = sphi %s136, %s136
                $region46: #{generator_forward.17} parent=42 // loop_header_branch
                  %228 = sbr.rel (%p226) target = $region50
                $region47: #{generator_forward.17} parent=42 // loop_body
                  _
                $region48: #{generator_forward.17} parent=42 // loop_footer
                  %s229 = sadd.s32 1, %s225
                $region49: #{generator_forward.17} parent=42 // loop_footer_branch
                  %224 = sbr.rel target = $region45
                $region50: #{generator_forward.17} parent=42 // loop_exit
                  _
                %s233 = ssub.s32 16, 1
                loop: start=0, step=1, limit=1
                $region51: #{generator_forward.17} parent=42 // loop_pre_header
                  _
                $region52: #{generator_forward.17} parent=42 // loop_header
                  %s235 = sphi 0, %s239
                  %p236 = scmp.ge.s32.totalorder %s235, 1
                  %s240 = sphi %s141, %s141
                  %s241 = sphi %s136, %s136
                $region53: #{generator_forward.17} parent=42 // loop_header_branch
                  %238 = sbr.rel (%p236) target = $region57
                $region54: #{generator_forward.17} parent=42 // loop_body
                  %v242 = vld [vmem:[%s240] sm:%s233]
                  %243 = vst [vmem:[%s241] sm:%s233] %v242
                  %v244 = vld [vmem:[%s240 + $0x24] sm:%s233]
                  %245 = vst [vmem:[%s241 + $0x4] sm:%s233] %v244
                  %v246 = vld [vmem:[%s240 + $0x48] sm:%s233]
                  %247 = vst [vmem:[%s241 + $0x8] sm:%s233] %v246
                  %v248 = vld [vmem:[%s240 + $0x6c] sm:%s233]
                  %249 = vst [vmem:[%s241 + $0xc] sm:%s233] %v248
                  %v250 = vld [vmem:[%s240 + $0x90] sm:%s233]
                  %251 = vst [vmem:[%s241 + $0x10] sm:%s233] %v250
                  %v252 = vld [vmem:[%s240 + $0xb4] sm:%s233]
                  %253 = vst [vmem:[%s241 + $0x14] sm:%s233] %v252
                  %v254 = vld [vmem:[%s240 + $0xd8] sm:%s233]
                  %255 = vst [vmem:[%s241 + $0x18] sm:%s233] %v254
                  %v256 = vld [vmem:[%s240 + $0xfc] sm:%s233]
                  %257 = vst [vmem:[%s241 + $0x1c] sm:%s233] %v256
                  %v258 = vld [vmem:[%s240 + $0x120] sm:%s233]
                  %259 = vst [vmem:[%s241 + $0x20] sm:%s233] %v258
                  %v260 = vld [vmem:[%s240 + $0x144] sm:%s233]
                  %261 = vst [vmem:[%s241 + $0x24] sm:%s233] %v260
                  %v262 = vld [vmem:[%s240 + $0x168] sm:%s233]
                  %263 = vst [vmem:[%s241 + $0x28] sm:%s233] %v262
                  %v264 = vld [vmem:[%s240 + $0x18c] sm:%s233]
                  %265 = vst [vmem:[%s241 + $0x2c] sm:%s233] %v264
                  %v266 = vld [vmem:[%s240 + $0x1b0] sm:%s233]
                  %267 = vst [vmem:[%s241 + $0x30] sm:%s233] %v266
                  %v268 = vld [vmem:[%s240 + $0x1d4] sm:%s233]
                  %269 = vst [vmem:[%s241 + $0x34] sm:%s233] %v268
                  %v270 = vld [vmem:[%s240 + $0x1f8] sm:%s233]
                  %271 = vst [vmem:[%s241 + $0x38] sm:%s233] %v270
                  %v272 = vld [vmem:[%s240 + $0x21c] sm:%s233]
                  %273 = vst [vmem:[%s241 + $0x3c] sm:%s233] %v272
                  %v274 = vld [vmem:[%s240 + $0x240] sm:%s233]
                  %275 = vst [vmem:[%s241 + $0x40] sm:%s233] %v274
                  %v276 = vld [vmem:[%s240 + $0x264] sm:%s233]
                  %277 = vst [vmem:[%s241 + $0x44] sm:%s233] %v276
                  %v278 = vld [vmem:[%s240 + $0x288] sm:%s233]
                  %279 = vst [vmem:[%s241 + $0x48] sm:%s233] %v278
                  %v280 = vld [vmem:[%s240 + $0x2ac] sm:%s233]
                  %281 = vst [vmem:[%s241 + $0x4c] sm:%s233] %v280
                  %v282 = vld [vmem:[%s240 + $0x2d0] sm:%s233]
                  %283 = vst [vmem:[%s241 + $0x50] sm:%s233] %v282
                  %v284 = vld [vmem:[%s240 + $0x2f4] sm:%s233]
                  %285 = vst [vmem:[%s241 + $0x54] sm:%s233] %v284
                  %v286 = vld [vmem:[%s240 + $0x318] sm:%s233]
                  %287 = vst [vmem:[%s241 + $0x58] sm:%s233] %v286
                  %v288 = vld [vmem:[%s240 + $0x33c] sm:%s233]
                  %289 = vst [vmem:[%s241 + $0x5c] sm:%s233] %v288
                  %v290 = vld [vmem:[%s240 + $0x360] sm:%s233]
                  %291 = vst [vmem:[%s241 + $0x60] sm:%s233] %v290
                  %v292 = vld [vmem:[%s240 + $0x384] sm:%s233]
                  %293 = vst [vmem:[%s241 + $0x64] sm:%s233] %v292
                  %v294 = vld [vmem:[%s240 + $0x3a8] sm:%s233]
                  %295 = vst [vmem:[%s241 + $0x68] sm:%s233] %v294
                  %v296 = vld [vmem:[%s240 + $0x3cc] sm:%s233]
                  %297 = vst [vmem:[%s241 + $0x6c] sm:%s233] %v296
                  %v298 = vld [vmem:[%s240 + $0x3f0] sm:%s233]
                  %299 = vst [vmem:[%s241 + $0x70] sm:%s233] %v298
                  %v300 = vld [vmem:[%s240 + $0x414] sm:%s233]
                  %301 = vst [vmem:[%s241 + $0x74] sm:%s233] %v300
                  %v302 = vld [vmem:[%s240 + $0x438] sm:%s233]
                  %303 = vst [vmem:[%s241 + $0x78] sm:%s233] %v302
                  %v304 = vld [vmem:[%s240 + $0x45c] sm:%s233]
                  %305 = vst [vmem:[%s241 + $0x7c] sm:%s233] %v304
                $region55: #{generator_forward.17} parent=42 // loop_footer
                  %s239 = sadd.s32 1, %s235
                $region56: #{generator_forward.17} parent=42 // loop_footer_branch
                  %234 = sbr.rel target = $region52
                $region57: #{generator_forward.17} parent=42 // loop_exit
                  _
              $region43: #{generator_forward.17} parent=27 // pred_fallthru
                _
            $region28: #{generator_forward.17} parent=23 // pred_fallthru
              _
            // Predicated region
            $region29: #{generator_forward.17} parent=23 // pred_check
              _
            $region30: #{generator_forward.17} parent=23 // pred_check_branch
              %147 = sbr.rel (0) target = $region32
            $region31: #{generator_forward.17} parent=23 // pred_region
              %s149 = ssub.s32 16, 1
              loop: start=0, step=1, limit=1
              $region33: #{generator_forward.17} parent=31 // loop_pre_header
                _
              $region34: #{generator_forward.17} parent=31 // loop_header
                %s151 = sphi 0, %s155
                %p152 = scmp.ge.s32.totalorder %s151, 1
                %s156 = sphi %s141, %s141
                %s157 = sphi %s136, %s136
              $region35: #{generator_forward.17} parent=31 // loop_header_branch
                %154 = sbr.rel (%p152) target = $region39
              $region36: #{generator_forward.17} parent=31 // loop_body
                %v158 = vld [vmem:[%s156] sm:%s149]
                %159 = vst [vmem:[%s157] sm:%s149] %v158
                %v160 = vld [vmem:[%s156 + $0x24] sm:%s149]
                %161 = vst [vmem:[%s157 + $0x4] sm:%s149] %v160
                %v162 = vld [vmem:[%s156 + $0x48] sm:%s149]
                %163 = vst [vmem:[%s157 + $0x8] sm:%s149] %v162
                %v164 = vld [vmem:[%s156 + $0x6c] sm:%s149]
                %165 = vst [vmem:[%s157 + $0xc] sm:%s149] %v164
                %v166 = vld [vmem:[%s156 + $0x90] sm:%s149]
                %167 = vst [vmem:[%s157 + $0x10] sm:%s149] %v166
                %v168 = vld [vmem:[%s156 + $0xb4] sm:%s149]
                %169 = vst [vmem:[%s157 + $0x14] sm:%s149] %v168
                %v170 = vld [vmem:[%s156 + $0xd8] sm:%s149]
                %171 = vst [vmem:[%s157 + $0x18] sm:%s149] %v170
                %v172 = vld [vmem:[%s156 + $0xfc] sm:%s149]
                %173 = vst [vmem:[%s157 + $0x1c] sm:%s149] %v172
                %v174 = vld [vmem:[%s156 + $0x120] sm:%s149]
                %175 = vst [vmem:[%s157 + $0x20] sm:%s149] %v174
                %v176 = vld [vmem:[%s156 + $0x144] sm:%s149]
                %177 = vst [vmem:[%s157 + $0x24] sm:%s149] %v176
                %v178 = vld [vmem:[%s156 + $0x168] sm:%s149]
                %179 = vst [vmem:[%s157 + $0x28] sm:%s149] %v178
                %v180 = vld [vmem:[%s156 + $0x18c] sm:%s149]
                %181 = vst [vmem:[%s157 + $0x2c] sm:%s149] %v180
                %v182 = vld [vmem:[%s156 + $0x1b0] sm:%s149]
                %183 = vst [vmem:[%s157 + $0x30] sm:%s149] %v182
                %v184 = vld [vmem:[%s156 + $0x1d4] sm:%s149]
                %185 = vst [vmem:[%s157 + $0x34] sm:%s149] %v184
                %v186 = vld [vmem:[%s156 + $0x1f8] sm:%s149]
                %187 = vst [vmem:[%s157 + $0x38] sm:%s149] %v186
                %v188 = vld [vmem:[%s156 + $0x21c] sm:%s149]
                %189 = vst [vmem:[%s157 + $0x3c] sm:%s149] %v188
                %v190 = vld [vmem:[%s156 + $0x240] sm:%s149]
                %191 = vst [vmem:[%s157 + $0x40] sm:%s149] %v190
                %v192 = vld [vmem:[%s156 + $0x264] sm:%s149]
                %193 = vst [vmem:[%s157 + $0x44] sm:%s149] %v192
                %v194 = vld [vmem:[%s156 + $0x288] sm:%s149]
                %195 = vst [vmem:[%s157 + $0x48] sm:%s149] %v194
                %v196 = vld [vmem:[%s156 + $0x2ac] sm:%s149]
                %197 = vst [vmem:[%s157 + $0x4c] sm:%s149] %v196
                %v198 = vld [vmem:[%s156 + $0x2d0] sm:%s149]
                %199 = vst [vmem:[%s157 + $0x50] sm:%s149] %v198
                %v200 = vld [vmem:[%s156 + $0x2f4] sm:%s149]
                %201 = vst [vmem:[%s157 + $0x54] sm:%s149] %v200
                %v202 = vld [vmem:[%s156 + $0x318] sm:%s149]
                %203 = vst [vmem:[%s157 + $0x58] sm:%s149] %v202
                %v204 = vld [vmem:[%s156 + $0x33c] sm:%s149]
                %205 = vst [vmem:[%s157 + $0x5c] sm:%s149] %v204
                %v206 = vld [vmem:[%s156 + $0x360] sm:%s149]
                %207 = vst [vmem:[%s157 + $0x60] sm:%s149] %v206
                %v208 = vld [vmem:[%s156 + $0x384] sm:%s149]
                %209 = vst [vmem:[%s157 + $0x64] sm:%s149] %v208
                %v210 = vld [vmem:[%s156 + $0x3a8] sm:%s149]
                %211 = vst [vmem:[%s157 + $0x68] sm:%s149] %v210
                %v212 = vld [vmem:[%s156 + $0x3cc] sm:%s149]
                %213 = vst [vmem:[%s157 + $0x6c] sm:%s149] %v212
                %v214 = vld [vmem:[%s156 + $0x3f0] sm:%s149]
                %215 = vst [vmem:[%s157 + $0x70] sm:%s149] %v214
                %v216 = vld [vmem:[%s156 + $0x414] sm:%s149]
                %217 = vst [vmem:[%s157 + $0x74] sm:%s149] %v216
                %v218 = vld [vmem:[%s156 + $0x438] sm:%s149]
                %219 = vst [vmem:[%s157 + $0x78] sm:%s149] %v218
                %v220 = vld [vmem:[%s156 + $0x45c] sm:%s149]
                %221 = vst [vmem:[%s157 + $0x7c] sm:%s149] %v220
              $region37: #{generator_forward.17} parent=31 // loop_footer
                %s155 = sadd.s32 1, %s151
              $region38: #{generator_forward.17} parent=31 // loop_footer_branch
                %150 = sbr.rel target = $region34
              $region39: #{generator_forward.17} parent=31 // loop_exit
                _
            $region32: #{generator_forward.17} parent=23 // pred_fallthru
              _
          $region24: #{generator_forward.17} parent=19 // pred_fallthru
            _
          %306 = vnop
        $region20: #{generator_forward.17} parent=15 // pred_fallthru
          _
        // Predicated region
        $region58: #{generator_forward.17} parent=15 // pred_check
          %p307 = pneg %p77
        $region59: #{generator_forward.17} parent=15 // pred_check_branch
          %309 = sbr.rel (%p307) target = $region61
        $region60: #{generator_forward.17} parent=15 // pred_region
          %s310 = smul.u32 16, %s17
          %s311 = smul.u32 4, %s16
          %p312 = scmp.lt.s32.totalorder %s310, 143
          %s313 = scalar_select %p312, %s310, 143
          %p314 = scmp.lt.s32.totalorder %s311, 3
          %s315 = scalar_select %p314, %s311, 3
          %s316 = smul.addr %s313, 4
          %s317 = sadd.s32 %s315, %s316
          %s318 = smul.addr %s317, 4
          %s319 = scalar_lea.vmem %s1, %s318
          %s320 = smul.u32 16, %s17
          %s321 = smul.u32 4, %s16
        $region61: #{generator_forward.17} parent=15 // pred_fallthru
          _
      $region16: #{generator_forward.17} parent=5 // pred_fallthru
        _
      %p322 = scmp.le.s32.totalorder 1, %s8
      %p323 = scmp.lt.s32.totalorder %s8, 19
      %p324 = pnand %p322, %p323
      %p325 = pneg %p324
      // Predicated region
      $region62: #{generator_forward.17} parent=5 // pred_check
        _
      $region63: #{generator_forward.17} parent=5 // pred_check_branch
        %327 = sbr.rel (%p324) target = $region65
      $region64: #{generator_forward.17} parent=5 // pred_region
        %s328 = ssub.s32 %s8, 1
        %s329 = sand.u32 %s42, 1
        %s330 = sand.u32 %s42, 1
        %s331 = smul.addr %s330, 128
        %s332 = scalar_lea.vmem [#allocation2], %s331
        // Predicated region
        $region66: #{generator_forward.17} parent=64 // pred_check
          %p333 = pneg %p55
        $region67: #{generator_forward.17} parent=64 // pred_check_branch
          %335 = sbr.rel (%p333) target = $region69
        $region68: #{generator_forward.17} parent=64 // pred_region
          _
        $region69: #{generator_forward.17} parent=64 // pred_fallthru
          _
        %s336 = sand.u32 %s42, 1
        %s337 = sand.u32 %s42, 1
        %s338 = smul.addr %s337, 128
        %s339 = scalar_lea.vmem [#allocation2], %s338
        %p340 = pneg %p55
        %p341 = pneg %p52
        %s342 = smul.u32 16, %s20
        %s343 = smul.u32 4, %s19
        %p344 = scmp.lt.s32.totalorder %s342, 143
        %s345 = scalar_select %p344, %s342, 143
        %p346 = scmp.lt.s32.totalorder %s343, 3
        %s347 = scalar_select %p346, %s343, 3
        %s348 = smul.addr %s345, 4
        %s349 = sadd.s32 %s347, %s348
        %s350 = smul.addr %s349, 4
        %s351 = scalar_lea.vmem %s1, %s350
        %p352 = pneg %p83
        %p353 = pneg %p80
        %p354 = pneg %p111
        %p355 = pneg %p108
        %s356 = smul.u32 32, %s18
        %s357 = smul.u32 4, %s19
        %p358 = scmp.lt.s32.totalorder %s356, 63
        %s359 = scalar_select %p358, %s356, 63
        %p360 = scmp.lt.s32.totalorder %s357, 3
        %s361 = scalar_select %p360, %s357, 3
        %s362 = smul.addr %s359, 4
        %s363 = sadd.s32 %s361, %s362
        %s364 = smul.addr %s363, 8
        %s365 = scalar_lea.vmem %s2, %s364
        %s366 = smul.u32 32, %s18
        %s367 = smul.u32 16, %s20
        %s368 = smul.u32 4, %s19
        %p369 = scmp.lt.s32.totalorder %s367, 143
        %s370 = scalar_select %p369, %s367, 143
        %p371 = scmp.lt.s32.totalorder %s368, 3
        %s372 = scalar_select %p371, %s368, 3
        %s373 = smul.addr %s370, 4
        %s374 = sadd.s32 %s372, %s373
        %s375 = smul.addr %s374, 4
        %s376 = scalar_lea.vmem %s1, %s375
        %s377 = smul.u32 16, %s20
        %s378 = smul.u32 4, %s19
        %s379 = smul.u32 32, %s18
        %s380 = smul.u32 4, %s19
        %p381 = scmp.lt.s32.totalorder %s379, 63
        %s382 = scalar_select %p381, %s379, 63
        %p383 = scmp.lt.s32.totalorder %s380, 3
        %s384 = scalar_select %p383, %s380, 3
        %s385 = smul.addr %s382, 4
        %s386 = sadd.s32 %s384, %s385
        %s387 = smul.addr %s386, 8
        %s388 = scalar_lea.vmem %s2, %s387
        %s389 = smul.u32 32, %s18
        %s390 = smul.u32 4, %s19
        %p391 = scmp.eq.s32.totalorder %s20, 0
        // Predicated region
        $region70: #{generator_forward.17} parent=64 // pred_check
          %p392 = pneg %p391
        $region71: #{generator_forward.17} parent=64 // pred_check_branch
          %394 = sbr.rel (%p392) target = $region73
        $region72: #{generator_forward.17} parent=64 // pred_region
          %395 = vst [vmem:[%s388] sm:$0xff] 0.0
          %396 = vst [vmem:[%s388 + $0x8] sm:$0xff] 0.0
          %397 = vst [vmem:[%s388 + $0x10] sm:$0xff] 0.0
          %398 = vst [vmem:[%s388 + $0x18] sm:$0xff] 0.0
          %399 = vst [vmem:[%s388 + $0x20] sm:$0xff] 0.0
          %400 = vst [vmem:[%s388 + $0x28] sm:$0xff] 0.0
          %401 = vst [vmem:[%s388 + $0x30] sm:$0xff] 0.0
          %402 = vst [vmem:[%s388 + $0x38] sm:$0xff] 0.0
          %403 = vst [vmem:[%s388 + $0x40] sm:$0xff] 0.0
          %404 = vst [vmem:[%s388 + $0x48] sm:$0xff] 0.0
          %405 = vst [vmem:[%s388 + $0x50] sm:$0xff] 0.0
          %406 = vst [vmem:[%s388 + $0x58] sm:$0xff] 0.0
          %407 = vst [vmem:[%s388 + $0x60] sm:$0xff] 0.0
          %408 = vst [vmem:[%s388 + $0x68] sm:$0xff] 0.0
          %409 = vst [vmem:[%s388 + $0x70] sm:$0xff] 0.0
          %410 = vst [vmem:[%s388 + $0x78] sm:$0xff] 0.0
          %411 = vst [vmem:[%s388 + $0x80] sm:$0xff] 0.0
          %412 = vst [vmem:[%s388 + $0x88] sm:$0xff] 0.0
          %413 = vst [vmem:[%s388 + $0x90] sm:$0xff] 0.0
          %414 = vst [vmem:[%s388 + $0x98] sm:$0xff] 0.0
          %415 = vst [vmem:[%s388 + $0xa0] sm:$0xff] 0.0
          %416 = vst [vmem:[%s388 + $0xa8] sm:$0xff] 0.0
          %417 = vst [vmem:[%s388 + $0xb0] sm:$0xff] 0.0
          %418 = vst [vmem:[%s388 + $0xb8] sm:$0xff] 0.0
          %419 = vst [vmem:[%s388 + $0xc0] sm:$0xff] 0.0
          %420 = vst [vmem:[%s388 + $0xc8] sm:$0xff] 0.0
          %421 = vst [vmem:[%s388 + $0xd0] sm:$0xff] 0.0
          %422 = vst [vmem:[%s388 + $0xd8] sm:$0xff] 0.0
          %423 = vst [vmem:[%s388 + $0xe0] sm:$0xff] 0.0
          %424 = vst [vmem:[%s388 + $0xe8] sm:$0xff] 0.0
          %425 = vst [vmem:[%s388 + $0xf0] sm:$0xff] 0.0
          %426 = vst [vmem:[%s388 + $0xf8] sm:$0xff] 0.0
          %427 = vst [vmem:[%s388 + $0x100] sm:$0xff] 0.0
          %428 = vst [vmem:[%s388 + $0x108] sm:$0xff] 0.0
          %429 = vst [vmem:[%s388 + $0x110] sm:$0xff] 0.0
          %430 = vst [vmem:[%s388 + $0x118] sm:$0xff] 0.0
          %431 = vst [vmem:[%s388 + $0x120] sm:$0xff] 0.0
          %432 = vst [vmem:[%s388 + $0x128] sm:$0xff] 0.0
          %433 = vst [vmem:[%s388 + $0x130] sm:$0xff] 0.0
          %434 = vst [vmem:[%s388 + $0x138] sm:$0xff] 0.0
          %435 = vst [vmem:[%s388 + $0x140] sm:$0xff] 0.0
          %436 = vst [vmem:[%s388 + $0x148] sm:$0xff] 0.0
          %437 = vst [vmem:[%s388 + $0x150] sm:$0xff] 0.0
          %438 = vst [vmem:[%s388 + $0x158] sm:$0xff] 0.0
          %439 = vst [vmem:[%s388 + $0x160] sm:$0xff] 0.0
          %440 = vst [vmem:[%s388 + $0x168] sm:$0xff] 0.0
          %441 = vst [vmem:[%s388 + $0x170] sm:$0xff] 0.0
          %442 = vst [vmem:[%s388 + $0x178] sm:$0xff] 0.0
          %443 = vst [vmem:[%s388 + $0x180] sm:$0xff] 0.0
          %444 = vst [vmem:[%s388 + $0x188] sm:$0xff] 0.0
          %445 = vst [vmem:[%s388 + $0x190] sm:$0xff] 0.0
          %446 = vst [vmem:[%s388 + $0x198] sm:$0xff] 0.0
          %447 = vst [vmem:[%s388 + $0x1a0] sm:$0xff] 0.0
          %448 = vst [vmem:[%s388 + $0x1a8] sm:$0xff] 0.0
          %449 = vst [vmem:[%s388 + $0x1b0] sm:$0xff] 0.0
          %450 = vst [vmem:[%s388 + $0x1b8] sm:$0xff] 0.0
          %451 = vst [vmem:[%s388 + $0x1c0] sm:$0xff] 0.0
          %452 = vst [vmem:[%s388 + $0x1c8] sm:$0xff] 0.0
          %453 = vst [vmem:[%s388 + $0x1d0] sm:$0xff] 0.0
          %454 = vst [vmem:[%s388 + $0x1d8] sm:$0xff] 0.0
          %455 = vst [vmem:[%s388 + $0x1e0] sm:$0xff] 0.0
          %456 = vst [vmem:[%s388 + $0x1e8] sm:$0xff] 0.0
          %457 = vst [vmem:[%s388 + $0x1f0] sm:$0xff] 0.0
          %458 = vst [vmem:[%s388 + $0x1f8] sm:$0xff] 0.0
          %459 = vst [vmem:[%s388 + $0x200] sm:$0xff] 0.0
          %460 = vst [vmem:[%s388 + $0x208] sm:$0xff] 0.0
          %461 = vst [vmem:[%s388 + $0x210] sm:$0xff] 0.0
          %462 = vst [vmem:[%s388 + $0x218] sm:$0xff] 0.0
          %463 = vst [vmem:[%s388 + $0x220] sm:$0xff] 0.0
          %464 = vst [vmem:[%s388 + $0x228] sm:$0xff] 0.0
          %465 = vst [vmem:[%s388 + $0x230] sm:$0xff] 0.0
          %466 = vst [vmem:[%s388 + $0x238] sm:$0xff] 0.0
          %467 = vst [vmem:[%s388 + $0x240] sm:$0xff] 0.0
          %468 = vst [vmem:[%s388 + $0x248] sm:$0xff] 0.0
          %469 = vst [vmem:[%s388 + $0x250] sm:$0xff] 0.0
          %470 = vst [vmem:[%s388 + $0x258] sm:$0xff] 0.0
          %471 = vst [vmem:[%s388 + $0x260] sm:$0xff] 0.0
          %472 = vst [vmem:[%s388 + $0x268] sm:$0xff] 0.0
          %473 = vst [vmem:[%s388 + $0x270] sm:$0xff] 0.0
          %474 = vst [vmem:[%s388 + $0x278] sm:$0xff] 0.0
          %475 = vst [vmem:[%s388 + $0x280] sm:$0xff] 0.0
          %476 = vst [vmem:[%s388 + $0x288] sm:$0xff] 0.0
          %477 = vst [vmem:[%s388 + $0x290] sm:$0xff] 0.0
          %478 = vst [vmem:[%s388 + $0x298] sm:$0xff] 0.0
          %479 = vst [vmem:[%s388 + $0x2a0] sm:$0xff] 0.0
          %480 = vst [vmem:[%s388 + $0x2a8] sm:$0xff] 0.0
          %481 = vst [vmem:[%s388 + $0x2b0] sm:$0xff] 0.0
          %482 = vst [vmem:[%s388 + $0x2b8] sm:$0xff] 0.0
          %483 = vst [vmem:[%s388 + $0x2c0] sm:$0xff] 0.0
          %484 = vst [vmem:[%s388 + $0x2c8] sm:$0xff] 0.0
          %485 = vst [vmem:[%s388 + $0x2d0] sm:$0xff] 0.0
          %486 = vst [vmem:[%s388 + $0x2d8] sm:$0xff] 0.0
          %487 = vst [vmem:[%s388 + $0x2e0] sm:$0xff] 0.0
          %488 = vst [vmem:[%s388 + $0x2e8] sm:$0xff] 0.0
          %489 = vst [vmem:[%s388 + $0x2f0] sm:$0xff] 0.0
          %490 = vst [vmem:[%s388 + $0x2f8] sm:$0xff] 0.0
          %491 = vst [vmem:[%s388 + $0x300] sm:$0xff] 0.0
          %492 = vst [vmem:[%s388 + $0x308] sm:$0xff] 0.0
          %493 = vst [vmem:[%s388 + $0x310] sm:$0xff] 0.0
          %494 = vst [vmem:[%s388 + $0x318] sm:$0xff] 0.0
          %495 = vst [vmem:[%s388 + $0x320] sm:$0xff] 0.0
          %496 = vst [vmem:[%s388 + $0x328] sm:$0xff] 0.0
          %497 = vst [vmem:[%s388 + $0x330] sm:$0xff] 0.0
          %498 = vst [vmem:[%s388 + $0x338] sm:$0xff] 0.0
          %499 = vst [vmem:[%s388 + $0x340] sm:$0xff] 0.0
          %500 = vst [vmem:[%s388 + $0x348] sm:$0xff] 0.0
          %501 = vst [vmem:[%s388 + $0x350] sm:$0xff] 0.0
          %502 = vst [vmem:[%s388 + $0x358] sm:$0xff] 0.0
          %503 = vst [vmem:[%s388 + $0x360] sm:$0xff] 0.0
          %504 = vst [vmem:[%s388 + $0x368] sm:$0xff] 0.0
          %505 = vst [vmem:[%s388 + $0x370] sm:$0xff] 0.0
          %506 = vst [vmem:[%s388 + $0x378] sm:$0xff] 0.0
          %507 = vst [vmem:[%s388 + $0x380] sm:$0xff] 0.0
          %508 = vst [vmem:[%s388 + $0x388] sm:$0xff] 0.0
          %509 = vst [vmem:[%s388 + $0x390] sm:$0xff] 0.0
          %510 = vst [vmem:[%s388 + $0x398] sm:$0xff] 0.0
          %511 = vst [vmem:[%s388 + $0x3a0] sm:$0xff] 0.0
          %512 = vst [vmem:[%s388 + $0x3a8] sm:$0xff] 0.0
          %513 = vst [vmem:[%s388 + $0x3b0] sm:$0xff] 0.0
          %514 = vst [vmem:[%s388 + $0x3b8] sm:$0xff] 0.0
          %515 = vst [vmem:[%s388 + $0x3c0] sm:$0xff] 0.0
          %516 = vst [vmem:[%s388 + $0x3c8] sm:$0xff] 0.0
          %517 = vst [vmem:[%s388 + $0x3d0] sm:$0xff] 0.0
          %518 = vst [vmem:[%s388 + $0x3d8] sm:$0xff] 0.0
          %519 = vst [vmem:[%s388 + $0x3e0] sm:$0xff] 0.0
          %520 = vst [vmem:[%s388 + $0x3e8] sm:$0xff] 0.0
          %521 = vst [vmem:[%s388 + $0x3f0] sm:$0xff] 0.0
          %522 = vst [vmem:[%s388 + $0x3f8] sm:$0xff] 0.0
        $region73: #{generator_forward.17} parent=64 // pred_fallthru
          _
        %v523 = vld [vmem:[%s388] sm:$0xff]
        %v524 = vld [vmem:[%s388 + $0x8] sm:$0xff]
        %v525 = vld [vmem:[%s388 + $0x10] sm:$0xff]
        %v526 = vld [vmem:[%s388 + $0x18] sm:$0xff]
        %v527 = vld [vmem:[%s388 + $0x20] sm:$0xff]
        %v528 = vld [vmem:[%s388 + $0x28] sm:$0xff]
        %v529 = vld [vmem:[%s388 + $0x30] sm:$0xff]
        %v530 = vld [vmem:[%s388 + $0x38] sm:$0xff]
        %v531 = vld [vmem:[%s388 + $0x40] sm:$0xff]
        %v532 = vld [vmem:[%s388 + $0x48] sm:$0xff]
        %v533 = vld [vmem:[%s388 + $0x50] sm:$0xff]
        %v534 = vld [vmem:[%s388 + $0x58] sm:$0xff]
        %v535 = vld [vmem:[%s388 + $0x60] sm:$0xff]
        %v536 = vld [vmem:[%s388 + $0x68] sm:$0xff]
        %v537 = vld [vmem:[%s388 + $0x70] sm:$0xff]
        %v538 = vld [vmem:[%s388 + $0x78] sm:$0xff]
        %v539 = vld [vmem:[%s388 + $0x80] sm:$0xff]
        %v540 = vld [vmem:[%s388 + $0x88] sm:$0xff]
        %v541 = vld [vmem:[%s388 + $0x90] sm:$0xff]
        %v542 = vld [vmem:[%s388 + $0x98] sm:$0xff]
        %v543 = vld [vmem:[%s388 + $0xa0] sm:$0xff]
        %v544 = vld [vmem:[%s388 + $0xa8] sm:$0xff]
        %v545 = vld [vmem:[%s388 + $0xb0] sm:$0xff]
        %v546 = vld [vmem:[%s388 + $0xb8] sm:$0xff]
        %v547 = vld [vmem:[%s388 + $0xc0] sm:$0xff]
        %v548 = vld [vmem:[%s388 + $0xc8] sm:$0xff]
        %v549 = vld [vmem:[%s388 + $0xd0] sm:$0xff]
        %v550 = vld [vmem:[%s388 + $0xd8] sm:$0xff]
        %v551 = vld [vmem:[%s388 + $0xe0] sm:$0xff]
        %v552 = vld [vmem:[%s388 + $0xe8] sm:$0xff]
        %v553 = vld [vmem:[%s388 + $0xf0] sm:$0xff]
        %v554 = vld [vmem:[%s388 + $0xf8] sm:$0xff]
        %v555 = vld [vmem:[%s388 + $0x100] sm:$0xff]
        %v556 = vld [vmem:[%s388 + $0x108] sm:$0xff]
        %v557 = vld [vmem:[%s388 + $0x110] sm:$0xff]
        %v558 = vld [vmem:[%s388 + $0x118] sm:$0xff]
        %v559 = vld [vmem:[%s388 + $0x120] sm:$0xff]
        %v560 = vld [vmem:[%s388 + $0x128] sm:$0xff]
        %v561 = vld [vmem:[%s388 + $0x130] sm:$0xff]
        %v562 = vld [vmem:[%s388 + $0x138] sm:$0xff]
        %v563 = vld [vmem:[%s388 + $0x140] sm:$0xff]
        %v564 = vld [vmem:[%s388 + $0x148] sm:$0xff]
        %v565 = vld [vmem:[%s388 + $0x150] sm:$0xff]
        %v566 = vld [vmem:[%s388 + $0x158] sm:$0xff]
        %v567 = vld [vmem:[%s388 + $0x160] sm:$0xff]
        %v568 = vld [vmem:[%s388 + $0x168] sm:$0xff]
        %v569 = vld [vmem:[%s388 + $0x170] sm:$0xff]
        %v570 = vld [vmem:[%s388 + $0x178] sm:$0xff]
        %v571 = vld [vmem:[%s388 + $0x180] sm:$0xff]
        %v572 = vld [vmem:[%s388 + $0x188] sm:$0xff]
        %v573 = vld [vmem:[%s388 + $0x190] sm:$0xff]
        %v574 = vld [vmem:[%s388 + $0x198] sm:$0xff]
        %v575 = vld [vmem:[%s388 + $0x1a0] sm:$0xff]
        %v576 = vld [vmem:[%s388 + $0x1a8] sm:$0xff]
        %v577 = vld [vmem:[%s388 + $0x1b0] sm:$0xff]
        %v578 = vld [vmem:[%s388 + $0x1b8] sm:$0xff]
        %v579 = vld [vmem:[%s388 + $0x1c0] sm:$0xff]
        %v580 = vld [vmem:[%s388 + $0x1c8] sm:$0xff]
        %v581 = vld [vmem:[%s388 + $0x1d0] sm:$0xff]
        %v582 = vld [vmem:[%s388 + $0x1d8] sm:$0xff]
        %v583 = vld [vmem:[%s388 + $0x1e0] sm:$0xff]
        %v584 = vld [vmem:[%s388 + $0x1e8] sm:$0xff]
        %v585 = vld [vmem:[%s388 + $0x1f0] sm:$0xff]
        %v586 = vld [vmem:[%s388 + $0x1f8] sm:$0xff]
        %v587 = vld [vmem:[%s388 + $0x200] sm:$0xff]
        %v588 = vld [vmem:[%s388 + $0x208] sm:$0xff]
        %v589 = vld [vmem:[%s388 + $0x210] sm:$0xff]
        %v590 = vld [vmem:[%s388 + $0x218] sm:$0xff]
        %v591 = vld [vmem:[%s388 + $0x220] sm:$0xff]
        %v592 = vld [vmem:[%s388 + $0x228] sm:$0xff]
        %v593 = vld [vmem:[%s388 + $0x230] sm:$0xff]
        %v594 = vld [vmem:[%s388 + $0x238] sm:$0xff]
        %v595 = vld [vmem:[%s388 + $0x240] sm:$0xff]
        %v596 = vld [vmem:[%s388 + $0x248] sm:$0xff]
        %v597 = vld [vmem:[%s388 + $0x250] sm:$0xff]
        %v598 = vld [vmem:[%s388 + $0x258] sm:$0xff]
        %v599 = vld [vmem:[%s388 + $0x260] sm:$0xff]
        %v600 = vld [vmem:[%s388 + $0x268] sm:$0xff]
        %v601 = vld [vmem:[%s388 + $0x270] sm:$0xff]
        %v602 = vld [vmem:[%s388 + $0x278] sm:$0xff]
        %v603 = vld [vmem:[%s388 + $0x280] sm:$0xff]
        %v604 = vld [vmem:[%s388 + $0x288] sm:$0xff]
        %v605 = vld [vmem:[%s388 + $0x290] sm:$0xff]
        %v606 = vld [vmem:[%s388 + $0x298] sm:$0xff]
        %v607 = vld [vmem:[%s388 + $0x2a0] sm:$0xff]
        %v608 = vld [vmem:[%s388 + $0x2a8] sm:$0xff]
        %v609 = vld [vmem:[%s388 + $0x2b0] sm:$0xff]
        %v610 = vld [vmem:[%s388 + $0x2b8] sm:$0xff]
        %v611 = vld [vmem:[%s388 + $0x2c0] sm:$0xff]
        %v612 = vld [vmem:[%s388 + $0x2c8] sm:$0xff]
        %v613 = vld [vmem:[%s388 + $0x2d0] sm:$0xff]
        %v614 = vld [vmem:[%s388 + $0x2d8] sm:$0xff]
        %v615 = vld [vmem:[%s388 + $0x2e0] sm:$0xff]
        %v616 = vld [vmem:[%s388 + $0x2e8] sm:$0xff]
        %v617 = vld [vmem:[%s388 + $0x2f0] sm:$0xff]
        %v618 = vld [vmem:[%s388 + $0x2f8] sm:$0xff]
        %v619 = vld [vmem:[%s388 + $0x300] sm:$0xff]
        %v620 = vld [vmem:[%s388 + $0x308] sm:$0xff]
        %v621 = vld [vmem:[%s388 + $0x310] sm:$0xff]
        %v622 = vld [vmem:[%s388 + $0x318] sm:$0xff]
        %v623 = vld [vmem:[%s388 + $0x320] sm:$0xff]
        %v624 = vld [vmem:[%s388 + $0x328] sm:$0xff]
        %v625 = vld [vmem:[%s388 + $0x330] sm:$0xff]
        %v626 = vld [vmem:[%s388 + $0x338] sm:$0xff]
        %v627 = vld [vmem:[%s388 + $0x340] sm:$0xff]
        %v628 = vld [vmem:[%s388 + $0x348] sm:$0xff]
        %v629 = vld [vmem:[%s388 + $0x350] sm:$0xff]
        %v630 = vld [vmem:[%s388 + $0x358] sm:$0xff]
        %v631 = vld [vmem:[%s388 + $0x360] sm:$0xff]
        %v632 = vld [vmem:[%s388 + $0x368] sm:$0xff]
        %v633 = vld [vmem:[%s388 + $0x370] sm:$0xff]
        %v634 = vld [vmem:[%s388 + $0x378] sm:$0xff]
        %v635 = vld [vmem:[%s388 + $0x380] sm:$0xff]
        %v636 = vld [vmem:[%s388 + $0x388] sm:$0xff]
        %v637 = vld [vmem:[%s388 + $0x390] sm:$0xff]
        %v638 = vld [vmem:[%s388 + $0x398] sm:$0xff]
        %v639 = vld [vmem:[%s388 + $0x3a0] sm:$0xff]
        %v640 = vld [vmem:[%s388 + $0x3a8] sm:$0xff]
        %v641 = vld [vmem:[%s388 + $0x3b0] sm:$0xff]
        %v642 = vld [vmem:[%s388 + $0x3b8] sm:$0xff]
        %v643 = vld [vmem:[%s388 + $0x3c0] sm:$0xff]
        %v644 = vld [vmem:[%s388 + $0x3c8] sm:$0xff]
        %v645 = vld [vmem:[%s388 + $0x3d0] sm:$0xff]
        %v646 = vld [vmem:[%s388 + $0x3d8] sm:$0xff]
        %v647 = vld [vmem:[%s388 + $0x3e0] sm:$0xff]
        %v648 = vld [vmem:[%s388 + $0x3e8] sm:$0xff]
        %v649 = vld [vmem:[%s388 + $0x3f0] sm:$0xff]
        %v650 = vld [vmem:[%s388 + $0x3f8] sm:$0xff]
        %v651 = vld [vmem:[%s332] sm:$0xf]
        %v652 = vld [vmem:[%s332 + $0x4] sm:$0xf]
        %v653 = vld [vmem:[%s332 + $0x8] sm:$0xf]
        %v654 = vld [vmem:[%s332 + $0xc] sm:$0xf]
        %v655 = vld [vmem:[%s332 + $0x10] sm:$0xf]
        %v656 = vld [vmem:[%s332 + $0x14] sm:$0xf]
        %v657 = vld [vmem:[%s332 + $0x18] sm:$0xf]
        %v658 = vld [vmem:[%s332 + $0x1c] sm:$0xf]
        %v659 = vld [vmem:[%s332 + $0x20] sm:$0xf]
        %v660 = vld [vmem:[%s332 + $0x24] sm:$0xf]
        %v661 = vld [vmem:[%s332 + $0x28] sm:$0xf]
        %v662 = vld [vmem:[%s332 + $0x2c] sm:$0xf]
        %v663 = vld [vmem:[%s332 + $0x30] sm:$0xf]
        %v664 = vld [vmem:[%s332 + $0x34] sm:$0xf]
        %v665 = vld [vmem:[%s332 + $0x38] sm:$0xf]
        %v666 = vld [vmem:[%s332 + $0x3c] sm:$0xf]
        %v667 = vld [vmem:[%s332 + $0x40] sm:$0xf]
        %v668 = vld [vmem:[%s332 + $0x44] sm:$0xf]
        %v669 = vld [vmem:[%s332 + $0x48] sm:$0xf]
        %v670 = vld [vmem:[%s332 + $0x4c] sm:$0xf]
        %v671 = vld [vmem:[%s332 + $0x50] sm:$0xf]
        %v672 = vld [vmem:[%s332 + $0x54] sm:$0xf]
        %v673 = vld [vmem:[%s332 + $0x58] sm:$0xf]
        %v674 = vld [vmem:[%s332 + $0x5c] sm:$0xf]
        %v675 = vld [vmem:[%s332 + $0x60] sm:$0xf]
        %v676 = vld [vmem:[%s332 + $0x64] sm:$0xf]
        %v677 = vld [vmem:[%s332 + $0x68] sm:$0xf]
        %v678 = vld [vmem:[%s332 + $0x6c] sm:$0xf]
        %v679 = vld [vmem:[%s332 + $0x70] sm:$0xf]
        %v680 = vld [vmem:[%s332 + $0x74] sm:$0xf]
        %v681 = vld [vmem:[%s332 + $0x78] sm:$0xf]
        %v682 = vld [vmem:[%s332 + $0x7c] sm:$0xf]
        %v683 = vld [vmem:[%s376] sm:$0xff]
        %v684 = vld [vmem:[%s376 + $0x8] sm:$0xff]
        %v685 = vld [vmem:[%s376 + $0x10] sm:$0xff]
        %v686 = vld [vmem:[%s376 + $0x18] sm:$0xff]
        %v687 = vld [vmem:[%s376 + $0x20] sm:$0xff]
        %v688 = vld [vmem:[%s376 + $0x28] sm:$0xff]
        %v689 = vld [vmem:[%s376 + $0x30] sm:$0xff]
        %v690 = vld [vmem:[%s376 + $0x38] sm:$0xff]
        %v691 = vld [vmem:[%s376 + $0x40] sm:$0xff]
        %v692 = vld [vmem:[%s376 + $0x48] sm:$0xff]
        %v693 = vld [vmem:[%s376 + $0x50] sm:$0xff]
        %v694 = vld [vmem:[%s376 + $0x58] sm:$0xff]
        %v695 = vld [vmem:[%s376 + $0x60] sm:$0xff]
        %v696 = vld [vmem:[%s376 + $0x68] sm:$0xff]
        %v697 = vld [vmem:[%s376 + $0x70] sm:$0xff]
        %v698 = vld [vmem:[%s376 + $0x78] sm:$0xff]
        %v699 = vld [vmem:[%s376 + $0x80] sm:$0xff]
        %v700 = vld [vmem:[%s376 + $0x88] sm:$0xff]
        %v701 = vld [vmem:[%s376 + $0x90] sm:$0xff]
        %v702 = vld [vmem:[%s376 + $0x98] sm:$0xff]
        %v703 = vld [vmem:[%s376 + $0xa0] sm:$0xff]
        %v704 = vld [vmem:[%s376 + $0xa8] sm:$0xff]
        %v705 = vld [vmem:[%s376 + $0xb0] sm:$0xff]
        %v706 = vld [vmem:[%s376 + $0xb8] sm:$0xff]
        %v707 = vld [vmem:[%s376 + $0xc0] sm:$0xff]
        %v708 = vld [vmem:[%s376 + $0xc8] sm:$0xff]
        %v709 = vld [vmem:[%s376 + $0xd0] sm:$0xff]
        %v710 = vld [vmem:[%s376 + $0xd8] sm:$0xff]
        %v711 = vld [vmem:[%s376 + $0xe0] sm:$0xff]
        %v712 = vld [vmem:[%s376 + $0xe8] sm:$0xff]
        %v713 = vld [vmem:[%s376 + $0xf0] sm:$0xff]
        %v714 = vld [vmem:[%s376 + $0xf8] sm:$0xff]
        %v747 = vunpack.c.l.b16 %v651
        %v748 = vunpack.c.l.b16 %v652
        %v749 = vunpack.c.l.b16 %v653
        %v750 = vunpack.c.l.b16 %v654
        %v751 = vunpack.c.l.b16 %v655
        %v752 = vunpack.c.l.b16 %v656
        %v753 = vunpack.c.l.b16 %v657
        %v754 = vunpack.c.l.b16 %v658
        %v755 = vunpack.c.l.b16 %v659
        %v756 = vunpack.c.l.b16 %v660
        %v757 = vunpack.c.l.b16 %v661
        %v758 = vunpack.c.l.b16 %v662
        %v759 = vunpack.c.l.b16 %v663
        %v760 = vunpack.c.l.b16 %v664
        %v761 = vunpack.c.l.b16 %v665
        %v762 = vunpack.c.l.b16 %v666
        %v763 = vunpack.c.l.b16 %v667
        %v764 = vunpack.c.l.b16 %v668
        %v765 = vunpack.c.l.b16 %v669
        %v766 = vunpack.c.l.b16 %v670
        %v767 = vunpack.c.l.b16 %v671
        %v768 = vunpack.c.l.b16 %v672
        %v769 = vunpack.c.l.b16 %v673
        %v770 = vunpack.c.l.b16 %v674
        %v771 = vunpack.c.l.b16 %v675
        %v772 = vunpack.c.l.b16 %v676
        %v773 = vunpack.c.l.b16 %v677
        %v774 = vunpack.c.l.b16 %v678
        %v775 = vunpack.c.l.b16 %v679
        %v776 = vunpack.c.l.b16 %v680
        %v777 = vunpack.c.l.b16 %v681
        %v778 = vunpack.c.l.b16 %v682
        %v779 = vpack.c.b16 %v748, %v747
        %v780 = vpack.c.b16 %v750, %v749
        %v781 = vpack.c.b16 %v752, %v751
        %v782 = vpack.c.b16 %v754, %v753
        %v783 = vpack.c.b16 %v756, %v755
        %v784 = vpack.c.b16 %v758, %v757
        %v785 = vpack.c.b16 %v760, %v759
        %v786 = vpack.c.b16 %v762, %v761
        %v787 = vpack.c.b16 %v764, %v763
        %v788 = vpack.c.b16 %v766, %v765
        %v789 = vpack.c.b16 %v768, %v767
        %v790 = vpack.c.b16 %v770, %v769
        %v791 = vpack.c.b16 %v772, %v771
        %v792 = vpack.c.b16 %v774, %v773
        %v793 = vpack.c.b16 %v776, %v775
        %v794 = vpack.c.b16 %v778, %v777
        %v843 = vunpack.c.l.b16 %v683
        %v844 = vunpack.c.h.b16 %v683
        %v845 = vunpack.c.l.b16 %v684
        %v846 = vunpack.c.h.b16 %v684
        %v847 = vunpack.c.l.b16 %v685
        %v848 = vunpack.c.h.b16 %v685
        %v849 = vunpack.c.l.b16 %v686
        %v850 = vunpack.c.h.b16 %v686
        %v851 = vunpack.c.l.b16 %v687
        %v852 = vunpack.c.h.b16 %v687
        %v853 = vunpack.c.l.b16 %v688
        %v854 = vunpack.c.h.b16 %v688
        %v855 = vunpack.c.l.b16 %v689
        %v856 = vunpack.c.h.b16 %v689
        %v857 = vunpack.c.l.b16 %v690
        %v858 = vunpack.c.h.b16 %v690
        %v859 = vunpack.c.l.b16 %v691
        %v860 = vunpack.c.h.b16 %v691
        %v861 = vunpack.c.l.b16 %v692
        %v862 = vunpack.c.h.b16 %v692
        %v863 = vunpack.c.l.b16 %v693
        %v864 = vunpack.c.h.b16 %v693
        %v865 = vunpack.c.l.b16 %v694
        %v866 = vunpack.c.h.b16 %v694
        %v867 = vunpack.c.l.b16 %v695
        %v868 = vunpack.c.h.b16 %v695
        %v869 = vunpack.c.l.b16 %v696
        %v870 = vunpack.c.h.b16 %v696
        %v871 = vunpack.c.l.b16 %v697
        %v872 = vunpack.c.h.b16 %v697
        %v873 = vunpack.c.l.b16 %v698
        %v874 = vunpack.c.h.b16 %v698
        %v875 = vunpack.c.l.b16 %v699
        %v876 = vunpack.c.h.b16 %v699
        %v877 = vunpack.c.l.b16 %v700
        %v878 = vunpack.c.h.b16 %v700
        %v879 = vunpack.c.l.b16 %v701
        %v880 = vunpack.c.h.b16 %v701
        %v881 = vunpack.c.l.b16 %v702
        %v882 = vunpack.c.h.b16 %v702
        %v883 = vunpack.c.l.b16 %v703
        %v884 = vunpack.c.h.b16 %v703
        %v885 = vunpack.c.l.b16 %v704
        %v886 = vunpack.c.h.b16 %v704
        %v887 = vunpack.c.l.b16 %v705
        %v888 = vunpack.c.h.b16 %v705
        %v889 = vunpack.c.l.b16 %v706
        %v890 = vunpack.c.h.b16 %v706
        %v891 = vunpack.c.l.b16 %v707
        %v892 = vunpack.c.h.b16 %v707
        %v893 = vunpack.c.l.b16 %v708
        %v894 = vunpack.c.h.b16 %v708
        %v895 = vunpack.c.l.b16 %v709
        %v896 = vunpack.c.h.b16 %v709
        %v897 = vunpack.c.l.b16 %v710
        %v898 = vunpack.c.h.b16 %v710
        %v899 = vunpack.c.l.b16 %v711
        %v900 = vunpack.c.h.b16 %v711
        %v901 = vunpack.c.l.b16 %v712
        %v902 = vunpack.c.h.b16 %v712
        %v903 = vunpack.c.l.b16 %v713
        %v904 = vunpack.c.h.b16 %v713
        %v905 = vunpack.c.l.b16 %v714
        %v906 = vunpack.c.h.b16 %v714
        %v907 = vpack.c.b16 %v847, %v843
        %v908 = vpack.c.b16 %v848, %v844
        %v909 = vpack.c.b16 %v849, %v845
        %v910 = vpack.c.b16 %v850, %v846
        %v911 = vpack.c.b16 %v855, %v851
        %v912 = vpack.c.b16 %v856, %v852
        %v913 = vpack.c.b16 %v857, %v853
        %v914 = vpack.c.b16 %v858, %v854
        %v915 = vpack.c.b16 %v863, %v859
        %v916 = vpack.c.b16 %v864, %v860
        %v917 = vpack.c.b16 %v865, %v861
        %v918 = vpack.c.b16 %v866, %v862
        %v919 = vpack.c.b16 %v871, %v867
        %v920 = vpack.c.b16 %v872, %v868
        %v921 = vpack.c.b16 %v873, %v869
        %v922 = vpack.c.b16 %v874, %v870
        %v923 = vpack.c.b16 %v879, %v875
        %v924 = vpack.c.b16 %v880, %v876
        %v925 = vpack.c.b16 %v881, %v877
        %v926 = vpack.c.b16 %v882, %v878
        %v927 = vpack.c.b16 %v887, %v883
        %v928 = vpack.c.b16 %v888, %v884
        %v929 = vpack.c.b16 %v889, %v885
        %v930 = vpack.c.b16 %v890, %v886
        %v931 = vpack.c.b16 %v895, %v891
        %v932 = vpack.c.b16 %v896, %v892
        %v933 = vpack.c.b16 %v897, %v893
        %v934 = vpack.c.b16 %v898, %v894
        %v935 = vpack.c.b16 %v903, %v899
        %v936 = vpack.c.b16 %v904, %v900
        %v937 = vpack.c.b16 %v905, %v901
        %v938 = vpack.c.b16 %v906, %v902
        %971 = vmatpush.bf16.msra.mxu0 %v935
        %972 = vmatpush.bf16.msra.mxu0 %v931
        %973 = vmatpush.bf16.msra.mxu0 %v927
        %974 = vmatpush.bf16.msra.mxu0 %v923
        %975 = vmatpush.bf16.msra.mxu0 %v919
        %976 = vmatpush.bf16.msra.mxu0 %v915
        %977 = vmatpush.bf16.msra.mxu0 %v911
        %978 = vmatpush.bf16.msra.mxu0 %v907
        %979 = vmatmul.bf16.gmra.mxu0 %v779
        %v980 = vpop.f32.mrf.mxu0
        %v981 = vadd.f32 0.0, %v980
        %v982 = vpop.f32.mrf.mxu0
        %v983 = vadd.f32 0.0, %v982
        %984 = vmatmul.bf16.gmra.mxu0 %v780
        %v985 = vpop.f32.mrf.mxu0
        %v986 = vadd.f32 0.0, %v985
        %v987 = vpop.f32.mrf.mxu0
        %v988 = vadd.f32 0.0, %v987
        %989 = vmatmul.bf16.gmra.mxu0 %v781
        %v990 = vpop.f32.mrf.mxu0
        %v991 = vadd.f32 0.0, %v990
        %v992 = vpop.f32.mrf.mxu0
        %v993 = vadd.f32 0.0, %v992
        %994 = vmatmul.bf16.gmra.mxu0 %v782
        %v995 = vpop.f32.mrf.mxu0
        %v996 = vadd.f32 0.0, %v995
        %v997 = vpop.f32.mrf.mxu0
        %v998 = vadd.f32 0.0, %v997
        %999 = vmatmul.bf16.gmra.mxu0 %v783
        %v1000 = vpop.f32.mrf.mxu0
        %v1001 = vadd.f32 0.0, %v1000
        %v1002 = vpop.f32.mrf.mxu0
        %v1003 = vadd.f32 0.0, %v1002
        %1004 = vmatmul.bf16.gmra.mxu0 %v784
        %v1005 = vpop.f32.mrf.mxu0
        %v1006 = vadd.f32 0.0, %v1005
        %v1007 = vpop.f32.mrf.mxu0
        %v1008 = vadd.f32 0.0, %v1007
        %1009 = vmatmul.bf16.gmra.mxu0 %v785
        %v1010 = vpop.f32.mrf.mxu0
        %v1011 = vadd.f32 0.0, %v1010
        %v1012 = vpop.f32.mrf.mxu0
        %v1013 = vadd.f32 0.0, %v1012
        %1014 = vmatmul.bf16.gmra.mxu0 %v786
        %v1015 = vpop.f32.mrf.mxu0
        %v1016 = vadd.f32 0.0, %v1015
        %v1017 = vpop.f32.mrf.mxu0
        %v1018 = vadd.f32 0.0, %v1017
        %1019 = vmatmul.bf16.gmra.mxu0 %v787
        %v1020 = vpop.f32.mrf.mxu0
        %v1021 = vadd.f32 0.0, %v1020
        %v1022 = vpop.f32.mrf.mxu0
        %v1023 = vadd.f32 0.0, %v1022
        %1024 = vmatmul.bf16.gmra.mxu0 %v788
        %v1025 = vpop.f32.mrf.mxu0
        %v1026 = vadd.f32 0.0, %v1025
        %v1027 = vpop.f32.mrf.mxu0
        %v1028 = vadd.f32 0.0, %v1027
        %1029 = vmatmul.bf16.gmra.mxu0 %v789
        %v1030 = vpop.f32.mrf.mxu0
        %v1031 = vadd.f32 0.0, %v1030
        %v1032 = vpop.f32.mrf.mxu0
        %v1033 = vadd.f32 0.0, %v1032
        %1034 = vmatmul.bf16.gmra.mxu0 %v790
        %v1035 = vpop.f32.mrf.mxu0
        %v1036 = vadd.f32 0.0, %v1035
        %v1037 = vpop.f32.mrf.mxu0
        %v1038 = vadd.f32 0.0, %v1037
        %1039 = vmatmul.bf16.gmra.mxu0 %v791
        %v1040 = vpop.f32.mrf.mxu0
        %v1041 = vadd.f32 0.0, %v1040
        %v1042 = vpop.f32.mrf.mxu0
        %v1043 = vadd.f32 0.0, %v1042
        %1044 = vmatmul.bf16.gmra.mxu0 %v792
        %v1045 = vpop.f32.mrf.mxu0
        %v1046 = vadd.f32 0.0, %v1045
        %v1047 = vpop.f32.mrf.mxu0
        %v1048 = vadd.f32 0.0, %v1047
        %1049 = vmatmul.bf16.gmra.mxu0 %v793
        %v1050 = vpop.f32.mrf.mxu0
        %v1051 = vadd.f32 0.0, %v1050
        %v1052 = vpop.f32.mrf.mxu0
        %v1053 = vadd.f32 0.0, %v1052
        %1054 = vmatmul.bf16.gmra.mxu0 %v794
        %v1055 = vpop.f32.mrf.mxu0
        %v1056 = vadd.f32 0.0, %v1055
        %v1057 = vpop.f32.mrf.mxu0
        %v1058 = vadd.f32 0.0, %v1057
        %1059 = vdwg.mxu0
        %1060 = vmatpush.bf16.msra.mxu0 %v936
        %1061 = vmatpush.bf16.msra.mxu0 %v932
        %1062 = vmatpush.bf16.msra.mxu0 %v928
        %1063 = vmatpush.bf16.msra.mxu0 %v924
        %1064 = vmatpush.bf16.msra.mxu0 %v920
        %1065 = vmatpush.bf16.msra.mxu0 %v916
        %1066 = vmatpush.bf16.msra.mxu0 %v912
        %1067 = vmatpush.bf16.msra.mxu0 %v908
        %1068 = vmatmul.bf16.gmra.mxu0 %v779
        %v1069 = vpop.f32.mrf.mxu0
        %v1070 = vadd.f32 0.0, %v1069
        %v1071 = vpop.f32.mrf.mxu0
        %v1072 = vadd.f32 0.0, %v1071
        %1073 = vmatmul.bf16.gmra.mxu0 %v780
        %v1074 = vpop.f32.mrf.mxu0
        %v1075 = vadd.f32 0.0, %v1074
        %v1076 = vpop.f32.mrf.mxu0
        %v1077 = vadd.f32 0.0, %v1076
        %1078 = vmatmul.bf16.gmra.mxu0 %v781
        %v1079 = vpop.f32.mrf.mxu0
        %v1080 = vadd.f32 0.0, %v1079
        %v1081 = vpop.f32.mrf.mxu0
        %v1082 = vadd.f32 0.0, %v1081
        %1083 = vmatmul.bf16.gmra.mxu0 %v782
        %v1084 = vpop.f32.mrf.mxu0
        %v1085 = vadd.f32 0.0, %v1084
        %v1086 = vpop.f32.mrf.mxu0
        %v1087 = vadd.f32 0.0, %v1086
        %1088 = vmatmul.bf16.gmra.mxu0 %v783
        %v1089 = vpop.f32.mrf.mxu0
        %v1090 = vadd.f32 0.0, %v1089
        %v1091 = vpop.f32.mrf.mxu0
        %v1092 = vadd.f32 0.0, %v1091
        %1093 = vmatmul.bf16.gmra.mxu0 %v784
        %v1094 = vpop.f32.mrf.mxu0
        %v1095 = vadd.f32 0.0, %v1094
        %v1096 = vpop.f32.mrf.mxu0
        %v1097 = vadd.f32 0.0, %v1096
        %1098 = vmatmul.bf16.gmra.mxu0 %v785
        %v1099 = vpop.f32.mrf.mxu0
        %v1100 = vadd.f32 0.0, %v1099
        %v1101 = vpop.f32.mrf.mxu0
        %v1102 = vadd.f32 0.0, %v1101
        %1103 = vmatmul.bf16.gmra.mxu0 %v786
        %v1104 = vpop.f32.mrf.mxu0
        %v1105 = vadd.f32 0.0, %v1104
        %v1106 = vpop.f32.mrf.mxu0
        %v1107 = vadd.f32 0.0, %v1106
        %1108 = vmatmul.bf16.gmra.mxu0 %v787
        %v1109 = vpop.f32.mrf.mxu0
        %v1110 = vadd.f32 0.0, %v1109
        %v1111 = vpop.f32.mrf.mxu0
        %v1112 = vadd.f32 0.0, %v1111
        %1113 = vmatmul.bf16.gmra.mxu0 %v788
        %v1114 = vpop.f32.mrf.mxu0
        %v1115 = vadd.f32 0.0, %v1114
        %v1116 = vpop.f32.mrf.mxu0
        %v1117 = vadd.f32 0.0, %v1116
        %1118 = vmatmul.bf16.gmra.mxu0 %v789
        %v1119 = vpop.f32.mrf.mxu0
        %v1120 = vadd.f32 0.0, %v1119
        %v1121 = vpop.f32.mrf.mxu0
        %v1122 = vadd.f32 0.0, %v1121
        %1123 = vmatmul.bf16.gmra.mxu0 %v790
        %v1124 = vpop.f32.mrf.mxu0
        %v1125 = vadd.f32 0.0, %v1124
        %v1126 = vpop.f32.mrf.mxu0
        %v1127 = vadd.f32 0.0, %v1126
        %1128 = vmatmul.bf16.gmra.mxu0 %v791
        %v1129 = vpop.f32.mrf.mxu0
        %v1130 = vadd.f32 0.0, %v1129
        %v1131 = vpop.f32.mrf.mxu0
        %v1132 = vadd.f32 0.0, %v1131
        %1133 = vmatmul.bf16.gmra.mxu0 %v792
        %v1134 = vpop.f32.mrf.mxu0
        %v1135 = vadd.f32 0.0, %v1134
        %v1136 = vpop.f32.mrf.mxu0
        %v1137 = vadd.f32 0.0, %v1136
        %1138 = vmatmul.bf16.gmra.mxu0 %v793
        %v1139 = vpop.f32.mrf.mxu0
        %v1140 = vadd.f32 0.0, %v1139
        %v1141 = vpop.f32.mrf.mxu0
        %v1142 = vadd.f32 0.0, %v1141
        %1143 = vmatmul.bf16.gmra.mxu0 %v794
        %v1144 = vpop.f32.mrf.mxu0
        %v1145 = vadd.f32 0.0, %v1144
        %v1146 = vpop.f32.mrf.mxu0
        %v1147 = vadd.f32 0.0, %v1146
        %1148 = vdwg.mxu0
        %1149 = vmatpush.bf16.msra.mxu0 %v937
        %1150 = vmatpush.bf16.msra.mxu0 %v933
        %1151 = vmatpush.bf16.msra.mxu0 %v929
        %1152 = vmatpush.bf16.msra.mxu0 %v925
        %1153 = vmatpush.bf16.msra.mxu0 %v921
        %1154 = vmatpush.bf16.msra.mxu0 %v917
        %1155 = vmatpush.bf16.msra.mxu0 %v913
        %1156 = vmatpush.bf16.msra.mxu0 %v909
        %1157 = vmatmul.bf16.gmra.mxu0 %v779
        %v1158 = vpop.f32.mrf.mxu0
        %v1159 = vadd.f32 0.0, %v1158
        %v1160 = vpop.f32.mrf.mxu0
        %v1161 = vadd.f32 0.0, %v1160
        %1162 = vmatmul.bf16.gmra.mxu0 %v780
        %v1163 = vpop.f32.mrf.mxu0
        %v1164 = vadd.f32 0.0, %v1163
        %v1165 = vpop.f32.mrf.mxu0
        %v1166 = vadd.f32 0.0, %v1165
        %1167 = vmatmul.bf16.gmra.mxu0 %v781
        %v1168 = vpop.f32.mrf.mxu0
        %v1169 = vadd.f32 0.0, %v1168
        %v1170 = vpop.f32.mrf.mxu0
        %v1171 = vadd.f32 0.0, %v1170
        %1172 = vmatmul.bf16.gmra.mxu0 %v782
        %v1173 = vpop.f32.mrf.mxu0
        %v1174 = vadd.f32 0.0, %v1173
        %v1175 = vpop.f32.mrf.mxu0
        %v1176 = vadd.f32 0.0, %v1175
        %1177 = vmatmul.bf16.gmra.mxu0 %v783
        %v1178 = vpop.f32.mrf.mxu0
        %v1179 = vadd.f32 0.0, %v1178
        %v1180 = vpop.f32.mrf.mxu0
        %v1181 = vadd.f32 0.0, %v1180
        %1182 = vmatmul.bf16.gmra.mxu0 %v784
        %v1183 = vpop.f32.mrf.mxu0
        %v1184 = vadd.f32 0.0, %v1183
        %v1185 = vpop.f32.mrf.mxu0
        %v1186 = vadd.f32 0.0, %v1185
        %1187 = vmatmul.bf16.gmra.mxu0 %v785
        %v1188 = vpop.f32.mrf.mxu0
        %v1189 = vadd.f32 0.0, %v1188
        %v1190 = vpop.f32.mrf.mxu0
        %v1191 = vadd.f32 0.0, %v1190
        %1192 = vmatmul.bf16.gmra.mxu0 %v786
        %v1193 = vpop.f32.mrf.mxu0
        %v1194 = vadd.f32 0.0, %v1193
        %v1195 = vpop.f32.mrf.mxu0
        %v1196 = vadd.f32 0.0, %v1195
        %1197 = vmatmul.bf16.gmra.mxu0 %v787
        %v1198 = vpop.f32.mrf.mxu0
        %v1199 = vadd.f32 0.0, %v1198
        %v1200 = vpop.f32.mrf.mxu0
        %v1201 = vadd.f32 0.0, %v1200
        %1202 = vmatmul.bf16.gmra.mxu0 %v788
        %v1203 = vpop.f32.mrf.mxu0
        %v1204 = vadd.f32 0.0, %v1203
        %v1205 = vpop.f32.mrf.mxu0
        %v1206 = vadd.f32 0.0, %v1205
        %1207 = vmatmul.bf16.gmra.mxu0 %v789
        %v1208 = vpop.f32.mrf.mxu0
        %v1209 = vadd.f32 0.0, %v1208
        %v1210 = vpop.f32.mrf.mxu0
        %v1211 = vadd.f32 0.0, %v1210
        %1212 = vmatmul.bf16.gmra.mxu0 %v790
        %v1213 = vpop.f32.mrf.mxu0
        %v1214 = vadd.f32 0.0, %v1213
        %v1215 = vpop.f32.mrf.mxu0
        %v1216 = vadd.f32 0.0, %v1215
        %1217 = vmatmul.bf16.gmra.mxu0 %v791
        %v1218 = vpop.f32.mrf.mxu0
        %v1219 = vadd.f32 0.0, %v1218
        %v1220 = vpop.f32.mrf.mxu0
        %v1221 = vadd.f32 0.0, %v1220
        %1222 = vmatmul.bf16.gmra.mxu0 %v792
        %v1223 = vpop.f32.mrf.mxu0
        %v1224 = vadd.f32 0.0, %v1223
        %v1225 = vpop.f32.mrf.mxu0
        %v1226 = vadd.f32 0.0, %v1225
        %1227 = vmatmul.bf16.gmra.mxu0 %v793
        %v1228 = vpop.f32.mrf.mxu0
        %v1229 = vadd.f32 0.0, %v1228
        %v1230 = vpop.f32.mrf.mxu0
        %v1231 = vadd.f32 0.0, %v1230
        %1232 = vmatmul.bf16.gmra.mxu0 %v794
        %v1233 = vpop.f32.mrf.mxu0
        %v1234 = vadd.f32 0.0, %v1233
        %v1235 = vpop.f32.mrf.mxu0
        %v1236 = vadd.f32 0.0, %v1235
        %1237 = vdwg.mxu0
        %1238 = vmatpush.bf16.msra.mxu0 %v938
        %1239 = vmatpush.bf16.msra.mxu0 %v934
        %1240 = vmatpush.bf16.msra.mxu0 %v930
        %1241 = vmatpush.bf16.msra.mxu0 %v926
        %1242 = vmatpush.bf16.msra.mxu0 %v922
        %1243 = vmatpush.bf16.msra.mxu0 %v918
        %1244 = vmatpush.bf16.msra.mxu0 %v914
        %1245 = vmatpush.bf16.msra.mxu0 %v910
        %1246 = vmatmul.bf16.gmra.mxu0 %v779
        %v1247 = vpop.f32.mrf.mxu0
        %v1248 = vadd.f32 0.0, %v1247
        %v1249 = vpop.f32.mrf.mxu0
        %v1250 = vadd.f32 0.0, %v1249
        %1251 = vmatmul.bf16.gmra.mxu0 %v780
        %v1252 = vpop.f32.mrf.mxu0
        %v1253 = vadd.f32 0.0, %v1252
        %v1254 = vpop.f32.mrf.mxu0
        %v1255 = vadd.f32 0.0, %v1254
        %1256 = vmatmul.bf16.gmra.mxu0 %v781
        %v1257 = vpop.f32.mrf.mxu0
        %v1258 = vadd.f32 0.0, %v1257
        %v1259 = vpop.f32.mrf.mxu0
        %v1260 = vadd.f32 0.0, %v1259
        %1261 = vmatmul.bf16.gmra.mxu0 %v782
        %v1262 = vpop.f32.mrf.mxu0
        %v1263 = vadd.f32 0.0, %v1262
        %v1264 = vpop.f32.mrf.mxu0
        %v1265 = vadd.f32 0.0, %v1264
        %1266 = vmatmul.bf16.gmra.mxu0 %v783
        %v1267 = vpop.f32.mrf.mxu0
        %v1268 = vadd.f32 0.0, %v1267
        %v1269 = vpop.f32.mrf.mxu0
        %v1270 = vadd.f32 0.0, %v1269
        %1271 = vmatmul.bf16.gmra.mxu0 %v784
        %v1272 = vpop.f32.mrf.mxu0
        %v1273 = vadd.f32 0.0, %v1272
        %v1274 = vpop.f32.mrf.mxu0
        %v1275 = vadd.f32 0.0, %v1274
        %1276 = vmatmul.bf16.gmra.mxu0 %v785
        %v1277 = vpop.f32.mrf.mxu0
        %v1278 = vadd.f32 0.0, %v1277
        %v1279 = vpop.f32.mrf.mxu0
        %v1280 = vadd.f32 0.0, %v1279
        %1281 = vmatmul.bf16.gmra.mxu0 %v786
        %v1282 = vpop.f32.mrf.mxu0
        %v1283 = vadd.f32 0.0, %v1282
        %v1284 = vpop.f32.mrf.mxu0
        %v1285 = vadd.f32 0.0, %v1284
        %1286 = vmatmul.bf16.gmra.mxu0 %v787
        %v1287 = vpop.f32.mrf.mxu0
        %v1288 = vadd.f32 0.0, %v1287
        %v1289 = vpop.f32.mrf.mxu0
        %v1290 = vadd.f32 0.0, %v1289
        %1291 = vmatmul.bf16.gmra.mxu0 %v788
        %v1292 = vpop.f32.mrf.mxu0
        %v1293 = vadd.f32 0.0, %v1292
        %v1294 = vpop.f32.mrf.mxu0
        %v1295 = vadd.f32 0.0, %v1294
        %1296 = vmatmul.bf16.gmra.mxu0 %v789
        %v1297 = vpop.f32.mrf.mxu0
        %v1298 = vadd.f32 0.0, %v1297
        %v1299 = vpop.f32.mrf.mxu0
        %v1300 = vadd.f32 0.0, %v1299
        %1301 = vmatmul.bf16.gmra.mxu0 %v790
        %v1302 = vpop.f32.mrf.mxu0
        %v1303 = vadd.f32 0.0, %v1302
        %v1304 = vpop.f32.mrf.mxu0
        %v1305 = vadd.f32 0.0, %v1304
        %1306 = vmatmul.bf16.gmra.mxu0 %v791
        %v1307 = vpop.f32.mrf.mxu0
        %v1308 = vadd.f32 0.0, %v1307
        %v1309 = vpop.f32.mrf.mxu0
        %v1310 = vadd.f32 0.0, %v1309
        %1311 = vmatmul.bf16.gmra.mxu0 %v792
        %v1312 = vpop.f32.mrf.mxu0
        %v1313 = vadd.f32 0.0, %v1312
        %v1314 = vpop.f32.mrf.mxu0
        %v1315 = vadd.f32 0.0, %v1314
        %1316 = vmatmul.bf16.gmra.mxu0 %v793
        %v1317 = vpop.f32.mrf.mxu0
        %v1318 = vadd.f32 0.0, %v1317
        %v1319 = vpop.f32.mrf.mxu0
        %v1320 = vadd.f32 0.0, %v1319
        %1321 = vmatmul.bf16.gmra.mxu0 %v794
        %v1322 = vpop.f32.mrf.mxu0
        %v1323 = vadd.f32 0.0, %v1322
        %v1324 = vpop.f32.mrf.mxu0
        %v1325 = vadd.f32 0.0, %v1324
        %1326 = vdwg.mxu0
        %v1327 = vadd.f32 %v523, %v981
        %v1328 = vadd.f32 %v524, %v1070
        %v1329 = vadd.f32 %v525, %v1159
        %v1330 = vadd.f32 %v526, %v1248
        %v1331 = vadd.f32 %v527, %v983
        %v1332 = vadd.f32 %v528, %v1072
        %v1333 = vadd.f32 %v529, %v1161
        %v1334 = vadd.f32 %v530, %v1250
        %v1335 = vadd.f32 %v531, %v986
        %v1336 = vadd.f32 %v532, %v1075
        %v1337 = vadd.f32 %v533, %v1164
        %v1338 = vadd.f32 %v534, %v1253
        %v1339 = vadd.f32 %v535, %v988
        %v1340 = vadd.f32 %v536, %v1077
        %v1341 = vadd.f32 %v537, %v1166
        %v1342 = vadd.f32 %v538, %v1255
        %v1343 = vadd.f32 %v539, %v991
        %v1344 = vadd.f32 %v540, %v1080
        %v1345 = vadd.f32 %v541, %v1169
        %v1346 = vadd.f32 %v542, %v1258
        %v1347 = vadd.f32 %v543, %v993
        %v1348 = vadd.f32 %v544, %v1082
        %v1349 = vadd.f32 %v545, %v1171
        %v1350 = vadd.f32 %v546, %v1260
        %v1351 = vadd.f32 %v547, %v996
        %v1352 = vadd.f32 %v548, %v1085
        %v1353 = vadd.f32 %v549, %v1174
        %v1354 = vadd.f32 %v550, %v1263
        %v1355 = vadd.f32 %v551, %v998
        %v1356 = vadd.f32 %v552, %v1087
        %v1357 = vadd.f32 %v553, %v1176
        %v1358 = vadd.f32 %v554, %v1265
        %v1359 = vadd.f32 %v555, %v1001
        %v1360 = vadd.f32 %v556, %v1090
        %v1361 = vadd.f32 %v557, %v1179
        %v1362 = vadd.f32 %v558, %v1268
        %v1363 = vadd.f32 %v559, %v1003
        %v1364 = vadd.f32 %v560, %v1092
        %v1365 = vadd.f32 %v561, %v1181
        %v1366 = vadd.f32 %v562, %v1270
        %v1367 = vadd.f32 %v563, %v1006
        %v1368 = vadd.f32 %v564, %v1095
        %v1369 = vadd.f32 %v565, %v1184
        %v1370 = vadd.f32 %v566, %v1273
        %v1371 = vadd.f32 %v567, %v1008
        %v1372 = vadd.f32 %v568, %v1097
        %v1373 = vadd.f32 %v569, %v1186
        %v1374 = vadd.f32 %v570, %v1275
        %v1375 = vadd.f32 %v571, %v1011
        %v1376 = vadd.f32 %v572, %v1100
        %v1377 = vadd.f32 %v573, %v1189
        %v1378 = vadd.f32 %v574, %v1278
        %v1379 = vadd.f32 %v575, %v1013
        %v1380 = vadd.f32 %v576, %v1102
        %v1381 = vadd.f32 %v577, %v1191
        %v1382 = vadd.f32 %v578, %v1280
        %v1383 = vadd.f32 %v579, %v1016
        %v1384 = vadd.f32 %v580, %v1105
        %v1385 = vadd.f32 %v581, %v1194
        %v1386 = vadd.f32 %v582, %v1283
        %v1387 = vadd.f32 %v583, %v1018
        %v1388 = vadd.f32 %v584, %v1107
        %v1389 = vadd.f32 %v585, %v1196
        %v1390 = vadd.f32 %v586, %v1285
        %v1391 = vadd.f32 %v587, %v1021
        %v1392 = vadd.f32 %v588, %v1110
        %v1393 = vadd.f32 %v589, %v1199
        %v1394 = vadd.f32 %v590, %v1288
        %v1395 = vadd.f32 %v591, %v1023
        %v1396 = vadd.f32 %v592, %v1112
        %v1397 = vadd.f32 %v593, %v1201
        %v1398 = vadd.f32 %v594, %v1290
        %v1399 = vadd.f32 %v595, %v1026
        %v1400 = vadd.f32 %v596, %v1115
        %v1401 = vadd.f32 %v597, %v1204
        %v1402 = vadd.f32 %v598, %v1293
        %v1403 = vadd.f32 %v599, %v1028
        %v1404 = vadd.f32 %v600, %v1117
        %v1405 = vadd.f32 %v601, %v1206
        %v1406 = vadd.f32 %v602, %v1295
        %v1407 = vadd.f32 %v603, %v1031
        %v1408 = vadd.f32 %v604, %v1120
        %v1409 = vadd.f32 %v605, %v1209
        %v1410 = vadd.f32 %v606, %v1298
        %v1411 = vadd.f32 %v607, %v1033
        %v1412 = vadd.f32 %v608, %v1122
        %v1413 = vadd.f32 %v609, %v1211
        %v1414 = vadd.f32 %v610, %v1300
        %v1415 = vadd.f32 %v611, %v1036
        %v1416 = vadd.f32 %v612, %v1125
        %v1417 = vadd.f32 %v613, %v1214
        %v1418 = vadd.f32 %v614, %v1303
        %v1419 = vadd.f32 %v615, %v1038
        %v1420 = vadd.f32 %v616, %v1127
        %v1421 = vadd.f32 %v617, %v1216
        %v1422 = vadd.f32 %v618, %v1305
        %v1423 = vadd.f32 %v619, %v1041
        %v1424 = vadd.f32 %v620, %v1130
        %v1425 = vadd.f32 %v621, %v1219
        %v1426 = vadd.f32 %v622, %v1308
        %v1427 = vadd.f32 %v623, %v1043
        %v1428 = vadd.f32 %v624, %v1132
        %v1429 = vadd.f32 %v625, %v1221
        %v1430 = vadd.f32 %v626, %v1310
        %v1431 = vadd.f32 %v627, %v1046
        %v1432 = vadd.f32 %v628, %v1135
        %v1433 = vadd.f32 %v629, %v1224
        %v1434 = vadd.f32 %v630, %v1313
        %v1435 = vadd.f32 %v631, %v1048
        %v1436 = vadd.f32 %v632, %v1137
        %v1437 = vadd.f32 %v633, %v1226
        %v1438 = vadd.f32 %v634, %v1315
        %v1439 = vadd.f32 %v635, %v1051
        %v1440 = vadd.f32 %v636, %v1140
        %v1441 = vadd.f32 %v637, %v1229
        %v1442 = vadd.f32 %v638, %v1318
        %v1443 = vadd.f32 %v639, %v1053
        %v1444 = vadd.f32 %v640, %v1142
        %v1445 = vadd.f32 %v641, %v1231
        %v1446 = vadd.f32 %v642, %v1320
        %v1447 = vadd.f32 %v643, %v1056
        %v1448 = vadd.f32 %v644, %v1145
        %v1449 = vadd.f32 %v645, %v1234
        %v1450 = vadd.f32 %v646, %v1323
        %v1451 = vadd.f32 %v647, %v1058
        %v1452 = vadd.f32 %v648, %v1147
        %v1453 = vadd.f32 %v649, %v1236
        %v1454 = vadd.f32 %v650, %v1325
        %1455 = vst [vmem:[%s388] sm:$0xff] %v1327
        %1456 = vst [vmem:[%s388 + $0x8] sm:$0xff] %v1328
        %1457 = vst [vmem:[%s388 + $0x10] sm:$0xff] %v1329
        %1458 = vst [vmem:[%s388 + $0x18] sm:$0xff] %v1330
        %1459 = vst [vmem:[%s388 + $0x20] sm:$0xff] %v1331
        %1460 = vst [vmem:[%s388 + $0x28] sm:$0xff] %v1332
        %1461 = vst [vmem:[%s388 + $0x30] sm:$0xff] %v1333
        %1462 = vst [vmem:[%s388 + $0x38] sm:$0xff] %v1334
        %1463 = vst [vmem:[%s388 + $0x40] sm:$0xff] %v1335
        %1464 = vst [vmem:[%s388 + $0x48] sm:$0xff] %v1336
        %1465 = vst [vmem:[%s388 + $0x50] sm:$0xff] %v1337
        %1466 = vst [vmem:[%s388 + $0x58] sm:$0xff] %v1338
        %1467 = vst [vmem:[%s388 + $0x60] sm:$0xff] %v1339
        %1468 = vst [vmem:[%s388 + $0x68] sm:$0xff] %v1340
        %1469 = vst [vmem:[%s388 + $0x70] sm:$0xff] %v1341
        %1470 = vst [vmem:[%s388 + $0x78] sm:$0xff] %v1342
        %1471 = vst [vmem:[%s388 + $0x80] sm:$0xff] %v1343
        %1472 = vst [vmem:[%s388 + $0x88] sm:$0xff] %v1344
        %1473 = vst [vmem:[%s388 + $0x90] sm:$0xff] %v1345
        %1474 = vst [vmem:[%s388 + $0x98] sm:$0xff] %v1346
        %1475 = vst [vmem:[%s388 + $0xa0] sm:$0xff] %v1347
        %1476 = vst [vmem:[%s388 + $0xa8] sm:$0xff] %v1348
        %1477 = vst [vmem:[%s388 + $0xb0] sm:$0xff] %v1349
        %1478 = vst [vmem:[%s388 + $0xb8] sm:$0xff] %v1350
        %1479 = vst [vmem:[%s388 + $0xc0] sm:$0xff] %v1351
        %1480 = vst [vmem:[%s388 + $0xc8] sm:$0xff] %v1352
        %1481 = vst [vmem:[%s388 + $0xd0] sm:$0xff] %v1353
        %1482 = vst [vmem:[%s388 + $0xd8] sm:$0xff] %v1354
        %1483 = vst [vmem:[%s388 + $0xe0] sm:$0xff] %v1355
        %1484 = vst [vmem:[%s388 + $0xe8] sm:$0xff] %v1356
        %1485 = vst [vmem:[%s388 + $0xf0] sm:$0xff] %v1357
        %1486 = vst [vmem:[%s388 + $0xf8] sm:$0xff] %v1358
        %1487 = vst [vmem:[%s388 + $0x100] sm:$0xff] %v1359
        %1488 = vst [vmem:[%s388 + $0x108] sm:$0xff] %v1360
        %1489 = vst [vmem:[%s388 + $0x110] sm:$0xff] %v1361
        %1490 = vst [vmem:[%s388 + $0x118] sm:$0xff] %v1362
        %1491 = vst [vmem:[%s388 + $0x120] sm:$0xff] %v1363
        %1492 = vst [vmem:[%s388 + $0x128] sm:$0xff] %v1364
        %1493 = vst [vmem:[%s388 + $0x130] sm:$0xff] %v1365
        %1494 = vst [vmem:[%s388 + $0x138] sm:$0xff] %v1366
        %1495 = vst [vmem:[%s388 + $0x140] sm:$0xff] %v1367
        %1496 = vst [vmem:[%s388 + $0x148] sm:$0xff] %v1368
        %1497 = vst [vmem:[%s388 + $0x150] sm:$0xff] %v1369
        %1498 = vst [vmem:[%s388 + $0x158] sm:$0xff] %v1370
        %1499 = vst [vmem:[%s388 + $0x160] sm:$0xff] %v1371
        %1500 = vst [vmem:[%s388 + $0x168] sm:$0xff] %v1372
        %1501 = vst [vmem:[%s388 + $0x170] sm:$0xff] %v1373
        %1502 = vst [vmem:[%s388 + $0x178] sm:$0xff] %v1374
        %1503 = vst [vmem:[%s388 + $0x180] sm:$0xff] %v1375
        %1504 = vst [vmem:[%s388 + $0x188] sm:$0xff] %v1376
        %1505 = vst [vmem:[%s388 + $0x190] sm:$0xff] %v1377
        %1506 = vst [vmem:[%s388 + $0x198] sm:$0xff] %v1378
        %1507 = vst [vmem:[%s388 + $0x1a0] sm:$0xff] %v1379
        %1508 = vst [vmem:[%s388 + $0x1a8] sm:$0xff] %v1380
        %1509 = vst [vmem:[%s388 + $0x1b0] sm:$0xff] %v1381
        %1510 = vst [vmem:[%s388 + $0x1b8] sm:$0xff] %v1382
        %1511 = vst [vmem:[%s388 + $0x1c0] sm:$0xff] %v1383
        %1512 = vst [vmem:[%s388 + $0x1c8] sm:$0xff] %v1384
        %1513 = vst [vmem:[%s388 + $0x1d0] sm:$0xff] %v1385
        %1514 = vst [vmem:[%s388 + $0x1d8] sm:$0xff] %v1386
        %1515 = vst [vmem:[%s388 + $0x1e0] sm:$0xff] %v1387
        %1516 = vst [vmem:[%s388 + $0x1e8] sm:$0xff] %v1388
        %1517 = vst [vmem:[%s388 + $0x1f0] sm:$0xff] %v1389
        %1518 = vst [vmem:[%s388 + $0x1f8] sm:$0xff] %v1390
        %1519 = vst [vmem:[%s388 + $0x200] sm:$0xff] %v1391
        %1520 = vst [vmem:[%s388 + $0x208] sm:$0xff] %v1392
        %1521 = vst [vmem:[%s388 + $0x210] sm:$0xff] %v1393
        %1522 = vst [vmem:[%s388 + $0x218] sm:$0xff] %v1394
        %1523 = vst [vmem:[%s388 + $0x220] sm:$0xff] %v1395
        %1524 = vst [vmem:[%s388 + $0x228] sm:$0xff] %v1396
        %1525 = vst [vmem:[%s388 + $0x230] sm:$0xff] %v1397
        %1526 = vst [vmem:[%s388 + $0x238] sm:$0xff] %v1398
        %1527 = vst [vmem:[%s388 + $0x240] sm:$0xff] %v1399
        %1528 = vst [vmem:[%s388 + $0x248] sm:$0xff] %v1400
        %1529 = vst [vmem:[%s388 + $0x250] sm:$0xff] %v1401
        %1530 = vst [vmem:[%s388 + $0x258] sm:$0xff] %v1402
        %1531 = vst [vmem:[%s388 + $0x260] sm:$0xff] %v1403
        %1532 = vst [vmem:[%s388 + $0x268] sm:$0xff] %v1404
        %1533 = vst [vmem:[%s388 + $0x270] sm:$0xff] %v1405
        %1534 = vst [vmem:[%s388 + $0x278] sm:$0xff] %v1406
        %1535 = vst [vmem:[%s388 + $0x280] sm:$0xff] %v1407
        %1536 = vst [vmem:[%s388 + $0x288] sm:$0xff] %v1408
        %1537 = vst [vmem:[%s388 + $0x290] sm:$0xff] %v1409
        %1538 = vst [vmem:[%s388 + $0x298] sm:$0xff] %v1410
        %1539 = vst [vmem:[%s388 + $0x2a0] sm:$0xff] %v1411
        %1540 = vst [vmem:[%s388 + $0x2a8] sm:$0xff] %v1412
        %1541 = vst [vmem:[%s388 + $0x2b0] sm:$0xff] %v1413
        %1542 = vst [vmem:[%s388 + $0x2b8] sm:$0xff] %v1414
        %1543 = vst [vmem:[%s388 + $0x2c0] sm:$0xff] %v1415
        %1544 = vst [vmem:[%s388 + $0x2c8] sm:$0xff] %v1416
        %1545 = vst [vmem:[%s388 + $0x2d0] sm:$0xff] %v1417
        %1546 = vst [vmem:[%s388 + $0x2d8] sm:$0xff] %v1418
        %1547 = vst [vmem:[%s388 + $0x2e0] sm:$0xff] %v1419
        %1548 = vst [vmem:[%s388 + $0x2e8] sm:$0xff] %v1420
        %1549 = vst [vmem:[%s388 + $0x2f0] sm:$0xff] %v1421
        %1550 = vst [vmem:[%s388 + $0x2f8] sm:$0xff] %v1422
        %1551 = vst [vmem:[%s388 + $0x300] sm:$0xff] %v1423
        %1552 = vst [vmem:[%s388 + $0x308] sm:$0xff] %v1424
        %1553 = vst [vmem:[%s388 + $0x310] sm:$0xff] %v1425
        %1554 = vst [vmem:[%s388 + $0x318] sm:$0xff] %v1426
        %1555 = vst [vmem:[%s388 + $0x320] sm:$0xff] %v1427
        %1556 = vst [vmem:[%s388 + $0x328] sm:$0xff] %v1428
        %1557 = vst [vmem:[%s388 + $0x330] sm:$0xff] %v1429
        %1558 = vst [vmem:[%s388 + $0x338] sm:$0xff] %v1430
        %1559 = vst [vmem:[%s388 + $0x340] sm:$0xff] %v1431
        %1560 = vst [vmem:[%s388 + $0x348] sm:$0xff] %v1432
        %1561 = vst [vmem:[%s388 + $0x350] sm:$0xff] %v1433
        %1562 = vst [vmem:[%s388 + $0x358] sm:$0xff] %v1434
        %1563 = vst [vmem:[%s388 + $0x360] sm:$0xff] %v1435
        %1564 = vst [vmem:[%s388 + $0x368] sm:$0xff] %v1436
        %1565 = vst [vmem:[%s388 + $0x370] sm:$0xff] %v1437
        %1566 = vst [vmem:[%s388 + $0x378] sm:$0xff] %v1438
        %1567 = vst [vmem:[%s388 + $0x380] sm:$0xff] %v1439
        %1568 = vst [vmem:[%s388 + $0x388] sm:$0xff] %v1440
        %1569 = vst [vmem:[%s388 + $0x390] sm:$0xff] %v1441
        %1570 = vst [vmem:[%s388 + $0x398] sm:$0xff] %v1442
        %1571 = vst [vmem:[%s388 + $0x3a0] sm:$0xff] %v1443
        %1572 = vst [vmem:[%s388 + $0x3a8] sm:$0xff] %v1444
        %1573 = vst [vmem:[%s388 + $0x3b0] sm:$0xff] %v1445
        %1574 = vst [vmem:[%s388 + $0x3b8] sm:$0xff] %v1446
        %1575 = vst [vmem:[%s388 + $0x3c0] sm:$0xff] %v1447
        %1576 = vst [vmem:[%s388 + $0x3c8] sm:$0xff] %v1448
        %1577 = vst [vmem:[%s388 + $0x3d0] sm:$0xff] %v1449
        %1578 = vst [vmem:[%s388 + $0x3d8] sm:$0xff] %v1450
        %1579 = vst [vmem:[%s388 + $0x3e0] sm:$0xff] %v1451
        %1580 = vst [vmem:[%s388 + $0x3e8] sm:$0xff] %v1452
        %1581 = vst [vmem:[%s388 + $0x3f0] sm:$0xff] %v1453
        %1582 = vst [vmem:[%s388 + $0x3f8] sm:$0xff] %v1454
        %p1583 = scmp.eq.s32.totalorder %s20, 8
        // Predicated region
        $region74: #{generator_forward.17} parent=64 // pred_check
          %p1584 = pneg %p1583
        $region75: #{generator_forward.17} parent=64 // pred_check_branch
          %1586 = sbr.rel (%p1584) target = $region77
        $region76: #{generator_forward.17} parent=64 // pred_region
          %v1587 = vld [vmem:[%s388] sm:$0xff]
          %v1588 = vld [vmem:[%s388 + $0x8] sm:$0xff]
          %v1589 = vld [vmem:[%s388 + $0x10] sm:$0xff]
          %v1590 = vld [vmem:[%s388 + $0x18] sm:$0xff]
          %v1591 = vld [vmem:[%s388 + $0x20] sm:$0xff]
          %v1592 = vld [vmem:[%s388 + $0x28] sm:$0xff]
          %v1593 = vld [vmem:[%s388 + $0x30] sm:$0xff]
          %v1594 = vld [vmem:[%s388 + $0x38] sm:$0xff]
          %v1595 = vld [vmem:[%s388 + $0x40] sm:$0xff]
          %v1596 = vld [vmem:[%s388 + $0x48] sm:$0xff]
          %v1597 = vld [vmem:[%s388 + $0x50] sm:$0xff]
          %v1598 = vld [vmem:[%s388 + $0x58] sm:$0xff]
          %v1599 = vld [vmem:[%s388 + $0x60] sm:$0xff]
          %v1600 = vld [vmem:[%s388 + $0x68] sm:$0xff]
          %v1601 = vld [vmem:[%s388 + $0x70] sm:$0xff]
          %v1602 = vld [vmem:[%s388 + $0x78] sm:$0xff]
          %v1603 = vld [vmem:[%s388 + $0x80] sm:$0xff]
          %v1604 = vld [vmem:[%s388 + $0x88] sm:$0xff]
          %v1605 = vld [vmem:[%s388 + $0x90] sm:$0xff]
          %v1606 = vld [vmem:[%s388 + $0x98] sm:$0xff]
          %v1607 = vld [vmem:[%s388 + $0xa0] sm:$0xff]
          %v1608 = vld [vmem:[%s388 + $0xa8] sm:$0xff]
          %v1609 = vld [vmem:[%s388 + $0xb0] sm:$0xff]
          %v1610 = vld [vmem:[%s388 + $0xb8] sm:$0xff]
          %v1611 = vld [vmem:[%s388 + $0xc0] sm:$0xff]
          %v1612 = vld [vmem:[%s388 + $0xc8] sm:$0xff]
          %v1613 = vld [vmem:[%s388 + $0xd0] sm:$0xff]
          %v1614 = vld [vmem:[%s388 + $0xd8] sm:$0xff]
          %v1615 = vld [vmem:[%s388 + $0xe0] sm:$0xff]
          %v1616 = vld [vmem:[%s388 + $0xe8] sm:$0xff]
          %v1617 = vld [vmem:[%s388 + $0xf0] sm:$0xff]
          %v1618 = vld [vmem:[%s388 + $0xf8] sm:$0xff]
          %v1619 = vld [vmem:[%s388 + $0x100] sm:$0xff]
          %v1620 = vld [vmem:[%s388 + $0x108] sm:$0xff]
          %v1621 = vld [vmem:[%s388 + $0x110] sm:$0xff]
          %v1622 = vld [vmem:[%s388 + $0x118] sm:$0xff]
          %v1623 = vld [vmem:[%s388 + $0x120] sm:$0xff]
          %v1624 = vld [vmem:[%s388 + $0x128] sm:$0xff]
          %v1625 = vld [vmem:[%s388 + $0x130] sm:$0xff]
          %v1626 = vld [vmem:[%s388 + $0x138] sm:$0xff]
          %v1627 = vld [vmem:[%s388 + $0x140] sm:$0xff]
          %v1628 = vld [vmem:[%s388 + $0x148] sm:$0xff]
          %v1629 = vld [vmem:[%s388 + $0x150] sm:$0xff]
          %v1630 = vld [vmem:[%s388 + $0x158] sm:$0xff]
          %v1631 = vld [vmem:[%s388 + $0x160] sm:$0xff]
          %v1632 = vld [vmem:[%s388 + $0x168] sm:$0xff]
          %v1633 = vld [vmem:[%s388 + $0x170] sm:$0xff]
          %v1634 = vld [vmem:[%s388 + $0x178] sm:$0xff]
          %v1635 = vld [vmem:[%s388 + $0x180] sm:$0xff]
          %v1636 = vld [vmem:[%s388 + $0x188] sm:$0xff]
          %v1637 = vld [vmem:[%s388 + $0x190] sm:$0xff]
          %v1638 = vld [vmem:[%s388 + $0x198] sm:$0xff]
          %v1639 = vld [vmem:[%s388 + $0x1a0] sm:$0xff]
          %v1640 = vld [vmem:[%s388 + $0x1a8] sm:$0xff]
          %v1641 = vld [vmem:[%s388 + $0x1b0] sm:$0xff]
          %v1642 = vld [vmem:[%s388 + $0x1b8] sm:$0xff]
          %v1643 = vld [vmem:[%s388 + $0x1c0] sm:$0xff]
          %v1644 = vld [vmem:[%s388 + $0x1c8] sm:$0xff]
          %v1645 = vld [vmem:[%s388 + $0x1d0] sm:$0xff]
          %v1646 = vld [vmem:[%s388 + $0x1d8] sm:$0xff]
          %v1647 = vld [vmem:[%s388 + $0x1e0] sm:$0xff]
          %v1648 = vld [vmem:[%s388 + $0x1e8] sm:$0xff]
          %v1649 = vld [vmem:[%s388 + $0x1f0] sm:$0xff]
          %v1650 = vld [vmem:[%s388 + $0x1f8] sm:$0xff]
          %v1651 = vld [vmem:[%s388 + $0x200] sm:$0xff]
          %v1652 = vld [vmem:[%s388 + $0x208] sm:$0xff]
          %v1653 = vld [vmem:[%s388 + $0x210] sm:$0xff]
          %v1654 = vld [vmem:[%s388 + $0x218] sm:$0xff]
          %v1655 = vld [vmem:[%s388 + $0x220] sm:$0xff]
          %v1656 = vld [vmem:[%s388 + $0x228] sm:$0xff]
          %v1657 = vld [vmem:[%s388 + $0x230] sm:$0xff]
          %v1658 = vld [vmem:[%s388 + $0x238] sm:$0xff]
          %v1659 = vld [vmem:[%s388 + $0x240] sm:$0xff]
          %v1660 = vld [vmem:[%s388 + $0x248] sm:$0xff]
          %v1661 = vld [vmem:[%s388 + $0x250] sm:$0xff]
          %v1662 = vld [vmem:[%s388 + $0x258] sm:$0xff]
          %v1663 = vld [vmem:[%s388 + $0x260] sm:$0xff]
          %v1664 = vld [vmem:[%s388 + $0x268] sm:$0xff]
          %v1665 = vld [vmem:[%s388 + $0x270] sm:$0xff]
          %v1666 = vld [vmem:[%s388 + $0x278] sm:$0xff]
          %v1667 = vld [vmem:[%s388 + $0x280] sm:$0xff]
          %v1668 = vld [vmem:[%s388 + $0x288] sm:$0xff]
          %v1669 = vld [vmem:[%s388 + $0x290] sm:$0xff]
          %v1670 = vld [vmem:[%s388 + $0x298] sm:$0xff]
          %v1671 = vld [vmem:[%s388 + $0x2a0] sm:$0xff]
          %v1672 = vld [vmem:[%s388 + $0x2a8] sm:$0xff]
          %v1673 = vld [vmem:[%s388 + $0x2b0] sm:$0xff]
          %v1674 = vld [vmem:[%s388 + $0x2b8] sm:$0xff]
          %v1675 = vld [vmem:[%s388 + $0x2c0] sm:$0xff]
          %v1676 = vld [vmem:[%s388 + $0x2c8] sm:$0xff]
          %v1677 = vld [vmem:[%s388 + $0x2d0] sm:$0xff]
          %v1678 = vld [vmem:[%s388 + $0x2d8] sm:$0xff]
          %v1679 = vld [vmem:[%s388 + $0x2e0] sm:$0xff]
          %v1680 = vld [vmem:[%s388 + $0x2e8] sm:$0xff]
          %v1681 = vld [vmem:[%s388 + $0x2f0] sm:$0xff]
          %v1682 = vld [vmem:[%s388 + $0x2f8] sm:$0xff]
          %v1683 = vld [vmem:[%s388 + $0x300] sm:$0xff]
          %v1684 = vld [vmem:[%s388 + $0x308] sm:$0xff]
          %v1685 = vld [vmem:[%s388 + $0x310] sm:$0xff]
          %v1686 = vld [vmem:[%s388 + $0x318] sm:$0xff]
          %v1687 = vld [vmem:[%s388 + $0x320] sm:$0xff]
          %v1688 = vld [vmem:[%s388 + $0x328] sm:$0xff]
          %v1689 = vld [vmem:[%s388 + $0x330] sm:$0xff]
          %v1690 = vld [vmem:[%s388 + $0x338] sm:$0xff]
          %v1691 = vld [vmem:[%s388 + $0x340] sm:$0xff]
          %v1692 = vld [vmem:[%s388 + $0x348] sm:$0xff]
          %v1693 = vld [vmem:[%s388 + $0x350] sm:$0xff]
          %v1694 = vld [vmem:[%s388 + $0x358] sm:$0xff]
          %v1695 = vld [vmem:[%s388 + $0x360] sm:$0xff]
          %v1696 = vld [vmem:[%s388 + $0x368] sm:$0xff]
          %v1697 = vld [vmem:[%s388 + $0x370] sm:$0xff]
          %v1698 = vld [vmem:[%s388 + $0x378] sm:$0xff]
          %v1699 = vld [vmem:[%s388 + $0x380] sm:$0xff]
          %v1700 = vld [vmem:[%s388 + $0x388] sm:$0xff]
          %v1701 = vld [vmem:[%s388 + $0x390] sm:$0xff]
          %v1702 = vld [vmem:[%s388 + $0x398] sm:$0xff]
          %v1703 = vld [vmem:[%s388 + $0x3a0] sm:$0xff]
          %v1704 = vld [vmem:[%s388 + $0x3a8] sm:$0xff]
          %v1705 = vld [vmem:[%s388 + $0x3b0] sm:$0xff]
          %v1706 = vld [vmem:[%s388 + $0x3b8] sm:$0xff]
          %v1707 = vld [vmem:[%s388 + $0x3c0] sm:$0xff]
          %v1708 = vld [vmem:[%s388 + $0x3c8] sm:$0xff]
          %v1709 = vld [vmem:[%s388 + $0x3d0] sm:$0xff]
          %v1710 = vld [vmem:[%s388 + $0x3d8] sm:$0xff]
          %v1711 = vld [vmem:[%s388 + $0x3e0] sm:$0xff]
          %v1712 = vld [vmem:[%s388 + $0x3e8] sm:$0xff]
          %v1713 = vld [vmem:[%s388 + $0x3f0] sm:$0xff]
          %v1714 = vld [vmem:[%s388 + $0x3f8] sm:$0xff]
          %v1715 = vtanh.pop %v1587
          %v1716 = vtanh.pop %v1588
          %v1717 = vtanh.pop %v1589
          %v1718 = vtanh.pop %v1590
          %v1719 = vtanh.pop %v1591
          %v1720 = vtanh.pop %v1592
          %v1721 = vtanh.pop %v1593
          %v1722 = vtanh.pop %v1594
          %v1723 = vtanh.pop %v1595
          %v1724 = vtanh.pop %v1596
          %v1725 = vtanh.pop %v1597
          %v1726 = vtanh.pop %v1598
          %v1727 = vtanh.pop %v1599
          %v1728 = vtanh.pop %v1600
          %v1729 = vtanh.pop %v1601
          %v1730 = vtanh.pop %v1602
          %v1731 = vtanh.pop %v1603
          %v1732 = vtanh.pop %v1604
          %v1733 = vtanh.pop %v1605
          %v1734 = vtanh.pop %v1606
          %v1735 = vtanh.pop %v1607
          %v1736 = vtanh.pop %v1608
          %v1737 = vtanh.pop %v1609
          %v1738 = vtanh.pop %v1610
          %v1739 = vtanh.pop %v1611
          %v1740 = vtanh.pop %v1612
          %v1741 = vtanh.pop %v1613
          %v1742 = vtanh.pop %v1614
          %v1743 = vtanh.pop %v1615
          %v1744 = vtanh.pop %v1616
          %v1745 = vtanh.pop %v1617
          %v1746 = vtanh.pop %v1618
          %v1747 = vtanh.pop %v1619
          %v1748 = vtanh.pop %v1620
          %v1749 = vtanh.pop %v1621
          %v1750 = vtanh.pop %v1622
          %v1751 = vtanh.pop %v1623
          %v1752 = vtanh.pop %v1624
          %v1753 = vtanh.pop %v1625
          %v1754 = vtanh.pop %v1626
          %v1755 = vtanh.pop %v1627
          %v1756 = vtanh.pop %v1628
          %v1757 = vtanh.pop %v1629
          %v1758 = vtanh.pop %v1630
          %v1759 = vtanh.pop %v1631
          %v1760 = vtanh.pop %v1632
          %v1761 = vtanh.pop %v1633
          %v1762 = vtanh.pop %v1634
          %v1763 = vtanh.pop %v1635
          %v1764 = vtanh.pop %v1636
          %v1765 = vtanh.pop %v1637
          %v1766 = vtanh.pop %v1638
          %v1767 = vtanh.pop %v1639
          %v1768 = vtanh.pop %v1640
          %v1769 = vtanh.pop %v1641
          %v1770 = vtanh.pop %v1642
          %v1771 = vtanh.pop %v1643
          %v1772 = vtanh.pop %v1644
          %v1773 = vtanh.pop %v1645
          %v1774 = vtanh.pop %v1646
          %v1775 = vtanh.pop %v1647
          %v1776 = vtanh.pop %v1648
          %v1777 = vtanh.pop %v1649
          %v1778 = vtanh.pop %v1650
          %v1779 = vtanh.pop %v1651
          %v1780 = vtanh.pop %v1652
          %v1781 = vtanh.pop %v1653
          %v1782 = vtanh.pop %v1654
          %v1783 = vtanh.pop %v1655
          %v1784 = vtanh.pop %v1656
          %v1785 = vtanh.pop %v1657
          %v1786 = vtanh.pop %v1658
          %v1787 = vtanh.pop %v1659
          %v1788 = vtanh.pop %v1660
          %v1789 = vtanh.pop %v1661
          %v1790 = vtanh.pop %v1662
          %v1791 = vtanh.pop %v1663
          %v1792 = vtanh.pop %v1664
          %v1793 = vtanh.pop %v1665
          %v1794 = vtanh.pop %v1666
          %v1795 = vtanh.pop %v1667
          %v1796 = vtanh.pop %v1668
          %v1797 = vtanh.pop %v1669
          %v1798 = vtanh.pop %v1670
          %v1799 = vtanh.pop %v1671
          %v1800 = vtanh.pop %v1672
          %v1801 = vtanh.pop %v1673
          %v1802 = vtanh.pop %v1674
          %v1803 = vtanh.pop %v1675
          %v1804 = vtanh.pop %v1676
          %v1805 = vtanh.pop %v1677
          %v1806 = vtanh.pop %v1678
          %v1807 = vtanh.pop %v1679
          %v1808 = vtanh.pop %v1680
          %v1809 = vtanh.pop %v1681
          %v1810 = vtanh.pop %v1682
          %v1811 = vtanh.pop %v1683
          %v1812 = vtanh.pop %v1684
          %v1813 = vtanh.pop %v1685
          %v1814 = vtanh.pop %v1686
          %v1815 = vtanh.pop %v1687
          %v1816 = vtanh.pop %v1688
          %v1817 = vtanh.pop %v1689
          %v1818 = vtanh.pop %v1690
          %v1819 = vtanh.pop %v1691
          %v1820 = vtanh.pop %v1692
          %v1821 = vtanh.pop %v1693
          %v1822 = vtanh.pop %v1694
          %v1823 = vtanh.pop %v1695
          %v1824 = vtanh.pop %v1696
          %v1825 = vtanh.pop %v1697
          %v1826 = vtanh.pop %v1698
          %v1827 = vtanh.pop %v1699
          %v1828 = vtanh.pop %v1700
          %v1829 = vtanh.pop %v1701
          %v1830 = vtanh.pop %v1702
          %v1831 = vtanh.pop %v1703
          %v1832 = vtanh.pop %v1704
          %v1833 = vtanh.pop %v1705
          %v1834 = vtanh.pop %v1706
          %v1835 = vtanh.pop %v1707
          %v1836 = vtanh.pop %v1708
          %v1837 = vtanh.pop %v1709
          %v1838 = vtanh.pop %v1710
          %v1839 = vtanh.pop %v1711
          %v1840 = vtanh.pop %v1712
          %v1841 = vtanh.pop %v1713
          %v1842 = vtanh.pop %v1714
          %1843 = vst [vmem:[%s388] sm:$0xff] %v1715
          %1844 = vst [vmem:[%s388 + $0x8] sm:$0xff] %v1716
          %1845 = vst [vmem:[%s388 + $0x10] sm:$0xff] %v1717
          %1846 = vst [vmem:[%s388 + $0x18] sm:$0xff] %v1718
          %1847 = vst [vmem:[%s388 + $0x20] sm:$0xff] %v1719
          %1848 = vst [vmem:[%s388 + $0x28] sm:$0xff] %v1720
          %1849 = vst [vmem:[%s388 + $0x30] sm:$0xff] %v1721
          %1850 = vst [vmem:[%s388 + $0x38] sm:$0xff] %v1722
          %1851 = vst [vmem:[%s388 + $0x40] sm:$0xff] %v1723
          %1852 = vst [vmem:[%s388 + $0x48] sm:$0xff] %v1724
          %1853 = vst [vmem:[%s388 + $0x50] sm:$0xff] %v1725
          %1854 = vst [vmem:[%s388 + $0x58] sm:$0xff] %v1726
          %1855 = vst [vmem:[%s388 + $0x60] sm:$0xff] %v1727
          %1856 = vst [vmem:[%s388 + $0x68] sm:$0xff] %v1728
          %1857 = vst [vmem:[%s388 + $0x70] sm:$0xff] %v1729
          %1858 = vst [vmem:[%s388 + $0x78] sm:$0xff] %v1730
          %1859 = vst [vmem:[%s388 + $0x80] sm:$0xff] %v1731
          %1860 = vst [vmem:[%s388 + $0x88] sm:$0xff] %v1732
          %1861 = vst [vmem:[%s388 + $0x90] sm:$0xff] %v1733
          %1862 = vst [vmem:[%s388 + $0x98] sm:$0xff] %v1734
          %1863 = vst [vmem:[%s388 + $0xa0] sm:$0xff] %v1735
          %1864 = vst [vmem:[%s388 + $0xa8] sm:$0xff] %v1736
          %1865 = vst [vmem:[%s388 + $0xb0] sm:$0xff] %v1737
          %1866 = vst [vmem:[%s388 + $0xb8] sm:$0xff] %v1738
          %1867 = vst [vmem:[%s388 + $0xc0] sm:$0xff] %v1739
          %1868 = vst [vmem:[%s388 + $0xc8] sm:$0xff] %v1740
          %1869 = vst [vmem:[%s388 + $0xd0] sm:$0xff] %v1741
          %1870 = vst [vmem:[%s388 + $0xd8] sm:$0xff] %v1742
          %1871 = vst [vmem:[%s388 + $0xe0] sm:$0xff] %v1743
          %1872 = vst [vmem:[%s388 + $0xe8] sm:$0xff] %v1744
          %1873 = vst [vmem:[%s388 + $0xf0] sm:$0xff] %v1745
          %1874 = vst [vmem:[%s388 + $0xf8] sm:$0xff] %v1746
          %1875 = vst [vmem:[%s388 + $0x100] sm:$0xff] %v1747
          %1876 = vst [vmem:[%s388 + $0x108] sm:$0xff] %v1748
          %1877 = vst [vmem:[%s388 + $0x110] sm:$0xff] %v1749
          %1878 = vst [vmem:[%s388 + $0x118] sm:$0xff] %v1750
          %1879 = vst [vmem:[%s388 + $0x120] sm:$0xff] %v1751
          %1880 = vst [vmem:[%s388 + $0x128] sm:$0xff] %v1752
          %1881 = vst [vmem:[%s388 + $0x130] sm:$0xff] %v1753
          %1882 = vst [vmem:[%s388 + $0x138] sm:$0xff] %v1754
          %1883 = vst [vmem:[%s388 + $0x140] sm:$0xff] %v1755
          %1884 = vst [vmem:[%s388 + $0x148] sm:$0xff] %v1756
          %1885 = vst [vmem:[%s388 + $0x150] sm:$0xff] %v1757
          %1886 = vst [vmem:[%s388 + $0x158] sm:$0xff] %v1758
          %1887 = vst [vmem:[%s388 + $0x160] sm:$0xff] %v1759
          %1888 = vst [vmem:[%s388 + $0x168] sm:$0xff] %v1760
          %1889 = vst [vmem:[%s388 + $0x170] sm:$0xff] %v1761
          %1890 = vst [vmem:[%s388 + $0x178] sm:$0xff] %v1762
          %1891 = vst [vmem:[%s388 + $0x180] sm:$0xff] %v1763
          %1892 = vst [vmem:[%s388 + $0x188] sm:$0xff] %v1764
          %1893 = vst [vmem:[%s388 + $0x190] sm:$0xff] %v1765
          %1894 = vst [vmem:[%s388 + $0x198] sm:$0xff] %v1766
          %1895 = vst [vmem:[%s388 + $0x1a0] sm:$0xff] %v1767
          %1896 = vst [vmem:[%s388 + $0x1a8] sm:$0xff] %v1768
          %1897 = vst [vmem:[%s388 + $0x1b0] sm:$0xff] %v1769
          %1898 = vst [vmem:[%s388 + $0x1b8] sm:$0xff] %v1770
          %1899 = vst [vmem:[%s388 + $0x1c0] sm:$0xff] %v1771
          %1900 = vst [vmem:[%s388 + $0x1c8] sm:$0xff] %v1772
          %1901 = vst [vmem:[%s388 + $0x1d0] sm:$0xff] %v1773
          %1902 = vst [vmem:[%s388 + $0x1d8] sm:$0xff] %v1774
          %1903 = vst [vmem:[%s388 + $0x1e0] sm:$0xff] %v1775
          %1904 = vst [vmem:[%s388 + $0x1e8] sm:$0xff] %v1776
          %1905 = vst [vmem:[%s388 + $0x1f0] sm:$0xff] %v1777
          %1906 = vst [vmem:[%s388 + $0x1f8] sm:$0xff] %v1778
          %1907 = vst [vmem:[%s388 + $0x200] sm:$0xff] %v1779
          %1908 = vst [vmem:[%s388 + $0x208] sm:$0xff] %v1780
          %1909 = vst [vmem:[%s388 + $0x210] sm:$0xff] %v1781
          %1910 = vst [vmem:[%s388 + $0x218] sm:$0xff] %v1782
          %1911 = vst [vmem:[%s388 + $0x220] sm:$0xff] %v1783
          %1912 = vst [vmem:[%s388 + $0x228] sm:$0xff] %v1784
          %1913 = vst [vmem:[%s388 + $0x230] sm:$0xff] %v1785
          %1914 = vst [vmem:[%s388 + $0x238] sm:$0xff] %v1786
          %1915 = vst [vmem:[%s388 + $0x240] sm:$0xff] %v1787
          %1916 = vst [vmem:[%s388 + $0x248] sm:$0xff] %v1788
          %1917 = vst [vmem:[%s388 + $0x250] sm:$0xff] %v1789
          %1918 = vst [vmem:[%s388 + $0x258] sm:$0xff] %v1790
          %1919 = vst [vmem:[%s388 + $0x260] sm:$0xff] %v1791
          %1920 = vst [vmem:[%s388 + $0x268] sm:$0xff] %v1792
          %1921 = vst [vmem:[%s388 + $0x270] sm:$0xff] %v1793
          %1922 = vst [vmem:[%s388 + $0x278] sm:$0xff] %v1794
          %1923 = vst [vmem:[%s388 + $0x280] sm:$0xff] %v1795
          %1924 = vst [vmem:[%s388 + $0x288] sm:$0xff] %v1796
          %1925 = vst [vmem:[%s388 + $0x290] sm:$0xff] %v1797
          %1926 = vst [vmem:[%s388 + $0x298] sm:$0xff] %v1798
          %1927 = vst [vmem:[%s388 + $0x2a0] sm:$0xff] %v1799
          %1928 = vst [vmem:[%s388 + $0x2a8] sm:$0xff] %v1800
          %1929 = vst [vmem:[%s388 + $0x2b0] sm:$0xff] %v1801
          %1930 = vst [vmem:[%s388 + $0x2b8] sm:$0xff] %v1802
          %1931 = vst [vmem:[%s388 + $0x2c0] sm:$0xff] %v1803
          %1932 = vst [vmem:[%s388 + $0x2c8] sm:$0xff] %v1804
          %1933 = vst [vmem:[%s388 + $0x2d0] sm:$0xff] %v1805
          %1934 = vst [vmem:[%s388 + $0x2d8] sm:$0xff] %v1806
          %1935 = vst [vmem:[%s388 + $0x2e0] sm:$0xff] %v1807
          %1936 = vst [vmem:[%s388 + $0x2e8] sm:$0xff] %v1808
          %1937 = vst [vmem:[%s388 + $0x2f0] sm:$0xff] %v1809
          %1938 = vst [vmem:[%s388 + $0x2f8] sm:$0xff] %v1810
          %1939 = vst [vmem:[%s388 + $0x300] sm:$0xff] %v1811
          %1940 = vst [vmem:[%s388 + $0x308] sm:$0xff] %v1812
          %1941 = vst [vmem:[%s388 + $0x310] sm:$0xff] %v1813
          %1942 = vst [vmem:[%s388 + $0x318] sm:$0xff] %v1814
          %1943 = vst [vmem:[%s388 + $0x320] sm:$0xff] %v1815
          %1944 = vst [vmem:[%s388 + $0x328] sm:$0xff] %v1816
          %1945 = vst [vmem:[%s388 + $0x330] sm:$0xff] %v1817
          %1946 = vst [vmem:[%s388 + $0x338] sm:$0xff] %v1818
          %1947 = vst [vmem:[%s388 + $0x340] sm:$0xff] %v1819
          %1948 = vst [vmem:[%s388 + $0x348] sm:$0xff] %v1820
          %1949 = vst [vmem:[%s388 + $0x350] sm:$0xff] %v1821
          %1950 = vst [vmem:[%s388 + $0x358] sm:$0xff] %v1822
          %1951 = vst [vmem:[%s388 + $0x360] sm:$0xff] %v1823
          %1952 = vst [vmem:[%s388 + $0x368] sm:$0xff] %v1824
          %1953 = vst [vmem:[%s388 + $0x370] sm:$0xff] %v1825
          %1954 = vst [vmem:[%s388 + $0x378] sm:$0xff] %v1826
          %1955 = vst [vmem:[%s388 + $0x380] sm:$0xff] %v1827
          %1956 = vst [vmem:[%s388 + $0x388] sm:$0xff] %v1828
          %1957 = vst [vmem:[%s388 + $0x390] sm:$0xff] %v1829
          %1958 = vst [vmem:[%s388 + $0x398] sm:$0xff] %v1830
          %1959 = vst [vmem:[%s388 + $0x3a0] sm:$0xff] %v1831
          %1960 = vst [vmem:[%s388 + $0x3a8] sm:$0xff] %v1832
          %1961 = vst [vmem:[%s388 + $0x3b0] sm:$0xff] %v1833
          %1962 = vst [vmem:[%s388 + $0x3b8] sm:$0xff] %v1834
          %1963 = vst [vmem:[%s388 + $0x3c0] sm:$0xff] %v1835
          %1964 = vst [vmem:[%s388 + $0x3c8] sm:$0xff] %v1836
          %1965 = vst [vmem:[%s388 + $0x3d0] sm:$0xff] %v1837
          %1966 = vst [vmem:[%s388 + $0x3d8] sm:$0xff] %v1838
          %1967 = vst [vmem:[%s388 + $0x3e0] sm:$0xff] %v1839
          %1968 = vst [vmem:[%s388 + $0x3e8] sm:$0xff] %v1840
          %1969 = vst [vmem:[%s388 + $0x3f0] sm:$0xff] %v1841
          %1970 = vst [vmem:[%s388 + $0x3f8] sm:$0xff] %v1842
        $region77: #{generator_forward.17} parent=64 // pred_fallthru
          _
        %s1971 = smul.u32 32, %s18
        %s1972 = smul.u32 4, %s19
        %p1973 = scmp.lt.s32.totalorder %s1971, 63
        %s1974 = scalar_select %p1973, %s1971, 63
        %p1975 = scmp.lt.s32.totalorder %s1972, 3
        %s1976 = scalar_select %p1975, %s1972, 3
        %s1977 = smul.addr %s1974, 4
        %s1978 = sadd.s32 %s1976, %s1977
        %s1979 = smul.addr %s1978, 8
        %s1980 = scalar_lea.vmem %s2, %s1979
        // Predicated region
        $region78: #{generator_forward.17} parent=64 // pred_check
          %p1981 = pneg %p108
        $region79: #{generator_forward.17} parent=64 // pred_check_branch
          %1983 = sbr.rel (%p1981) target = $region81
        $region80: #{generator_forward.17} parent=64 // pred_region
          %s1984 = smul.u32 32, %s18
          %s1985 = smul.u32 4, %s19
        $region81: #{generator_forward.17} parent=64 // pred_fallthru
          _
      $region65: #{generator_forward.17} parent=5 // pred_fallthru
        _
      %p1986 = scmp.le.s32.totalorder 2, %s8
      // Predicated region
      $region82: #{generator_forward.17} parent=5 // pred_check
        %p1987 = pneg %p1986
      $region83: #{generator_forward.17} parent=5 // pred_check_branch
        %1989 = sbr.rel (%p1987) target = $region85
      $region84: #{generator_forward.17} parent=5 // pred_region
        %s1990 = ssub.s32 %s8, 2
        // Predicated region
        $region86: #{generator_forward.17} parent=84 // pred_check
          %p1991 = pneg %p114
        $region87: #{generator_forward.17} parent=84 // pred_check_branch
          %1993 = sbr.rel (%p1991) target = $region89
        $region88: #{generator_forward.17} parent=84 // pred_region
          %s1994 = smul.u32 32, %s21
          %s1995 = smul.u32 4, %s22
          %p1996 = scmp.lt.s32.totalorder %s1994, 63
          %s1997 = scalar_select %p1996, %s1994, 63
          %p1998 = scmp.lt.s32.totalorder %s1995, 3
          %s1999 = scalar_select %p1998, %s1995, 3
          %s2000 = smul.addr %s1997, 4
          %s2001 = sadd.s32 %s1999, %s2000
          %s2002 = smul.addr %s2001, 8
          %s2003 = scalar_lea.vmem %s2, %s2002
        $region89: #{generator_forward.17} parent=84 // pred_fallthru
          _
      $region85: #{generator_forward.17} parent=5 // pred_fallthru
        _
    $region6: #{generator_forward.17} parent=1 // loop_footer
      %s12 = sadd.s32 1, %s8
    $region7: #{generator_forward.17} parent=1 // loop_footer_branch
      %7 = sbr.rel target = $region3
    $region8: #{generator_forward.17} parent=1 // loop_exit
      _

</llo_original>
